<compile_context>
chip_gen: v7x
topology: tpu7x:2x2x1
jax: 0.10.0
libtpu: 0.0.40
codegen_flags: <defaults>
</compile_context>

<pallas_src>
import functools

import jax
import jax.numpy as jnp
from jax import lax
from jax.experimental import pallas as pl
from jax.experimental.pallas import tpu as pltpu


def _attention_kernel(n_q_heads, n_kv_heads, head_size,
                      x_ref, wqkv_ref, bqkv_ref, wo_ref, bo_ref,
                      cos_ref, sin_e_ref, sin_o_ref, o_ref):
    S = x_ref.shape[1]
    group = n_q_heads // n_kv_heads
    dq = n_q_heads * head_size
    dkv = n_kv_heads * head_size

    x = x_ref[0]                                                    # (S, D) bf16

    # ---- fused QKV projection (bf16 MXU, f32 accumulate, f32 bias) ---------------
    # wq / bq were pre-scaled by 1/sqrt(head_size) on the host.
    qkv = jnp.dot(x, wqkv_ref[...],
                  preferred_element_type=jnp.float32) + bqkv_ref[...]   # (S, dq+2*dkv)
    q = qkv[:, :dq]
    k = qkv[:, dq:dq + dkv]
    v = qkv[:, dq + dkv:]

    # ---- RoPE via XLU lane rolls (f32), then one bf16 cast per tensor -------------
    #   out[2i]   = t[2i]   * cos[i] - t[2i+1] * sin[i]
    #   out[2i+1] = t[2i+1] * cos[i] + t[2i]   * sin[i]
    # cos_ref   : (cos_0, cos_0, cos_1, cos_1, ...) tiled per q head
    # sin_e_ref : (-sin_0, 0, -sin_1, 0, ...)  pairs with the "next element" roll
    # sin_o_ref : (0, +sin_0, 0, +sin_1, ...)  pairs with the "prev element" roll
    # Pair/head boundaries are never crossed: the wrapped lanes always multiply a
    # zero entry of the sin tables.
    def rope(t, c, se, so):
        w = t.shape[-1]
        t_next = pltpu.roll(t, w - 1, axis=1)    # == roll by -1: out[i] = t[i+1]
        t_prev = pltpu.roll(t, 1, axis=1)        #                out[i] = t[i-1]
        return t * c + t_next * se + t_prev * so

    # k-width tables are free aligned prefix slices of the q-width tables.
    q = rope(q, cos_ref[...], sin_e_ref[...], sin_o_ref[...]).astype(jnp.bfloat16)
    k = rope(k, cos_ref[:, :dkv], sin_e_ref[:, :dkv],
             sin_o_ref[:, :dkv]).astype(jnp.bfloat16)
    v = v.astype(jnp.bfloat16)

    # ---- causal mask built directly at (group*S, S): no concat copy ---------------
    row = lax.broadcasted_iota(jnp.int32, (group * S, S), 0)
    col = lax.broadcasted_iota(jnp.int32, (group * S, S), 1)
    row = (row & (S - 1)) if (S & (S - 1)) == 0 else (row % S)
    mask_g = jnp.where(col > row, -1e30, 0.0).astype(jnp.float32)

    # ---- GQA attention: all q heads sharing a kv head in one matmul ---------------
    head_out = [None] * n_q_heads
    for j in range(n_kv_heads):
        k_j = k[:, j * head_size:(j + 1) * head_size]                    # (S, hd) bf16
        v_j = v[:, j * head_size:(j + 1) * head_size]                    # (S, hd) bf16
        # q heads h with h % n_kv_heads == j, stacked along rows -> (group*S, hd)
        q_g = jnp.concatenate(
            [q[:, (j + g * n_kv_heads) * head_size:
                  (j + g * n_kv_heads + 1) * head_size] for g in range(group)],
            axis=0)
        s = lax.dot_general(q_g, k_j, (((1,), (1,)), ((), ())),
                            preferred_element_type=jnp.float32)          # (group*S, S)
        s = s + mask_g
        m = jnp.max(s, axis=-1, keepdims=True)
        p = jnp.exp(s - m)
        l = jnp.sum(p, axis=-1, keepdims=True)
        attn = (p * pl.reciprocal(l, approx=True)).astype(jnp.bfloat16)  # EUP recip
        o_g = jnp.dot(attn, v_j,
                      preferred_element_type=jnp.float32).astype(jnp.bfloat16)
        for g in range(group):
            head_out[j + g * n_kv_heads] = o_g[g * S:(g + 1) * S, :]

    # ---- one lane-dense (S, D) bf16 slab, then output projection ------------------
    o_cat = jnp.concatenate(head_out, axis=-1)                           # (S, D) bf16
    o_ref[0] = (jnp.dot(o_cat, wo_ref[...],
                        preferred_element_type=jnp.float32) + bo_ref[...])


def _interleave(a, b):
    """(S, n), (S, n) -> (S, 2n): a at even feature positions, b at odd."""
    return jnp.stack([a, b], axis=-1).reshape(a.shape[0], -1)


def attention_forward(x, params, cos, sin, n_q_heads, n_kv_heads):
    """x: (B, S, D) f32; cos/sin: (S, head_size//2) f32 (llama freqs_cis as cos/sin)."""
    B, S, D = x.shape
    head_size = D // n_q_heads
    dq = n_q_heads * head_size
    dkv = n_kv_heads * head_size
    wq, bq, wk, bk, wv, bv, wo, bo = params
    inv_dk = 1.0 / (head_size ** 0.5)

    # Fuse QKV weights/biases; fold the score scale into the q projection
    # (RoPE is a per-pair rotation, so the scale commutes with it).
    wqkv = jnp.concatenate([wq * inv_dk, wk, wv], axis=1)                 # (D, dq+2*dkv)
    bqkv = jnp.concatenate([bq * inv_dk, bk, bv]).reshape(1, -1)          # (1, dq+2*dkv)

    # Host-side RoPE tables at q-width; k-width tables are prefix slices in-kernel.
    zeros = jnp.zeros_like(sin)
    cos_i = jnp.tile(_interleave(cos, cos), (1, n_q_heads))               # (S, dq)
    sin_e = jnp.tile(_interleave(-sin, zeros), (1, n_q_heads))            # (S, dq)
    sin_o = jnp.tile(_interleave(zeros, sin), (1, n_q_heads))             # (S, dq)

    bf = jnp.bfloat16
    kernel = functools.partial(_attention_kernel, n_q_heads, n_kv_heads, head_size)

    # TODO(synk): at production D add pipeline_mode=pl.Buffered(1) to the constant-index
    # weight/table specs (single-buffer them) and flash-block the kv axis for large S.
    out = pl.pallas_call(
        kernel,
        out_shape=jax.ShapeDtypeStruct((B, S, D), jnp.float32),
        grid_spec=pltpu.PrefetchScalarGridSpec(
            num_scalar_prefetch=0,
            grid=(B,),
            in_specs=[
                pl.BlockSpec((1, S, D), lambda b: (b, 0, 0)),        # x (per-batch, bf16)
                pl.BlockSpec((D, dq + 2 * dkv), lambda b: (0, 0)),   # wqkv (bf16, q pre-scaled)
                pl.BlockSpec((1, dq + 2 * dkv), lambda b: (0, 0)),   # bqkv (f32)
                pl.BlockSpec((D, D), lambda b: (0, 0)),              # wo (bf16)
                pl.BlockSpec((1, D), lambda b: (0, 0)),              # bo (f32)
                pl.BlockSpec((S, dq), lambda b: (0, 0)),             # cos (interleaved, tiled)
                pl.BlockSpec((S, dq), lambda b: (0, 0)),             # -sin @ even positions
                pl.BlockSpec((S, dq), lambda b: (0, 0)),             # +sin @ odd positions
            ],
            out_specs=pl.BlockSpec((1, S, D), lambda b: (b, 0, 0)),
        ),
        compiler_params=pltpu.CompilerParams(
            dimension_semantics=("parallel",),
            vmem_limit_bytes=32 * 1024 * 1024),
    )(x.astype(bf), wqkv.astype(bf), bqkv, wo.astype(bf), bo.reshape(1, -1),
      cos_i, sin_e, sin_o)
    return out


def ref_attention(x, params, cos, sin, n_q_heads, n_kv_heads):
    """Pure-JAX reference matching the PyTorch forward (same bf16-operand / f32-acc
    precision policy, but scores scaled at softmax time exactly as in the module)."""
    wq, bq, wk, bk, wv, bv, wo, bo = params
    B, S, D = x.shape
    hd = D // n_q_heads
    bf = jnp.bfloat16
    xb = x.astype(bf)
    q = jnp.dot(xb, wq.astype(bf), preferred_element_type=jnp.float32) + bq
    k = jnp.dot(xb, wk.astype(bf), preferred_element_type=jnp.float32) + bk
    v = jnp.dot(xb, wv.astype(bf), preferred_element_type=jnp.float32) + bv

    def rope(t, n_heads):
        t = t.reshape(B, S, n_heads, hd // 2, 2)
        x0, x1 = t[..., 0], t[..., 1]
        c = cos[None, :, None, :]
        s = sin[None, :, None, :]
        o = jnp.stack([x0 * c - x1 * s, x0 * s + x1 * c], axis=-1)
        return o.reshape(B, S, n_heads * hd)

    q = rope(q, n_q_heads).reshape(B, S, n_q_heads, hd).transpose(0, 2, 1, 3)
    k = rope(k, n_kv_heads).reshape(B, S, n_kv_heads, hd).transpose(0, 2, 1, 3)
    v = v.reshape(B, S, n_kv_heads, hd).transpose(0, 2, 1, 3)
    idx = jnp.arange(n_q_heads) % n_kv_heads            # torch repeat order
    k, v = k[:, idx], v[:, idx]
    mask = jnp.where(jnp.arange(S)[None, :] > jnp.arange(S)[:, None], -1e30, 0.0)
    s = jnp.einsum('bhqd,bhkd->bhqk', q.astype(bf), k.astype(bf),
                   preferred_element_type=jnp.float32) / (hd ** 0.5) + mask
    p = jax.nn.softmax(s, axis=-1)
    o = jnp.einsum('bhqk,bhkd->bhqd', p.astype(bf), v.astype(bf),
                   preferred_element_type=jnp.float32)
    o = o.transpose(0, 2, 1, 3).reshape(B, S, D)
    return jnp.dot(o.astype(bf), wo.astype(bf), preferred_element_type=jnp.float32) + bo


if __name__ == "__main__":
    # head_size = 128 so every per-head slice / concat / MXU contraction is lane-aligned.
    B, S, D = 2, 128, 512
    n_q_heads, n_kv_heads = 4, 2
    hd = D // n_q_heads

    key = jax.random.PRNGKey(0)
    ks = jax.random.split(key, 9)
    scale = 0.05
    x = jax.random.normal(ks[0], (B, S, D), jnp.float32)
    wq = jax.random.normal(ks[1], (D, n_q_heads * hd), jnp.float32) * scale
    bq = jax.random.normal(ks[2], (n_q_heads * hd,), jnp.float32) * scale
    wk = jax.random.normal(ks[3], (D, n_kv_heads * hd), jnp.float32) * scale
    bk = jax.random.normal(ks[4], (n_kv_heads * hd,), jnp.float32) * scale
    wv = jax.random.normal(ks[5], (D, n_kv_heads * hd), jnp.float32) * scale
    bv = jax.random.normal(ks[6], (n_kv_heads * hd,), jnp.float32) * scale
    wo = jax.random.normal(ks[7], (D, D), jnp.float32) * scale
    bo = jax.random.normal(ks[8], (D,), jnp.float32) * scale
    params = (wq, bq, wk, bk, wv, bv, wo, bo)

    # llama-style freqs_cis represented as cos/sin of shape (S, hd//2)
    inv_freq = 1.0 / (10000.0 ** (jnp.arange(0, hd, 2, dtype=jnp.float32) / hd))
    t = jnp.arange(S, dtype=jnp.float32)
    angles = jnp.outer(t, inv_freq)
    cos, sin = jnp.cos(angles), jnp.sin(angles)

    out = attention_forward(x, params, cos, sin, n_q_heads, n_kv_heads)
    out = jax.block_until_ready(out)

    ref = ref_attention(x, params, cos, sin, n_q_heads, n_kv_heads)
    assert out.shape == (B, S, D)
    # Tolerance covers bf16 rounding-order differences from the host-side score-scale
    # folding plus the EUP approximate reciprocal in the softmax normalizer.
    err = float(jnp.max(jnp.abs(out - ref)))
    assert jnp.allclose(out, ref, atol=2e-2, rtol=2e-2), err
    print("KERNEL_OK")
</pallas_src>

<mosaic_0001>
module attributes {stable_mosaic.version = 11 : i64} {
  func.func @_attention_kernel(%arg0: i32, %arg1: memref<1x128x512xbf16, #tpu.memory_space<vmem>>, %arg2: memref<512x1024xbf16, #tpu.memory_space<vmem>>, %arg3: memref<1x1024xf32, #tpu.memory_space<vmem>>, %arg4: memref<512x512xbf16, #tpu.memory_space<vmem>>, %arg5: memref<1x512xf32, #tpu.memory_space<vmem>>, %arg6: memref<128x512xf32, #tpu.memory_space<vmem>>, %arg7: memref<128x512xf32, #tpu.memory_space<vmem>>, %arg8: memref<128x512xf32, #tpu.memory_space<vmem>>, %arg9: memref<1x128x512xf32, #tpu.memory_space<vmem>>) attributes {dimension_semantics = [#tpu.dimension_semantics<parallel>], iteration_bounds = array<i64: 2>, scalar_prefetch = 0 : i64, scratch_operands = 0 : i64, tpu.core_type = #tpu.core_type<tc>, window_params = [{transform_indices = @transform_0, window_bounds = array<i64: 1, 128, 512>}, {pipeline_mode = #tpu.pipeline_mode<synchronous>, transform_indices = @transform_1, window_bounds = array<i64: 512, 1024>}, {pipeline_mode = #tpu.pipeline_mode<synchronous>, transform_indices = @transform_2, window_bounds = array<i64: 1, 1024>}, {pipeline_mode = #tpu.pipeline_mode<synchronous>, transform_indices = @transform_3, window_bounds = array<i64: 512, 512>}, {pipeline_mode = #tpu.pipeline_mode<synchronous>, transform_indices = @transform_4, window_bounds = array<i64: 1, 512>}, {pipeline_mode = #tpu.pipeline_mode<synchronous>, transform_indices = @transform_5, window_bounds = array<i64: 128, 512>}, {pipeline_mode = #tpu.pipeline_mode<synchronous>, transform_indices = @transform_6, window_bounds = array<i64: 128, 512>}, {pipeline_mode = #tpu.pipeline_mode<synchronous>, transform_indices = @transform_7, window_bounds = array<i64: 128, 512>}, {transform_indices = @transform_8, window_bounds = array<i64: 1, 128, 512>}]} {
    %c0 = arith.constant 0 : index
    %c0_0 = arith.constant 0 : index
    %c0_1 = arith.constant 0 : index
    %0 = vector.load %arg1[%c0, %c0_0, %c0_1] : memref<1x128x512xbf16, #tpu.memory_space<vmem>>, vector<1x128x512xbf16>
    %1 = vector.shape_cast %0 : vector<1x128x512xbf16> to vector<128x512xbf16>
    %c0_2 = arith.constant 0 : index
    %c0_3 = arith.constant 0 : index
    %2 = vector.load %arg2[%c0_2, %c0_3] : memref<512x1024xbf16, #tpu.memory_space<vmem>>, vector<512x1024xbf16>
    %cst = arith.constant dense<0.000000e+00> : vector<128x1024xf32>
    %3 = tpu.matmul %1, %2, %cst {dimension_numbers = #tpu.dot_dimension_numbers<[1], [0], [0], [1], [0, 0, 1, 1], [], []>} : vector<128x512xbf16>, vector<512x1024xbf16>, vector<128x1024xf32> -> vector<128x1024xf32>
    %c0_4 = arith.constant 0 : index
    %c0_5 = arith.constant 0 : index
    %4 = vector.load %arg3[%c0_4, %c0_5] : memref<1x1024xf32, #tpu.memory_space<vmem>>, vector<1x1024xf32>
    %5 = vector.broadcast %4 : vector<1x1024xf32> to vector<128x1024xf32>
    %6 = arith.addf %3, %5 : vector<128x1024xf32>
    %7 = vector.extract_strided_slice %6 {offsets = [0, 0], sizes = [128, 512], strides = [1, 1]} : vector<128x1024xf32> to vector<128x512xf32>
    %8 = vector.extract_strided_slice %6 {offsets = [0, 512], sizes = [128, 256], strides = [1, 1]} : vector<128x1024xf32> to vector<128x256xf32>
    %9 = vector.extract_strided_slice %6 {offsets = [0, 768], sizes = [128, 256], strides = [1, 1]} : vector<128x1024xf32> to vector<128x256xf32>
    %c0_6 = arith.constant 0 : index
    %c0_7 = arith.constant 0 : index
    %10 = vector.load %arg6[%c0_6, %c0_7] : memref<128x512xf32, #tpu.memory_space<vmem>>, vector<128x512xf32>
    %c0_8 = arith.constant 0 : index
    %c0_9 = arith.constant 0 : index
    %11 = vector.load %arg7[%c0_8, %c0_9] : memref<128x512xf32, #tpu.memory_space<vmem>>, vector<128x512xf32>
    %c0_10 = arith.constant 0 : index
    %c0_11 = arith.constant 0 : index
    %12 = vector.load %arg8[%c0_10, %c0_11] : memref<128x512xf32, #tpu.memory_space<vmem>>, vector<128x512xf32>
    %c511_i32 = arith.constant 511 : i32
    %13 = tpu.dynamic_rotate %7 by %c511_i32 dim 1 : vector<128x512xf32>, i32 -> vector<128x512xf32>
    %c1_i32 = arith.constant 1 : i32
    %14 = tpu.dynamic_rotate %7 by %c1_i32 dim 1 : vector<128x512xf32>, i32 -> vector<128x512xf32>
    %15 = arith.mulf %7, %10 : vector<128x512xf32>
    %16 = arith.mulf %13, %11 : vector<128x512xf32>
    %17 = arith.addf %15, %16 : vector<128x512xf32>
    %18 = arith.mulf %14, %12 : vector<128x512xf32>
    %19 = arith.addf %17, %18 : vector<128x512xf32>
    %20 = arith.truncf %19 : vector<128x512xf32> to vector<128x512xbf16>
    %c0_12 = arith.constant 0 : index
    %c0_13 = arith.constant 0 : index
    %21 = vector.load %arg6[%c0_12, %c0_13] : memref<128x512xf32, #tpu.memory_space<vmem>>, vector<128x256xf32>
    %c0_14 = arith.constant 0 : index
    %c0_15 = arith.constant 0 : index
    %22 = vector.load %arg7[%c0_14, %c0_15] : memref<128x512xf32, #tpu.memory_space<vmem>>, vector<128x256xf32>
    %c0_16 = arith.constant 0 : index
    %c0_17 = arith.constant 0 : index
    %23 = vector.load %arg8[%c0_16, %c0_17] : memref<128x512xf32, #tpu.memory_space<vmem>>, vector<128x256xf32>
    %c255_i32 = arith.constant 255 : i32
    %24 = tpu.dynamic_rotate %8 by %c255_i32 dim 1 : vector<128x256xf32>, i32 -> vector<128x256xf32>
    %c1_i32_18 = arith.constant 1 : i32
    %25 = tpu.dynamic_rotate %8 by %c1_i32_18 dim 1 : vector<128x256xf32>, i32 -> vector<128x256xf32>
    %26 = arith.mulf %8, %21 : vector<128x256xf32>
    %27 = arith.mulf %24, %22 : vector<128x256xf32>
    %28 = arith.addf %26, %27 : vector<128x256xf32>
    %29 = arith.mulf %25, %23 : vector<128x256xf32>
    %30 = arith.addf %28, %29 : vector<128x256xf32>
    %31 = arith.truncf %30 : vector<128x256xf32> to vector<128x256xbf16>
    %32 = arith.truncf %9 : vector<128x256xf32> to vector<128x256xbf16>
    %33 = tpu.iota {dimensions = array<i32: 0>} : vector<256x128xi32>
    %34 = tpu.iota {dimensions = array<i32: 1>} : vector<256x128xi32>
    %c127_i32 = arith.constant 127 : i32
    %35 = vector.broadcast %c127_i32 : i32 to vector<256x128xi32>
    %36 = arith.andi %33, %35 : vector<256x128xi32>
    %37 = arith.cmpi sgt, %34, %36 : vector<256x128xi32>
    %cst_19 = arith.constant -1.000000e+30 : f32
    %cst_20 = arith.constant 0.000000e+00 : f32
    %38 = vector.broadcast %cst_19 : f32 to vector<256x128xf32>
    %39 = vector.broadcast %cst_20 : f32 to vector<256x128xf32>
    %40 = arith.select %37, %38, %39 : vector<256x128xi1>, vector<256x128xf32>
    %41 = vector.extract_strided_slice %31 {offsets = [0, 0], sizes = [128, 128], strides = [1, 1]} : vector<128x256xbf16> to vector<128x128xbf16>
    %42 = vector.extract_strided_slice %32 {offsets = [0, 0], sizes = [128, 128], strides = [1, 1]} : vector<128x256xbf16> to vector<128x128xbf16>
    %43 = vector.extract_strided_slice %20 {offsets = [0, 0], sizes = [128, 128], strides = [1, 1]} : vector<128x512xbf16> to vector<128x128xbf16>
    %44 = vector.extract_strided_slice %20 {offsets = [0, 256], sizes = [128, 128], strides = [1, 1]} : vector<128x512xbf16> to vector<128x128xbf16>
    %45 = tpu.concatenate %43, %44 in 0 : vector<128x128xbf16>, vector<128x128xbf16> -> vector<256x128xbf16>
    %cst_21 = arith.constant dense<0.000000e+00> : vector<256x128xf32>
    %46 = tpu.matmul %45, %41, %cst_21 {dimension_numbers = #tpu.dot_dimension_numbers<[1], [1], [0], [0], [0, 0, 1, 0], [], []>} : vector<256x128xbf16>, vector<128x128xbf16>, vector<256x128xf32> -> vector<256x128xf32>
    %47 = arith.addf %46, %40 : vector<256x128xf32>
    %cst_22 = arith.constant dense<0xFF800000> : vector<256xf32>
    %48 = vector.multi_reduction <maximumf>, %47, %cst_22 [1] : vector<256x128xf32> to vector<256xf32>
    %49 = vector.shape_cast %48 : vector<256xf32> to vector<256x1xf32>
    %50 = vector.broadcast %49 : vector<256x1xf32> to vector<256x128xf32>
    %51 = arith.subf %47, %50 : vector<256x128xf32>
    %52 = math.exp %51 : vector<256x128xf32>
    %cst_23 = arith.constant dense<0.000000e+00> : vector<256xf32>
    %53 = vector.multi_reduction <add>, %52, %cst_23 [1] : vector<256x128xf32> to vector<256xf32>
    %54 = vector.shape_cast %53 : vector<256xf32> to vector<256x1xf32>
    %55 = tpu.reciprocal %54 {approx = true} : vector<256x1xf32> -> vector<256x1xf32>
    %56 = vector.broadcast %55 : vector<256x1xf32> to vector<256x128xf32>
    %57 = arith.mulf %52, %56 : vector<256x128xf32>
    %58 = arith.truncf %57 : vector<256x128xf32> to vector<256x128xbf16>
    %cst_24 = arith.constant dense<0.000000e+00> : vector<256x128xf32>
    %59 = tpu.matmul %58, %42, %cst_24 {dimension_numbers = #tpu.dot_dimension_numbers<[1], [0], [0], [1], [0, 0, 1, 1], [], []>} : vector<256x128xbf16>, vector<128x128xbf16>, vector<256x128xf32> -> vector<256x128xf32>
    %60 = arith.truncf %59 : vector<256x128xf32> to vector<256x128xbf16>
    %61 = vector.extract_strided_slice %60 {offsets = [0, 0], sizes = [128, 128], strides = [1, 1]} : vector<256x128xbf16> to vector<128x128xbf16>
    %62 = vector.extract_strided_slice %60 {offsets = [128, 0], sizes = [128, 128], strides = [1, 1]} : vector<256x128xbf16> to vector<128x128xbf16>
    %63 = vector.extract_strided_slice %31 {offsets = [0, 128], sizes = [128, 128], strides = [1, 1]} : vector<128x256xbf16> to vector<128x128xbf16>
    %64 = vector.extract_strided_slice %32 {offsets = [0, 128], sizes = [128, 128], strides = [1, 1]} : vector<128x256xbf16> to vector<128x128xbf16>
    %65 = vector.extract_strided_slice %20 {offsets = [0, 128], sizes = [128, 128], strides = [1, 1]} : vector<128x512xbf16> to vector<128x128xbf16>
    %66 = vector.extract_strided_slice %20 {offsets = [0, 384], sizes = [128, 128], strides = [1, 1]} : vector<128x512xbf16> to vector<128x128xbf16>
    %67 = tpu.concatenate %65, %66 in 0 : vector<128x128xbf16>, vector<128x128xbf16> -> vector<256x128xbf16>
    %cst_25 = arith.constant dense<0.000000e+00> : vector<256x128xf32>
    %68 = tpu.matmul %67, %63, %cst_25 {dimension_numbers = #tpu.dot_dimension_numbers<[1], [1], [0], [0], [0, 0, 1, 0], [], []>} : vector<256x128xbf16>, vector<128x128xbf16>, vector<256x128xf32> -> vector<256x128xf32>
    %69 = arith.addf %68, %40 : vector<256x128xf32>
    %cst_26 = arith.constant dense<0xFF800000> : vector<256xf32>
    %70 = vector.multi_reduction <maximumf>, %69, %cst_26 [1] : vector<256x128xf32> to vector<256xf32>
    %71 = vector.shape_cast %70 : vector<256xf32> to vector<256x1xf32>
    %72 = vector.broadcast %71 : vector<256x1xf32> to vector<256x128xf32>
    %73 = arith.subf %69, %72 : vector<256x128xf32>
    %74 = math.exp %73 : vector<256x128xf32>
    %cst_27 = arith.constant dense<0.000000e+00> : vector<256xf32>
    %75 = vector.multi_reduction <add>, %74, %cst_27 [1] : vector<256x128xf32> to vector<256xf32>
    %76 = vector.shape_cast %75 : vector<256xf32> to vector<256x1xf32>
    %77 = tpu.reciprocal %76 {approx = true} : vector<256x1xf32> -> vector<256x1xf32>
    %78 = vector.broadcast %77 : vector<256x1xf32> to vector<256x128xf32>
    %79 = arith.mulf %74, %78 : vector<256x128xf32>
    %80 = arith.truncf %79 : vector<256x128xf32> to vector<256x128xbf16>
    %cst_28 = arith.constant dense<0.000000e+00> : vector<256x128xf32>
    %81 = tpu.matmul %80, %64, %cst_28 {dimension_numbers = #tpu.dot_dimension_numbers<[1], [0], [0], [1], [0, 0, 1, 1], [], []>} : vector<256x128xbf16>, vector<128x128xbf16>, vector<256x128xf32> -> vector<256x128xf32>
    %82 = arith.truncf %81 : vector<256x128xf32> to vector<256x128xbf16>
    %83 = vector.extract_strided_slice %82 {offsets = [0, 0], sizes = [128, 128], strides = [1, 1]} : vector<256x128xbf16> to vector<128x128xbf16>
    %84 = vector.extract_strided_slice %82 {offsets = [128, 0], sizes = [128, 128], strides = [1, 1]} : vector<256x128xbf16> to vector<128x128xbf16>
    %85 = tpu.concatenate %61, %83, %62, %84 in 1 : vector<128x128xbf16>, vector<128x128xbf16>, vector<128x128xbf16>, vector<128x128xbf16> -> vector<128x512xbf16>
    %c0_29 = arith.constant 0 : index
    %c0_30 = arith.constant 0 : index
    %86 = vector.load %arg4[%c0_29, %c0_30] : memref<512x512xbf16, #tpu.memory_space<vmem>>, vector<512x512xbf16>
    %cst_31 = arith.constant dense<0.000000e+00> : vector<128x512xf32>
    %87 = tpu.matmul %85, %86, %cst_31 {dimension_numbers = #tpu.dot_dimension_numbers<[1], [0], [0], [1], [0, 0, 1, 1], [], []>} : vector<128x512xbf16>, vector<512x512xbf16>, vector<128x512xf32> -> vector<128x512xf32>
    %c0_32 = arith.constant 0 : index
    %c0_33 = arith.constant 0 : index
    %88 = vector.load %arg5[%c0_32, %c0_33] : memref<1x512xf32, #tpu.memory_space<vmem>>, vector<1x512xf32>
    %89 = vector.broadcast %88 : vector<1x512xf32> to vector<128x512xf32>
    %90 = arith.addf %87, %89 : vector<128x512xf32>
    %c0_34 = arith.constant 0 : index
    %c0_35 = arith.constant 0 : index
    %c0_36 = arith.constant 0 : index
    %91 = vector.load %arg9[%c0_34, %c0_35, %c0_36] : memref<1x128x512xf32, #tpu.memory_space<vmem>>, vector<1x128x512xf32>
    %92 = vector.shape_cast %91 : vector<1x128x512xf32> to vector<128x512xf32>
    %93 = vector.shape_cast %90 : vector<128x512xf32> to vector<1x128x512xf32>
    tpu.vector_store %arg9[%c0_34, %c0_35, %c0_36], %93 {strides = array<i32>} : memref<1x128x512xf32, #tpu.memory_space<vmem>>, vector<1x128x512xf32>,
    return
  }
  func.func @transform_0(%arg0: i32) -> (i32, i32, i32) {
    %c0_i32 = arith.constant 0 : i32
    %c0_i32_0 = arith.constant 0 : i32
    %c0_i32_1 = arith.constant 0 : i32
    return %arg0, %c0_i32, %c0_i32_0 : i32, i32, i32
  }
  func.func @transform_1(%arg0: i32) -> (i32, i32) {
    %c0_i32 = arith.constant 0 : i32
    %c0_i32_0 = arith.constant 0 : i32
    %c0_i32_1 = arith.constant 0 : i32
    return %c0_i32, %c0_i32_0 : i32, i32
  }
  func.func @transform_2(%arg0: i32) -> (i32, i32) {
    %c0_i32 = arith.constant 0 : i32
    %c0_i32_0 = arith.constant 0 : i32
    %c0_i32_1 = arith.constant 0 : i32
    return %c0_i32, %c0_i32_0 : i32, i32
  }
  func.func @transform_3(%arg0: i32) -> (i32, i32) {
    %c0_i32 = arith.constant 0 : i32
    %c0_i32_0 = arith.constant 0 : i32
    %c0_i32_1 = arith.constant 0 : i32
    return %c0_i32, %c0_i32_0 : i32, i32
  }
  func.func @transform_4(%arg0: i32) -> (i32, i32) {
    %c0_i32 = arith.constant 0 : i32
    %c0_i32_0 = arith.constant 0 : i32
    %c0_i32_1 = arith.constant 0 : i32
    return %c0_i32, %c0_i32_0 : i32, i32
  }
  func.func @transform_5(%arg0: i32) -> (i32, i32) {
    %c0_i32 = arith.constant 0 : i32
    %c0_i32_0 = arith.constant 0 : i32
    %c0_i32_1 = arith.constant 0 : i32
    return %c0_i32, %c0_i32_0 : i32, i32
  }
  func.func @transform_6(%arg0: i32) -> (i32, i32) {
    %c0_i32 = arith.constant 0 : i32
    %c0_i32_0 = arith.constant 0 : i32
    %c0_i32_1 = arith.constant 0 : i32
    return %c0_i32, %c0_i32_0 : i32, i32
  }
  func.func @transform_7(%arg0: i32) -> (i32, i32) {
    %c0_i32 = arith.constant 0 : i32
    %c0_i32_0 = arith.constant 0 : i32
    %c0_i32_1 = arith.constant 0 : i32
    return %c0_i32, %c0_i32_0 : i32, i32
  }
  func.func @transform_8(%arg0: i32) -> (i32, i32, i32) {
    %c0_i32 = arith.constant 0 : i32
    %c0_i32_0 = arith.constant 0 : i32
    %c0_i32_1 = arith.constant 0 : i32
    return %arg0, %c0_i32, %c0_i32_0 : i32, i32, i32
  }
}

</mosaic_0001>

<llo_original>
// kernel: tpu_custom_call.1
$region0: #{tpu_custom_call.1}
  #allocation0 [shape = 'u32[]', space=smem, size = 0x4, offset = 0x4, fixed_abs, tag = 'smem constant byte address 0x4 - core index']
  #allocation1 [shape = 'u32[144,128]{1,0:T(1,128)}', space=vmem, size = 0x12000, scoped, tag = 'internal scratch']
  %s0 = inlined_call_operand.hbm [shape: bf16[2,128,512], index: 0, kind: input, shape index: {}]
  %s1 = inlined_call_operand.hbm [shape: bf16[512,1024], index: 1, kind: input, shape index: {}]
  %s2 = inlined_call_operand.hbm [shape: f32[1,1024], index: 2, kind: input, shape index: {}]
  %s3 = inlined_call_operand.hbm [shape: bf16[512,512], index: 3, kind: input, shape index: {}]
  %s4 = inlined_call_operand.vmem [shape: f32[1,512], index: 4, kind: input, shape index: {}]
  %s5 = inlined_call_operand.hbm [shape: f32[128,512], index: 5, kind: input, shape index: {}]
  %s6 = inlined_call_operand.hbm [shape: f32[128,512], index: 6, kind: input, shape index: {}]
  %s7 = inlined_call_operand.hbm [shape: f32[128,512], index: 7, kind: input, shape index: {}]
  %s8 = inlined_call_operand.hbm [shape: f32[2,128,512], index: 8, kind: output, shape index: {}]
  %s9 = sld [smem:[#allocation0]]
  $region93: #{tpu_custom_call.1} parent=0
    _
  %s11 = ssub.s32 1, %s9
  %s12 = scalar_select 0, %s11, %s9
  $region1: #{tpu_custom_call.1} parent=0
    #allocation2 [shape = 'u8[262144]{0}', space=vmem, size = 0x40000, scoped, tag = 'input window, operand 0']
    #allocation3 [shape = 's32[2]{0}', space=sflag, size = 0x8, scoped, tag = 'scoped memory for tpu_custom_call.1']
    #allocation4 [shape = 's32[2]{0}', space=sflag, size = 0x8, scoped, tag = 'scoped memory for tpu_custom_call.1']
    #allocation5 [shape = 'u8[1048576]{0}', space=vmem, size = 0x100000, scoped, tag = 'input window, operand 1, single buffered']
    #allocation6 [shape = 's32[1]{0}', space=sflag, size = 0x4, scoped, tag = 'scoped memory for tpu_custom_call.1']
    #allocation7 [shape = 'u8[4096]{0}', space=vmem, size = 0x1000, scoped, tag = 'input window, operand 2, single buffered']
    #allocation8 [shape = 'u8[524288]{0}', space=vmem, size = 0x80000, scoped, tag = 'input window, operand 3, single buffered']
    #allocation9 [shape = 's32[1]{0}', space=sflag, size = 0x4, scoped, tag = 'scoped memory for tpu_custom_call.1']
    #allocation10 [shape = 'u8[262144]{0}', space=vmem, size = 0x40000, scoped, tag = 'input window, operand 5, single buffered']
    #allocation11 [shape = 'u8[262144]{0}', space=vmem, size = 0x40000, scoped, tag = 'input window, operand 6, single buffered']
    #allocation12 [shape = 's32[1]{0}', space=sflag, size = 0x4, scoped, tag = 'scoped memory for tpu_custom_call.1']
    #allocation13 [shape = 'u8[262144]{0}', space=vmem, size = 0x40000, scoped, tag = 'input window, operand 7, single buffered']
    #allocation14 [shape = 'u8[524288]{0}', space=vmem, size = 0x80000, scoped, tag = 'output window, operand 0']
    %13 = vsyncpa [#allocation3], 0
    %s14 = scalar_lea.sflag [#allocation3], 1
    %15 = vsyncpa %s14, 0
    %16 = vsyncpa [#allocation6], 0
    %17 = vsyncpa [#allocation9], 0
    %18 = vsyncpa [#allocation12], 0
    %19 = vsyncpa [#allocation4], 0
    %s20 = scalar_lea.sflag [#allocation4], 1
    %21 = vsyncpa %s20, 0
    loop: start=0, step=1, limit=4
    $region2: #{tpu_custom_call.1} parent=1 // loop_pre_header
      _
    $region3: #{tpu_custom_call.1} parent=1 // loop_header
      %s23 = sphi 0, %s27
      %p24 = scmp.ge.s32.totalorder %s23, 4
      %s33 = sphi 0, %s35
      %s36 = sphi 0, %s33
      %s37 = sphi 0, %s36
      %s53 = sphi 0, %s37
      %s57 = sphi 0, %s57
      %s59 = sphi 0, %s57
      %s60 = sphi 0, %s59
      %s74 = sphi 0, %s60
      %s78 = sphi 0, %s78
      %s80 = sphi 0, %s78
      %s81 = sphi 0, %s80
      %s95 = sphi 0, %s81
      %s99 = sphi 0, %s99
      %s101 = sphi 0, %s99
      %s102 = sphi 0, %s101
      %s116 = sphi 0, %s102
      %s120 = sphi 0, %s120
      %s122 = sphi 0, %s120
      %s123 = sphi 0, %s122
      %s137 = sphi 0, %s123
      %s141 = sphi 0, %s141
      %s143 = sphi 0, %s141
      %s144 = sphi 0, %s143
      %s158 = sphi 0, %s144
      %s162 = sphi 0, %s162
      %s164 = sphi 0, %s162
      %s165 = sphi 0, %s164
      %s179 = sphi 0, %s165
      %s183 = sphi 0, %s183
      %s185 = sphi 0, %s183
      %s186 = sphi 0, %s185
      %s200 = sphi 0, %s186
      %s206 = sphi 0, %s208
      %s209 = sphi 0, %s206
      %s210 = sphi 0, %s209
      %s226 = sphi 0, %s210
    $region4: #{tpu_custom_call.1} parent=1 // loop_header_branch
      %26 = sbr.rel (%p24) target = $region8
    $region5: #{tpu_custom_call.1} parent=1 // loop_body
      %s28 = ssub.s32 %s23, 1
      %s29 = ssub.s32 %s23, 2
      %s30 = sadd.s32 %s23, 1
      %s31 = ssub.s32 %s23, %s30
      %p32 = scmp.eq.s32.totalorder %s31, 0
      %s34 = sadd.s32 %s33, 1
      %s35 = scalar_select %p32, %s33, %s34
      %p38 = pneg %p32
      %p39 = scmp.eq.s32.totalorder %s23, 1
      %p40 = por %p38, %p39
      %p41 = scmp.ne.s32.totalorder %s33, %s36
      %p42 = scmp.eq.s32.totalorder %s23, 0
      %p43 = por %p41, %p42
      %p44 = scmp.ne.s32.totalorder %s33, %s36
      %p45 = scmp.eq.s32.totalorder %s28, 1
      %p46 = por %p44, %p45
      %p47 = scmp.ne.s32.totalorder %s36, %s37
      %p48 = scmp.eq.s32.totalorder %s28, 0
      %p49 = por %p47, %p48
      %p50 = scmp.ne.s32.totalorder %s36, %s37
      %p51 = scmp.eq.s32.totalorder %s29, 1
      %p52 = por %p50, %p51
      %p54 = scmp.ne.s32.totalorder %s37, %s53
      %p55 = scmp.eq.s32.totalorder %s29, 0
      %p56 = por %p54, %p55
      %s58 = sadd.s32 %s57, 1
      %p61 = scmp.eq.s32.totalorder %s23, 1
      %p62 = scmp.ne.s32.totalorder %s57, %s59
      %p63 = scmp.eq.s32.totalorder %s23, 0
      %p64 = por %p62, %p63
      %p65 = scmp.ne.s32.totalorder %s57, %s59
      %p66 = scmp.eq.s32.totalorder %s28, 1
      %p67 = por %p65, %p66
      %p68 = scmp.ne.s32.totalorder %s59, %s60
      %p69 = scmp.eq.s32.totalorder %s28, 0
      %p70 = por %p68, %p69
      %p71 = scmp.ne.s32.totalorder %s59, %s60
      %p72 = scmp.eq.s32.totalorder %s29, 1
      %p73 = por %p71, %p72
      %p75 = scmp.ne.s32.totalorder %s60, %s74
      %p76 = scmp.eq.s32.totalorder %s29, 0
      %p77 = por %p75, %p76
      %s79 = sadd.s32 %s78, 1
      %p82 = scmp.eq.s32.totalorder %s23, 1
      %p83 = scmp.ne.s32.totalorder %s78, %s80
      %p84 = scmp.eq.s32.totalorder %s23, 0
      %p85 = por %p83, %p84
      %p86 = scmp.ne.s32.totalorder %s78, %s80
      %p87 = scmp.eq.s32.totalorder %s28, 1
      %p88 = por %p86, %p87
      %p89 = scmp.ne.s32.totalorder %s80, %s81
      %p90 = scmp.eq.s32.totalorder %s28, 0
      %p91 = por %p89, %p90
      %p92 = scmp.ne.s32.totalorder %s80, %s81
      %p93 = scmp.eq.s32.totalorder %s29, 1
      %p94 = por %p92, %p93
      %p96 = scmp.ne.s32.totalorder %s81, %s95
      %p97 = scmp.eq.s32.totalorder %s29, 0
      %p98 = por %p96, %p97
      %s100 = sadd.s32 %s99, 1
      %p103 = scmp.eq.s32.totalorder %s23, 1
      %p104 = scmp.ne.s32.totalorder %s99, %s101
      %p105 = scmp.eq.s32.totalorder %s23, 0
      %p106 = por %p104, %p105
      %p107 = scmp.ne.s32.totalorder %s99, %s101
      %p108 = scmp.eq.s32.totalorder %s28, 1
      %p109 = por %p107, %p108
      %p110 = scmp.ne.s32.totalorder %s101, %s102
      %p111 = scmp.eq.s32.totalorder %s28, 0
      %p112 = por %p110, %p111
      %p113 = scmp.ne.s32.totalorder %s101, %s102
      %p114 = scmp.eq.s32.totalorder %s29, 1
      %p115 = por %p113, %p114
      %p117 = scmp.ne.s32.totalorder %s102, %s116
      %p118 = scmp.eq.s32.totalorder %s29, 0
      %p119 = por %p117, %p118
      %s121 = sadd.s32 %s120, 1
      %p124 = scmp.eq.s32.totalorder %s23, 1
      %p125 = scmp.ne.s32.totalorder %s120, %s122
      %p126 = scmp.eq.s32.totalorder %s23, 0
      %p127 = por %p125, %p126
      %p128 = scmp.ne.s32.totalorder %s120, %s122
      %p129 = scmp.eq.s32.totalorder %s28, 1
      %p130 = por %p128, %p129
      %p131 = scmp.ne.s32.totalorder %s122, %s123
      %p132 = scmp.eq.s32.totalorder %s28, 0
      %p133 = por %p131, %p132
      %p134 = scmp.ne.s32.totalorder %s122, %s123
      %p135 = scmp.eq.s32.totalorder %s29, 1
      %p136 = por %p134, %p135
      %p138 = scmp.ne.s32.totalorder %s123, %s137
      %p139 = scmp.eq.s32.totalorder %s29, 0
      %p140 = por %p138, %p139
      %s142 = sadd.s32 %s141, 1
      %p145 = scmp.eq.s32.totalorder %s23, 1
      %p146 = scmp.ne.s32.totalorder %s141, %s143
      %p147 = scmp.eq.s32.totalorder %s23, 0
      %p148 = por %p146, %p147
      %p149 = scmp.ne.s32.totalorder %s141, %s143
      %p150 = scmp.eq.s32.totalorder %s28, 1
      %p151 = por %p149, %p150
      %p152 = scmp.ne.s32.totalorder %s143, %s144
      %p153 = scmp.eq.s32.totalorder %s28, 0
      %p154 = por %p152, %p153
      %p155 = scmp.ne.s32.totalorder %s143, %s144
      %p156 = scmp.eq.s32.totalorder %s29, 1
      %p157 = por %p155, %p156
      %p159 = scmp.ne.s32.totalorder %s144, %s158
      %p160 = scmp.eq.s32.totalorder %s29, 0
      %p161 = por %p159, %p160
      %s163 = sadd.s32 %s162, 1
      %p166 = scmp.eq.s32.totalorder %s23, 1
      %p167 = scmp.ne.s32.totalorder %s162, %s164
      %p168 = scmp.eq.s32.totalorder %s23, 0
      %p169 = por %p167, %p168
      %p170 = scmp.ne.s32.totalorder %s162, %s164
      %p171 = scmp.eq.s32.totalorder %s28, 1
      %p172 = por %p170, %p171
      %p173 = scmp.ne.s32.totalorder %s164, %s165
      %p174 = scmp.eq.s32.totalorder %s28, 0
      %p175 = por %p173, %p174
      %p176 = scmp.ne.s32.totalorder %s164, %s165
      %p177 = scmp.eq.s32.totalorder %s29, 1
      %p178 = por %p176, %p177
      %p180 = scmp.ne.s32.totalorder %s165, %s179
      %p181 = scmp.eq.s32.totalorder %s29, 0
      %p182 = por %p180, %p181
      %s184 = sadd.s32 %s183, 1
      %p187 = scmp.eq.s32.totalorder %s23, 1
      %p188 = scmp.ne.s32.totalorder %s183, %s185
      %p189 = scmp.eq.s32.totalorder %s23, 0
      %p190 = por %p188, %p189
      %p191 = scmp.ne.s32.totalorder %s183, %s185
      %p192 = scmp.eq.s32.totalorder %s28, 1
      %p193 = por %p191, %p192
      %p194 = scmp.ne.s32.totalorder %s185, %s186
      %p195 = scmp.eq.s32.totalorder %s28, 0
      %p196 = por %p194, %p195
      %p197 = scmp.ne.s32.totalorder %s185, %s186
      %p198 = scmp.eq.s32.totalorder %s29, 1
      %p199 = por %p197, %p198
      %p201 = scmp.ne.s32.totalorder %s186, %s200
      %p202 = scmp.eq.s32.totalorder %s29, 0
      %p203 = por %p201, %p202
      %s204 = ssub.s32 %s23, %s30
      %p205 = scmp.eq.s32.totalorder %s204, 0
      %s207 = sadd.s32 %s206, 1
      %s208 = scalar_select %p205, %s206, %s207
      %p211 = pneg %p205
      %p212 = scmp.eq.s32.totalorder %s23, 1
      %p213 = por %p211, %p212
      %p214 = scmp.ne.s32.totalorder %s206, %s209
      %p215 = scmp.eq.s32.totalorder %s23, 0
      %p216 = por %p214, %p215
      %p217 = scmp.ne.s32.totalorder %s206, %s209
      %p218 = scmp.eq.s32.totalorder %s28, 1
      %p219 = por %p217, %p218
      %p220 = scmp.ne.s32.totalorder %s209, %s210
      %p221 = scmp.eq.s32.totalorder %s28, 0
      %p222 = por %p220, %p221
      %p223 = scmp.ne.s32.totalorder %s209, %s210
      %p224 = scmp.eq.s32.totalorder %s29, 1
      %p225 = por %p223, %p224
      %p227 = scmp.ne.s32.totalorder %s210, %s226
      %p228 = scmp.eq.s32.totalorder %s29, 0
      %p229 = por %p227, %p228
      %p230 = scmp.le.s32.totalorder 1, %s23
      %p231 = scmp.lt.s32.totalorder %s23, 3
      %p232 = pnand %p230, %p231
      %p233 = pneg %p232
      // Predicated region
      $region9: #{tpu_custom_call.1} parent=5 // pred_check
        _
      $region10: #{tpu_custom_call.1} parent=5 // pred_check_branch
        %235 = sbr.rel (%p232) target = $region12
      $region11: #{tpu_custom_call.1} parent=5 // pred_region
        %s236 = ssub.s32 %s23, 1
        // Predicated region
        $region13: #{tpu_custom_call.1} parent=11 // pred_check
          %p237 = pneg %p70
        $region14: #{tpu_custom_call.1} parent=11 // pred_check_branch
          %239 = sbr.rel (%p237) target = $region16
        $region15: #{tpu_custom_call.1} parent=11 // pred_region
          %s241 = ssub.s32 32768, 32768
          %242 = vsyncadd [#allocation6], %s241
          %s243 = sshll.u32 [#allocation5], 4
          %s244 = int_to_ptr.vmem [resolvable:$true] %s243
          %249 = dma.hbm_to_vmem [thread:$0]  %s1, 32768, %s244, [#allocation6], 512, 512, 32
        $region16: #{tpu_custom_call.1} parent=11 // pred_fallthru
          _
        // Predicated region
        $region17: #{tpu_custom_call.1} parent=11 // pred_check
          %p250 = pneg %p91
        $region18: #{tpu_custom_call.1} parent=11 // pred_check_branch
          %252 = sbr.rel (%p250) target = $region20
        $region19: #{tpu_custom_call.1} parent=11 // pred_region
          %s254 = ssub.s32 128, 128
          %255 = vsyncadd [#allocation6], %s254
          %s257 = sshll.u32 [#allocation7], 4
          %s258 = int_to_ptr.vmem [resolvable:$true] %s257
          %260 = dma.hbm_to_vmem [thread:$0]  %s2, 128, %s258, [#allocation6]
        $region20: #{tpu_custom_call.1} parent=11 // pred_fallthru
          _
        // Predicated region
        $region21: #{tpu_custom_call.1} parent=11 // pred_check
          %p261 = pneg %p112
        $region22: #{tpu_custom_call.1} parent=11 // pred_check_branch
          %263 = sbr.rel (%p261) target = $region24
        $region23: #{tpu_custom_call.1} parent=11 // pred_region
          %s265 = ssub.s32 16384, 16384
          %266 = vsyncadd [#allocation9], %s265
          %s267 = sshll.u32 [#allocation8], 4
          %s268 = int_to_ptr.vmem [resolvable:$true] %s267
          %273 = dma.hbm_to_vmem [thread:$0]  %s3, 16384, %s268, [#allocation9], 256, 256, 16
        $region24: #{tpu_custom_call.1} parent=11 // pred_fallthru
          _
        // Predicated region
        $region25: #{tpu_custom_call.1} parent=11 // pred_check
          %p274 = pneg %p133
        $region26: #{tpu_custom_call.1} parent=11 // pred_check_branch
          %276 = sbr.rel (%p274) target = $region28
        $region27: #{tpu_custom_call.1} parent=11 // pred_region
          _
        $region28: #{tpu_custom_call.1} parent=11 // pred_fallthru
          _
        // Predicated region
        $region29: #{tpu_custom_call.1} parent=11 // pred_check
          %p277 = pneg %p154
        $region30: #{tpu_custom_call.1} parent=11 // pred_check_branch
          %279 = sbr.rel (%p277) target = $region32
        $region31: #{tpu_custom_call.1} parent=11 // pred_region
          %s281 = ssub.s32 8192, 8192
          %282 = vsyncadd [#allocation9], %s281
          %s283 = sshll.u32 [#allocation10], 4
          %s284 = int_to_ptr.vmem [resolvable:$true] %s283
          %289 = dma.hbm_to_vmem [thread:$0]  %s5, 8192, %s284, [#allocation9], 512, 512, 32
        $region32: #{tpu_custom_call.1} parent=11 // pred_fallthru
          _
        // Predicated region
        $region33: #{tpu_custom_call.1} parent=11 // pred_check
          %p290 = pneg %p175
        $region34: #{tpu_custom_call.1} parent=11 // pred_check_branch
          %292 = sbr.rel (%p290) target = $region36
        $region35: #{tpu_custom_call.1} parent=11 // pred_region
          %s294 = ssub.s32 8192, 8192
          %295 = vsyncadd [#allocation12], %s294
          %s296 = sshll.u32 [#allocation11], 4
          %s297 = int_to_ptr.vmem [resolvable:$true] %s296
          %302 = dma.hbm_to_vmem [thread:$0]  %s6, 8192, %s297, [#allocation12], 512, 512, 32
        $region36: #{tpu_custom_call.1} parent=11 // pred_fallthru
          _
        // Predicated region
        $region37: #{tpu_custom_call.1} parent=11 // pred_check
          %p303 = pneg %p196
        $region38: #{tpu_custom_call.1} parent=11 // pred_check_branch
          %305 = sbr.rel (%p303) target = $region40
        $region39: #{tpu_custom_call.1} parent=11 // pred_region
          %s307 = ssub.s32 8192, 8192
          %308 = vsyncadd [#allocation12], %s307
          %s309 = sshll.u32 [#allocation13], 4
          %s310 = int_to_ptr.vmem [resolvable:$true] %s309
          %315 = dma.hbm_to_vmem [thread:$0]  %s7, 8192, %s310, [#allocation12], 512, 512, 32
        $region40: #{tpu_custom_call.1} parent=11 // pred_fallthru
          _
      $region12: #{tpu_custom_call.1} parent=5 // pred_fallthru
        _
      %p316 = scmp.lt.s32.totalorder %s23, 2
      // Predicated region
      $region41: #{tpu_custom_call.1} parent=5 // pred_check
        %p317 = pneg %p316
      $region42: #{tpu_custom_call.1} parent=5 // pred_check_branch
        %319 = sbr.rel (%p317) target = $region44
      $region43: #{tpu_custom_call.1} parent=5 // pred_region
        // Predicated region
        $region45: #{tpu_custom_call.1} parent=43 // pred_check
          %p320 = pneg %p43
        $region46: #{tpu_custom_call.1} parent=43 // pred_check_branch
          %322 = sbr.rel (%p320) target = $region48
        $region47: #{tpu_custom_call.1} parent=43 // pred_region
          %s323 = sand.u32 %s33, 1
          %s324 = scalar_lea.sflag [#allocation3], %s323
          %s325 = sand.u32 %s33, 1
          %s326 = smul.addr %s325, 256
          %s327 = scalar_lea.vmem [#allocation2], %s326
          %s329 = ssub.s32 4096, 4096
          %330 = vsyncadd %s324, %s329
          %s331 = smul.addr %s23, 64
          %s332 = smul.addr %s331, 64
          %s333 = scalar_lea.hbm %s0, %s332
          %s334 = sshll.u32 %s327, 4
          %s335 = int_to_ptr.vmem [resolvable:$true] %s334
          %340 = dma.hbm_to_vmem [thread:$0]  %s333, 4096, %s335, %s324, 256, 256, 16
        $region48: #{tpu_custom_call.1} parent=43 // pred_fallthru
          _
      $region44: #{tpu_custom_call.1} parent=5 // pred_fallthru
        _
      %p341 = scmp.le.s32.totalorder 1, %s23
      %p342 = scmp.lt.s32.totalorder %s23, 3
      %p343 = pnand %p341, %p342
      %p344 = pneg %p343
      // Predicated region
      $region49: #{tpu_custom_call.1} parent=5 // pred_check
        _
      $region50: #{tpu_custom_call.1} parent=5 // pred_check_branch
        %346 = sbr.rel (%p343) target = $region52
      $region51: #{tpu_custom_call.1} parent=5 // pred_region
        %s347 = ssub.s32 %s23, 1
        %s348 = sand.u32 %s36, 1
        %s349 = scalar_lea.sflag [#allocation3], %s348
        %s350 = sand.u32 %s36, 1
        %s351 = smul.addr %s350, 256
        %s352 = scalar_lea.vmem [#allocation2], %s351
        // Predicated region
        $region53: #{tpu_custom_call.1} parent=51 // pred_check
          %p353 = pneg %p49
        $region54: #{tpu_custom_call.1} parent=51 // pred_check_branch
          %355 = sbr.rel (%p353) target = $region56
        $region55: #{tpu_custom_call.1} parent=51 // pred_region
          %356 = dma.done %s349, 4096
        $region56: #{tpu_custom_call.1} parent=51 // pred_fallthru
          _
        // Predicated region
        $region57: #{tpu_custom_call.1} parent=51 // pred_check
          %p357 = pneg %p70
        $region58: #{tpu_custom_call.1} parent=51 // pred_check_branch
          %359 = sbr.rel (%p357) target = $region60
        $region59: #{tpu_custom_call.1} parent=51 // pred_region
          %360 = dma.done [#allocation6], 32768
        $region60: #{tpu_custom_call.1} parent=51 // pred_fallthru
          _
        // Predicated region
        $region61: #{tpu_custom_call.1} parent=51 // pred_check
          %p361 = pneg %p91
        $region62: #{tpu_custom_call.1} parent=51 // pred_check_branch
          %363 = sbr.rel (%p361) target = $region64
        $region63: #{tpu_custom_call.1} parent=51 // pred_region
          %364 = dma.done [#allocation6], 128
        $region64: #{tpu_custom_call.1} parent=51 // pred_fallthru
          _
        // Predicated region
        $region65: #{tpu_custom_call.1} parent=51 // pred_check
          %p365 = pneg %p112
        $region66: #{tpu_custom_call.1} parent=51 // pred_check_branch
          %367 = sbr.rel (%p365) target = $region68
        $region67: #{tpu_custom_call.1} parent=51 // pred_region
          %368 = dma.done [#allocation9], 16384
        $region68: #{tpu_custom_call.1} parent=51 // pred_fallthru
          _
        // Predicated region
        $region69: #{tpu_custom_call.1} parent=51 // pred_check
          %p369 = pneg %p154
        $region70: #{tpu_custom_call.1} parent=51 // pred_check_branch
          %371 = sbr.rel (%p369) target = $region72
        $region71: #{tpu_custom_call.1} parent=51 // pred_region
          %372 = dma.done [#allocation9], 8192
        $region72: #{tpu_custom_call.1} parent=51 // pred_fallthru
          _
        // Predicated region
        $region73: #{tpu_custom_call.1} parent=51 // pred_check
          %p373 = pneg %p175
        $region74: #{tpu_custom_call.1} parent=51 // pred_check_branch
          %375 = sbr.rel (%p373) target = $region76
        $region75: #{tpu_custom_call.1} parent=51 // pred_region
          %376 = dma.done [#allocation12], 8192
        $region76: #{tpu_custom_call.1} parent=51 // pred_fallthru
          _
        // Predicated region
        $region77: #{tpu_custom_call.1} parent=51 // pred_check
          %p377 = pneg %p196
        $region78: #{tpu_custom_call.1} parent=51 // pred_check_branch
          %379 = sbr.rel (%p377) target = $region80
        $region79: #{tpu_custom_call.1} parent=51 // pred_region
          %380 = dma.done [#allocation12], 8192
        $region80: #{tpu_custom_call.1} parent=51 // pred_fallthru
          _
        %s381 = sand.u32 %s36, 1
        %s382 = scalar_lea.sflag [#allocation3], %s381
        %s383 = sand.u32 %s36, 1
        %s384 = smul.addr %s383, 256
        %s385 = scalar_lea.vmem [#allocation2], %s384
        %p386 = pneg %p49
        %p387 = pneg %p46
        %p388 = pneg %p70
        %p389 = pneg %p67
        %p390 = pneg %p91
        %p391 = pneg %p88
        %p392 = pneg %p112
        %p393 = pneg %p109
        %p394 = pneg %p133
        %p395 = pneg %p130
        %p396 = pneg %p154
        %p397 = pneg %p151
        %p398 = pneg %p175
        %p399 = pneg %p172
        %p400 = pneg %p196
        %p401 = pneg %p193
        %p402 = pneg %p222
        %p403 = pneg %p219
        %s404 = sand.u32 %s209, 1
        %s405 = scalar_lea.sflag [#allocation4], %s404
        %s406 = sand.u32 %s209, 1
        %s407 = smul.addr %s406, 512
        %s408 = scalar_lea.vmem [#allocation14], %s407
        %v410 = vld [vmem:[%s352] sm:$0xff]
        %v411 = vld [vmem:[%s352 + $0x8] sm:$0xff]
        %v412 = vld [vmem:[%s352 + $0x10] sm:$0xff]
        %v413 = vld [vmem:[%s352 + $0x18] sm:$0xff]
        %v414 = vld [vmem:[%s352 + $0x20] sm:$0xff]
        %v415 = vld [vmem:[%s352 + $0x28] sm:$0xff]
        %v416 = vld [vmem:[%s352 + $0x30] sm:$0xff]
        %v417 = vld [vmem:[%s352 + $0x38] sm:$0xff]
        %v418 = vld [vmem:[%s352 + $0x40] sm:$0xff]
        %v419 = vld [vmem:[%s352 + $0x48] sm:$0xff]
        %v420 = vld [vmem:[%s352 + $0x50] sm:$0xff]
        %v421 = vld [vmem:[%s352 + $0x58] sm:$0xff]
        %v422 = vld [vmem:[%s352 + $0x60] sm:$0xff]
        %v423 = vld [vmem:[%s352 + $0x68] sm:$0xff]
        %v424 = vld [vmem:[%s352 + $0x70] sm:$0xff]
        %v425 = vld [vmem:[%s352 + $0x78] sm:$0xff]
        %v426 = vld [vmem:[%s352 + $0x80] sm:$0xff]
        %v427 = vld [vmem:[%s352 + $0x88] sm:$0xff]
        %v428 = vld [vmem:[%s352 + $0x90] sm:$0xff]
        %v429 = vld [vmem:[%s352 + $0x98] sm:$0xff]
        %v430 = vld [vmem:[%s352 + $0xa0] sm:$0xff]
        %v431 = vld [vmem:[%s352 + $0xa8] sm:$0xff]
        %v432 = vld [vmem:[%s352 + $0xb0] sm:$0xff]
        %v433 = vld [vmem:[%s352 + $0xb8] sm:$0xff]
        %v434 = vld [vmem:[%s352 + $0xc0] sm:$0xff]
        %v435 = vld [vmem:[%s352 + $0xc8] sm:$0xff]
        %v436 = vld [vmem:[%s352 + $0xd0] sm:$0xff]
        %v437 = vld [vmem:[%s352 + $0xd8] sm:$0xff]
        %v438 = vld [vmem:[%s352 + $0xe0] sm:$0xff]
        %v439 = vld [vmem:[%s352 + $0xe8] sm:$0xff]
        %v440 = vld [vmem:[%s352 + $0xf0] sm:$0xff]
        %v441 = vld [vmem:[%s352 + $0xf8] sm:$0xff]
        %v442 = vld [vmem:[#allocation5] sm:$0xff]
        %v443 = vld [vmem:[#allocation5 + $0x8] sm:$0xff]
        %v444 = vld [vmem:[#allocation5 + $0x10] sm:$0xff]
        %v445 = vld [vmem:[#allocation5 + $0x18] sm:$0xff]
        %v446 = vld [vmem:[#allocation5 + $0x20] sm:$0xff]
        %v447 = vld [vmem:[#allocation5 + $0x28] sm:$0xff]
        %v448 = vld [vmem:[#allocation5 + $0x30] sm:$0xff]
        %v449 = vld [vmem:[#allocation5 + $0x38] sm:$0xff]
        %v450 = vld [vmem:[#allocation5 + $0x40] sm:$0xff]
        %v451 = vld [vmem:[#allocation5 + $0x48] sm:$0xff]
        %v452 = vld [vmem:[#allocation5 + $0x50] sm:$0xff]
        %v453 = vld [vmem:[#allocation5 + $0x58] sm:$0xff]
        %v454 = vld [vmem:[#allocation5 + $0x60] sm:$0xff]
        %v455 = vld [vmem:[#allocation5 + $0x68] sm:$0xff]
        %v456 = vld [vmem:[#allocation5 + $0x70] sm:$0xff]
        %v457 = vld [vmem:[#allocation5 + $0x78] sm:$0xff]
        %v458 = vld [vmem:[#allocation5 + $0x80] sm:$0xff]
        %v459 = vld [vmem:[#allocation5 + $0x88] sm:$0xff]
        %v460 = vld [vmem:[#allocation5 + $0x90] sm:$0xff]
        %v461 = vld [vmem:[#allocation5 + $0x98] sm:$0xff]
        %v462 = vld [vmem:[#allocation5 + $0xa0] sm:$0xff]
        %v463 = vld [vmem:[#allocation5 + $0xa8] sm:$0xff]
        %v464 = vld [vmem:[#allocation5 + $0xb0] sm:$0xff]
        %v465 = vld [vmem:[#allocation5 + $0xb8] sm:$0xff]
        %v466 = vld [vmem:[#allocation5 + $0xc0] sm:$0xff]
        %v467 = vld [vmem:[#allocation5 + $0xc8] sm:$0xff]
        %v468 = vld [vmem:[#allocation5 + $0xd0] sm:$0xff]
        %v469 = vld [vmem:[#allocation5 + $0xd8] sm:$0xff]
        %v470 = vld [vmem:[#allocation5 + $0xe0] sm:$0xff]
        %v471 = vld [vmem:[#allocation5 + $0xe8] sm:$0xff]
        %v472 = vld [vmem:[#allocation5 + $0xf0] sm:$0xff]
        %v473 = vld [vmem:[#allocation5 + $0xf8] sm:$0xff]
        %v474 = vld [vmem:[#allocation5 + $0x100] sm:$0xff]
        %v475 = vld [vmem:[#allocation5 + $0x108] sm:$0xff]
        %v476 = vld [vmem:[#allocation5 + $0x110] sm:$0xff]
        %v477 = vld [vmem:[#allocation5 + $0x118] sm:$0xff]
        %v478 = vld [vmem:[#allocation5 + $0x120] sm:$0xff]
        %v479 = vld [vmem:[#allocation5 + $0x128] sm:$0xff]
        %v480 = vld [vmem:[#allocation5 + $0x130] sm:$0xff]
        %v481 = vld [vmem:[#allocation5 + $0x138] sm:$0xff]
        %v482 = vld [vmem:[#allocation5 + $0x140] sm:$0xff]
        %v483 = vld [vmem:[#allocation5 + $0x148] sm:$0xff]
        %v484 = vld [vmem:[#allocation5 + $0x150] sm:$0xff]
        %v485 = vld [vmem:[#allocation5 + $0x158] sm:$0xff]
        %v486 = vld [vmem:[#allocation5 + $0x160] sm:$0xff]
        %v487 = vld [vmem:[#allocation5 + $0x168] sm:$0xff]
        %v488 = vld [vmem:[#allocation5 + $0x170] sm:$0xff]
        %v489 = vld [vmem:[#allocation5 + $0x178] sm:$0xff]
        %v490 = vld [vmem:[#allocation5 + $0x180] sm:$0xff]
        %v491 = vld [vmem:[#allocation5 + $0x188] sm:$0xff]
        %v492 = vld [vmem:[#allocation5 + $0x190] sm:$0xff]
        %v493 = vld [vmem:[#allocation5 + $0x198] sm:$0xff]
        %v494 = vld [vmem:[#allocation5 + $0x1a0] sm:$0xff]
        %v495 = vld [vmem:[#allocation5 + $0x1a8] sm:$0xff]
        %v496 = vld [vmem:[#allocation5 + $0x1b0] sm:$0xff]
        %v497 = vld [vmem:[#allocation5 + $0x1b8] sm:$0xff]
        %v498 = vld [vmem:[#allocation5 + $0x1c0] sm:$0xff]
        %v499 = vld [vmem:[#allocation5 + $0x1c8] sm:$0xff]
        %v500 = vld [vmem:[#allocation5 + $0x1d0] sm:$0xff]
        %v501 = vld [vmem:[#allocation5 + $0x1d8] sm:$0xff]
        %v502 = vld [vmem:[#allocation5 + $0x1e0] sm:$0xff]
        %v503 = vld [vmem:[#allocation5 + $0x1e8] sm:$0xff]
        %v504 = vld [vmem:[#allocation5 + $0x1f0] sm:$0xff]
        %v505 = vld [vmem:[#allocation5 + $0x1f8] sm:$0xff]
        %v506 = vld [vmem:[#allocation5 + $0x200] sm:$0xff]
        %v507 = vld [vmem:[#allocation5 + $0x208] sm:$0xff]
        %v508 = vld [vmem:[#allocation5 + $0x210] sm:$0xff]
        %v509 = vld [vmem:[#allocation5 + $0x218] sm:$0xff]
        %v510 = vld [vmem:[#allocation5 + $0x220] sm:$0xff]
        %v511 = vld [vmem:[#allocation5 + $0x228] sm:$0xff]
        %v512 = vld [vmem:[#allocation5 + $0x230] sm:$0xff]
        %v513 = vld [vmem:[#allocation5 + $0x238] sm:$0xff]
        %v514 = vld [vmem:[#allocation5 + $0x240] sm:$0xff]
        %v515 = vld [vmem:[#allocation5 + $0x248] sm:$0xff]
        %v516 = vld [vmem:[#allocation5 + $0x250] sm:$0xff]
        %v517 = vld [vmem:[#allocation5 + $0x258] sm:$0xff]
        %v518 = vld [vmem:[#allocation5 + $0x260] sm:$0xff]
        %v519 = vld [vmem:[#allocation5 + $0x268] sm:$0xff]
        %v520 = vld [vmem:[#allocation5 + $0x270] sm:$0xff]
        %v521 = vld [vmem:[#allocation5 + $0x278] sm:$0xff]
        %v522 = vld [vmem:[#allocation5 + $0x280] sm:$0xff]
        %v523 = vld [vmem:[#allocation5 + $0x288] sm:$0xff]
        %v524 = vld [vmem:[#allocation5 + $0x290] sm:$0xff]
        %v525 = vld [vmem:[#allocation5 + $0x298] sm:$0xff]
        %v526 = vld [vmem:[#allocation5 + $0x2a0] sm:$0xff]
        %v527 = vld [vmem:[#allocation5 + $0x2a8] sm:$0xff]
        %v528 = vld [vmem:[#allocation5 + $0x2b0] sm:$0xff]
        %v529 = vld [vmem:[#allocation5 + $0x2b8] sm:$0xff]
        %v530 = vld [vmem:[#allocation5 + $0x2c0] sm:$0xff]
        %v531 = vld [vmem:[#allocation5 + $0x2c8] sm:$0xff]
        %v532 = vld [vmem:[#allocation5 + $0x2d0] sm:$0xff]
        %v533 = vld [vmem:[#allocation5 + $0x2d8] sm:$0xff]
        %v534 = vld [vmem:[#allocation5 + $0x2e0] sm:$0xff]
        %v535 = vld [vmem:[#allocation5 + $0x2e8] sm:$0xff]
        %v536 = vld [vmem:[#allocation5 + $0x2f0] sm:$0xff]
        %v537 = vld [vmem:[#allocation5 + $0x2f8] sm:$0xff]
        %v538 = vld [vmem:[#allocation5 + $0x300] sm:$0xff]
        %v539 = vld [vmem:[#allocation5 + $0x308] sm:$0xff]
        %v540 = vld [vmem:[#allocation5 + $0x310] sm:$0xff]
        %v541 = vld [vmem:[#allocation5 + $0x318] sm:$0xff]
        %v542 = vld [vmem:[#allocation5 + $0x320] sm:$0xff]
        %v543 = vld [vmem:[#allocation5 + $0x328] sm:$0xff]
        %v544 = vld [vmem:[#allocation5 + $0x330] sm:$0xff]
        %v545 = vld [vmem:[#allocation5 + $0x338] sm:$0xff]
        %v546 = vld [vmem:[#allocation5 + $0x340] sm:$0xff]
        %v547 = vld [vmem:[#allocation5 + $0x348] sm:$0xff]
        %v548 = vld [vmem:[#allocation5 + $0x350] sm:$0xff]
        %v549 = vld [vmem:[#allocation5 + $0x358] sm:$0xff]
        %v550 = vld [vmem:[#allocation5 + $0x360] sm:$0xff]
        %v551 = vld [vmem:[#allocation5 + $0x368] sm:$0xff]
        %v552 = vld [vmem:[#allocation5 + $0x370] sm:$0xff]
        %v553 = vld [vmem:[#allocation5 + $0x378] sm:$0xff]
        %v554 = vld [vmem:[#allocation5 + $0x380] sm:$0xff]
        %v555 = vld [vmem:[#allocation5 + $0x388] sm:$0xff]
        %v556 = vld [vmem:[#allocation5 + $0x390] sm:$0xff]
        %v557 = vld [vmem:[#allocation5 + $0x398] sm:$0xff]
        %v558 = vld [vmem:[#allocation5 + $0x3a0] sm:$0xff]
        %v559 = vld [vmem:[#allocation5 + $0x3a8] sm:$0xff]
        %v560 = vld [vmem:[#allocation5 + $0x3b0] sm:$0xff]
        %v561 = vld [vmem:[#allocation5 + $0x3b8] sm:$0xff]
        %v562 = vld [vmem:[#allocation5 + $0x3c0] sm:$0xff]
        %v563 = vld [vmem:[#allocation5 + $0x3c8] sm:$0xff]
        %v564 = vld [vmem:[#allocation5 + $0x3d0] sm:$0xff]
        %v565 = vld [vmem:[#allocation5 + $0x3d8] sm:$0xff]
        %v566 = vld [vmem:[#allocation5 + $0x3e0] sm:$0xff]
        %v567 = vld [vmem:[#allocation5 + $0x3e8] sm:$0xff]
        %v568 = vld [vmem:[#allocation5 + $0x3f0] sm:$0xff]
        %v569 = vld [vmem:[#allocation5 + $0x3f8] sm:$0xff]
        %v570 = vld [vmem:[#allocation5 + $0x400] sm:$0xff]
        %v571 = vld [vmem:[#allocation5 + $0x408] sm:$0xff]
        %v572 = vld [vmem:[#allocation5 + $0x410] sm:$0xff]
        %v573 = vld [vmem:[#allocation5 + $0x418] sm:$0xff]
        %v574 = vld [vmem:[#allocation5 + $0x420] sm:$0xff]
        %v575 = vld [vmem:[#allocation5 + $0x428] sm:$0xff]
        %v576 = vld [vmem:[#allocation5 + $0x430] sm:$0xff]
        %v577 = vld [vmem:[#allocation5 + $0x438] sm:$0xff]
        %v578 = vld [vmem:[#allocation5 + $0x440] sm:$0xff]
        %v579 = vld [vmem:[#allocation5 + $0x448] sm:$0xff]
        %v580 = vld [vmem:[#allocation5 + $0x450] sm:$0xff]
        %v581 = vld [vmem:[#allocation5 + $0x458] sm:$0xff]
        %v582 = vld [vmem:[#allocation5 + $0x460] sm:$0xff]
        %v583 = vld [vmem:[#allocation5 + $0x468] sm:$0xff]
        %v584 = vld [vmem:[#allocation5 + $0x470] sm:$0xff]
        %v585 = vld [vmem:[#allocation5 + $0x478] sm:$0xff]
        %v586 = vld [vmem:[#allocation5 + $0x480] sm:$0xff]
        %v587 = vld [vmem:[#allocation5 + $0x488] sm:$0xff]
        %v588 = vld [vmem:[#allocation5 + $0x490] sm:$0xff]
        %v589 = vld [vmem:[#allocation5 + $0x498] sm:$0xff]
        %v590 = vld [vmem:[#allocation5 + $0x4a0] sm:$0xff]
        %v591 = vld [vmem:[#allocation5 + $0x4a8] sm:$0xff]
        %v592 = vld [vmem:[#allocation5 + $0x4b0] sm:$0xff]
        %v593 = vld [vmem:[#allocation5 + $0x4b8] sm:$0xff]
        %v594 = vld [vmem:[#allocation5 + $0x4c0] sm:$0xff]
        %v595 = vld [vmem:[#allocation5 + $0x4c8] sm:$0xff]
        %v596 = vld [vmem:[#allocation5 + $0x4d0] sm:$0xff]
        %v597 = vld [vmem:[#allocation5 + $0x4d8] sm:$0xff]
        %v598 = vld [vmem:[#allocation5 + $0x4e0] sm:$0xff]
        %v599 = vld [vmem:[#allocation5 + $0x4e8] sm:$0xff]
        %v600 = vld [vmem:[#allocation5 + $0x4f0] sm:$0xff]
        %v601 = vld [vmem:[#allocation5 + $0x4f8] sm:$0xff]
        %v602 = vld [vmem:[#allocation5 + $0x500] sm:$0xff]
        %v603 = vld [vmem:[#allocation5 + $0x508] sm:$0xff]
        %v604 = vld [vmem:[#allocation5 + $0x510] sm:$0xff]
        %v605 = vld [vmem:[#allocation5 + $0x518] sm:$0xff]
        %v606 = vld [vmem:[#allocation5 + $0x520] sm:$0xff]
        %v607 = vld [vmem:[#allocation5 + $0x528] sm:$0xff]
        %v608 = vld [vmem:[#allocation5 + $0x530] sm:$0xff]
        %v609 = vld [vmem:[#allocation5 + $0x538] sm:$0xff]
        %v610 = vld [vmem:[#allocation5 + $0x540] sm:$0xff]
        %v611 = vld [vmem:[#allocation5 + $0x548] sm:$0xff]
        %v612 = vld [vmem:[#allocation5 + $0x550] sm:$0xff]
        %v613 = vld [vmem:[#allocation5 + $0x558] sm:$0xff]
        %v614 = vld [vmem:[#allocation5 + $0x560] sm:$0xff]
        %v615 = vld [vmem:[#allocation5 + $0x568] sm:$0xff]
        %v616 = vld [vmem:[#allocation5 + $0x570] sm:$0xff]
        %v617 = vld [vmem:[#allocation5 + $0x578] sm:$0xff]
        %v618 = vld [vmem:[#allocation5 + $0x580] sm:$0xff]
        %v619 = vld [vmem:[#allocation5 + $0x588] sm:$0xff]
        %v620 = vld [vmem:[#allocation5 + $0x590] sm:$0xff]
        %v621 = vld [vmem:[#allocation5 + $0x598] sm:$0xff]
        %v622 = vld [vmem:[#allocation5 + $0x5a0] sm:$0xff]
        %v623 = vld [vmem:[#allocation5 + $0x5a8] sm:$0xff]
        %v624 = vld [vmem:[#allocation5 + $0x5b0] sm:$0xff]
        %v625 = vld [vmem:[#allocation5 + $0x5b8] sm:$0xff]
        %v626 = vld [vmem:[#allocation5 + $0x5c0] sm:$0xff]
        %v627 = vld [vmem:[#allocation5 + $0x5c8] sm:$0xff]
        %v628 = vld [vmem:[#allocation5 + $0x5d0] sm:$0xff]
        %v629 = vld [vmem:[#allocation5 + $0x5d8] sm:$0xff]
        %v630 = vld [vmem:[#allocation5 + $0x5e0] sm:$0xff]
        %v631 = vld [vmem:[#allocation5 + $0x5e8] sm:$0xff]
        %v632 = vld [vmem:[#allocation5 + $0x5f0] sm:$0xff]
        %v633 = vld [vmem:[#allocation5 + $0x5f8] sm:$0xff]
        %v634 = vld [vmem:[#allocation5 + $0x600] sm:$0xff]
        %v635 = vld [vmem:[#allocation5 + $0x608] sm:$0xff]
        %v636 = vld [vmem:[#allocation5 + $0x610] sm:$0xff]
        %v637 = vld [vmem:[#allocation5 + $0x618] sm:$0xff]
        %v638 = vld [vmem:[#allocation5 + $0x620] sm:$0xff]
        %v639 = vld [vmem:[#allocation5 + $0x628] sm:$0xff]
        %v640 = vld [vmem:[#allocation5 + $0x630] sm:$0xff]
        %v641 = vld [vmem:[#allocation5 + $0x638] sm:$0xff]
        %v642 = vld [vmem:[#allocation5 + $0x640] sm:$0xff]
        %v643 = vld [vmem:[#allocation5 + $0x648] sm:$0xff]
        %v644 = vld [vmem:[#allocation5 + $0x650] sm:$0xff]
        %v645 = vld [vmem:[#allocation5 + $0x658] sm:$0xff]
        %v646 = vld [vmem:[#allocation5 + $0x660] sm:$0xff]
        %v647 = vld [vmem:[#allocation5 + $0x668] sm:$0xff]
        %v648 = vld [vmem:[#allocation5 + $0x670] sm:$0xff]
        %v649 = vld [vmem:[#allocation5 + $0x678] sm:$0xff]
        %v650 = vld [vmem:[#allocation5 + $0x680] sm:$0xff]
        %v651 = vld [vmem:[#allocation5 + $0x688] sm:$0xff]
        %v652 = vld [vmem:[#allocation5 + $0x690] sm:$0xff]
        %v653 = vld [vmem:[#allocation5 + $0x698] sm:$0xff]
        %v654 = vld [vmem:[#allocation5 + $0x6a0] sm:$0xff]
        %v655 = vld [vmem:[#allocation5 + $0x6a8] sm:$0xff]
        %v656 = vld [vmem:[#allocation5 + $0x6b0] sm:$0xff]
        %v657 = vld [vmem:[#allocation5 + $0x6b8] sm:$0xff]
        %v658 = vld [vmem:[#allocation5 + $0x6c0] sm:$0xff]
        %v659 = vld [vmem:[#allocation5 + $0x6c8] sm:$0xff]
        %v660 = vld [vmem:[#allocation5 + $0x6d0] sm:$0xff]
        %v661 = vld [vmem:[#allocation5 + $0x6d8] sm:$0xff]
        %v662 = vld [vmem:[#allocation5 + $0x6e0] sm:$0xff]
        %v663 = vld [vmem:[#allocation5 + $0x6e8] sm:$0xff]
        %v664 = vld [vmem:[#allocation5 + $0x6f0] sm:$0xff]
        %v665 = vld [vmem:[#allocation5 + $0x6f8] sm:$0xff]
        %v666 = vld [vmem:[#allocation5 + $0x700] sm:$0xff]
        %v667 = vld [vmem:[#allocation5 + $0x708] sm:$0xff]
        %v668 = vld [vmem:[#allocation5 + $0x710] sm:$0xff]
        %v669 = vld [vmem:[#allocation5 + $0x718] sm:$0xff]
        %v670 = vld [vmem:[#allocation5 + $0x720] sm:$0xff]
        %v671 = vld [vmem:[#allocation5 + $0x728] sm:$0xff]
        %v672 = vld [vmem:[#allocation5 + $0x730] sm:$0xff]
        %v673 = vld [vmem:[#allocation5 + $0x738] sm:$0xff]
        %v674 = vld [vmem:[#allocation5 + $0x740] sm:$0xff]
        %v675 = vld [vmem:[#allocation5 + $0x748] sm:$0xff]
        %v676 = vld [vmem:[#allocation5 + $0x750] sm:$0xff]
        %v677 = vld [vmem:[#allocation5 + $0x758] sm:$0xff]
        %v678 = vld [vmem:[#allocation5 + $0x760] sm:$0xff]
        %v679 = vld [vmem:[#allocation5 + $0x768] sm:$0xff]
        %v680 = vld [vmem:[#allocation5 + $0x770] sm:$0xff]
        %v681 = vld [vmem:[#allocation5 + $0x778] sm:$0xff]
        %v682 = vld [vmem:[#allocation5 + $0x780] sm:$0xff]
        %v683 = vld [vmem:[#allocation5 + $0x788] sm:$0xff]
        %v684 = vld [vmem:[#allocation5 + $0x790] sm:$0xff]
        %v685 = vld [vmem:[#allocation5 + $0x798] sm:$0xff]
        %v686 = vld [vmem:[#allocation5 + $0x7a0] sm:$0xff]
        %v687 = vld [vmem:[#allocation5 + $0x7a8] sm:$0xff]
        %v688 = vld [vmem:[#allocation5 + $0x7b0] sm:$0xff]
        %v689 = vld [vmem:[#allocation5 + $0x7b8] sm:$0xff]
        %v690 = vld [vmem:[#allocation5 + $0x7c0] sm:$0xff]
        %v691 = vld [vmem:[#allocation5 + $0x7c8] sm:$0xff]
        %v692 = vld [vmem:[#allocation5 + $0x7d0] sm:$0xff]
        %v693 = vld [vmem:[#allocation5 + $0x7d8] sm:$0xff]
        %v694 = vld [vmem:[#allocation5 + $0x7e0] sm:$0xff]
        %v695 = vld [vmem:[#allocation5 + $0x7e8] sm:$0xff]
        %v696 = vld [vmem:[#allocation5 + $0x7f0] sm:$0xff]
        %v697 = vld [vmem:[#allocation5 + $0x7f8] sm:$0xff]
        %v698 = vld [vmem:[#allocation7] sm:$0xff]
        %v700 = vlaneseq
        %v701 = vshrl.u32 %v700, 7
        %v702 = vsub.s32 0, %v701
        %v703 = vrot.slane %v698, %v702
        %v704 = vlaneseq
        %v705 = vshrl.u32 %v704, 7
        %v706 = vsub.s32 1, %v705
        %v707 = vrot.slane %v698, %v706
        %v708 = vlaneseq
        %v709 = vshrl.u32 %v708, 7
        %v710 = vsub.s32 2, %v709
        %v711 = vrot.slane %v698, %v710
        %v712 = vlaneseq
        %v713 = vshrl.u32 %v712, 7
        %v714 = vsub.s32 3, %v713
        %v715 = vrot.slane %v698, %v714
        %v716 = vlaneseq
        %v717 = vshrl.u32 %v716, 7
        %v718 = vsub.s32 4, %v717
        %v719 = vrot.slane %v698, %v718
        %v720 = vlaneseq
        %v721 = vshrl.u32 %v720, 7
        %v722 = vsub.s32 5, %v721
        %v723 = vrot.slane %v698, %v722
        %v724 = vlaneseq
        %v725 = vshrl.u32 %v724, 7
        %v726 = vsub.s32 6, %v725
        %v727 = vrot.slane %v698, %v726
        %v728 = vlaneseq
        %v729 = vshrl.u32 %v728, 7
        %v730 = vsub.s32 7, %v729
        %v731 = vrot.slane %v698, %v730
        %v772 = vunpack.c.l.b16 %v410
        %v773 = vunpack.c.h.b16 %v410
        %v774 = vunpack.c.l.b16 %v411
        %v775 = vunpack.c.h.b16 %v411
        %v776 = vunpack.c.l.b16 %v412
        %v777 = vunpack.c.h.b16 %v412
        %v778 = vunpack.c.l.b16 %v413
        %v779 = vunpack.c.h.b16 %v413
        %v780 = vunpack.c.l.b16 %v414
        %v781 = vunpack.c.h.b16 %v414
        %v782 = vunpack.c.l.b16 %v415
        %v783 = vunpack.c.h.b16 %v415
        %v784 = vunpack.c.l.b16 %v416
        %v785 = vunpack.c.h.b16 %v416
        %v786 = vunpack.c.l.b16 %v417
        %v787 = vunpack.c.h.b16 %v417
        %v788 = vunpack.c.l.b16 %v418
        %v789 = vunpack.c.h.b16 %v418
        %v790 = vunpack.c.l.b16 %v419
        %v791 = vunpack.c.h.b16 %v419
        %v792 = vunpack.c.l.b16 %v420
        %v793 = vunpack.c.h.b16 %v420
        %v794 = vunpack.c.l.b16 %v421
        %v795 = vunpack.c.h.b16 %v421
        %v796 = vunpack.c.l.b16 %v422
        %v797 = vunpack.c.h.b16 %v422
        %v798 = vunpack.c.l.b16 %v423
        %v799 = vunpack.c.h.b16 %v423
        %v800 = vunpack.c.l.b16 %v424
        %v801 = vunpack.c.h.b16 %v424
        %v802 = vunpack.c.l.b16 %v425
        %v803 = vunpack.c.h.b16 %v425
        %v804 = vunpack.c.l.b16 %v426
        %v805 = vunpack.c.h.b16 %v426
        %v806 = vunpack.c.l.b16 %v427
        %v807 = vunpack.c.h.b16 %v427
        %v808 = vunpack.c.l.b16 %v428
        %v809 = vunpack.c.h.b16 %v428
        %v810 = vunpack.c.l.b16 %v429
        %v811 = vunpack.c.h.b16 %v429
        %v812 = vunpack.c.l.b16 %v430
        %v813 = vunpack.c.h.b16 %v430
        %v814 = vunpack.c.l.b16 %v431
        %v815 = vunpack.c.h.b16 %v431
        %v816 = vunpack.c.l.b16 %v432
        %v817 = vunpack.c.h.b16 %v432
        %v818 = vunpack.c.l.b16 %v433
        %v819 = vunpack.c.h.b16 %v433
        %v820 = vunpack.c.l.b16 %v434
        %v821 = vunpack.c.h.b16 %v434
        %v822 = vunpack.c.l.b16 %v435
        %v823 = vunpack.c.h.b16 %v435
        %v824 = vunpack.c.l.b16 %v436
        %v825 = vunpack.c.h.b16 %v436
        %v826 = vunpack.c.l.b16 %v437
        %v827 = vunpack.c.h.b16 %v437
        %v828 = vunpack.c.l.b16 %v438
        %v829 = vunpack.c.h.b16 %v438
        %v830 = vunpack.c.l.b16 %v439
        %v831 = vunpack.c.h.b16 %v439
        %v832 = vunpack.c.l.b16 %v440
        %v833 = vunpack.c.h.b16 %v440
        %v834 = vunpack.c.l.b16 %v441
        %v835 = vunpack.c.h.b16 %v441
        %v836 = vpack.c.b16 %v776, %v772
        %v837 = vpack.c.b16 %v777, %v773
        %v838 = vpack.c.b16 %v778, %v774
        %v839 = vpack.c.b16 %v779, %v775
        %v840 = vpack.c.b16 %v784, %v780
        %v841 = vpack.c.b16 %v785, %v781
        %v842 = vpack.c.b16 %v786, %v782
        %v843 = vpack.c.b16 %v787, %v783
        %v844 = vpack.c.b16 %v792, %v788
        %v845 = vpack.c.b16 %v793, %v789
        %v846 = vpack.c.b16 %v794, %v790
        %v847 = vpack.c.b16 %v795, %v791
        %v848 = vpack.c.b16 %v800, %v796
        %v849 = vpack.c.b16 %v801, %v797
        %v850 = vpack.c.b16 %v802, %v798
        %v851 = vpack.c.b16 %v803, %v799
        %v852 = vpack.c.b16 %v808, %v804
        %v853 = vpack.c.b16 %v809, %v805
        %v854 = vpack.c.b16 %v810, %v806
        %v855 = vpack.c.b16 %v811, %v807
        %v856 = vpack.c.b16 %v816, %v812
        %v857 = vpack.c.b16 %v817, %v813
        %v858 = vpack.c.b16 %v818, %v814
        %v859 = vpack.c.b16 %v819, %v815
        %v860 = vpack.c.b16 %v824, %v820
        %v861 = vpack.c.b16 %v825, %v821
        %v862 = vpack.c.b16 %v826, %v822
        %v863 = vpack.c.b16 %v827, %v823
        %v864 = vpack.c.b16 %v832, %v828
        %v865 = vpack.c.b16 %v833, %v829
        %v866 = vpack.c.b16 %v834, %v830
        %v867 = vpack.c.b16 %v835, %v831
        %v1156 = vunpack.c.l.b16 %v442
        %v1157 = vunpack.c.h.b16 %v442
        %v1158 = vunpack.c.l.b16 %v443
        %v1159 = vunpack.c.h.b16 %v443
        %v1160 = vunpack.c.l.b16 %v444
        %v1161 = vunpack.c.h.b16 %v444
        %v1162 = vunpack.c.l.b16 %v445
        %v1163 = vunpack.c.h.b16 %v445
        %v1164 = vunpack.c.l.b16 %v446
        %v1165 = vunpack.c.h.b16 %v446
        %v1166 = vunpack.c.l.b16 %v447
        %v1167 = vunpack.c.h.b16 %v447
        %v1168 = vunpack.c.l.b16 %v448
        %v1169 = vunpack.c.h.b16 %v448
        %v1170 = vunpack.c.l.b16 %v449
        %v1171 = vunpack.c.h.b16 %v449
        %v1172 = vunpack.c.l.b16 %v450
        %v1173 = vunpack.c.h.b16 %v450
        %v1174 = vunpack.c.l.b16 %v451
        %v1175 = vunpack.c.h.b16 %v451
        %v1176 = vunpack.c.l.b16 %v452
        %v1177 = vunpack.c.h.b16 %v452
        %v1178 = vunpack.c.l.b16 %v453
        %v1179 = vunpack.c.h.b16 %v453
        %v1180 = vunpack.c.l.b16 %v454
        %v1181 = vunpack.c.h.b16 %v454
        %v1182 = vunpack.c.l.b16 %v455
        %v1183 = vunpack.c.h.b16 %v455
        %v1184 = vunpack.c.l.b16 %v456
        %v1185 = vunpack.c.h.b16 %v456
        %v1186 = vunpack.c.l.b16 %v457
        %v1187 = vunpack.c.h.b16 %v457
        %v1188 = vunpack.c.l.b16 %v458
        %v1189 = vunpack.c.h.b16 %v458
        %v1190 = vunpack.c.l.b16 %v459
        %v1191 = vunpack.c.h.b16 %v459
        %v1192 = vunpack.c.l.b16 %v460
        %v1193 = vunpack.c.h.b16 %v460
        %v1194 = vunpack.c.l.b16 %v461
        %v1195 = vunpack.c.h.b16 %v461
        %v1196 = vunpack.c.l.b16 %v462
        %v1197 = vunpack.c.h.b16 %v462
        %v1198 = vunpack.c.l.b16 %v463
        %v1199 = vunpack.c.h.b16 %v463
        %v1200 = vunpack.c.l.b16 %v464
        %v1201 = vunpack.c.h.b16 %v464
        %v1202 = vunpack.c.l.b16 %v465
        %v1203 = vunpack.c.h.b16 %v465
        %v1204 = vunpack.c.l.b16 %v466
        %v1205 = vunpack.c.h.b16 %v466
        %v1206 = vunpack.c.l.b16 %v467
        %v1207 = vunpack.c.h.b16 %v467
        %v1208 = vunpack.c.l.b16 %v468
        %v1209 = vunpack.c.h.b16 %v468
        %v1210 = vunpack.c.l.b16 %v469
        %v1211 = vunpack.c.h.b16 %v469
        %v1212 = vunpack.c.l.b16 %v470
        %v1213 = vunpack.c.h.b16 %v470
        %v1214 = vunpack.c.l.b16 %v471
        %v1215 = vunpack.c.h.b16 %v471
        %v1216 = vunpack.c.l.b16 %v472
        %v1217 = vunpack.c.h.b16 %v472
        %v1218 = vunpack.c.l.b16 %v473
        %v1219 = vunpack.c.h.b16 %v473
        %v1220 = vunpack.c.l.b16 %v474
        %v1221 = vunpack.c.h.b16 %v474
        %v1222 = vunpack.c.l.b16 %v475
        %v1223 = vunpack.c.h.b16 %v475
        %v1224 = vunpack.c.l.b16 %v476
        %v1225 = vunpack.c.h.b16 %v476
        %v1226 = vunpack.c.l.b16 %v477
        %v1227 = vunpack.c.h.b16 %v477
        %v1228 = vunpack.c.l.b16 %v478
        %v1229 = vunpack.c.h.b16 %v478
        %v1230 = vunpack.c.l.b16 %v479
        %v1231 = vunpack.c.h.b16 %v479
        %v1232 = vunpack.c.l.b16 %v480
        %v1233 = vunpack.c.h.b16 %v480
        %v1234 = vunpack.c.l.b16 %v481
        %v1235 = vunpack.c.h.b16 %v481
        %v1236 = vunpack.c.l.b16 %v482
        %v1237 = vunpack.c.h.b16 %v482
        %v1238 = vunpack.c.l.b16 %v483
        %v1239 = vunpack.c.h.b16 %v483
        %v1240 = vunpack.c.l.b16 %v484
        %v1241 = vunpack.c.h.b16 %v484
        %v1242 = vunpack.c.l.b16 %v485
        %v1243 = vunpack.c.h.b16 %v485
        %v1244 = vunpack.c.l.b16 %v486
        %v1245 = vunpack.c.h.b16 %v486
        %v1246 = vunpack.c.l.b16 %v487
        %v1247 = vunpack.c.h.b16 %v487
        %v1248 = vunpack.c.l.b16 %v488
        %v1249 = vunpack.c.h.b16 %v488
        %v1250 = vunpack.c.l.b16 %v489
        %v1251 = vunpack.c.h.b16 %v489
        %v1252 = vunpack.c.l.b16 %v490
        %v1253 = vunpack.c.h.b16 %v490
        %v1254 = vunpack.c.l.b16 %v491
        %v1255 = vunpack.c.h.b16 %v491
        %v1256 = vunpack.c.l.b16 %v492
        %v1257 = vunpack.c.h.b16 %v492
        %v1258 = vunpack.c.l.b16 %v493
        %v1259 = vunpack.c.h.b16 %v493
        %v1260 = vunpack.c.l.b16 %v494
        %v1261 = vunpack.c.h.b16 %v494
        %v1262 = vunpack.c.l.b16 %v495
        %v1263 = vunpack.c.h.b16 %v495
        %v1264 = vunpack.c.l.b16 %v496
        %v1265 = vunpack.c.h.b16 %v496
        %v1266 = vunpack.c.l.b16 %v497
        %v1267 = vunpack.c.h.b16 %v497
        %v1268 = vunpack.c.l.b16 %v498
        %v1269 = vunpack.c.h.b16 %v498
        %v1270 = vunpack.c.l.b16 %v499
        %v1271 = vunpack.c.h.b16 %v499
        %v1272 = vunpack.c.l.b16 %v500
        %v1273 = vunpack.c.h.b16 %v500
        %v1274 = vunpack.c.l.b16 %v501
        %v1275 = vunpack.c.h.b16 %v501
        %v1276 = vunpack.c.l.b16 %v502
        %v1277 = vunpack.c.h.b16 %v502
        %v1278 = vunpack.c.l.b16 %v503
        %v1279 = vunpack.c.h.b16 %v503
        %v1280 = vunpack.c.l.b16 %v504
        %v1281 = vunpack.c.h.b16 %v504
        %v1282 = vunpack.c.l.b16 %v505
        %v1283 = vunpack.c.h.b16 %v505
        %v1284 = vunpack.c.l.b16 %v506
        %v1285 = vunpack.c.h.b16 %v506
        %v1286 = vunpack.c.l.b16 %v507
        %v1287 = vunpack.c.h.b16 %v507
        %v1288 = vunpack.c.l.b16 %v508
        %v1289 = vunpack.c.h.b16 %v508
        %v1290 = vunpack.c.l.b16 %v509
        %v1291 = vunpack.c.h.b16 %v509
        %v1292 = vunpack.c.l.b16 %v510
        %v1293 = vunpack.c.h.b16 %v510
        %v1294 = vunpack.c.l.b16 %v511
        %v1295 = vunpack.c.h.b16 %v511
        %v1296 = vunpack.c.l.b16 %v512
        %v1297 = vunpack.c.h.b16 %v512
        %v1298 = vunpack.c.l.b16 %v513
        %v1299 = vunpack.c.h.b16 %v513
        %v1300 = vunpack.c.l.b16 %v514
        %v1301 = vunpack.c.h.b16 %v514
        %v1302 = vunpack.c.l.b16 %v515
        %v1303 = vunpack.c.h.b16 %v515
        %v1304 = vunpack.c.l.b16 %v516
        %v1305 = vunpack.c.h.b16 %v516
        %v1306 = vunpack.c.l.b16 %v517
        %v1307 = vunpack.c.h.b16 %v517
        %v1308 = vunpack.c.l.b16 %v518
        %v1309 = vunpack.c.h.b16 %v518
        %v1310 = vunpack.c.l.b16 %v519
        %v1311 = vunpack.c.h.b16 %v519
        %v1312 = vunpack.c.l.b16 %v520
        %v1313 = vunpack.c.h.b16 %v520
        %v1314 = vunpack.c.l.b16 %v521
        %v1315 = vunpack.c.h.b16 %v521
        %v1316 = vunpack.c.l.b16 %v522
        %v1317 = vunpack.c.h.b16 %v522
        %v1318 = vunpack.c.l.b16 %v523
        %v1319 = vunpack.c.h.b16 %v523
        %v1320 = vunpack.c.l.b16 %v524
        %v1321 = vunpack.c.h.b16 %v524
        %v1322 = vunpack.c.l.b16 %v525
        %v1323 = vunpack.c.h.b16 %v525
        %v1324 = vunpack.c.l.b16 %v526
        %v1325 = vunpack.c.h.b16 %v526
        %v1326 = vunpack.c.l.b16 %v527
        %v1327 = vunpack.c.h.b16 %v527
        %v1328 = vunpack.c.l.b16 %v528
        %v1329 = vunpack.c.h.b16 %v528
        %v1330 = vunpack.c.l.b16 %v529
        %v1331 = vunpack.c.h.b16 %v529
        %v1332 = vunpack.c.l.b16 %v530
        %v1333 = vunpack.c.h.b16 %v530
        %v1334 = vunpack.c.l.b16 %v531
        %v1335 = vunpack.c.h.b16 %v531
        %v1336 = vunpack.c.l.b16 %v532
        %v1337 = vunpack.c.h.b16 %v532
        %v1338 = vunpack.c.l.b16 %v533
        %v1339 = vunpack.c.h.b16 %v533
        %v1340 = vunpack.c.l.b16 %v534
        %v1341 = vunpack.c.h.b16 %v534
        %v1342 = vunpack.c.l.b16 %v535
        %v1343 = vunpack.c.h.b16 %v535
        %v1344 = vunpack.c.l.b16 %v536
        %v1345 = vunpack.c.h.b16 %v536
        %v1346 = vunpack.c.l.b16 %v537
        %v1347 = vunpack.c.h.b16 %v537
        %v1348 = vunpack.c.l.b16 %v538
        %v1349 = vunpack.c.h.b16 %v538
        %v1350 = vunpack.c.l.b16 %v539
        %v1351 = vunpack.c.h.b16 %v539
        %v1352 = vunpack.c.l.b16 %v540
        %v1353 = vunpack.c.h.b16 %v540
        %v1354 = vunpack.c.l.b16 %v541
        %v1355 = vunpack.c.h.b16 %v541
        %v1356 = vunpack.c.l.b16 %v542
        %v1357 = vunpack.c.h.b16 %v542
        %v1358 = vunpack.c.l.b16 %v543
        %v1359 = vunpack.c.h.b16 %v543
        %v1360 = vunpack.c.l.b16 %v544
        %v1361 = vunpack.c.h.b16 %v544
        %v1362 = vunpack.c.l.b16 %v545
        %v1363 = vunpack.c.h.b16 %v545
        %v1364 = vunpack.c.l.b16 %v546
        %v1365 = vunpack.c.h.b16 %v546
        %v1366 = vunpack.c.l.b16 %v547
        %v1367 = vunpack.c.h.b16 %v547
        %v1368 = vunpack.c.l.b16 %v548
        %v1369 = vunpack.c.h.b16 %v548
        %v1370 = vunpack.c.l.b16 %v549
        %v1371 = vunpack.c.h.b16 %v549
        %v1372 = vunpack.c.l.b16 %v550
        %v1373 = vunpack.c.h.b16 %v550
        %v1374 = vunpack.c.l.b16 %v551
        %v1375 = vunpack.c.h.b16 %v551
        %v1376 = vunpack.c.l.b16 %v552
        %v1377 = vunpack.c.h.b16 %v552
        %v1378 = vunpack.c.l.b16 %v553
        %v1379 = vunpack.c.h.b16 %v553
        %v1380 = vunpack.c.l.b16 %v554
        %v1381 = vunpack.c.h.b16 %v554
        %v1382 = vunpack.c.l.b16 %v555
        %v1383 = vunpack.c.h.b16 %v555
        %v1384 = vunpack.c.l.b16 %v556
        %v1385 = vunpack.c.h.b16 %v556
        %v1386 = vunpack.c.l.b16 %v557
        %v1387 = vunpack.c.h.b16 %v557
        %v1388 = vunpack.c.l.b16 %v558
        %v1389 = vunpack.c.h.b16 %v558
        %v1390 = vunpack.c.l.b16 %v559
        %v1391 = vunpack.c.h.b16 %v559
        %v1392 = vunpack.c.l.b16 %v560
        %v1393 = vunpack.c.h.b16 %v560
        %v1394 = vunpack.c.l.b16 %v561
        %v1395 = vunpack.c.h.b16 %v561
        %v1396 = vunpack.c.l.b16 %v562
        %v1397 = vunpack.c.h.b16 %v562
        %v1398 = vunpack.c.l.b16 %v563
        %v1399 = vunpack.c.h.b16 %v563
        %v1400 = vunpack.c.l.b16 %v564
        %v1401 = vunpack.c.h.b16 %v564
        %v1402 = vunpack.c.l.b16 %v565
        %v1403 = vunpack.c.h.b16 %v565
        %v1404 = vunpack.c.l.b16 %v566
        %v1405 = vunpack.c.h.b16 %v566
        %v1406 = vunpack.c.l.b16 %v567
        %v1407 = vunpack.c.h.b16 %v567
        %v1408 = vunpack.c.l.b16 %v568
        %v1409 = vunpack.c.h.b16 %v568
        %v1410 = vunpack.c.l.b16 %v569
        %v1411 = vunpack.c.h.b16 %v569
        %v1412 = vunpack.c.l.b16 %v570
        %v1413 = vunpack.c.h.b16 %v570
        %v1414 = vunpack.c.l.b16 %v571
        %v1415 = vunpack.c.h.b16 %v571
        %v1416 = vunpack.c.l.b16 %v572
        %v1417 = vunpack.c.h.b16 %v572
        %v1418 = vunpack.c.l.b16 %v573
        %v1419 = vunpack.c.h.b16 %v573
        %v1420 = vunpack.c.l.b16 %v574
        %v1421 = vunpack.c.h.b16 %v574
        %v1422 = vunpack.c.l.b16 %v575
        %v1423 = vunpack.c.h.b16 %v575
        %v1424 = vunpack.c.l.b16 %v576
        %v1425 = vunpack.c.h.b16 %v576
        %v1426 = vunpack.c.l.b16 %v577
        %v1427 = vunpack.c.h.b16 %v577
        %v1428 = vunpack.c.l.b16 %v578
        %v1429 = vunpack.c.h.b16 %v578
        %v1430 = vunpack.c.l.b16 %v579
        %v1431 = vunpack.c.h.b16 %v579
        %v1432 = vunpack.c.l.b16 %v580
        %v1433 = vunpack.c.h.b16 %v580
        %v1434 = vunpack.c.l.b16 %v581
        %v1435 = vunpack.c.h.b16 %v581
        %v1436 = vunpack.c.l.b16 %v582
        %v1437 = vunpack.c.h.b16 %v582
        %v1438 = vunpack.c.l.b16 %v583
        %v1439 = vunpack.c.h.b16 %v583
        %v1440 = vunpack.c.l.b16 %v584
        %v1441 = vunpack.c.h.b16 %v584
        %v1442 = vunpack.c.l.b16 %v585
        %v1443 = vunpack.c.h.b16 %v585
        %v1444 = vunpack.c.l.b16 %v586
        %v1445 = vunpack.c.h.b16 %v586
        %v1446 = vunpack.c.l.b16 %v587
        %v1447 = vunpack.c.h.b16 %v587
        %v1448 = vunpack.c.l.b16 %v588
        %v1449 = vunpack.c.h.b16 %v588
        %v1450 = vunpack.c.l.b16 %v589
        %v1451 = vunpack.c.h.b16 %v589
        %v1452 = vunpack.c.l.b16 %v590
        %v1453 = vunpack.c.h.b16 %v590
        %v1454 = vunpack.c.l.b16 %v591
        %v1455 = vunpack.c.h.b16 %v591
        %v1456 = vunpack.c.l.b16 %v592
        %v1457 = vunpack.c.h.b16 %v592
        %v1458 = vunpack.c.l.b16 %v593
        %v1459 = vunpack.c.h.b16 %v593
        %v1460 = vunpack.c.l.b16 %v594
        %v1461 = vunpack.c.h.b16 %v594
        %v1462 = vunpack.c.l.b16 %v595
        %v1463 = vunpack.c.h.b16 %v595
        %v1464 = vunpack.c.l.b16 %v596
        %v1465 = vunpack.c.h.b16 %v596
        %v1466 = vunpack.c.l.b16 %v597
        %v1467 = vunpack.c.h.b16 %v597
        %v1468 = vunpack.c.l.b16 %v598
        %v1469 = vunpack.c.h.b16 %v598
        %v1470 = vunpack.c.l.b16 %v599
        %v1471 = vunpack.c.h.b16 %v599
        %v1472 = vunpack.c.l.b16 %v600
        %v1473 = vunpack.c.h.b16 %v600
        %v1474 = vunpack.c.l.b16 %v601
        %v1475 = vunpack.c.h.b16 %v601
        %v1476 = vunpack.c.l.b16 %v602
        %v1477 = vunpack.c.h.b16 %v602
        %v1478 = vunpack.c.l.b16 %v603
        %v1479 = vunpack.c.h.b16 %v603
        %v1480 = vunpack.c.l.b16 %v604
        %v1481 = vunpack.c.h.b16 %v604
        %v1482 = vunpack.c.l.b16 %v605
        %v1483 = vunpack.c.h.b16 %v605
        %v1484 = vunpack.c.l.b16 %v606
        %v1485 = vunpack.c.h.b16 %v606
        %v1486 = vunpack.c.l.b16 %v607
        %v1487 = vunpack.c.h.b16 %v607
        %v1488 = vunpack.c.l.b16 %v608
        %v1489 = vunpack.c.h.b16 %v608
        %v1490 = vunpack.c.l.b16 %v609
        %v1491 = vunpack.c.h.b16 %v609
        %v1492 = vunpack.c.l.b16 %v610
        %v1493 = vunpack.c.h.b16 %v610
        %v1494 = vunpack.c.l.b16 %v611
        %v1495 = vunpack.c.h.b16 %v611
        %v1496 = vunpack.c.l.b16 %v612
        %v1497 = vunpack.c.h.b16 %v612
        %v1498 = vunpack.c.l.b16 %v613
        %v1499 = vunpack.c.h.b16 %v613
        %v1500 = vunpack.c.l.b16 %v614
        %v1501 = vunpack.c.h.b16 %v614
        %v1502 = vunpack.c.l.b16 %v615
        %v1503 = vunpack.c.h.b16 %v615
        %v1504 = vunpack.c.l.b16 %v616
        %v1505 = vunpack.c.h.b16 %v616
        %v1506 = vunpack.c.l.b16 %v617
        %v1507 = vunpack.c.h.b16 %v617
        %v1508 = vunpack.c.l.b16 %v618
        %v1509 = vunpack.c.h.b16 %v618
        %v1510 = vunpack.c.l.b16 %v619
        %v1511 = vunpack.c.h.b16 %v619
        %v1512 = vunpack.c.l.b16 %v620
        %v1513 = vunpack.c.h.b16 %v620
        %v1514 = vunpack.c.l.b16 %v621
        %v1515 = vunpack.c.h.b16 %v621
        %v1516 = vunpack.c.l.b16 %v622
        %v1517 = vunpack.c.h.b16 %v622
        %v1518 = vunpack.c.l.b16 %v623
        %v1519 = vunpack.c.h.b16 %v623
        %v1520 = vunpack.c.l.b16 %v624
        %v1521 = vunpack.c.h.b16 %v624
        %v1522 = vunpack.c.l.b16 %v625
        %v1523 = vunpack.c.h.b16 %v625
        %v1524 = vunpack.c.l.b16 %v626
        %v1525 = vunpack.c.h.b16 %v626
        %v1526 = vunpack.c.l.b16 %v627
        %v1527 = vunpack.c.h.b16 %v627
        %v1528 = vunpack.c.l.b16 %v628
        %v1529 = vunpack.c.h.b16 %v628
        %v1530 = vunpack.c.l.b16 %v629
        %v1531 = vunpack.c.h.b16 %v629
        %v1532 = vunpack.c.l.b16 %v630
        %v1533 = vunpack.c.h.b16 %v630
        %v1534 = vunpack.c.l.b16 %v631
        %v1535 = vunpack.c.h.b16 %v631
        %v1536 = vunpack.c.l.b16 %v632
        %v1537 = vunpack.c.h.b16 %v632
        %v1538 = vunpack.c.l.b16 %v633
        %v1539 = vunpack.c.h.b16 %v633
        %v1540 = vunpack.c.l.b16 %v634
        %v1541 = vunpack.c.h.b16 %v634
        %v1542 = vunpack.c.l.b16 %v635
        %v1543 = vunpack.c.h.b16 %v635
        %v1544 = vunpack.c.l.b16 %v636
        %v1545 = vunpack.c.h.b16 %v636
        %v1546 = vunpack.c.l.b16 %v637
        %v1547 = vunpack.c.h.b16 %v637
        %v1548 = vunpack.c.l.b16 %v638
        %v1549 = vunpack.c.h.b16 %v638
        %v1550 = vunpack.c.l.b16 %v639
        %v1551 = vunpack.c.h.b16 %v639
        %v1552 = vunpack.c.l.b16 %v640
        %v1553 = vunpack.c.h.b16 %v640
        %v1554 = vunpack.c.l.b16 %v641
        %v1555 = vunpack.c.h.b16 %v641
        %v1556 = vunpack.c.l.b16 %v642
        %v1557 = vunpack.c.h.b16 %v642
        %v1558 = vunpack.c.l.b16 %v643
        %v1559 = vunpack.c.h.b16 %v643
        %v1560 = vunpack.c.l.b16 %v644
        %v1561 = vunpack.c.h.b16 %v644
        %v1562 = vunpack.c.l.b16 %v645
        %v1563 = vunpack.c.h.b16 %v645
        %v1564 = vunpack.c.l.b16 %v646
        %v1565 = vunpack.c.h.b16 %v646
        %v1566 = vunpack.c.l.b16 %v647
        %v1567 = vunpack.c.h.b16 %v647
        %v1568 = vunpack.c.l.b16 %v648
        %v1569 = vunpack.c.h.b16 %v648
        %v1570 = vunpack.c.l.b16 %v649
        %v1571 = vunpack.c.h.b16 %v649
        %v1572 = vunpack.c.l.b16 %v650
        %v1573 = vunpack.c.h.b16 %v650
        %v1574 = vunpack.c.l.b16 %v651
        %v1575 = vunpack.c.h.b16 %v651
        %v1576 = vunpack.c.l.b16 %v652
        %v1577 = vunpack.c.h.b16 %v652
        %v1578 = vunpack.c.l.b16 %v653
        %v1579 = vunpack.c.h.b16 %v653
        %v1580 = vunpack.c.l.b16 %v654
        %v1581 = vunpack.c.h.b16 %v654
        %v1582 = vunpack.c.l.b16 %v655
        %v1583 = vunpack.c.h.b16 %v655
        %v1584 = vunpack.c.l.b16 %v656
        %v1585 = vunpack.c.h.b16 %v656
        %v1586 = vunpack.c.l.b16 %v657
        %v1587 = vunpack.c.h.b16 %v657
        %v1588 = vunpack.c.l.b16 %v658
        %v1589 = vunpack.c.h.b16 %v658
        %v1590 = vunpack.c.l.b16 %v659
        %v1591 = vunpack.c.h.b16 %v659
        %v1592 = vunpack.c.l.b16 %v660
        %v1593 = vunpack.c.h.b16 %v660
        %v1594 = vunpack.c.l.b16 %v661
        %v1595 = vunpack.c.h.b16 %v661
        %v1596 = vunpack.c.l.b16 %v662
        %v1597 = vunpack.c.h.b16 %v662
        %v1598 = vunpack.c.l.b16 %v663
        %v1599 = vunpack.c.h.b16 %v663
        %v1600 = vunpack.c.l.b16 %v664
        %v1601 = vunpack.c.h.b16 %v664
        %v1602 = vunpack.c.l.b16 %v665
        %v1603 = vunpack.c.h.b16 %v665
        %v1604 = vunpack.c.l.b16 %v666
        %v1605 = vunpack.c.h.b16 %v666
        %v1606 = vunpack.c.l.b16 %v667
        %v1607 = vunpack.c.h.b16 %v667
        %v1608 = vunpack.c.l.b16 %v668
        %v1609 = vunpack.c.h.b16 %v668
        %v1610 = vunpack.c.l.b16 %v669
        %v1611 = vunpack.c.h.b16 %v669
        %v1612 = vunpack.c.l.b16 %v670
        %v1613 = vunpack.c.h.b16 %v670
        %v1614 = vunpack.c.l.b16 %v671
        %v1615 = vunpack.c.h.b16 %v671
        %v1616 = vunpack.c.l.b16 %v672
        %v1617 = vunpack.c.h.b16 %v672
        %v1618 = vunpack.c.l.b16 %v673
        %v1619 = vunpack.c.h.b16 %v673
        %v1620 = vunpack.c.l.b16 %v674
        %v1621 = vunpack.c.h.b16 %v674
        %v1622 = vunpack.c.l.b16 %v675
        %v1623 = vunpack.c.h.b16 %v675
        %v1624 = vunpack.c.l.b16 %v676
        %v1625 = vunpack.c.h.b16 %v676
        %v1626 = vunpack.c.l.b16 %v677
        %v1627 = vunpack.c.h.b16 %v677
        %v1628 = vunpack.c.l.b16 %v678
        %v1629 = vunpack.c.h.b16 %v678
        %v1630 = vunpack.c.l.b16 %v679
        %v1631 = vunpack.c.h.b16 %v679
        %v1632 = vunpack.c.l.b16 %v680
        %v1633 = vunpack.c.h.b16 %v680
        %v1634 = vunpack.c.l.b16 %v681
        %v1635 = vunpack.c.h.b16 %v681
        %v1636 = vunpack.c.l.b16 %v682
        %v1637 = vunpack.c.h.b16 %v682
        %v1638 = vunpack.c.l.b16 %v683
        %v1639 = vunpack.c.h.b16 %v683
        %v1640 = vunpack.c.l.b16 %v684
        %v1641 = vunpack.c.h.b16 %v684
        %v1642 = vunpack.c.l.b16 %v685
        %v1643 = vunpack.c.h.b16 %v685
        %v1644 = vunpack.c.l.b16 %v686
        %v1645 = vunpack.c.h.b16 %v686
        %v1646 = vunpack.c.l.b16 %v687
        %v1647 = vunpack.c.h.b16 %v687
        %v1648 = vunpack.c.l.b16 %v688
        %v1649 = vunpack.c.h.b16 %v688
        %v1650 = vunpack.c.l.b16 %v689
        %v1651 = vunpack.c.h.b16 %v689
        %v1652 = vunpack.c.l.b16 %v690
        %v1653 = vunpack.c.h.b16 %v690
        %v1654 = vunpack.c.l.b16 %v691
        %v1655 = vunpack.c.h.b16 %v691
        %v1656 = vunpack.c.l.b16 %v692
        %v1657 = vunpack.c.h.b16 %v692
        %v1658 = vunpack.c.l.b16 %v693
        %v1659 = vunpack.c.h.b16 %v693
        %v1660 = vunpack.c.l.b16 %v694
        %v1661 = vunpack.c.h.b16 %v694
        %v1662 = vunpack.c.l.b16 %v695
        %v1663 = vunpack.c.h.b16 %v695
        %v1664 = vunpack.c.l.b16 %v696
        %v1665 = vunpack.c.h.b16 %v696
        %v1666 = vunpack.c.l.b16 %v697
        %v1667 = vunpack.c.h.b16 %v697
        %v1668 = vpack.c.b16 %v1164, %v1156
        %v1669 = vpack.c.b16 %v1165, %v1157
        %v1670 = vpack.c.b16 %v1166, %v1158
        %v1671 = vpack.c.b16 %v1167, %v1159
        %v1672 = vpack.c.b16 %v1168, %v1160
        %v1673 = vpack.c.b16 %v1169, %v1161
        %v1674 = vpack.c.b16 %v1170, %v1162
        %v1675 = vpack.c.b16 %v1171, %v1163
        %v1676 = vpack.c.b16 %v1180, %v1172
        %v1677 = vpack.c.b16 %v1181, %v1173
        %v1678 = vpack.c.b16 %v1182, %v1174
        %v1679 = vpack.c.b16 %v1183, %v1175
        %v1680 = vpack.c.b16 %v1184, %v1176
        %v1681 = vpack.c.b16 %v1185, %v1177
        %v1682 = vpack.c.b16 %v1186, %v1178
        %v1683 = vpack.c.b16 %v1187, %v1179
        %v1684 = vpack.c.b16 %v1196, %v1188
        %v1685 = vpack.c.b16 %v1197, %v1189
        %v1686 = vpack.c.b16 %v1198, %v1190
        %v1687 = vpack.c.b16 %v1199, %v1191
        %v1688 = vpack.c.b16 %v1200, %v1192
        %v1689 = vpack.c.b16 %v1201, %v1193
        %v1690 = vpack.c.b16 %v1202, %v1194
        %v1691 = vpack.c.b16 %v1203, %v1195
        %v1692 = vpack.c.b16 %v1212, %v1204
        %v1693 = vpack.c.b16 %v1213, %v1205
        %v1694 = vpack.c.b16 %v1214, %v1206
        %v1695 = vpack.c.b16 %v1215, %v1207
        %v1696 = vpack.c.b16 %v1216, %v1208
        %v1697 = vpack.c.b16 %v1217, %v1209
        %v1698 = vpack.c.b16 %v1218, %v1210
        %v1699 = vpack.c.b16 %v1219, %v1211
        %v1700 = vpack.c.b16 %v1228, %v1220
        %v1701 = vpack.c.b16 %v1229, %v1221
        %v1702 = vpack.c.b16 %v1230, %v1222
        %v1703 = vpack.c.b16 %v1231, %v1223
        %v1704 = vpack.c.b16 %v1232, %v1224
        %v1705 = vpack.c.b16 %v1233, %v1225
        %v1706 = vpack.c.b16 %v1234, %v1226
        %v1707 = vpack.c.b16 %v1235, %v1227
        %v1708 = vpack.c.b16 %v1244, %v1236
        %v1709 = vpack.c.b16 %v1245, %v1237
        %v1710 = vpack.c.b16 %v1246, %v1238
        %v1711 = vpack.c.b16 %v1247, %v1239
        %v1712 = vpack.c.b16 %v1248, %v1240
        %v1713 = vpack.c.b16 %v1249, %v1241
        %v1714 = vpack.c.b16 %v1250, %v1242
        %v1715 = vpack.c.b16 %v1251, %v1243
        %v1716 = vpack.c.b16 %v1260, %v1252
        %v1717 = vpack.c.b16 %v1261, %v1253
        %v1718 = vpack.c.b16 %v1262, %v1254
        %v1719 = vpack.c.b16 %v1263, %v1255
        %v1720 = vpack.c.b16 %v1264, %v1256
        %v1721 = vpack.c.b16 %v1265, %v1257
        %v1722 = vpack.c.b16 %v1266, %v1258
        %v1723 = vpack.c.b16 %v1267, %v1259
        %v1724 = vpack.c.b16 %v1276, %v1268
        %v1725 = vpack.c.b16 %v1277, %v1269
        %v1726 = vpack.c.b16 %v1278, %v1270
        %v1727 = vpack.c.b16 %v1279, %v1271
        %v1728 = vpack.c.b16 %v1280, %v1272
        %v1729 = vpack.c.b16 %v1281, %v1273
        %v1730 = vpack.c.b16 %v1282, %v1274
        %v1731 = vpack.c.b16 %v1283, %v1275
        %v1732 = vpack.c.b16 %v1292, %v1284
        %v1733 = vpack.c.b16 %v1293, %v1285
        %v1734 = vpack.c.b16 %v1294, %v1286
        %v1735 = vpack.c.b16 %v1295, %v1287
        %v1736 = vpack.c.b16 %v1296, %v1288
        %v1737 = vpack.c.b16 %v1297, %v1289
        %v1738 = vpack.c.b16 %v1298, %v1290
        %v1739 = vpack.c.b16 %v1299, %v1291
        %v1740 = vpack.c.b16 %v1308, %v1300
        %v1741 = vpack.c.b16 %v1309, %v1301
        %v1742 = vpack.c.b16 %v1310, %v1302
        %v1743 = vpack.c.b16 %v1311, %v1303
        %v1744 = vpack.c.b16 %v1312, %v1304
        %v1745 = vpack.c.b16 %v1313, %v1305
        %v1746 = vpack.c.b16 %v1314, %v1306
        %v1747 = vpack.c.b16 %v1315, %v1307
        %v1748 = vpack.c.b16 %v1324, %v1316
        %v1749 = vpack.c.b16 %v1325, %v1317
        %v1750 = vpack.c.b16 %v1326, %v1318
        %v1751 = vpack.c.b16 %v1327, %v1319
        %v1752 = vpack.c.b16 %v1328, %v1320
        %v1753 = vpack.c.b16 %v1329, %v1321
        %v1754 = vpack.c.b16 %v1330, %v1322
        %v1755 = vpack.c.b16 %v1331, %v1323
        %v1756 = vpack.c.b16 %v1340, %v1332
        %v1757 = vpack.c.b16 %v1341, %v1333
        %v1758 = vpack.c.b16 %v1342, %v1334
        %v1759 = vpack.c.b16 %v1343, %v1335
        %v1760 = vpack.c.b16 %v1344, %v1336
        %v1761 = vpack.c.b16 %v1345, %v1337
        %v1762 = vpack.c.b16 %v1346, %v1338
        %v1763 = vpack.c.b16 %v1347, %v1339
        %v1764 = vpack.c.b16 %v1356, %v1348
        %v1765 = vpack.c.b16 %v1357, %v1349
        %v1766 = vpack.c.b16 %v1358, %v1350
        %v1767 = vpack.c.b16 %v1359, %v1351
        %v1768 = vpack.c.b16 %v1360, %v1352
        %v1769 = vpack.c.b16 %v1361, %v1353
        %v1770 = vpack.c.b16 %v1362, %v1354
        %v1771 = vpack.c.b16 %v1363, %v1355
        %v1772 = vpack.c.b16 %v1372, %v1364
        %v1773 = vpack.c.b16 %v1373, %v1365
        %v1774 = vpack.c.b16 %v1374, %v1366
        %v1775 = vpack.c.b16 %v1375, %v1367
        %v1776 = vpack.c.b16 %v1376, %v1368
        %v1777 = vpack.c.b16 %v1377, %v1369
        %v1778 = vpack.c.b16 %v1378, %v1370
        %v1779 = vpack.c.b16 %v1379, %v1371
        %v1780 = vpack.c.b16 %v1388, %v1380
        %v1781 = vpack.c.b16 %v1389, %v1381
        %v1782 = vpack.c.b16 %v1390, %v1382
        %v1783 = vpack.c.b16 %v1391, %v1383
        %v1784 = vpack.c.b16 %v1392, %v1384
        %v1785 = vpack.c.b16 %v1393, %v1385
        %v1786 = vpack.c.b16 %v1394, %v1386
        %v1787 = vpack.c.b16 %v1395, %v1387
        %v1788 = vpack.c.b16 %v1404, %v1396
        %v1789 = vpack.c.b16 %v1405, %v1397
        %v1790 = vpack.c.b16 %v1406, %v1398
        %v1791 = vpack.c.b16 %v1407, %v1399
        %v1792 = vpack.c.b16 %v1408, %v1400
        %v1793 = vpack.c.b16 %v1409, %v1401
        %v1794 = vpack.c.b16 %v1410, %v1402
        %v1795 = vpack.c.b16 %v1411, %v1403
        %v1796 = vpack.c.b16 %v1420, %v1412
        %v1797 = vpack.c.b16 %v1421, %v1413
        %v1798 = vpack.c.b16 %v1422, %v1414
        %v1799 = vpack.c.b16 %v1423, %v1415
        %v1800 = vpack.c.b16 %v1424, %v1416
        %v1801 = vpack.c.b16 %v1425, %v1417
        %v1802 = vpack.c.b16 %v1426, %v1418
        %v1803 = vpack.c.b16 %v1427, %v1419
        %v1804 = vpack.c.b16 %v1436, %v1428
        %v1805 = vpack.c.b16 %v1437, %v1429
        %v1806 = vpack.c.b16 %v1438, %v1430
        %v1807 = vpack.c.b16 %v1439, %v1431
        %v1808 = vpack.c.b16 %v1440, %v1432
        %v1809 = vpack.c.b16 %v1441, %v1433
        %v1810 = vpack.c.b16 %v1442, %v1434
        %v1811 = vpack.c.b16 %v1443, %v1435
        %v1812 = vpack.c.b16 %v1452, %v1444
        %v1813 = vpack.c.b16 %v1453, %v1445
        %v1814 = vpack.c.b16 %v1454, %v1446
        %v1815 = vpack.c.b16 %v1455, %v1447
        %v1816 = vpack.c.b16 %v1456, %v1448
        %v1817 = vpack.c.b16 %v1457, %v1449
        %v1818 = vpack.c.b16 %v1458, %v1450
        %v1819 = vpack.c.b16 %v1459, %v1451
        %v1820 = vpack.c.b16 %v1468, %v1460
        %v1821 = vpack.c.b16 %v1469, %v1461
        %v1822 = vpack.c.b16 %v1470, %v1462
        %v1823 = vpack.c.b16 %v1471, %v1463
        %v1824 = vpack.c.b16 %v1472, %v1464
        %v1825 = vpack.c.b16 %v1473, %v1465
        %v1826 = vpack.c.b16 %v1474, %v1466
        %v1827 = vpack.c.b16 %v1475, %v1467
        %v1828 = vpack.c.b16 %v1484, %v1476
        %v1829 = vpack.c.b16 %v1485, %v1477
        %v1830 = vpack.c.b16 %v1486, %v1478
        %v1831 = vpack.c.b16 %v1487, %v1479
        %v1832 = vpack.c.b16 %v1488, %v1480
        %v1833 = vpack.c.b16 %v1489, %v1481
        %v1834 = vpack.c.b16 %v1490, %v1482
        %v1835 = vpack.c.b16 %v1491, %v1483
        %v1836 = vpack.c.b16 %v1500, %v1492
        %v1837 = vpack.c.b16 %v1501, %v1493
        %v1838 = vpack.c.b16 %v1502, %v1494
        %v1839 = vpack.c.b16 %v1503, %v1495
        %v1840 = vpack.c.b16 %v1504, %v1496
        %v1841 = vpack.c.b16 %v1505, %v1497
        %v1842 = vpack.c.b16 %v1506, %v1498
        %v1843 = vpack.c.b16 %v1507, %v1499
        %v1844 = vpack.c.b16 %v1516, %v1508
        %v1845 = vpack.c.b16 %v1517, %v1509
        %v1846 = vpack.c.b16 %v1518, %v1510
        %v1847 = vpack.c.b16 %v1519, %v1511
        %v1848 = vpack.c.b16 %v1520, %v1512
        %v1849 = vpack.c.b16 %v1521, %v1513
        %v1850 = vpack.c.b16 %v1522, %v1514
        %v1851 = vpack.c.b16 %v1523, %v1515
        %v1852 = vpack.c.b16 %v1532, %v1524
        %v1853 = vpack.c.b16 %v1533, %v1525
        %v1854 = vpack.c.b16 %v1534, %v1526
        %v1855 = vpack.c.b16 %v1535, %v1527
        %v1856 = vpack.c.b16 %v1536, %v1528
        %v1857 = vpack.c.b16 %v1537, %v1529
        %v1858 = vpack.c.b16 %v1538, %v1530
        %v1859 = vpack.c.b16 %v1539, %v1531
        %v1860 = vpack.c.b16 %v1548, %v1540
        %v1861 = vpack.c.b16 %v1549, %v1541
        %v1862 = vpack.c.b16 %v1550, %v1542
        %v1863 = vpack.c.b16 %v1551, %v1543
        %v1864 = vpack.c.b16 %v1552, %v1544
        %v1865 = vpack.c.b16 %v1553, %v1545
        %v1866 = vpack.c.b16 %v1554, %v1546
        %v1867 = vpack.c.b16 %v1555, %v1547
        %v1868 = vpack.c.b16 %v1564, %v1556
        %v1869 = vpack.c.b16 %v1565, %v1557
        %v1870 = vpack.c.b16 %v1566, %v1558
        %v1871 = vpack.c.b16 %v1567, %v1559
        %v1872 = vpack.c.b16 %v1568, %v1560
        %v1873 = vpack.c.b16 %v1569, %v1561
        %v1874 = vpack.c.b16 %v1570, %v1562
        %v1875 = vpack.c.b16 %v1571, %v1563
        %v1876 = vpack.c.b16 %v1580, %v1572
        %v1877 = vpack.c.b16 %v1581, %v1573
        %v1878 = vpack.c.b16 %v1582, %v1574
        %v1879 = vpack.c.b16 %v1583, %v1575
        %v1880 = vpack.c.b16 %v1584, %v1576
        %v1881 = vpack.c.b16 %v1585, %v1577
        %v1882 = vpack.c.b16 %v1586, %v1578
        %v1883 = vpack.c.b16 %v1587, %v1579
        %v1884 = vpack.c.b16 %v1596, %v1588
        %v1885 = vpack.c.b16 %v1597, %v1589
        %v1886 = vpack.c.b16 %v1598, %v1590
        %v1887 = vpack.c.b16 %v1599, %v1591
        %v1888 = vpack.c.b16 %v1600, %v1592
        %v1889 = vpack.c.b16 %v1601, %v1593
        %v1890 = vpack.c.b16 %v1602, %v1594
        %v1891 = vpack.c.b16 %v1603, %v1595
        %v1892 = vpack.c.b16 %v1612, %v1604
        %v1893 = vpack.c.b16 %v1613, %v1605
        %v1894 = vpack.c.b16 %v1614, %v1606
        %v1895 = vpack.c.b16 %v1615, %v1607
        %v1896 = vpack.c.b16 %v1616, %v1608
        %v1897 = vpack.c.b16 %v1617, %v1609
        %v1898 = vpack.c.b16 %v1618, %v1610
        %v1899 = vpack.c.b16 %v1619, %v1611
        %v1900 = vpack.c.b16 %v1628, %v1620
        %v1901 = vpack.c.b16 %v1629, %v1621
        %v1902 = vpack.c.b16 %v1630, %v1622
        %v1903 = vpack.c.b16 %v1631, %v1623
        %v1904 = vpack.c.b16 %v1632, %v1624
        %v1905 = vpack.c.b16 %v1633, %v1625
        %v1906 = vpack.c.b16 %v1634, %v1626
        %v1907 = vpack.c.b16 %v1635, %v1627
        %v1908 = vpack.c.b16 %v1644, %v1636
        %v1909 = vpack.c.b16 %v1645, %v1637
        %v1910 = vpack.c.b16 %v1646, %v1638
        %v1911 = vpack.c.b16 %v1647, %v1639
        %v1912 = vpack.c.b16 %v1648, %v1640
        %v1913 = vpack.c.b16 %v1649, %v1641
        %v1914 = vpack.c.b16 %v1650, %v1642
        %v1915 = vpack.c.b16 %v1651, %v1643
        %v1916 = vpack.c.b16 %v1660, %v1652
        %v1917 = vpack.c.b16 %v1661, %v1653
        %v1918 = vpack.c.b16 %v1662, %v1654
        %v1919 = vpack.c.b16 %v1663, %v1655
        %v1920 = vpack.c.b16 %v1664, %v1656
        %v1921 = vpack.c.b16 %v1665, %v1657
        %v1922 = vpack.c.b16 %v1666, %v1658
        %v1923 = vpack.c.b16 %v1667, %v1659
        %2180 = vmatprep.subr.bf16.mxu0 %v1669
        %2181 = vmatpush1.bf16.msra.mxu0 %v1668
        %2182 = vmatprep.subr.bf16.mxu0 %v1677
        %2183 = vmatpush1.bf16.msra.mxu0 %v1676
        %2184 = vmatprep.subr.bf16.mxu0 %v1685
        %2185 = vmatpush1.bf16.msra.mxu0 %v1684
        %2186 = vmatprep.subr.bf16.mxu0 %v1693
        %2187 = vmatpush1.bf16.msra.mxu0 %v1692
        %2188 = vmatprep.subr.bf16.mxu0 %v1701
        %2189 = vmatpush1.bf16.msra.mxu0 %v1700
        %2190 = vmatprep.subr.bf16.mxu0 %v1709
        %2191 = vmatpush1.bf16.msra.mxu0 %v1708
        %2192 = vmatprep.subr.bf16.mxu0 %v1717
        %2193 = vmatpush1.bf16.msra.mxu0 %v1716
        %2194 = vmatprep.subr.bf16.mxu0 %v1725
        %2195 = vmatpush1.bf16.msra.mxu0 %v1724
        %2196 = vmatprep.subr.bf16.mxu0 %v1733
        %2197 = vmatpush1.bf16.msra.mxu0 %v1732
        %2198 = vmatprep.subr.bf16.mxu0 %v1741
        %2199 = vmatpush1.bf16.msra.mxu0 %v1740
        %2200 = vmatprep.subr.bf16.mxu0 %v1749
        %2201 = vmatpush1.bf16.msra.mxu0 %v1748
        %2202 = vmatprep.subr.bf16.mxu0 %v1757
        %2203 = vmatpush1.bf16.msra.mxu0 %v1756
        %2204 = vmatprep.subr.bf16.mxu0 %v1765
        %2205 = vmatpush1.bf16.msra.mxu0 %v1764
        %2206 = vmatprep.subr.bf16.mxu0 %v1773
        %2207 = vmatpush1.bf16.msra.mxu0 %v1772
        %2208 = vmatprep.subr.bf16.mxu0 %v1781
        %2209 = vmatpush1.bf16.msra.mxu0 %v1780
        %2210 = vmatprep.subr.bf16.mxu0 %v1789
        %2211 = vmatpush1.bf16.msra.mxu0 %v1788
        %2212 = vmatprep.mubr.bf16.mxu0 %v837
        %2213 = vmatmul.mubr.bf16.gmra.mrb[0].mxu0 %v836
        %v2214 = vpop.f32.mrb[0].mxu0
        %v2215 = vadd.f32 %v703, %v2214
        %v2216 = vpop.f32.mrb[0].mxu0
        %v2217 = vadd.f32 %v707, %v2216
        %v2218 = vpop.f32.mrb[0].mxu0
        %v2219 = vadd.f32 %v703, %v2218
        %v2220 = vpop.f32.mrb[0].mxu0
        %v2221 = vadd.f32 %v707, %v2220
        %2222 = vmatprep.mubr.bf16.mxu0 %v841
        %2223 = vmatmul.mubr.bf16.gmra.mrb[0].mxu0 %v840
        %v2224 = vpop.f32.mrb[0].mxu0
        %v2225 = vadd.f32 %v703, %v2224
        %v2226 = vpop.f32.mrb[0].mxu0
        %v2227 = vadd.f32 %v707, %v2226
        %v2228 = vpop.f32.mrb[0].mxu0
        %v2229 = vadd.f32 %v703, %v2228
        %v2230 = vpop.f32.mrb[0].mxu0
        %v2231 = vadd.f32 %v707, %v2230
        %2232 = vmatprep.mubr.bf16.mxu0 %v845
        %2233 = vmatmul.mubr.bf16.gmra.mrb[0].mxu0 %v844
        %v2234 = vpop.f32.mrb[0].mxu0
        %v2235 = vadd.f32 %v703, %v2234
        %v2236 = vpop.f32.mrb[0].mxu0
        %v2237 = vadd.f32 %v707, %v2236
        %v2238 = vpop.f32.mrb[0].mxu0
        %v2239 = vadd.f32 %v703, %v2238
        %v2240 = vpop.f32.mrb[0].mxu0
        %v2241 = vadd.f32 %v707, %v2240
        %2242 = vmatprep.mubr.bf16.mxu0 %v849
        %2243 = vmatmul.mubr.bf16.gmra.mrb[0].mxu0 %v848
        %v2244 = vpop.f32.mrb[0].mxu0
        %v2245 = vadd.f32 %v703, %v2244
        %v2246 = vpop.f32.mrb[0].mxu0
        %v2247 = vadd.f32 %v707, %v2246
        %v2248 = vpop.f32.mrb[0].mxu0
        %v2249 = vadd.f32 %v703, %v2248
        %v2250 = vpop.f32.mrb[0].mxu0
        %v2251 = vadd.f32 %v707, %v2250
        %2252 = vmatprep.mubr.bf16.mxu0 %v853
        %2253 = vmatmul.mubr.bf16.gmra.mrb[0].mxu0 %v852
        %v2254 = vpop.f32.mrb[0].mxu0
        %v2255 = vadd.f32 %v703, %v2254
        %v2256 = vpop.f32.mrb[0].mxu0
        %v2257 = vadd.f32 %v707, %v2256
        %v2258 = vpop.f32.mrb[0].mxu0
        %v2259 = vadd.f32 %v703, %v2258
        %v2260 = vpop.f32.mrb[0].mxu0
        %v2261 = vadd.f32 %v707, %v2260
        %2262 = vmatprep.mubr.bf16.mxu0 %v857
        %2263 = vmatmul.mubr.bf16.gmra.mrb[0].mxu0 %v856
        %v2264 = vpop.f32.mrb[0].mxu0
        %v2265 = vadd.f32 %v703, %v2264
        %v2266 = vpop.f32.mrb[0].mxu0
        %v2267 = vadd.f32 %v707, %v2266
        %v2268 = vpop.f32.mrb[0].mxu0
        %v2269 = vadd.f32 %v703, %v2268
        %v2270 = vpop.f32.mrb[0].mxu0
        %v2271 = vadd.f32 %v707, %v2270
        %2272 = vmatprep.mubr.bf16.mxu0 %v861
        %2273 = vmatmul.mubr.bf16.gmra.mrb[0].mxu0 %v860
        %v2274 = vpop.f32.mrb[0].mxu0
        %v2275 = vadd.f32 %v703, %v2274
        %v2276 = vpop.f32.mrb[0].mxu0
        %v2277 = vadd.f32 %v707, %v2276
        %v2278 = vpop.f32.mrb[0].mxu0
        %v2279 = vadd.f32 %v703, %v2278
        %v2280 = vpop.f32.mrb[0].mxu0
        %v2281 = vadd.f32 %v707, %v2280
        %2282 = vmatprep.mubr.bf16.mxu0 %v865
        %2283 = vmatmul.mubr.bf16.gmra.mrb[0].mxu0 %v864
        %v2284 = vpop.f32.mrb[0].mxu0
        %v2285 = vadd.f32 %v703, %v2284
        %v2286 = vpop.f32.mrb[0].mxu0
        %v2287 = vadd.f32 %v707, %v2286
        %v2288 = vpop.f32.mrb[0].mxu0
        %v2289 = vadd.f32 %v703, %v2288
        %v2290 = vpop.f32.mrb[0].mxu0
        %v2291 = vadd.f32 %v707, %v2290
        %2292 = vdwg.mxu0
        %2293 = vmatprep.subr.bf16.mxu0 %v1797
        %2294 = vmatpush1.bf16.msra.mxu0 %v1796
        %2295 = vmatprep.subr.bf16.mxu0 %v1805
        %2296 = vmatpush1.bf16.msra.mxu0 %v1804
        %2297 = vmatprep.subr.bf16.mxu0 %v1813
        %2298 = vmatpush1.bf16.msra.mxu0 %v1812
        %2299 = vmatprep.subr.bf16.mxu0 %v1821
        %2300 = vmatpush1.bf16.msra.mxu0 %v1820
        %2301 = vmatprep.subr.bf16.mxu0 %v1829
        %2302 = vmatpush1.bf16.msra.mxu0 %v1828
        %2303 = vmatprep.subr.bf16.mxu0 %v1837
        %2304 = vmatpush1.bf16.msra.mxu0 %v1836
        %2305 = vmatprep.subr.bf16.mxu0 %v1845
        %2306 = vmatpush1.bf16.msra.mxu0 %v1844
        %2307 = vmatprep.subr.bf16.mxu0 %v1853
        %2308 = vmatpush1.bf16.msra.mxu0 %v1852
        %2309 = vmatprep.subr.bf16.mxu0 %v1861
        %2310 = vmatpush1.bf16.msra.mxu0 %v1860
        %2311 = vmatprep.subr.bf16.mxu0 %v1869
        %2312 = vmatpush1.bf16.msra.mxu0 %v1868
        %2313 = vmatprep.subr.bf16.mxu0 %v1877
        %2314 = vmatpush1.bf16.msra.mxu0 %v1876
        %2315 = vmatprep.subr.bf16.mxu0 %v1885
        %2316 = vmatpush1.bf16.msra.mxu0 %v1884
        %2317 = vmatprep.subr.bf16.mxu0 %v1893
        %2318 = vmatpush1.bf16.msra.mxu0 %v1892
        %2319 = vmatprep.subr.bf16.mxu0 %v1901
        %2320 = vmatpush1.bf16.msra.mxu0 %v1900
        %2321 = vmatprep.subr.bf16.mxu0 %v1909
        %2322 = vmatpush1.bf16.msra.mxu0 %v1908
        %2323 = vmatprep.subr.bf16.mxu0 %v1917
        %2324 = vmatpush1.bf16.msra.mxu0 %v1916
        %2325 = vmatprep.mubr.bf16.mxu0 %v839
        %2326 = vmatmul.mubr.bf16.gmra.mrb[0].mxu0 %v838
        %v2327 = vpop.f32.mrb[0].mxu0
        %v2328 = vadd.f32 %v2215, %v2327
        %v2329 = vpop.f32.mrb[0].mxu0
        %v2330 = vadd.f32 %v2217, %v2329
        %v2331 = vpop.f32.mrb[0].mxu0
        %v2332 = vadd.f32 %v2219, %v2331
        %v2333 = vpop.f32.mrb[0].mxu0
        %v2334 = vadd.f32 %v2221, %v2333
        %2335 = vmatprep.mubr.bf16.mxu0 %v843
        %2336 = vmatmul.mubr.bf16.gmra.mrb[0].mxu0 %v842
        %v2337 = vpop.f32.mrb[0].mxu0
        %v2338 = vadd.f32 %v2225, %v2337
        %v2339 = vpop.f32.mrb[0].mxu0
        %v2340 = vadd.f32 %v2227, %v2339
        %v2341 = vpop.f32.mrb[0].mxu0
        %v2342 = vadd.f32 %v2229, %v2341
        %v2343 = vpop.f32.mrb[0].mxu0
        %v2344 = vadd.f32 %v2231, %v2343
        %2345 = vmatprep.mubr.bf16.mxu0 %v847
        %2346 = vmatmul.mubr.bf16.gmra.mrb[0].mxu0 %v846
        %v2347 = vpop.f32.mrb[0].mxu0
        %v2348 = vadd.f32 %v2235, %v2347
        %v2349 = vpop.f32.mrb[0].mxu0
        %v2350 = vadd.f32 %v2237, %v2349
        %v2351 = vpop.f32.mrb[0].mxu0
        %v2352 = vadd.f32 %v2239, %v2351
        %v2353 = vpop.f32.mrb[0].mxu0
        %v2354 = vadd.f32 %v2241, %v2353
        %2355 = vmatprep.mubr.bf16.mxu0 %v851
        %2356 = vmatmul.mubr.bf16.gmra.mrb[0].mxu0 %v850
        %v2357 = vpop.f32.mrb[0].mxu0
        %v2358 = vadd.f32 %v2245, %v2357
        %v2359 = vpop.f32.mrb[0].mxu0
        %v2360 = vadd.f32 %v2247, %v2359
        %v2361 = vpop.f32.mrb[0].mxu0
        %v2362 = vadd.f32 %v2249, %v2361
        %v2363 = vpop.f32.mrb[0].mxu0
        %v2364 = vadd.f32 %v2251, %v2363
        %2365 = vmatprep.mubr.bf16.mxu0 %v855
        %2366 = vmatmul.mubr.bf16.gmra.mrb[0].mxu0 %v854
        %v2367 = vpop.f32.mrb[0].mxu0
        %v2368 = vadd.f32 %v2255, %v2367
        %v2369 = vpop.f32.mrb[0].mxu0
        %v2370 = vadd.f32 %v2257, %v2369
        %v2371 = vpop.f32.mrb[0].mxu0
        %v2372 = vadd.f32 %v2259, %v2371
        %v2373 = vpop.f32.mrb[0].mxu0
        %v2374 = vadd.f32 %v2261, %v2373
        %2375 = vmatprep.mubr.bf16.mxu0 %v859
        %2376 = vmatmul.mubr.bf16.gmra.mrb[0].mxu0 %v858
        %v2377 = vpop.f32.mrb[0].mxu0
        %v2378 = vadd.f32 %v2265, %v2377
        %v2379 = vpop.f32.mrb[0].mxu0
        %v2380 = vadd.f32 %v2267, %v2379
        %v2381 = vpop.f32.mrb[0].mxu0
        %v2382 = vadd.f32 %v2269, %v2381
        %v2383 = vpop.f32.mrb[0].mxu0
        %v2384 = vadd.f32 %v2271, %v2383
        %2385 = vmatprep.mubr.bf16.mxu0 %v863
        %2386 = vmatmul.mubr.bf16.gmra.mrb[0].mxu0 %v862
        %v2387 = vpop.f32.mrb[0].mxu0
        %v2388 = vadd.f32 %v2275, %v2387
        %v2389 = vpop.f32.mrb[0].mxu0
        %v2390 = vadd.f32 %v2277, %v2389
        %v2391 = vpop.f32.mrb[0].mxu0
        %v2392 = vadd.f32 %v2279, %v2391
        %v2393 = vpop.f32.mrb[0].mxu0
        %v2394 = vadd.f32 %v2281, %v2393
        %2395 = vmatprep.mubr.bf16.mxu0 %v867
        %2396 = vmatmul.mubr.bf16.gmra.mrb[0].mxu0 %v866
        %v2397 = vpop.f32.mrb[0].mxu0
        %v2398 = vadd.f32 %v2285, %v2397
        %v2399 = vpop.f32.mrb[0].mxu0
        %v2400 = vadd.f32 %v2287, %v2399
        %v2401 = vpop.f32.mrb[0].mxu0
        %v2402 = vadd.f32 %v2289, %v2401
        %v2403 = vpop.f32.mrb[0].mxu0
        %v2404 = vadd.f32 %v2291, %v2403
        %2405 = vdwg.mxu0
        %2406 = vmatprep.subr.bf16.mxu0 %v1671
        %2407 = vmatpush1.bf16.msra.mxu0 %v1670
        %2408 = vmatprep.subr.bf16.mxu0 %v1679
        %2409 = vmatpush1.bf16.msra.mxu0 %v1678
        %2410 = vmatprep.subr.bf16.mxu0 %v1687
        %2411 = vmatpush1.bf16.msra.mxu0 %v1686
        %2412 = vmatprep.subr.bf16.mxu0 %v1695
        %2413 = vmatpush1.bf16.msra.mxu0 %v1694
        %2414 = vmatprep.subr.bf16.mxu0 %v1703
        %2415 = vmatpush1.bf16.msra.mxu0 %v1702
        %2416 = vmatprep.subr.bf16.mxu0 %v1711
        %2417 = vmatpush1.bf16.msra.mxu0 %v1710
        %2418 = vmatprep.subr.bf16.mxu0 %v1719
        %2419 = vmatpush1.bf16.msra.mxu0 %v1718
        %2420 = vmatprep.subr.bf16.mxu0 %v1727
        %2421 = vmatpush1.bf16.msra.mxu0 %v1726
        %2422 = vmatprep.subr.bf16.mxu0 %v1735
        %2423 = vmatpush1.bf16.msra.mxu0 %v1734
        %2424 = vmatprep.subr.bf16.mxu0 %v1743
        %2425 = vmatpush1.bf16.msra.mxu0 %v1742
        %2426 = vmatprep.subr.bf16.mxu0 %v1751
        %2427 = vmatpush1.bf16.msra.mxu0 %v1750
        %2428 = vmatprep.subr.bf16.mxu0 %v1759
        %2429 = vmatpush1.bf16.msra.mxu0 %v1758
        %2430 = vmatprep.subr.bf16.mxu0 %v1767
        %2431 = vmatpush1.bf16.msra.mxu0 %v1766
        %2432 = vmatprep.subr.bf16.mxu0 %v1775
        %2433 = vmatpush1.bf16.msra.mxu0 %v1774
        %2434 = vmatprep.subr.bf16.mxu0 %v1783
        %2435 = vmatpush1.bf16.msra.mxu0 %v1782
        %2436 = vmatprep.subr.bf16.mxu0 %v1791
        %2437 = vmatpush1.bf16.msra.mxu0 %v1790
        %2438 = vmatprep.mubr.bf16.mxu0 %v837
        %2439 = vmatmul.mubr.bf16.gmra.mrb[0].mxu0 %v836
        %v2440 = vpop.f32.mrb[0].mxu0
        %v2441 = vadd.f32 %v711, %v2440
        %v2442 = vpop.f32.mrb[0].mxu0
        %v2443 = vadd.f32 %v715, %v2442
        %v2444 = vpop.f32.mrb[0].mxu0
        %v2445 = vadd.f32 %v711, %v2444
        %v2446 = vpop.f32.mrb[0].mxu0
        %v2447 = vadd.f32 %v715, %v2446
        %2448 = vmatprep.mubr.bf16.mxu0 %v841
        %2449 = vmatmul.mubr.bf16.gmra.mrb[0].mxu0 %v840
        %v2450 = vpop.f32.mrb[0].mxu0
        %v2451 = vadd.f32 %v711, %v2450
        %v2452 = vpop.f32.mrb[0].mxu0
        %v2453 = vadd.f32 %v715, %v2452
        %v2454 = vpop.f32.mrb[0].mxu0
        %v2455 = vadd.f32 %v711, %v2454
        %v2456 = vpop.f32.mrb[0].mxu0
        %v2457 = vadd.f32 %v715, %v2456
        %2458 = vmatprep.mubr.bf16.mxu0 %v845
        %2459 = vmatmul.mubr.bf16.gmra.mrb[0].mxu0 %v844
        %v2460 = vpop.f32.mrb[0].mxu0
        %v2461 = vadd.f32 %v711, %v2460
        %v2462 = vpop.f32.mrb[0].mxu0
        %v2463 = vadd.f32 %v715, %v2462
        %v2464 = vpop.f32.mrb[0].mxu0
        %v2465 = vadd.f32 %v711, %v2464
        %v2466 = vpop.f32.mrb[0].mxu0
        %v2467 = vadd.f32 %v715, %v2466
        %2468 = vmatprep.mubr.bf16.mxu0 %v849
        %2469 = vmatmul.mubr.bf16.gmra.mrb[0].mxu0 %v848
        %v2470 = vpop.f32.mrb[0].mxu0
        %v2471 = vadd.f32 %v711, %v2470
        %v2472 = vpop.f32.mrb[0].mxu0
        %v2473 = vadd.f32 %v715, %v2472
        %v2474 = vpop.f32.mrb[0].mxu0
        %v2475 = vadd.f32 %v711, %v2474
        %v2476 = vpop.f32.mrb[0].mxu0
        %v2477 = vadd.f32 %v715, %v2476
        %2478 = vmatprep.mubr.bf16.mxu0 %v853
        %2479 = vmatmul.mubr.bf16.gmra.mrb[0].mxu0 %v852
        %v2480 = vpop.f32.mrb[0].mxu0
        %v2481 = vadd.f32 %v711, %v2480
        %v2482 = vpop.f32.mrb[0].mxu0
        %v2483 = vadd.f32 %v715, %v2482
        %v2484 = vpop.f32.mrb[0].mxu0
        %v2485 = vadd.f32 %v711, %v2484
        %v2486 = vpop.f32.mrb[0].mxu0
        %v2487 = vadd.f32 %v715, %v2486
        %2488 = vmatprep.mubr.bf16.mxu0 %v857
        %2489 = vmatmul.mubr.bf16.gmra.mrb[0].mxu0 %v856
        %v2490 = vpop.f32.mrb[0].mxu0
        %v2491 = vadd.f32 %v711, %v2490
        %v2492 = vpop.f32.mrb[0].mxu0
        %v2493 = vadd.f32 %v715, %v2492
        %v2494 = vpop.f32.mrb[0].mxu0
        %v2495 = vadd.f32 %v711, %v2494
        %v2496 = vpop.f32.mrb[0].mxu0
        %v2497 = vadd.f32 %v715, %v2496
        %2498 = vmatprep.mubr.bf16.mxu0 %v861
        %2499 = vmatmul.mubr.bf16.gmra.mrb[0].mxu0 %v860
        %v2500 = vpop.f32.mrb[0].mxu0
        %v2501 = vadd.f32 %v711, %v2500
        %v2502 = vpop.f32.mrb[0].mxu0
        %v2503 = vadd.f32 %v715, %v2502
        %v2504 = vpop.f32.mrb[0].mxu0
        %v2505 = vadd.f32 %v711, %v2504
        %v2506 = vpop.f32.mrb[0].mxu0
        %v2507 = vadd.f32 %v715, %v2506
        %2508 = vmatprep.mubr.bf16.mxu0 %v865
        %2509 = vmatmul.mubr.bf16.gmra.mrb[0].mxu0 %v864
        %v2510 = vpop.f32.mrb[0].mxu0
        %v2511 = vadd.f32 %v711, %v2510
        %v2512 = vpop.f32.mrb[0].mxu0
        %v2513 = vadd.f32 %v715, %v2512
        %v2514 = vpop.f32.mrb[0].mxu0
        %v2515 = vadd.f32 %v711, %v2514
        %v2516 = vpop.f32.mrb[0].mxu0
        %v2517 = vadd.f32 %v715, %v2516
        %2518 = vdwg.mxu0
        %2519 = vmatprep.subr.bf16.mxu0 %v1799
        %2520 = vmatpush1.bf16.msra.mxu0 %v1798
        %2521 = vmatprep.subr.bf16.mxu0 %v1807
        %2522 = vmatpush1.bf16.msra.mxu0 %v1806
        %2523 = vmatprep.subr.bf16.mxu0 %v1815
        %2524 = vmatpush1.bf16.msra.mxu0 %v1814
        %2525 = vmatprep.subr.bf16.mxu0 %v1823
        %2526 = vmatpush1.bf16.msra.mxu0 %v1822
        %2527 = vmatprep.subr.bf16.mxu0 %v1831
        %2528 = vmatpush1.bf16.msra.mxu0 %v1830
        %2529 = vmatprep.subr.bf16.mxu0 %v1839
        %2530 = vmatpush1.bf16.msra.mxu0 %v1838
        %2531 = vmatprep.subr.bf16.mxu0 %v1847
        %2532 = vmatpush1.bf16.msra.mxu0 %v1846
        %2533 = vmatprep.subr.bf16.mxu0 %v1855
        %2534 = vmatpush1.bf16.msra.mxu0 %v1854
        %2535 = vmatprep.subr.bf16.mxu0 %v1863
        %2536 = vmatpush1.bf16.msra.mxu0 %v1862
        %2537 = vmatprep.subr.bf16.mxu0 %v1871
        %2538 = vmatpush1.bf16.msra.mxu0 %v1870
        %2539 = vmatprep.subr.bf16.mxu0 %v1879
        %2540 = vmatpush1.bf16.msra.mxu0 %v1878
        %2541 = vmatprep.subr.bf16.mxu0 %v1887
        %2542 = vmatpush1.bf16.msra.mxu0 %v1886
        %2543 = vmatprep.subr.bf16.mxu0 %v1895
        %2544 = vmatpush1.bf16.msra.mxu0 %v1894
        %2545 = vmatprep.subr.bf16.mxu0 %v1903
        %2546 = vmatpush1.bf16.msra.mxu0 %v1902
        %2547 = vmatprep.subr.bf16.mxu0 %v1911
        %2548 = vmatpush1.bf16.msra.mxu0 %v1910
        %2549 = vmatprep.subr.bf16.mxu0 %v1919
        %2550 = vmatpush1.bf16.msra.mxu0 %v1918
        %2551 = vmatprep.mubr.bf16.mxu0 %v839
        %2552 = vmatmul.mubr.bf16.gmra.mrb[0].mxu0 %v838
        %v2553 = vpop.f32.mrb[0].mxu0
        %v2554 = vadd.f32 %v2441, %v2553
        %v2555 = vpop.f32.mrb[0].mxu0
        %v2556 = vadd.f32 %v2443, %v2555
        %v2557 = vpop.f32.mrb[0].mxu0
        %v2558 = vadd.f32 %v2445, %v2557
        %v2559 = vpop.f32.mrb[0].mxu0
        %v2560 = vadd.f32 %v2447, %v2559
        %2561 = vmatprep.mubr.bf16.mxu0 %v843
        %2562 = vmatmul.mubr.bf16.gmra.mrb[0].mxu0 %v842
        %v2563 = vpop.f32.mrb[0].mxu0
        %v2564 = vadd.f32 %v2451, %v2563
        %v2565 = vpop.f32.mrb[0].mxu0
        %v2566 = vadd.f32 %v2453, %v2565
        %v2567 = vpop.f32.mrb[0].mxu0
        %v2568 = vadd.f32 %v2455, %v2567
        %v2569 = vpop.f32.mrb[0].mxu0
        %v2570 = vadd.f32 %v2457, %v2569
        %2571 = vmatprep.mubr.bf16.mxu0 %v847
        %2572 = vmatmul.mubr.bf16.gmra.mrb[0].mxu0 %v846
        %v2573 = vpop.f32.mrb[0].mxu0
        %v2574 = vadd.f32 %v2461, %v2573
        %v2575 = vpop.f32.mrb[0].mxu0
        %v2576 = vadd.f32 %v2463, %v2575
        %v2577 = vpop.f32.mrb[0].mxu0
        %v2578 = vadd.f32 %v2465, %v2577
        %v2579 = vpop.f32.mrb[0].mxu0
        %v2580 = vadd.f32 %v2467, %v2579
        %2581 = vmatprep.mubr.bf16.mxu0 %v851
        %2582 = vmatmul.mubr.bf16.gmra.mrb[0].mxu0 %v850
        %v2583 = vpop.f32.mrb[0].mxu0
        %v2584 = vadd.f32 %v2471, %v2583
        %v2585 = vpop.f32.mrb[0].mxu0
        %v2586 = vadd.f32 %v2473, %v2585
        %v2587 = vpop.f32.mrb[0].mxu0
        %v2588 = vadd.f32 %v2475, %v2587
        %v2589 = vpop.f32.mrb[0].mxu0
        %v2590 = vadd.f32 %v2477, %v2589
        %2591 = vmatprep.mubr.bf16.mxu0 %v855
        %2592 = vmatmul.mubr.bf16.gmra.mrb[0].mxu0 %v854
        %v2593 = vpop.f32.mrb[0].mxu0
        %v2594 = vadd.f32 %v2481, %v2593
        %v2595 = vpop.f32.mrb[0].mxu0
        %v2596 = vadd.f32 %v2483, %v2595
        %v2597 = vpop.f32.mrb[0].mxu0
        %v2598 = vadd.f32 %v2485, %v2597
        %v2599 = vpop.f32.mrb[0].mxu0
        %v2600 = vadd.f32 %v2487, %v2599
        %2601 = vmatprep.mubr.bf16.mxu0 %v859
        %2602 = vmatmul.mubr.bf16.gmra.mrb[0].mxu0 %v858
        %v2603 = vpop.f32.mrb[0].mxu0
        %v2604 = vadd.f32 %v2491, %v2603
        %v2605 = vpop.f32.mrb[0].mxu0
        %v2606 = vadd.f32 %v2493, %v2605
        %v2607 = vpop.f32.mrb[0].mxu0
        %v2608 = vadd.f32 %v2495, %v2607
        %v2609 = vpop.f32.mrb[0].mxu0
        %v2610 = vadd.f32 %v2497, %v2609
        %2611 = vmatprep.mubr.bf16.mxu0 %v863
        %2612 = vmatmul.mubr.bf16.gmra.mrb[0].mxu0 %v862
        %v2613 = vpop.f32.mrb[0].mxu0
        %v2614 = vadd.f32 %v2501, %v2613
        %v2615 = vpop.f32.mrb[0].mxu0
        %v2616 = vadd.f32 %v2503, %v2615
        %v2617 = vpop.f32.mrb[0].mxu0
        %v2618 = vadd.f32 %v2505, %v2617
        %v2619 = vpop.f32.mrb[0].mxu0
        %v2620 = vadd.f32 %v2507, %v2619
        %2621 = vmatprep.mubr.bf16.mxu0 %v867
        %2622 = vmatmul.mubr.bf16.gmra.mrb[0].mxu0 %v866
        %v2623 = vpop.f32.mrb[0].mxu0
        %v2624 = vadd.f32 %v2511, %v2623
        %v2625 = vpop.f32.mrb[0].mxu0
        %v2626 = vadd.f32 %v2513, %v2625
        %v2627 = vpop.f32.mrb[0].mxu0
        %v2628 = vadd.f32 %v2515, %v2627
        %v2629 = vpop.f32.mrb[0].mxu0
        %v2630 = vadd.f32 %v2517, %v2629
        %2631 = vdwg.mxu0
        %2632 = vmatprep.subr.bf16.mxu0 %v1673
        %2633 = vmatpush1.bf16.msra.mxu0 %v1672
        %2634 = vmatprep.subr.bf16.mxu0 %v1681
        %2635 = vmatpush1.bf16.msra.mxu0 %v1680
        %2636 = vmatprep.subr.bf16.mxu0 %v1689
        %2637 = vmatpush1.bf16.msra.mxu0 %v1688
        %2638 = vmatprep.subr.bf16.mxu0 %v1697
        %2639 = vmatpush1.bf16.msra.mxu0 %v1696
        %2640 = vmatprep.subr.bf16.mxu0 %v1705
        %2641 = vmatpush1.bf16.msra.mxu0 %v1704
        %2642 = vmatprep.subr.bf16.mxu0 %v1713
        %2643 = vmatpush1.bf16.msra.mxu0 %v1712
        %2644 = vmatprep.subr.bf16.mxu0 %v1721
        %2645 = vmatpush1.bf16.msra.mxu0 %v1720
        %2646 = vmatprep.subr.bf16.mxu0 %v1729
        %2647 = vmatpush1.bf16.msra.mxu0 %v1728
        %2648 = vmatprep.subr.bf16.mxu0 %v1737
        %2649 = vmatpush1.bf16.msra.mxu0 %v1736
        %2650 = vmatprep.subr.bf16.mxu0 %v1745
        %2651 = vmatpush1.bf16.msra.mxu0 %v1744
        %2652 = vmatprep.subr.bf16.mxu0 %v1753
        %2653 = vmatpush1.bf16.msra.mxu0 %v1752
        %2654 = vmatprep.subr.bf16.mxu0 %v1761
        %2655 = vmatpush1.bf16.msra.mxu0 %v1760
        %2656 = vmatprep.subr.bf16.mxu0 %v1769
        %2657 = vmatpush1.bf16.msra.mxu0 %v1768
        %2658 = vmatprep.subr.bf16.mxu0 %v1777
        %2659 = vmatpush1.bf16.msra.mxu0 %v1776
        %2660 = vmatprep.subr.bf16.mxu0 %v1785
        %2661 = vmatpush1.bf16.msra.mxu0 %v1784
        %2662 = vmatprep.subr.bf16.mxu0 %v1793
        %2663 = vmatpush1.bf16.msra.mxu0 %v1792
        %2664 = vmatprep.mubr.bf16.mxu0 %v837
        %2665 = vmatmul.mubr.bf16.gmra.mrb[0].mxu0 %v836
        %v2666 = vpop.f32.mrb[0].mxu0
        %v2667 = vadd.f32 %v719, %v2666
        %v2668 = vpop.f32.mrb[0].mxu0
        %v2669 = vadd.f32 %v723, %v2668
        %v2670 = vpop.f32.mrb[0].mxu0
        %v2671 = vadd.f32 %v719, %v2670
        %v2672 = vpop.f32.mrb[0].mxu0
        %v2673 = vadd.f32 %v723, %v2672
        %2674 = vmatprep.mubr.bf16.mxu0 %v841
        %2675 = vmatmul.mubr.bf16.gmra.mrb[0].mxu0 %v840
        %v2676 = vpop.f32.mrb[0].mxu0
        %v2677 = vadd.f32 %v719, %v2676
        %v2678 = vpop.f32.mrb[0].mxu0
        %v2679 = vadd.f32 %v723, %v2678
        %v2680 = vpop.f32.mrb[0].mxu0
        %v2681 = vadd.f32 %v719, %v2680
        %v2682 = vpop.f32.mrb[0].mxu0
        %v2683 = vadd.f32 %v723, %v2682
        %2684 = vmatprep.mubr.bf16.mxu0 %v845
        %2685 = vmatmul.mubr.bf16.gmra.mrb[0].mxu0 %v844
        %v2686 = vpop.f32.mrb[0].mxu0
        %v2687 = vadd.f32 %v719, %v2686
        %v2688 = vpop.f32.mrb[0].mxu0
        %v2689 = vadd.f32 %v723, %v2688
        %v2690 = vpop.f32.mrb[0].mxu0
        %v2691 = vadd.f32 %v719, %v2690
        %v2692 = vpop.f32.mrb[0].mxu0
        %v2693 = vadd.f32 %v723, %v2692
        %2694 = vmatprep.mubr.bf16.mxu0 %v849
        %2695 = vmatmul.mubr.bf16.gmra.mrb[0].mxu0 %v848
        %v2696 = vpop.f32.mrb[0].mxu0
        %v2697 = vadd.f32 %v719, %v2696
        %v2698 = vpop.f32.mrb[0].mxu0
        %v2699 = vadd.f32 %v723, %v2698
        %v2700 = vpop.f32.mrb[0].mxu0
        %v2701 = vadd.f32 %v719, %v2700
        %v2702 = vpop.f32.mrb[0].mxu0
        %v2703 = vadd.f32 %v723, %v2702
        %2704 = vmatprep.mubr.bf16.mxu0 %v853
        %2705 = vmatmul.mubr.bf16.gmra.mrb[0].mxu0 %v852
        %v2706 = vpop.f32.mrb[0].mxu0
        %v2707 = vadd.f32 %v719, %v2706
        %v2708 = vpop.f32.mrb[0].mxu0
        %v2709 = vadd.f32 %v723, %v2708
        %v2710 = vpop.f32.mrb[0].mxu0
        %v2711 = vadd.f32 %v719, %v2710
        %v2712 = vpop.f32.mrb[0].mxu0
        %v2713 = vadd.f32 %v723, %v2712
        %2714 = vmatprep.mubr.bf16.mxu0 %v857
        %2715 = vmatmul.mubr.bf16.gmra.mrb[0].mxu0 %v856
        %v2716 = vpop.f32.mrb[0].mxu0
        %v2717 = vadd.f32 %v719, %v2716
        %v2718 = vpop.f32.mrb[0].mxu0
        %v2719 = vadd.f32 %v723, %v2718
        %v2720 = vpop.f32.mrb[0].mxu0
        %v2721 = vadd.f32 %v719, %v2720
        %v2722 = vpop.f32.mrb[0].mxu0
        %v2723 = vadd.f32 %v723, %v2722
        %2724 = vmatprep.mubr.bf16.mxu0 %v861
        %2725 = vmatmul.mubr.bf16.gmra.mrb[0].mxu0 %v860
        %v2726 = vpop.f32.mrb[0].mxu0
        %v2727 = vadd.f32 %v719, %v2726
        %v2728 = vpop.f32.mrb[0].mxu0
        %v2729 = vadd.f32 %v723, %v2728
        %v2730 = vpop.f32.mrb[0].mxu0
        %v2731 = vadd.f32 %v719, %v2730
        %v2732 = vpop.f32.mrb[0].mxu0
        %v2733 = vadd.f32 %v723, %v2732
        %2734 = vmatprep.mubr.bf16.mxu0 %v865
        %2735 = vmatmul.mubr.bf16.gmra.mrb[0].mxu0 %v864
        %v2736 = vpop.f32.mrb[0].mxu0
        %v2737 = vadd.f32 %v719, %v2736
        %v2738 = vpop.f32.mrb[0].mxu0
        %v2739 = vadd.f32 %v723, %v2738
        %v2740 = vpop.f32.mrb[0].mxu0
        %v2741 = vadd.f32 %v719, %v2740
        %v2742 = vpop.f32.mrb[0].mxu0
        %v2743 = vadd.f32 %v723, %v2742
        %2744 = vdwg.mxu0
        %2745 = vmatprep.subr.bf16.mxu0 %v1801
        %2746 = vmatpush1.bf16.msra.mxu0 %v1800
        %2747 = vmatprep.subr.bf16.mxu0 %v1809
        %2748 = vmatpush1.bf16.msra.mxu0 %v1808
        %2749 = vmatprep.subr.bf16.mxu0 %v1817
        %2750 = vmatpush1.bf16.msra.mxu0 %v1816
        %2751 = vmatprep.subr.bf16.mxu0 %v1825
        %2752 = vmatpush1.bf16.msra.mxu0 %v1824
        %2753 = vmatprep.subr.bf16.mxu0 %v1833
        %2754 = vmatpush1.bf16.msra.mxu0 %v1832
        %2755 = vmatprep.subr.bf16.mxu0 %v1841
        %2756 = vmatpush1.bf16.msra.mxu0 %v1840
        %2757 = vmatprep.subr.bf16.mxu0 %v1849
        %2758 = vmatpush1.bf16.msra.mxu0 %v1848
        %2759 = vmatprep.subr.bf16.mxu0 %v1857
        %2760 = vmatpush1.bf16.msra.mxu0 %v1856
        %2761 = vmatprep.subr.bf16.mxu0 %v1865
        %2762 = vmatpush1.bf16.msra.mxu0 %v1864
        %2763 = vmatprep.subr.bf16.mxu0 %v1873
        %2764 = vmatpush1.bf16.msra.mxu0 %v1872
        %2765 = vmatprep.subr.bf16.mxu0 %v1881
        %2766 = vmatpush1.bf16.msra.mxu0 %v1880
        %2767 = vmatprep.subr.bf16.mxu0 %v1889
        %2768 = vmatpush1.bf16.msra.mxu0 %v1888
        %2769 = vmatprep.subr.bf16.mxu0 %v1897
        %2770 = vmatpush1.bf16.msra.mxu0 %v1896
        %2771 = vmatprep.subr.bf16.mxu0 %v1905
        %2772 = vmatpush1.bf16.msra.mxu0 %v1904
        %2773 = vmatprep.subr.bf16.mxu0 %v1913
        %2774 = vmatpush1.bf16.msra.mxu0 %v1912
        %2775 = vmatprep.subr.bf16.mxu0 %v1921
        %2776 = vmatpush1.bf16.msra.mxu0 %v1920
        %2777 = vmatprep.mubr.bf16.mxu0 %v839
        %2778 = vmatmul.mubr.bf16.gmra.mrb[0].mxu0 %v838
        %v2779 = vpop.f32.mrb[0].mxu0
        %v2780 = vadd.f32 %v2667, %v2779
        %v2781 = vpop.f32.mrb[0].mxu0
        %v2782 = vadd.f32 %v2669, %v2781
        %v2783 = vpop.f32.mrb[0].mxu0
        %v2784 = vadd.f32 %v2671, %v2783
        %v2785 = vpop.f32.mrb[0].mxu0
        %v2786 = vadd.f32 %v2673, %v2785
        %2787 = vmatprep.mubr.bf16.mxu0 %v843
        %2788 = vmatmul.mubr.bf16.gmra.mrb[0].mxu0 %v842
        %v2789 = vpop.f32.mrb[0].mxu0
        %v2790 = vadd.f32 %v2677, %v2789
        %v2791 = vpop.f32.mrb[0].mxu0
        %v2792 = vadd.f32 %v2679, %v2791
        %v2793 = vpop.f32.mrb[0].mxu0
        %v2794 = vadd.f32 %v2681, %v2793
        %v2795 = vpop.f32.mrb[0].mxu0
        %v2796 = vadd.f32 %v2683, %v2795
        %2797 = vmatprep.mubr.bf16.mxu0 %v847
        %2798 = vmatmul.mubr.bf16.gmra.mrb[0].mxu0 %v846
        %v2799 = vpop.f32.mrb[0].mxu0
        %v2800 = vadd.f32 %v2687, %v2799
        %v2801 = vpop.f32.mrb[0].mxu0
        %v2802 = vadd.f32 %v2689, %v2801
        %v2803 = vpop.f32.mrb[0].mxu0
        %v2804 = vadd.f32 %v2691, %v2803
        %v2805 = vpop.f32.mrb[0].mxu0
        %v2806 = vadd.f32 %v2693, %v2805
        %2807 = vmatprep.mubr.bf16.mxu0 %v851
        %2808 = vmatmul.mubr.bf16.gmra.mrb[0].mxu0 %v850
        %v2809 = vpop.f32.mrb[0].mxu0
        %v2810 = vadd.f32 %v2697, %v2809
        %v2811 = vpop.f32.mrb[0].mxu0
        %v2812 = vadd.f32 %v2699, %v2811
        %v2813 = vpop.f32.mrb[0].mxu0
        %v2814 = vadd.f32 %v2701, %v2813
        %v2815 = vpop.f32.mrb[0].mxu0
        %v2816 = vadd.f32 %v2703, %v2815
        %2817 = vmatprep.mubr.bf16.mxu0 %v855
        %2818 = vmatmul.mubr.bf16.gmra.mrb[0].mxu0 %v854
        %v2819 = vpop.f32.mrb[0].mxu0
        %v2820 = vadd.f32 %v2707, %v2819
        %v2821 = vpop.f32.mrb[0].mxu0
        %v2822 = vadd.f32 %v2709, %v2821
        %v2823 = vpop.f32.mrb[0].mxu0
        %v2824 = vadd.f32 %v2711, %v2823
        %v2825 = vpop.f32.mrb[0].mxu0
        %v2826 = vadd.f32 %v2713, %v2825
        %2827 = vmatprep.mubr.bf16.mxu0 %v859
        %2828 = vmatmul.mubr.bf16.gmra.mrb[0].mxu0 %v858
        %v2829 = vpop.f32.mrb[0].mxu0
        %v2830 = vadd.f32 %v2717, %v2829
        %v2831 = vpop.f32.mrb[0].mxu0
        %v2832 = vadd.f32 %v2719, %v2831
        %v2833 = vpop.f32.mrb[0].mxu0
        %v2834 = vadd.f32 %v2721, %v2833
        %v2835 = vpop.f32.mrb[0].mxu0
        %v2836 = vadd.f32 %v2723, %v2835
        %2837 = vmatprep.mubr.bf16.mxu0 %v863
        %2838 = vmatmul.mubr.bf16.gmra.mrb[0].mxu0 %v862
        %v2839 = vpop.f32.mrb[0].mxu0
        %v2840 = vadd.f32 %v2727, %v2839
        %v2841 = vpop.f32.mrb[0].mxu0
        %v2842 = vadd.f32 %v2729, %v2841
        %v2843 = vpop.f32.mrb[0].mxu0
        %v2844 = vadd.f32 %v2731, %v2843
        %v2845 = vpop.f32.mrb[0].mxu0
        %v2846 = vadd.f32 %v2733, %v2845
        %2847 = vmatprep.mubr.bf16.mxu0 %v867
        %2848 = vmatmul.mubr.bf16.gmra.mrb[0].mxu0 %v866
        %v2849 = vpop.f32.mrb[0].mxu0
        %v2850 = vadd.f32 %v2737, %v2849
        %v2851 = vpop.f32.mrb[0].mxu0
        %v2852 = vadd.f32 %v2739, %v2851
        %v2853 = vpop.f32.mrb[0].mxu0
        %v2854 = vadd.f32 %v2741, %v2853
        %v2855 = vpop.f32.mrb[0].mxu0
        %v2856 = vadd.f32 %v2743, %v2855
        %2857 = vdwg.mxu0
        %2858 = vmatprep.subr.bf16.mxu0 %v1675
        %2859 = vmatpush1.bf16.msra.mxu0 %v1674
        %2860 = vmatprep.subr.bf16.mxu0 %v1683
        %2861 = vmatpush1.bf16.msra.mxu0 %v1682
        %2862 = vmatprep.subr.bf16.mxu0 %v1691
        %2863 = vmatpush1.bf16.msra.mxu0 %v1690
        %2864 = vmatprep.subr.bf16.mxu0 %v1699
        %2865 = vmatpush1.bf16.msra.mxu0 %v1698
        %2866 = vmatprep.subr.bf16.mxu0 %v1707
        %2867 = vmatpush1.bf16.msra.mxu0 %v1706
        %2868 = vmatprep.subr.bf16.mxu0 %v1715
        %2869 = vmatpush1.bf16.msra.mxu0 %v1714
        %2870 = vmatprep.subr.bf16.mxu0 %v1723
        %2871 = vmatpush1.bf16.msra.mxu0 %v1722
        %2872 = vmatprep.subr.bf16.mxu0 %v1731
        %2873 = vmatpush1.bf16.msra.mxu0 %v1730
        %2874 = vmatprep.subr.bf16.mxu0 %v1739
        %2875 = vmatpush1.bf16.msra.mxu0 %v1738
        %2876 = vmatprep.subr.bf16.mxu0 %v1747
        %2877 = vmatpush1.bf16.msra.mxu0 %v1746
        %2878 = vmatprep.subr.bf16.mxu0 %v1755
        %2879 = vmatpush1.bf16.msra.mxu0 %v1754
        %2880 = vmatprep.subr.bf16.mxu0 %v1763
        %2881 = vmatpush1.bf16.msra.mxu0 %v1762
        %2882 = vmatprep.subr.bf16.mxu0 %v1771
        %2883 = vmatpush1.bf16.msra.mxu0 %v1770
        %2884 = vmatprep.subr.bf16.mxu0 %v1779
        %2885 = vmatpush1.bf16.msra.mxu0 %v1778
        %2886 = vmatprep.subr.bf16.mxu0 %v1787
        %2887 = vmatpush1.bf16.msra.mxu0 %v1786
        %2888 = vmatprep.subr.bf16.mxu0 %v1795
        %2889 = vmatpush1.bf16.msra.mxu0 %v1794
        %2890 = vmatprep.mubr.bf16.mxu0 %v837
        %2891 = vmatmul.mubr.bf16.gmra.mrb[0].mxu0 %v836
        %v2892 = vpop.f32.mrb[0].mxu0
        %v2893 = vadd.f32 %v727, %v2892
        %v2894 = vpop.f32.mrb[0].mxu0
        %v2895 = vadd.f32 %v731, %v2894
        %v2896 = vpop.f32.mrb[0].mxu0
        %v2897 = vadd.f32 %v727, %v2896
        %v2898 = vpop.f32.mrb[0].mxu0
        %v2899 = vadd.f32 %v731, %v2898
        %2900 = vmatprep.mubr.bf16.mxu0 %v841
        %2901 = vmatmul.mubr.bf16.gmra.mrb[0].mxu0 %v840
        %v2902 = vpop.f32.mrb[0].mxu0
        %v2903 = vadd.f32 %v727, %v2902
        %v2904 = vpop.f32.mrb[0].mxu0
        %v2905 = vadd.f32 %v731, %v2904
        %v2906 = vpop.f32.mrb[0].mxu0
        %v2907 = vadd.f32 %v727, %v2906
        %v2908 = vpop.f32.mrb[0].mxu0
        %v2909 = vadd.f32 %v731, %v2908
        %2910 = vmatprep.mubr.bf16.mxu0 %v845
        %2911 = vmatmul.mubr.bf16.gmra.mrb[0].mxu0 %v844
        %v2912 = vpop.f32.mrb[0].mxu0
        %v2913 = vadd.f32 %v727, %v2912
        %v2914 = vpop.f32.mrb[0].mxu0
        %v2915 = vadd.f32 %v731, %v2914
        %v2916 = vpop.f32.mrb[0].mxu0
        %v2917 = vadd.f32 %v727, %v2916
        %v2918 = vpop.f32.mrb[0].mxu0
        %v2919 = vadd.f32 %v731, %v2918
        %2920 = vmatprep.mubr.bf16.mxu0 %v849
        %2921 = vmatmul.mubr.bf16.gmra.mrb[0].mxu0 %v848
        %v2922 = vpop.f32.mrb[0].mxu0
        %v2923 = vadd.f32 %v727, %v2922
        %v2924 = vpop.f32.mrb[0].mxu0
        %v2925 = vadd.f32 %v731, %v2924
        %v2926 = vpop.f32.mrb[0].mxu0
        %v2927 = vadd.f32 %v727, %v2926
        %v2928 = vpop.f32.mrb[0].mxu0
        %v2929 = vadd.f32 %v731, %v2928
        %2930 = vmatprep.mubr.bf16.mxu0 %v853
        %2931 = vmatmul.mubr.bf16.gmra.mrb[0].mxu0 %v852
        %v2932 = vpop.f32.mrb[0].mxu0
        %v2933 = vadd.f32 %v727, %v2932
        %v2934 = vpop.f32.mrb[0].mxu0
        %v2935 = vadd.f32 %v731, %v2934
        %v2936 = vpop.f32.mrb[0].mxu0
        %v2937 = vadd.f32 %v727, %v2936
        %v2938 = vpop.f32.mrb[0].mxu0
        %v2939 = vadd.f32 %v731, %v2938
        %2940 = vmatprep.mubr.bf16.mxu0 %v857
        %2941 = vmatmul.mubr.bf16.gmra.mrb[0].mxu0 %v856
        %v2942 = vpop.f32.mrb[0].mxu0
        %v2943 = vadd.f32 %v727, %v2942
        %v2944 = vpop.f32.mrb[0].mxu0
        %v2945 = vadd.f32 %v731, %v2944
        %v2946 = vpop.f32.mrb[0].mxu0
        %v2947 = vadd.f32 %v727, %v2946
        %v2948 = vpop.f32.mrb[0].mxu0
        %v2949 = vadd.f32 %v731, %v2948
        %2950 = vmatprep.mubr.bf16.mxu0 %v861
        %2951 = vmatmul.mubr.bf16.gmra.mrb[0].mxu0 %v860
        %v2952 = vpop.f32.mrb[0].mxu0
        %v2953 = vadd.f32 %v727, %v2952
        %v2954 = vpop.f32.mrb[0].mxu0
        %v2955 = vadd.f32 %v731, %v2954
        %v2956 = vpop.f32.mrb[0].mxu0
        %v2957 = vadd.f32 %v727, %v2956
        %v2958 = vpop.f32.mrb[0].mxu0
        %v2959 = vadd.f32 %v731, %v2958
        %2960 = vmatprep.mubr.bf16.mxu0 %v865
        %2961 = vmatmul.mubr.bf16.gmra.mrb[0].mxu0 %v864
        %v2962 = vpop.f32.mrb[0].mxu0
        %v2963 = vadd.f32 %v727, %v2962
        %v2964 = vpop.f32.mrb[0].mxu0
        %v2965 = vadd.f32 %v731, %v2964
        %v2966 = vpop.f32.mrb[0].mxu0
        %v2967 = vadd.f32 %v727, %v2966
        %v2968 = vpop.f32.mrb[0].mxu0
        %v2969 = vadd.f32 %v731, %v2968
        %2970 = vdwg.mxu0
        %2971 = vmatprep.subr.bf16.mxu0 %v1803
        %2972 = vmatpush1.bf16.msra.mxu0 %v1802
        %2973 = vmatprep.subr.bf16.mxu0 %v1811
        %2974 = vmatpush1.bf16.msra.mxu0 %v1810
        %2975 = vmatprep.subr.bf16.mxu0 %v1819
        %2976 = vmatpush1.bf16.msra.mxu0 %v1818
        %2977 = vmatprep.subr.bf16.mxu0 %v1827
        %2978 = vmatpush1.bf16.msra.mxu0 %v1826
        %2979 = vmatprep.subr.bf16.mxu0 %v1835
        %2980 = vmatpush1.bf16.msra.mxu0 %v1834
        %2981 = vmatprep.subr.bf16.mxu0 %v1843
        %2982 = vmatpush1.bf16.msra.mxu0 %v1842
        %2983 = vmatprep.subr.bf16.mxu0 %v1851
        %2984 = vmatpush1.bf16.msra.mxu0 %v1850
        %2985 = vmatprep.subr.bf16.mxu0 %v1859
        %2986 = vmatpush1.bf16.msra.mxu0 %v1858
        %2987 = vmatprep.subr.bf16.mxu0 %v1867
        %2988 = vmatpush1.bf16.msra.mxu0 %v1866
        %2989 = vmatprep.subr.bf16.mxu0 %v1875
        %2990 = vmatpush1.bf16.msra.mxu0 %v1874
        %2991 = vmatprep.subr.bf16.mxu0 %v1883
        %2992 = vmatpush1.bf16.msra.mxu0 %v1882
        %2993 = vmatprep.subr.bf16.mxu0 %v1891
        %2994 = vmatpush1.bf16.msra.mxu0 %v1890
        %2995 = vmatprep.subr.bf16.mxu0 %v1899
        %2996 = vmatpush1.bf16.msra.mxu0 %v1898
        %2997 = vmatprep.subr.bf16.mxu0 %v1907
        %2998 = vmatpush1.bf16.msra.mxu0 %v1906
        %2999 = vmatprep.subr.bf16.mxu0 %v1915
        %3000 = vmatpush1.bf16.msra.mxu0 %v1914
        %3001 = vmatprep.subr.bf16.mxu0 %v1923
        %3002 = vmatpush1.bf16.msra.mxu0 %v1922
        %3003 = vmatprep.mubr.bf16.mxu0 %v839
        %3004 = vmatmul.mubr.bf16.gmra.mrb[0].mxu0 %v838
        %v3005 = vpop.f32.mrb[0].mxu0
        %v3006 = vadd.f32 %v2893, %v3005
        %v3007 = vpop.f32.mrb[0].mxu0
        %v3008 = vadd.f32 %v2895, %v3007
        %v3009 = vpop.f32.mrb[0].mxu0
        %v3010 = vadd.f32 %v2897, %v3009
        %v3011 = vpop.f32.mrb[0].mxu0
        %v3012 = vadd.f32 %v2899, %v3011
        %3013 = vmatprep.mubr.bf16.mxu0 %v843
        %3014 = vmatmul.mubr.bf16.gmra.mrb[0].mxu0 %v842
        %v3015 = vpop.f32.mrb[0].mxu0
        %v3016 = vadd.f32 %v2903, %v3015
        %v3017 = vpop.f32.mrb[0].mxu0
        %v3018 = vadd.f32 %v2905, %v3017
        %v3019 = vpop.f32.mrb[0].mxu0
        %v3020 = vadd.f32 %v2907, %v3019
        %v3021 = vpop.f32.mrb[0].mxu0
        %v3022 = vadd.f32 %v2909, %v3021
        %3023 = vmatprep.mubr.bf16.mxu0 %v847
        %3024 = vmatmul.mubr.bf16.gmra.mrb[0].mxu0 %v846
        %v3025 = vpop.f32.mrb[0].mxu0
        %v3026 = vadd.f32 %v2913, %v3025
        %v3027 = vpop.f32.mrb[0].mxu0
        %v3028 = vadd.f32 %v2915, %v3027
        %v3029 = vpop.f32.mrb[0].mxu0
        %v3030 = vadd.f32 %v2917, %v3029
        %v3031 = vpop.f32.mrb[0].mxu0
        %v3032 = vadd.f32 %v2919, %v3031
        %3033 = vmatprep.mubr.bf16.mxu0 %v851
        %3034 = vmatmul.mubr.bf16.gmra.mrb[0].mxu0 %v850
        %v3035 = vpop.f32.mrb[0].mxu0
        %v3036 = vadd.f32 %v2923, %v3035
        %v3037 = vpop.f32.mrb[0].mxu0
        %v3038 = vadd.f32 %v2925, %v3037
        %v3039 = vpop.f32.mrb[0].mxu0
        %v3040 = vadd.f32 %v2927, %v3039
        %v3041 = vpop.f32.mrb[0].mxu0
        %v3042 = vadd.f32 %v2929, %v3041
        %3043 = vmatprep.mubr.bf16.mxu0 %v855
        %3044 = vmatmul.mubr.bf16.gmra.mrb[0].mxu0 %v854
        %v3045 = vpop.f32.mrb[0].mxu0
        %v3046 = vadd.f32 %v2933, %v3045
        %v3047 = vpop.f32.mrb[0].mxu0
        %v3048 = vadd.f32 %v2935, %v3047
        %v3049 = vpop.f32.mrb[0].mxu0
        %v3050 = vadd.f32 %v2937, %v3049
        %v3051 = vpop.f32.mrb[0].mxu0
        %v3052 = vadd.f32 %v2939, %v3051
        %3053 = vmatprep.mubr.bf16.mxu0 %v859
        %3054 = vmatmul.mubr.bf16.gmra.mrb[0].mxu0 %v858
        %v3055 = vpop.f32.mrb[0].mxu0
        %v3056 = vadd.f32 %v2943, %v3055
        %v3057 = vpop.f32.mrb[0].mxu0
        %v3058 = vadd.f32 %v2945, %v3057
        %v3059 = vpop.f32.mrb[0].mxu0
        %v3060 = vadd.f32 %v2947, %v3059
        %v3061 = vpop.f32.mrb[0].mxu0
        %v3062 = vadd.f32 %v2949, %v3061
        %3063 = vmatprep.mubr.bf16.mxu0 %v863
        %3064 = vmatmul.mubr.bf16.gmra.mrb[0].mxu0 %v862
        %v3065 = vpop.f32.mrb[0].mxu0
        %v3066 = vadd.f32 %v2953, %v3065
        %v3067 = vpop.f32.mrb[0].mxu0
        %v3068 = vadd.f32 %v2955, %v3067
        %v3069 = vpop.f32.mrb[0].mxu0
        %v3070 = vadd.f32 %v2957, %v3069
        %v3071 = vpop.f32.mrb[0].mxu0
        %v3072 = vadd.f32 %v2959, %v3071
        %3073 = vmatprep.mubr.bf16.mxu0 %v867
        %3074 = vmatmul.mubr.bf16.gmra.mrb[0].mxu0 %v866
        %v3075 = vpop.f32.mrb[0].mxu0
        %v3076 = vadd.f32 %v2963, %v3075
        %v3077 = vpop.f32.mrb[0].mxu0
        %v3078 = vadd.f32 %v2965, %v3077
        %v3079 = vpop.f32.mrb[0].mxu0
        %v3080 = vadd.f32 %v2967, %v3079
        %v3081 = vpop.f32.mrb[0].mxu0
        %v3082 = vadd.f32 %v2969, %v3081
        %3083 = vdwg.mxu0
        %v3084 = vld [vmem:[#allocation10] sm:$0xff]
        %v3085 = vld [vmem:[#allocation10 + $0x8] sm:$0xff]
        %v3086 = vld [vmem:[#allocation10 + $0x10] sm:$0xff]
        %v3087 = vld [vmem:[#allocation10 + $0x18] sm:$0xff]
        %v3088 = vld [vmem:[#allocation10 + $0x20] sm:$0xff]
        %v3089 = vld [vmem:[#allocation10 + $0x28] sm:$0xff]
        %v3090 = vld [vmem:[#allocation10 + $0x30] sm:$0xff]
        %v3091 = vld [vmem:[#allocation10 + $0x38] sm:$0xff]
        %v3092 = vld [vmem:[#allocation10 + $0x40] sm:$0xff]
        %v3093 = vld [vmem:[#allocation10 + $0x48] sm:$0xff]
        %v3094 = vld [vmem:[#allocation10 + $0x50] sm:$0xff]
        %v3095 = vld [vmem:[#allocation10 + $0x58] sm:$0xff]
        %v3096 = vld [vmem:[#allocation10 + $0x60] sm:$0xff]
        %v3097 = vld [vmem:[#allocation10 + $0x68] sm:$0xff]
        %v3098 = vld [vmem:[#allocation10 + $0x70] sm:$0xff]
        %v3099 = vld [vmem:[#allocation10 + $0x78] sm:$0xff]
        %v3100 = vld [vmem:[#allocation10 + $0x80] sm:$0xff]
        %v3101 = vld [vmem:[#allocation10 + $0x88] sm:$0xff]
        %v3102 = vld [vmem:[#allocation10 + $0x90] sm:$0xff]
        %v3103 = vld [vmem:[#allocation10 + $0x98] sm:$0xff]
        %v3104 = vld [vmem:[#allocation10 + $0xa0] sm:$0xff]
        %v3105 = vld [vmem:[#allocation10 + $0xa8] sm:$0xff]
        %v3106 = vld [vmem:[#allocation10 + $0xb0] sm:$0xff]
        %v3107 = vld [vmem:[#allocation10 + $0xb8] sm:$0xff]
        %v3108 = vld [vmem:[#allocation10 + $0xc0] sm:$0xff]
        %v3109 = vld [vmem:[#allocation10 + $0xc8] sm:$0xff]
        %v3110 = vld [vmem:[#allocation10 + $0xd0] sm:$0xff]
        %v3111 = vld [vmem:[#allocation10 + $0xd8] sm:$0xff]
        %v3112 = vld [vmem:[#allocation10 + $0xe0] sm:$0xff]
        %v3113 = vld [vmem:[#allocation10 + $0xe8] sm:$0xff]
        %v3114 = vld [vmem:[#allocation10 + $0xf0] sm:$0xff]
        %v3115 = vld [vmem:[#allocation10 + $0xf8] sm:$0xff]
        %v3116 = vld [vmem:[#allocation10 + $0x100] sm:$0xff]
        %v3117 = vld [vmem:[#allocation10 + $0x108] sm:$0xff]
        %v3118 = vld [vmem:[#allocation10 + $0x110] sm:$0xff]
        %v3119 = vld [vmem:[#allocation10 + $0x118] sm:$0xff]
        %v3120 = vld [vmem:[#allocation10 + $0x120] sm:$0xff]
        %v3121 = vld [vmem:[#allocation10 + $0x128] sm:$0xff]
        %v3122 = vld [vmem:[#allocation10 + $0x130] sm:$0xff]
        %v3123 = vld [vmem:[#allocation10 + $0x138] sm:$0xff]
        %v3124 = vld [vmem:[#allocation10 + $0x140] sm:$0xff]
        %v3125 = vld [vmem:[#allocation10 + $0x148] sm:$0xff]
        %v3126 = vld [vmem:[#allocation10 + $0x150] sm:$0xff]
        %v3127 = vld [vmem:[#allocation10 + $0x158] sm:$0xff]
        %v3128 = vld [vmem:[#allocation10 + $0x160] sm:$0xff]
        %v3129 = vld [vmem:[#allocation10 + $0x168] sm:$0xff]
        %v3130 = vld [vmem:[#allocation10 + $0x170] sm:$0xff]
        %v3131 = vld [vmem:[#allocation10 + $0x178] sm:$0xff]
        %v3132 = vld [vmem:[#allocation10 + $0x180] sm:$0xff]
        %v3133 = vld [vmem:[#allocation10 + $0x188] sm:$0xff]
        %v3134 = vld [vmem:[#allocation10 + $0x190] sm:$0xff]
        %v3135 = vld [vmem:[#allocation10 + $0x198] sm:$0xff]
        %v3136 = vld [vmem:[#allocation10 + $0x1a0] sm:$0xff]
        %v3137 = vld [vmem:[#allocation10 + $0x1a8] sm:$0xff]
        %v3138 = vld [vmem:[#allocation10 + $0x1b0] sm:$0xff]
        %v3139 = vld [vmem:[#allocation10 + $0x1b8] sm:$0xff]
        %v3140 = vld [vmem:[#allocation10 + $0x1c0] sm:$0xff]
        %v3141 = vld [vmem:[#allocation10 + $0x1c8] sm:$0xff]
        %v3142 = vld [vmem:[#allocation10 + $0x1d0] sm:$0xff]
        %v3143 = vld [vmem:[#allocation10 + $0x1d8] sm:$0xff]
        %v3144 = vld [vmem:[#allocation10 + $0x1e0] sm:$0xff]
        %v3145 = vld [vmem:[#allocation10 + $0x1e8] sm:$0xff]
        %v3146 = vld [vmem:[#allocation10 + $0x1f0] sm:$0xff]
        %v3147 = vld [vmem:[#allocation10 + $0x1f8] sm:$0xff]
        %v3148 = vld [vmem:[#allocation11] sm:$0xff]
        %v3149 = vld [vmem:[#allocation11 + $0x8] sm:$0xff]
        %v3150 = vld [vmem:[#allocation11 + $0x10] sm:$0xff]
        %v3151 = vld [vmem:[#allocation11 + $0x18] sm:$0xff]
        %v3152 = vld [vmem:[#allocation11 + $0x20] sm:$0xff]
        %v3153 = vld [vmem:[#allocation11 + $0x28] sm:$0xff]
        %v3154 = vld [vmem:[#allocation11 + $0x30] sm:$0xff]
        %v3155 = vld [vmem:[#allocation11 + $0x38] sm:$0xff]
        %v3156 = vld [vmem:[#allocation11 + $0x40] sm:$0xff]
        %v3157 = vld [vmem:[#allocation11 + $0x48] sm:$0xff]
        %v3158 = vld [vmem:[#allocation11 + $0x50] sm:$0xff]
        %v3159 = vld [vmem:[#allocation11 + $0x58] sm:$0xff]
        %v3160 = vld [vmem:[#allocation11 + $0x60] sm:$0xff]
        %v3161 = vld [vmem:[#allocation11 + $0x68] sm:$0xff]
        %v3162 = vld [vmem:[#allocation11 + $0x70] sm:$0xff]
        %v3163 = vld [vmem:[#allocation11 + $0x78] sm:$0xff]
        %v3164 = vld [vmem:[#allocation11 + $0x80] sm:$0xff]
        %v3165 = vld [vmem:[#allocation11 + $0x88] sm:$0xff]
        %v3166 = vld [vmem:[#allocation11 + $0x90] sm:$0xff]
        %v3167 = vld [vmem:[#allocation11 + $0x98] sm:$0xff]
        %v3168 = vld [vmem:[#allocation11 + $0xa0] sm:$0xff]
        %v3169 = vld [vmem:[#allocation11 + $0xa8] sm:$0xff]
        %v3170 = vld [vmem:[#allocation11 + $0xb0] sm:$0xff]
        %v3171 = vld [vmem:[#allocation11 + $0xb8] sm:$0xff]
        %v3172 = vld [vmem:[#allocation11 + $0xc0] sm:$0xff]
        %v3173 = vld [vmem:[#allocation11 + $0xc8] sm:$0xff]
        %v3174 = vld [vmem:[#allocation11 + $0xd0] sm:$0xff]
        %v3175 = vld [vmem:[#allocation11 + $0xd8] sm:$0xff]
        %v3176 = vld [vmem:[#allocation11 + $0xe0] sm:$0xff]
        %v3177 = vld [vmem:[#allocation11 + $0xe8] sm:$0xff]
        %v3178 = vld [vmem:[#allocation11 + $0xf0] sm:$0xff]
        %v3179 = vld [vmem:[#allocation11 + $0xf8] sm:$0xff]
        %v3180 = vld [vmem:[#allocation11 + $0x100] sm:$0xff]
        %v3181 = vld [vmem:[#allocation11 + $0x108] sm:$0xff]
        %v3182 = vld [vmem:[#allocation11 + $0x110] sm:$0xff]
        %v3183 = vld [vmem:[#allocation11 + $0x118] sm:$0xff]
        %v3184 = vld [vmem:[#allocation11 + $0x120] sm:$0xff]
        %v3185 = vld [vmem:[#allocation11 + $0x128] sm:$0xff]
        %v3186 = vld [vmem:[#allocation11 + $0x130] sm:$0xff]
        %v3187 = vld [vmem:[#allocation11 + $0x138] sm:$0xff]
        %v3188 = vld [vmem:[#allocation11 + $0x140] sm:$0xff]
        %v3189 = vld [vmem:[#allocation11 + $0x148] sm:$0xff]
        %v3190 = vld [vmem:[#allocation11 + $0x150] sm:$0xff]
        %v3191 = vld [vmem:[#allocation11 + $0x158] sm:$0xff]
        %v3192 = vld [vmem:[#allocation11 + $0x160] sm:$0xff]
        %v3193 = vld [vmem:[#allocation11 + $0x168] sm:$0xff]
        %v3194 = vld [vmem:[#allocation11 + $0x170] sm:$0xff]
        %v3195 = vld [vmem:[#allocation11 + $0x178] sm:$0xff]
        %v3196 = vld [vmem:[#allocation11 + $0x180] sm:$0xff]
        %v3197 = vld [vmem:[#allocation11 + $0x188] sm:$0xff]
        %v3198 = vld [vmem:[#allocation11 + $0x190] sm:$0xff]
        %v3199 = vld [vmem:[#allocation11 + $0x198] sm:$0xff]
        %v3200 = vld [vmem:[#allocation11 + $0x1a0] sm:$0xff]
        %v3201 = vld [vmem:[#allocation11 + $0x1a8] sm:$0xff]
        %v3202 = vld [vmem:[#allocation11 + $0x1b0] sm:$0xff]
        %v3203 = vld [vmem:[#allocation11 + $0x1b8] sm:$0xff]
        %v3204 = vld [vmem:[#allocation11 + $0x1c0] sm:$0xff]
        %v3205 = vld [vmem:[#allocation11 + $0x1c8] sm:$0xff]
        %v3206 = vld [vmem:[#allocation11 + $0x1d0] sm:$0xff]
        %v3207 = vld [vmem:[#allocation11 + $0x1d8] sm:$0xff]
        %v3208 = vld [vmem:[#allocation11 + $0x1e0] sm:$0xff]
        %v3209 = vld [vmem:[#allocation11 + $0x1e8] sm:$0xff]
        %v3210 = vld [vmem:[#allocation11 + $0x1f0] sm:$0xff]
        %v3211 = vld [vmem:[#allocation11 + $0x1f8] sm:$0xff]
        %v3212 = vld [vmem:[#allocation13] sm:$0xff]
        %v3213 = vld [vmem:[#allocation13 + $0x8] sm:$0xff]
        %v3214 = vld [vmem:[#allocation13 + $0x10] sm:$0xff]
        %v3215 = vld [vmem:[#allocation13 + $0x18] sm:$0xff]
        %v3216 = vld [vmem:[#allocation13 + $0x20] sm:$0xff]
        %v3217 = vld [vmem:[#allocation13 + $0x28] sm:$0xff]
        %v3218 = vld [vmem:[#allocation13 + $0x30] sm:$0xff]
        %v3219 = vld [vmem:[#allocation13 + $0x38] sm:$0xff]
        %v3220 = vld [vmem:[#allocation13 + $0x40] sm:$0xff]
        %v3221 = vld [vmem:[#allocation13 + $0x48] sm:$0xff]
        %v3222 = vld [vmem:[#allocation13 + $0x50] sm:$0xff]
        %v3223 = vld [vmem:[#allocation13 + $0x58] sm:$0xff]
        %v3224 = vld [vmem:[#allocation13 + $0x60] sm:$0xff]
        %v3225 = vld [vmem:[#allocation13 + $0x68] sm:$0xff]
        %v3226 = vld [vmem:[#allocation13 + $0x70] sm:$0xff]
        %v3227 = vld [vmem:[#allocation13 + $0x78] sm:$0xff]
        %v3228 = vld [vmem:[#allocation13 + $0x80] sm:$0xff]
        %v3229 = vld [vmem:[#allocation13 + $0x88] sm:$0xff]
        %v3230 = vld [vmem:[#allocation13 + $0x90] sm:$0xff]
        %v3231 = vld [vmem:[#allocation13 + $0x98] sm:$0xff]
        %v3232 = vld [vmem:[#allocation13 + $0xa0] sm:$0xff]
        %v3233 = vld [vmem:[#allocation13 + $0xa8] sm:$0xff]
        %v3234 = vld [vmem:[#allocation13 + $0xb0] sm:$0xff]
        %v3235 = vld [vmem:[#allocation13 + $0xb8] sm:$0xff]
        %v3236 = vld [vmem:[#allocation13 + $0xc0] sm:$0xff]
        %v3237 = vld [vmem:[#allocation13 + $0xc8] sm:$0xff]
        %v3238 = vld [vmem:[#allocation13 + $0xd0] sm:$0xff]
        %v3239 = vld [vmem:[#allocation13 + $0xd8] sm:$0xff]
        %v3240 = vld [vmem:[#allocation13 + $0xe0] sm:$0xff]
        %v3241 = vld [vmem:[#allocation13 + $0xe8] sm:$0xff]
        %v3242 = vld [vmem:[#allocation13 + $0xf0] sm:$0xff]
        %v3243 = vld [vmem:[#allocation13 + $0xf8] sm:$0xff]
        %v3244 = vld [vmem:[#allocation13 + $0x100] sm:$0xff]
        %v3245 = vld [vmem:[#allocation13 + $0x108] sm:$0xff]
        %v3246 = vld [vmem:[#allocation13 + $0x110] sm:$0xff]
        %v3247 = vld [vmem:[#allocation13 + $0x118] sm:$0xff]
        %v3248 = vld [vmem:[#allocation13 + $0x120] sm:$0xff]
        %v3249 = vld [vmem:[#allocation13 + $0x128] sm:$0xff]
        %v3250 = vld [vmem:[#allocation13 + $0x130] sm:$0xff]
        %v3251 = vld [vmem:[#allocation13 + $0x138] sm:$0xff]
        %v3252 = vld [vmem:[#allocation13 + $0x140] sm:$0xff]
        %v3253 = vld [vmem:[#allocation13 + $0x148] sm:$0xff]
        %v3254 = vld [vmem:[#allocation13 + $0x150] sm:$0xff]
        %v3255 = vld [vmem:[#allocation13 + $0x158] sm:$0xff]
        %v3256 = vld [vmem:[#allocation13 + $0x160] sm:$0xff]
        %v3257 = vld [vmem:[#allocation13 + $0x168] sm:$0xff]
        %v3258 = vld [vmem:[#allocation13 + $0x170] sm:$0xff]
        %v3259 = vld [vmem:[#allocation13 + $0x178] sm:$0xff]
        %v3260 = vld [vmem:[#allocation13 + $0x180] sm:$0xff]
        %v3261 = vld [vmem:[#allocation13 + $0x188] sm:$0xff]
        %v3262 = vld [vmem:[#allocation13 + $0x190] sm:$0xff]
        %v3263 = vld [vmem:[#allocation13 + $0x198] sm:$0xff]
        %v3264 = vld [vmem:[#allocation13 + $0x1a0] sm:$0xff]
        %v3265 = vld [vmem:[#allocation13 + $0x1a8] sm:$0xff]
        %v3266 = vld [vmem:[#allocation13 + $0x1b0] sm:$0xff]
        %v3267 = vld [vmem:[#allocation13 + $0x1b8] sm:$0xff]
        %v3268 = vld [vmem:[#allocation13 + $0x1c0] sm:$0xff]
        %v3269 = vld [vmem:[#allocation13 + $0x1c8] sm:$0xff]
        %v3270 = vld [vmem:[#allocation13 + $0x1d0] sm:$0xff]
        %v3271 = vld [vmem:[#allocation13 + $0x1d8] sm:$0xff]
        %v3272 = vld [vmem:[#allocation13 + $0x1e0] sm:$0xff]
        %v3273 = vld [vmem:[#allocation13 + $0x1e8] sm:$0xff]
        %v3274 = vld [vmem:[#allocation13 + $0x1f0] sm:$0xff]
        %v3275 = vld [vmem:[#allocation13 + $0x1f8] sm:$0xff]
        %3276 = vrot.lane.b32.xlu0 %v2328, 127
        %v3277 = vpop.permute.xlu0 %3276
        %3278 = vrot.lane.b32.xlu0 %v2332, 127
        %v3279 = vpop.permute.xlu0 %3278
        %3280 = vrot.lane.b32.xlu0 %v2338, 127
        %v3281 = vpop.permute.xlu0 %3280
        %3282 = vrot.lane.b32.xlu0 %v2342, 127
        %v3283 = vpop.permute.xlu0 %3282
        %3284 = vrot.lane.b32.xlu0 %v2348, 127
        %v3285 = vpop.permute.xlu0 %3284
        %3286 = vrot.lane.b32.xlu0 %v2352, 127
        %v3287 = vpop.permute.xlu0 %3286
        %3288 = vrot.lane.b32.xlu0 %v2358, 127
        %v3289 = vpop.permute.xlu0 %3288
        %3290 = vrot.lane.b32.xlu0 %v2362, 127
        %v3291 = vpop.permute.xlu0 %3290
        %3292 = vrot.lane.b32.xlu0 %v2368, 127
        %v3293 = vpop.permute.xlu0 %3292
        %3294 = vrot.lane.b32.xlu0 %v2372, 127
        %v3295 = vpop.permute.xlu0 %3294
        %3296 = vrot.lane.b32.xlu0 %v2378, 127
        %v3297 = vpop.permute.xlu0 %3296
        %3298 = vrot.lane.b32.xlu0 %v2382, 127
        %v3299 = vpop.permute.xlu0 %3298
        %3300 = vrot.lane.b32.xlu0 %v2388, 127
        %v3301 = vpop.permute.xlu0 %3300
        %3302 = vrot.lane.b32.xlu0 %v2392, 127
        %v3303 = vpop.permute.xlu0 %3302
        %3304 = vrot.lane.b32.xlu0 %v2398, 127
        %v3305 = vpop.permute.xlu0 %3304
        %3306 = vrot.lane.b32.xlu0 %v2402, 127
        %v3307 = vpop.permute.xlu0 %3306
        %3308 = vrot.lane.b32.xlu0 %v2330, 127
        %v3309 = vpop.permute.xlu0 %3308
        %3310 = vrot.lane.b32.xlu0 %v2334, 127
        %v3311 = vpop.permute.xlu0 %3310
        %3312 = vrot.lane.b32.xlu0 %v2340, 127
        %v3313 = vpop.permute.xlu0 %3312
        %3314 = vrot.lane.b32.xlu0 %v2344, 127
        %v3315 = vpop.permute.xlu0 %3314
        %3316 = vrot.lane.b32.xlu0 %v2350, 127
        %v3317 = vpop.permute.xlu0 %3316
        %3318 = vrot.lane.b32.xlu0 %v2354, 127
        %v3319 = vpop.permute.xlu0 %3318
        %3320 = vrot.lane.b32.xlu0 %v2360, 127
        %v3321 = vpop.permute.xlu0 %3320
        %3322 = vrot.lane.b32.xlu0 %v2364, 127
        %v3323 = vpop.permute.xlu0 %3322
        %3324 = vrot.lane.b32.xlu0 %v2370, 127
        %v3325 = vpop.permute.xlu0 %3324
        %3326 = vrot.lane.b32.xlu0 %v2374, 127
        %v3327 = vpop.permute.xlu0 %3326
        %3328 = vrot.lane.b32.xlu0 %v2380, 127
        %v3329 = vpop.permute.xlu0 %3328
        %3330 = vrot.lane.b32.xlu0 %v2384, 127
        %v3331 = vpop.permute.xlu0 %3330
        %3332 = vrot.lane.b32.xlu0 %v2390, 127
        %v3333 = vpop.permute.xlu0 %3332
        %3334 = vrot.lane.b32.xlu0 %v2394, 127
        %v3335 = vpop.permute.xlu0 %3334
        %3336 = vrot.lane.b32.xlu0 %v2400, 127
        %v3337 = vpop.permute.xlu0 %3336
        %3338 = vrot.lane.b32.xlu0 %v2404, 127
        %v3339 = vpop.permute.xlu0 %3338
        %3340 = vrot.lane.b32.xlu0 %v2554, 127
        %v3341 = vpop.permute.xlu0 %3340
        %3342 = vrot.lane.b32.xlu0 %v2558, 127
        %v3343 = vpop.permute.xlu0 %3342
        %3344 = vrot.lane.b32.xlu0 %v2564, 127
        %v3345 = vpop.permute.xlu0 %3344
        %3346 = vrot.lane.b32.xlu0 %v2568, 127
        %v3347 = vpop.permute.xlu0 %3346
        %3348 = vrot.lane.b32.xlu0 %v2574, 127
        %v3349 = vpop.permute.xlu0 %3348
        %3350 = vrot.lane.b32.xlu0 %v2578, 127
        %v3351 = vpop.permute.xlu0 %3350
        %3352 = vrot.lane.b32.xlu0 %v2584, 127
        %v3353 = vpop.permute.xlu0 %3352
        %3354 = vrot.lane.b32.xlu0 %v2588, 127
        %v3355 = vpop.permute.xlu0 %3354
        %3356 = vrot.lane.b32.xlu0 %v2594, 127
        %v3357 = vpop.permute.xlu0 %3356
        %3358 = vrot.lane.b32.xlu0 %v2598, 127
        %v3359 = vpop.permute.xlu0 %3358
        %3360 = vrot.lane.b32.xlu0 %v2604, 127
        %v3361 = vpop.permute.xlu0 %3360
        %3362 = vrot.lane.b32.xlu0 %v2608, 127
        %v3363 = vpop.permute.xlu0 %3362
        %3364 = vrot.lane.b32.xlu0 %v2614, 127
        %v3365 = vpop.permute.xlu0 %3364
        %3366 = vrot.lane.b32.xlu0 %v2618, 127
        %v3367 = vpop.permute.xlu0 %3366
        %3368 = vrot.lane.b32.xlu0 %v2624, 127
        %v3369 = vpop.permute.xlu0 %3368
        %3370 = vrot.lane.b32.xlu0 %v2628, 127
        %v3371 = vpop.permute.xlu0 %3370
        %3372 = vrot.lane.b32.xlu0 %v2556, 127
        %v3373 = vpop.permute.xlu0 %3372
        %3374 = vrot.lane.b32.xlu0 %v2560, 127
        %v3375 = vpop.permute.xlu0 %3374
        %3376 = vrot.lane.b32.xlu0 %v2566, 127
        %v3377 = vpop.permute.xlu0 %3376
        %3378 = vrot.lane.b32.xlu0 %v2570, 127
        %v3379 = vpop.permute.xlu0 %3378
        %3380 = vrot.lane.b32.xlu0 %v2576, 127
        %v3381 = vpop.permute.xlu0 %3380
        %3382 = vrot.lane.b32.xlu0 %v2580, 127
        %v3383 = vpop.permute.xlu0 %3382
        %3384 = vrot.lane.b32.xlu0 %v2586, 127
        %v3385 = vpop.permute.xlu0 %3384
        %3386 = vrot.lane.b32.xlu0 %v2590, 127
        %v3387 = vpop.permute.xlu0 %3386
        %3388 = vrot.lane.b32.xlu0 %v2596, 127
        %v3389 = vpop.permute.xlu0 %3388
        %3390 = vrot.lane.b32.xlu0 %v2600, 127
        %v3391 = vpop.permute.xlu0 %3390
        %3392 = vrot.lane.b32.xlu0 %v2606, 127
        %v3393 = vpop.permute.xlu0 %3392
        %3394 = vrot.lane.b32.xlu0 %v2610, 127
        %v3395 = vpop.permute.xlu0 %3394
        %3396 = vrot.lane.b32.xlu0 %v2616, 127
        %v3397 = vpop.permute.xlu0 %3396
        %3398 = vrot.lane.b32.xlu0 %v2620, 127
        %v3399 = vpop.permute.xlu0 %3398
        %3400 = vrot.lane.b32.xlu0 %v2626, 127
        %v3401 = vpop.permute.xlu0 %3400
        %3402 = vrot.lane.b32.xlu0 %v2630, 127
        %v3403 = vpop.permute.xlu0 %3402
        %v3404 = vlaneseq
        %v3405 = vand.u32 %v3404, 127
        %vm3406 = vcmp.lt.s32.totalorder %v3405, 127
        %v3407 = vsel %vm3406, %v3341, %v3373
        %v3408 = vsel %vm3406, %v3343, %v3375
        %v3409 = vsel %vm3406, %v3345, %v3377
        %v3410 = vsel %vm3406, %v3347, %v3379
        %v3411 = vsel %vm3406, %v3349, %v3381
        %v3412 = vsel %vm3406, %v3351, %v3383
        %v3413 = vsel %vm3406, %v3353, %v3385
        %v3414 = vsel %vm3406, %v3355, %v3387
        %v3415 = vsel %vm3406, %v3357, %v3389
        %v3416 = vsel %vm3406, %v3359, %v3391
        %v3417 = vsel %vm3406, %v3361, %v3393
        %v3418 = vsel %vm3406, %v3363, %v3395
        %v3419 = vsel %vm3406, %v3365, %v3397
        %v3420 = vsel %vm3406, %v3367, %v3399
        %v3421 = vsel %vm3406, %v3369, %v3401
        %v3422 = vsel %vm3406, %v3371, %v3403
        %v3423 = vsel %vm3406, %v3309, %v3341
        %v3424 = vsel %vm3406, %v3311, %v3343
        %v3425 = vsel %vm3406, %v3313, %v3345
        %v3426 = vsel %vm3406, %v3315, %v3347
        %v3427 = vsel %vm3406, %v3317, %v3349
        %v3428 = vsel %vm3406, %v3319, %v3351
        %v3429 = vsel %vm3406, %v3321, %v3353
        %v3430 = vsel %vm3406, %v3323, %v3355
        %v3431 = vsel %vm3406, %v3325, %v3357
        %v3432 = vsel %vm3406, %v3327, %v3359
        %v3433 = vsel %vm3406, %v3329, %v3361
        %v3434 = vsel %vm3406, %v3331, %v3363
        %v3435 = vsel %vm3406, %v3333, %v3365
        %v3436 = vsel %vm3406, %v3335, %v3367
        %v3437 = vsel %vm3406, %v3337, %v3369
        %v3438 = vsel %vm3406, %v3339, %v3371
        %v3439 = vsel %vm3406, %v3277, %v3309
        %v3440 = vsel %vm3406, %v3279, %v3311
        %v3441 = vsel %vm3406, %v3281, %v3313
        %v3442 = vsel %vm3406, %v3283, %v3315
        %v3443 = vsel %vm3406, %v3285, %v3317
        %v3444 = vsel %vm3406, %v3287, %v3319
        %v3445 = vsel %vm3406, %v3289, %v3321
        %v3446 = vsel %vm3406, %v3291, %v3323
        %v3447 = vsel %vm3406, %v3293, %v3325
        %v3448 = vsel %vm3406, %v3295, %v3327
        %v3449 = vsel %vm3406, %v3297, %v3329
        %v3450 = vsel %vm3406, %v3299, %v3331
        %v3451 = vsel %vm3406, %v3301, %v3333
        %v3452 = vsel %vm3406, %v3303, %v3335
        %v3453 = vsel %vm3406, %v3305, %v3337
        %v3454 = vsel %vm3406, %v3307, %v3339
        %v3455 = vsel %vm3406, %v3373, %v3277
        %v3456 = vsel %vm3406, %v3375, %v3279
        %v3457 = vsel %vm3406, %v3377, %v3281
        %v3458 = vsel %vm3406, %v3379, %v3283
        %v3459 = vsel %vm3406, %v3381, %v3285
        %v3460 = vsel %vm3406, %v3383, %v3287
        %v3461 = vsel %vm3406, %v3385, %v3289
        %v3462 = vsel %vm3406, %v3387, %v3291
        %v3463 = vsel %vm3406, %v3389, %v3293
        %v3464 = vsel %vm3406, %v3391, %v3295
        %v3465 = vsel %vm3406, %v3393, %v3297
        %v3466 = vsel %vm3406, %v3395, %v3299
        %v3467 = vsel %vm3406, %v3397, %v3301
        %v3468 = vsel %vm3406, %v3399, %v3303
        %v3469 = vsel %vm3406, %v3401, %v3305
        %v3470 = vsel %vm3406, %v3403, %v3307
        %3471 = vrot.lane.b32.xlu0 %v2328, 1
        %v3472 = vpop.permute.xlu0 %3471
        %3473 = vrot.lane.b32.xlu0 %v2332, 1
        %v3474 = vpop.permute.xlu0 %3473
        %3475 = vrot.lane.b32.xlu0 %v2338, 1
        %v3476 = vpop.permute.xlu0 %3475
        %3477 = vrot.lane.b32.xlu0 %v2342, 1
        %v3478 = vpop.permute.xlu0 %3477
        %3479 = vrot.lane.b32.xlu0 %v2348, 1
        %v3480 = vpop.permute.xlu0 %3479
        %3481 = vrot.lane.b32.xlu0 %v2352, 1
        %v3482 = vpop.permute.xlu0 %3481
        %3483 = vrot.lane.b32.xlu0 %v2358, 1
        %v3484 = vpop.permute.xlu0 %3483
        %3485 = vrot.lane.b32.xlu0 %v2362, 1
        %v3486 = vpop.permute.xlu0 %3485
        %3487 = vrot.lane.b32.xlu0 %v2368, 1
        %v3488 = vpop.permute.xlu0 %3487
        %3489 = vrot.lane.b32.xlu0 %v2372, 1
        %v3490 = vpop.permute.xlu0 %3489
        %3491 = vrot.lane.b32.xlu0 %v2378, 1
        %v3492 = vpop.permute.xlu0 %3491
        %3493 = vrot.lane.b32.xlu0 %v2382, 1
        %v3494 = vpop.permute.xlu0 %3493
        %3495 = vrot.lane.b32.xlu0 %v2388, 1
        %v3496 = vpop.permute.xlu0 %3495
        %3497 = vrot.lane.b32.xlu0 %v2392, 1
        %v3498 = vpop.permute.xlu0 %3497
        %3499 = vrot.lane.b32.xlu0 %v2398, 1
        %v3500 = vpop.permute.xlu0 %3499
        %3501 = vrot.lane.b32.xlu0 %v2402, 1
        %v3502 = vpop.permute.xlu0 %3501
        %3503 = vrot.lane.b32.xlu0 %v2330, 1
        %v3504 = vpop.permute.xlu0 %3503
        %3505 = vrot.lane.b32.xlu0 %v2334, 1
        %v3506 = vpop.permute.xlu0 %3505
        %3507 = vrot.lane.b32.xlu0 %v2340, 1
        %v3508 = vpop.permute.xlu0 %3507
        %3509 = vrot.lane.b32.xlu0 %v2344, 1
        %v3510 = vpop.permute.xlu0 %3509
        %3511 = vrot.lane.b32.xlu0 %v2350, 1
        %v3512 = vpop.permute.xlu0 %3511
        %3513 = vrot.lane.b32.xlu0 %v2354, 1
        %v3514 = vpop.permute.xlu0 %3513
        %3515 = vrot.lane.b32.xlu0 %v2360, 1
        %v3516 = vpop.permute.xlu0 %3515
        %3517 = vrot.lane.b32.xlu0 %v2364, 1
        %v3518 = vpop.permute.xlu0 %3517
        %3519 = vrot.lane.b32.xlu0 %v2370, 1
        %v3520 = vpop.permute.xlu0 %3519
        %3521 = vrot.lane.b32.xlu0 %v2374, 1
        %v3522 = vpop.permute.xlu0 %3521
        %3523 = vrot.lane.b32.xlu0 %v2380, 1
        %v3524 = vpop.permute.xlu0 %3523
        %3525 = vrot.lane.b32.xlu0 %v2384, 1
        %v3526 = vpop.permute.xlu0 %3525
        %3527 = vrot.lane.b32.xlu0 %v2390, 1
        %v3528 = vpop.permute.xlu0 %3527
        %3529 = vrot.lane.b32.xlu0 %v2394, 1
        %v3530 = vpop.permute.xlu0 %3529
        %3531 = vrot.lane.b32.xlu0 %v2400, 1
        %v3532 = vpop.permute.xlu0 %3531
        %3533 = vrot.lane.b32.xlu0 %v2404, 1
        %v3534 = vpop.permute.xlu0 %3533
        %3535 = vrot.lane.b32.xlu0 %v2554, 1
        %v3536 = vpop.permute.xlu0 %3535
        %3537 = vrot.lane.b32.xlu0 %v2558, 1
        %v3538 = vpop.permute.xlu0 %3537
        %3539 = vrot.lane.b32.xlu0 %v2564, 1
        %v3540 = vpop.permute.xlu0 %3539
        %3541 = vrot.lane.b32.xlu0 %v2568, 1
        %v3542 = vpop.permute.xlu0 %3541
        %3543 = vrot.lane.b32.xlu0 %v2574, 1
        %v3544 = vpop.permute.xlu0 %3543
        %3545 = vrot.lane.b32.xlu0 %v2578, 1
        %v3546 = vpop.permute.xlu0 %3545
        %3547 = vrot.lane.b32.xlu0 %v2584, 1
        %v3548 = vpop.permute.xlu0 %3547
        %3549 = vrot.lane.b32.xlu0 %v2588, 1
        %v3550 = vpop.permute.xlu0 %3549
        %3551 = vrot.lane.b32.xlu0 %v2594, 1
        %v3552 = vpop.permute.xlu0 %3551
        %3553 = vrot.lane.b32.xlu0 %v2598, 1
        %v3554 = vpop.permute.xlu0 %3553
        %3555 = vrot.lane.b32.xlu0 %v2604, 1
        %v3556 = vpop.permute.xlu0 %3555
        %3557 = vrot.lane.b32.xlu0 %v2608, 1
        %v3558 = vpop.permute.xlu0 %3557
        %3559 = vrot.lane.b32.xlu0 %v2614, 1
        %v3560 = vpop.permute.xlu0 %3559
        %3561 = vrot.lane.b32.xlu0 %v2618, 1
        %v3562 = vpop.permute.xlu0 %3561
        %3563 = vrot.lane.b32.xlu0 %v2624, 1
        %v3564 = vpop.permute.xlu0 %3563
        %3565 = vrot.lane.b32.xlu0 %v2628, 1
        %v3566 = vpop.permute.xlu0 %3565
        %3567 = vrot.lane.b32.xlu0 %v2556, 1
        %v3568 = vpop.permute.xlu0 %3567
        %3569 = vrot.lane.b32.xlu0 %v2560, 1
        %v3570 = vpop.permute.xlu0 %3569
        %3571 = vrot.lane.b32.xlu0 %v2566, 1
        %v3572 = vpop.permute.xlu0 %3571
        %3573 = vrot.lane.b32.xlu0 %v2570, 1
        %v3574 = vpop.permute.xlu0 %3573
        %3575 = vrot.lane.b32.xlu0 %v2576, 1
        %v3576 = vpop.permute.xlu0 %3575
        %3577 = vrot.lane.b32.xlu0 %v2580, 1
        %v3578 = vpop.permute.xlu0 %3577
        %3579 = vrot.lane.b32.xlu0 %v2586, 1
        %v3580 = vpop.permute.xlu0 %3579
        %3581 = vrot.lane.b32.xlu0 %v2590, 1
        %v3582 = vpop.permute.xlu0 %3581
        %3583 = vrot.lane.b32.xlu0 %v2596, 1
        %v3584 = vpop.permute.xlu0 %3583
        %3585 = vrot.lane.b32.xlu0 %v2600, 1
        %v3586 = vpop.permute.xlu0 %3585
        %3587 = vrot.lane.b32.xlu0 %v2606, 1
        %v3588 = vpop.permute.xlu0 %3587
        %3589 = vrot.lane.b32.xlu0 %v2610, 1
        %v3590 = vpop.permute.xlu0 %3589
        %3591 = vrot.lane.b32.xlu0 %v2616, 1
        %v3592 = vpop.permute.xlu0 %3591
        %3593 = vrot.lane.b32.xlu0 %v2620, 1
        %v3594 = vpop.permute.xlu0 %3593
        %3595 = vrot.lane.b32.xlu0 %v2626, 1
        %v3596 = vpop.permute.xlu0 %3595
        %3597 = vrot.lane.b32.xlu0 %v2630, 1
        %v3598 = vpop.permute.xlu0 %3597
        %vm3599 = vcmp.lt.s32.totalorder %v3405, 1
        %v3600 = vsel %vm3599, %v3536, %v3568
        %v3601 = vsel %vm3599, %v3538, %v3570
        %v3602 = vsel %vm3599, %v3540, %v3572
        %v3603 = vsel %vm3599, %v3542, %v3574
        %v3604 = vsel %vm3599, %v3544, %v3576
        %v3605 = vsel %vm3599, %v3546, %v3578
        %v3606 = vsel %vm3599, %v3548, %v3580
        %v3607 = vsel %vm3599, %v3550, %v3582
        %v3608 = vsel %vm3599, %v3552, %v3584
        %v3609 = vsel %vm3599, %v3554, %v3586
        %v3610 = vsel %vm3599, %v3556, %v3588
        %v3611 = vsel %vm3599, %v3558, %v3590
        %v3612 = vsel %vm3599, %v3560, %v3592
        %v3613 = vsel %vm3599, %v3562, %v3594
        %v3614 = vsel %vm3599, %v3564, %v3596
        %v3615 = vsel %vm3599, %v3566, %v3598
        %v3616 = vsel %vm3599, %v3504, %v3536
        %v3617 = vsel %vm3599, %v3506, %v3538
        %v3618 = vsel %vm3599, %v3508, %v3540
        %v3619 = vsel %vm3599, %v3510, %v3542
        %v3620 = vsel %vm3599, %v3512, %v3544
        %v3621 = vsel %vm3599, %v3514, %v3546
        %v3622 = vsel %vm3599, %v3516, %v3548
        %v3623 = vsel %vm3599, %v3518, %v3550
        %v3624 = vsel %vm3599, %v3520, %v3552
        %v3625 = vsel %vm3599, %v3522, %v3554
        %v3626 = vsel %vm3599, %v3524, %v3556
        %v3627 = vsel %vm3599, %v3526, %v3558
        %v3628 = vsel %vm3599, %v3528, %v3560
        %v3629 = vsel %vm3599, %v3530, %v3562
        %v3630 = vsel %vm3599, %v3532, %v3564
        %v3631 = vsel %vm3599, %v3534, %v3566
        %v3632 = vsel %vm3599, %v3472, %v3504
        %v3633 = vsel %vm3599, %v3474, %v3506
        %v3634 = vsel %vm3599, %v3476, %v3508
        %v3635 = vsel %vm3599, %v3478, %v3510
        %v3636 = vsel %vm3599, %v3480, %v3512
        %v3637 = vsel %vm3599, %v3482, %v3514
        %v3638 = vsel %vm3599, %v3484, %v3516
        %v3639 = vsel %vm3599, %v3486, %v3518
        %v3640 = vsel %vm3599, %v3488, %v3520
        %v3641 = vsel %vm3599, %v3490, %v3522
        %v3642 = vsel %vm3599, %v3492, %v3524
        %v3643 = vsel %vm3599, %v3494, %v3526
        %v3644 = vsel %vm3599, %v3496, %v3528
        %v3645 = vsel %vm3599, %v3498, %v3530
        %v3646 = vsel %vm3599, %v3500, %v3532
        %v3647 = vsel %vm3599, %v3502, %v3534
        %v3648 = vsel %vm3599, %v3568, %v3472
        %v3649 = vsel %vm3599, %v3570, %v3474
        %v3650 = vsel %vm3599, %v3572, %v3476
        %v3651 = vsel %vm3599, %v3574, %v3478
        %v3652 = vsel %vm3599, %v3576, %v3480
        %v3653 = vsel %vm3599, %v3578, %v3482
        %v3654 = vsel %vm3599, %v3580, %v3484
        %v3655 = vsel %vm3599, %v3582, %v3486
        %v3656 = vsel %vm3599, %v3584, %v3488
        %v3657 = vsel %vm3599, %v3586, %v3490
        %v3658 = vsel %vm3599, %v3588, %v3492
        %v3659 = vsel %vm3599, %v3590, %v3494
        %v3660 = vsel %vm3599, %v3592, %v3496
        %v3661 = vsel %vm3599, %v3594, %v3498
        %v3662 = vsel %vm3599, %v3596, %v3500
        %v3663 = vsel %vm3599, %v3598, %v3502
        %v3664 = vmul.f32 %v2328, %v3084
        %v3665 = vmul.f32 %v2330, %v3085
        %v3666 = vmul.f32 %v2554, %v3086
        %v3667 = vmul.f32 %v2556, %v3087
        %v3668 = vmul.f32 %v2332, %v3088
        %v3669 = vmul.f32 %v2334, %v3089
        %v3670 = vmul.f32 %v2558, %v3090
        %v3671 = vmul.f32 %v2560, %v3091
        %v3672 = vmul.f32 %v2338, %v3092
        %v3673 = vmul.f32 %v2340, %v3093
        %v3674 = vmul.f32 %v2564, %v3094
        %v3675 = vmul.f32 %v2566, %v3095
        %v3676 = vmul.f32 %v2342, %v3096
        %v3677 = vmul.f32 %v2344, %v3097
        %v3678 = vmul.f32 %v2568, %v3098
        %v3679 = vmul.f32 %v2570, %v3099
        %v3680 = vmul.f32 %v2348, %v3100
        %v3681 = vmul.f32 %v2350, %v3101
        %v3682 = vmul.f32 %v2574, %v3102
        %v3683 = vmul.f32 %v2576, %v3103
        %v3684 = vmul.f32 %v2352, %v3104
        %v3685 = vmul.f32 %v2354, %v3105
        %v3686 = vmul.f32 %v2578, %v3106
        %v3687 = vmul.f32 %v2580, %v3107
        %v3688 = vmul.f32 %v2358, %v3108
        %v3689 = vmul.f32 %v2360, %v3109
        %v3690 = vmul.f32 %v2584, %v3110
        %v3691 = vmul.f32 %v2586, %v3111
        %v3692 = vmul.f32 %v2362, %v3112
        %v3693 = vmul.f32 %v2364, %v3113
        %v3694 = vmul.f32 %v2588, %v3114
        %v3695 = vmul.f32 %v2590, %v3115
        %v3696 = vmul.f32 %v2368, %v3116
        %v3697 = vmul.f32 %v2370, %v3117
        %v3698 = vmul.f32 %v2594, %v3118
        %v3699 = vmul.f32 %v2596, %v3119
        %v3700 = vmul.f32 %v2372, %v3120
        %v3701 = vmul.f32 %v2374, %v3121
        %v3702 = vmul.f32 %v2598, %v3122
        %v3703 = vmul.f32 %v2600, %v3123
        %v3704 = vmul.f32 %v2378, %v3124
        %v3705 = vmul.f32 %v2380, %v3125
        %v3706 = vmul.f32 %v2604, %v3126
        %v3707 = vmul.f32 %v2606, %v3127
        %v3708 = vmul.f32 %v2382, %v3128
        %v3709 = vmul.f32 %v2384, %v3129
        %v3710 = vmul.f32 %v2608, %v3130
        %v3711 = vmul.f32 %v2610, %v3131
        %v3712 = vmul.f32 %v2388, %v3132
        %v3713 = vmul.f32 %v2390, %v3133
        %v3714 = vmul.f32 %v2614, %v3134
        %v3715 = vmul.f32 %v2616, %v3135
        %v3716 = vmul.f32 %v2392, %v3136
        %v3717 = vmul.f32 %v2394, %v3137
        %v3718 = vmul.f32 %v2618, %v3138
        %v3719 = vmul.f32 %v2620, %v3139
        %v3720 = vmul.f32 %v2398, %v3140
        %v3721 = vmul.f32 %v2400, %v3141
        %v3722 = vmul.f32 %v2624, %v3142
        %v3723 = vmul.f32 %v2626, %v3143
        %v3724 = vmul.f32 %v2402, %v3144
        %v3725 = vmul.f32 %v2404, %v3145
        %v3726 = vmul.f32 %v2628, %v3146
        %v3727 = vmul.f32 %v2630, %v3147
        %v3728 = vmul.f32 %v3439, %v3148
        %v3729 = vmul.f32 %v3423, %v3149
        %v3730 = vmul.f32 %v3407, %v3150
        %v3731 = vmul.f32 %v3455, %v3151
        %v3732 = vmul.f32 %v3440, %v3152
        %v3733 = vmul.f32 %v3424, %v3153
        %v3734 = vmul.f32 %v3408, %v3154
        %v3735 = vmul.f32 %v3456, %v3155
        %v3736 = vmul.f32 %v3441, %v3156
        %v3737 = vmul.f32 %v3425, %v3157
        %v3738 = vmul.f32 %v3409, %v3158
        %v3739 = vmul.f32 %v3457, %v3159
        %v3740 = vmul.f32 %v3442, %v3160
        %v3741 = vmul.f32 %v3426, %v3161
        %v3742 = vmul.f32 %v3410, %v3162
        %v3743 = vmul.f32 %v3458, %v3163
        %v3744 = vmul.f32 %v3443, %v3164
        %v3745 = vmul.f32 %v3427, %v3165
        %v3746 = vmul.f32 %v3411, %v3166
        %v3747 = vmul.f32 %v3459, %v3167
        %v3748 = vmul.f32 %v3444, %v3168
        %v3749 = vmul.f32 %v3428, %v3169
        %v3750 = vmul.f32 %v3412, %v3170
        %v3751 = vmul.f32 %v3460, %v3171
        %v3752 = vmul.f32 %v3445, %v3172
        %v3753 = vmul.f32 %v3429, %v3173
        %v3754 = vmul.f32 %v3413, %v3174
        %v3755 = vmul.f32 %v3461, %v3175
        %v3756 = vmul.f32 %v3446, %v3176
        %v3757 = vmul.f32 %v3430, %v3177
        %v3758 = vmul.f32 %v3414, %v3178
        %v3759 = vmul.f32 %v3462, %v3179
        %v3760 = vmul.f32 %v3447, %v3180
        %v3761 = vmul.f32 %v3431, %v3181
        %v3762 = vmul.f32 %v3415, %v3182
        %v3763 = vmul.f32 %v3463, %v3183
        %v3764 = vmul.f32 %v3448, %v3184
        %v3765 = vmul.f32 %v3432, %v3185
        %v3766 = vmul.f32 %v3416, %v3186
        %v3767 = vmul.f32 %v3464, %v3187
        %v3768 = vmul.f32 %v3449, %v3188
        %v3769 = vmul.f32 %v3433, %v3189
        %v3770 = vmul.f32 %v3417, %v3190
        %v3771 = vmul.f32 %v3465, %v3191
        %v3772 = vmul.f32 %v3450, %v3192
        %v3773 = vmul.f32 %v3434, %v3193
        %v3774 = vmul.f32 %v3418, %v3194
        %v3775 = vmul.f32 %v3466, %v3195
        %v3776 = vmul.f32 %v3451, %v3196
        %v3777 = vmul.f32 %v3435, %v3197
        %v3778 = vmul.f32 %v3419, %v3198
        %v3779 = vmul.f32 %v3467, %v3199
        %v3780 = vmul.f32 %v3452, %v3200
        %v3781 = vmul.f32 %v3436, %v3201
        %v3782 = vmul.f32 %v3420, %v3202
        %v3783 = vmul.f32 %v3468, %v3203
        %v3784 = vmul.f32 %v3453, %v3204
        %v3785 = vmul.f32 %v3437, %v3205
        %v3786 = vmul.f32 %v3421, %v3206
        %v3787 = vmul.f32 %v3469, %v3207
        %v3788 = vmul.f32 %v3454, %v3208
        %v3789 = vmul.f32 %v3438, %v3209
        %v3790 = vmul.f32 %v3422, %v3210
        %v3791 = vmul.f32 %v3470, %v3211
        %v3792 = vadd.f32 %v3664, %v3728
        %v3793 = vadd.f32 %v3665, %v3729
        %v3794 = vadd.f32 %v3666, %v3730
        %v3795 = vadd.f32 %v3667, %v3731
        %v3796 = vadd.f32 %v3668, %v3732
        %v3797 = vadd.f32 %v3669, %v3733
        %v3798 = vadd.f32 %v3670, %v3734
        %v3799 = vadd.f32 %v3671, %v3735
        %v3800 = vadd.f32 %v3672, %v3736
        %v3801 = vadd.f32 %v3673, %v3737
        %v3802 = vadd.f32 %v3674, %v3738
        %v3803 = vadd.f32 %v3675, %v3739
        %v3804 = vadd.f32 %v3676, %v3740
        %v3805 = vadd.f32 %v3677, %v3741
        %v3806 = vadd.f32 %v3678, %v3742
        %v3807 = vadd.f32 %v3679, %v3743
        %v3808 = vadd.f32 %v3680, %v3744
        %v3809 = vadd.f32 %v3681, %v3745
        %v3810 = vadd.f32 %v3682, %v3746
        %v3811 = vadd.f32 %v3683, %v3747
        %v3812 = vadd.f32 %v3684, %v3748
        %v3813 = vadd.f32 %v3685, %v3749
        %v3814 = vadd.f32 %v3686, %v3750
        %v3815 = vadd.f32 %v3687, %v3751
        %v3816 = vadd.f32 %v3688, %v3752
        %v3817 = vadd.f32 %v3689, %v3753
        %v3818 = vadd.f32 %v3690, %v3754
        %v3819 = vadd.f32 %v3691, %v3755
        %v3820 = vadd.f32 %v3692, %v3756
        %v3821 = vadd.f32 %v3693, %v3757
        %v3822 = vadd.f32 %v3694, %v3758
        %v3823 = vadd.f32 %v3695, %v3759
        %v3824 = vadd.f32 %v3696, %v3760
        %v3825 = vadd.f32 %v3697, %v3761
        %v3826 = vadd.f32 %v3698, %v3762
        %v3827 = vadd.f32 %v3699, %v3763
        %v3828 = vadd.f32 %v3700, %v3764
        %v3829 = vadd.f32 %v3701, %v3765
        %v3830 = vadd.f32 %v3702, %v3766
        %v3831 = vadd.f32 %v3703, %v3767
        %v3832 = vadd.f32 %v3704, %v3768
        %v3833 = vadd.f32 %v3705, %v3769
        %v3834 = vadd.f32 %v3706, %v3770
        %v3835 = vadd.f32 %v3707, %v3771
        %v3836 = vadd.f32 %v3708, %v3772
        %v3837 = vadd.f32 %v3709, %v3773
        %v3838 = vadd.f32 %v3710, %v3774
        %v3839 = vadd.f32 %v3711, %v3775
        %v3840 = vadd.f32 %v3712, %v3776
        %v3841 = vadd.f32 %v3713, %v3777
        %v3842 = vadd.f32 %v3714, %v3778
        %v3843 = vadd.f32 %v3715, %v3779
        %v3844 = vadd.f32 %v3716, %v3780
        %v3845 = vadd.f32 %v3717, %v3781
        %v3846 = vadd.f32 %v3718, %v3782
        %v3847 = vadd.f32 %v3719, %v3783
        %v3848 = vadd.f32 %v3720, %v3784
        %v3849 = vadd.f32 %v3721, %v3785
        %v3850 = vadd.f32 %v3722, %v3786
        %v3851 = vadd.f32 %v3723, %v3787
        %v3852 = vadd.f32 %v3724, %v3788
        %v3853 = vadd.f32 %v3725, %v3789
        %v3854 = vadd.f32 %v3726, %v3790
        %v3855 = vadd.f32 %v3727, %v3791
        %v3856 = vmul.f32 %v3648, %v3212
        %v3857 = vmul.f32 %v3632, %v3213
        %v3858 = vmul.f32 %v3616, %v3214
        %v3859 = vmul.f32 %v3600, %v3215
        %v3860 = vmul.f32 %v3649, %v3216
        %v3861 = vmul.f32 %v3633, %v3217
        %v3862 = vmul.f32 %v3617, %v3218
        %v3863 = vmul.f32 %v3601, %v3219
        %v3864 = vmul.f32 %v3650, %v3220
        %v3865 = vmul.f32 %v3634, %v3221
        %v3866 = vmul.f32 %v3618, %v3222
        %v3867 = vmul.f32 %v3602, %v3223
        %v3868 = vmul.f32 %v3651, %v3224
        %v3869 = vmul.f32 %v3635, %v3225
        %v3870 = vmul.f32 %v3619, %v3226
        %v3871 = vmul.f32 %v3603, %v3227
        %v3872 = vmul.f32 %v3652, %v3228
        %v3873 = vmul.f32 %v3636, %v3229
        %v3874 = vmul.f32 %v3620, %v3230
        %v3875 = vmul.f32 %v3604, %v3231
        %v3876 = vmul.f32 %v3653, %v3232
        %v3877 = vmul.f32 %v3637, %v3233
        %v3878 = vmul.f32 %v3621, %v3234
        %v3879 = vmul.f32 %v3605, %v3235
        %v3880 = vmul.f32 %v3654, %v3236
        %v3881 = vmul.f32 %v3638, %v3237
        %v3882 = vmul.f32 %v3622, %v3238
        %v3883 = vmul.f32 %v3606, %v3239
        %v3884 = vmul.f32 %v3655, %v3240
        %v3885 = vmul.f32 %v3639, %v3241
        %v3886 = vmul.f32 %v3623, %v3242
        %v3887 = vmul.f32 %v3607, %v3243
        %v3888 = vmul.f32 %v3656, %v3244
        %v3889 = vmul.f32 %v3640, %v3245
        %v3890 = vmul.f32 %v3624, %v3246
        %v3891 = vmul.f32 %v3608, %v3247
        %v3892 = vmul.f32 %v3657, %v3248
        %v3893 = vmul.f32 %v3641, %v3249
        %v3894 = vmul.f32 %v3625, %v3250
        %v3895 = vmul.f32 %v3609, %v3251
        %v3896 = vmul.f32 %v3658, %v3252
        %v3897 = vmul.f32 %v3642, %v3253
        %v3898 = vmul.f32 %v3626, %v3254
        %v3899 = vmul.f32 %v3610, %v3255
        %v3900 = vmul.f32 %v3659, %v3256
        %v3901 = vmul.f32 %v3643, %v3257
        %v3902 = vmul.f32 %v3627, %v3258
        %v3903 = vmul.f32 %v3611, %v3259
        %v3904 = vmul.f32 %v3660, %v3260
        %v3905 = vmul.f32 %v3644, %v3261
        %v3906 = vmul.f32 %v3628, %v3262
        %v3907 = vmul.f32 %v3612, %v3263
        %v3908 = vmul.f32 %v3661, %v3264
        %v3909 = vmul.f32 %v3645, %v3265
        %v3910 = vmul.f32 %v3629, %v3266
        %v3911 = vmul.f32 %v3613, %v3267
        %v3912 = vmul.f32 %v3662, %v3268
        %v3913 = vmul.f32 %v3646, %v3269
        %v3914 = vmul.f32 %v3630, %v3270
        %v3915 = vmul.f32 %v3614, %v3271
        %v3916 = vmul.f32 %v3663, %v3272
        %v3917 = vmul.f32 %v3647, %v3273
        %v3918 = vmul.f32 %v3631, %v3274
        %v3919 = vmul.f32 %v3615, %v3275
        %v3920 = vadd.f32 %v3792, %v3856
        %v3921 = vadd.f32 %v3793, %v3857
        %v3922 = vadd.f32 %v3794, %v3858
        %v3923 = vadd.f32 %v3795, %v3859
        %v3924 = vadd.f32 %v3796, %v3860
        %v3925 = vadd.f32 %v3797, %v3861
        %v3926 = vadd.f32 %v3798, %v3862
        %v3927 = vadd.f32 %v3799, %v3863
        %v3928 = vadd.f32 %v3800, %v3864
        %v3929 = vadd.f32 %v3801, %v3865
        %v3930 = vadd.f32 %v3802, %v3866
        %v3931 = vadd.f32 %v3803, %v3867
        %v3932 = vadd.f32 %v3804, %v3868
        %v3933 = vadd.f32 %v3805, %v3869
        %v3934 = vadd.f32 %v3806, %v3870
        %v3935 = vadd.f32 %v3807, %v3871
        %v3936 = vadd.f32 %v3808, %v3872
        %v3937 = vadd.f32 %v3809, %v3873
        %v3938 = vadd.f32 %v3810, %v3874
        %v3939 = vadd.f32 %v3811, %v3875
        %v3940 = vadd.f32 %v3812, %v3876
        %v3941 = vadd.f32 %v3813, %v3877
        %v3942 = vadd.f32 %v3814, %v3878
        %v3943 = vadd.f32 %v3815, %v3879
        %v3944 = vadd.f32 %v3816, %v3880
        %v3945 = vadd.f32 %v3817, %v3881
        %v3946 = vadd.f32 %v3818, %v3882
        %v3947 = vadd.f32 %v3819, %v3883
        %v3948 = vadd.f32 %v3820, %v3884
        %v3949 = vadd.f32 %v3821, %v3885
        %v3950 = vadd.f32 %v3822, %v3886
        %v3951 = vadd.f32 %v3823, %v3887
        %v3952 = vadd.f32 %v3824, %v3888
        %v3953 = vadd.f32 %v3825, %v3889
        %v3954 = vadd.f32 %v3826, %v3890
        %v3955 = vadd.f32 %v3827, %v3891
        %v3956 = vadd.f32 %v3828, %v3892
        %v3957 = vadd.f32 %v3829, %v3893
        %v3958 = vadd.f32 %v3830, %v3894
        %v3959 = vadd.f32 %v3831, %v3895
        %v3960 = vadd.f32 %v3832, %v3896
        %v3961 = vadd.f32 %v3833, %v3897
        %v3962 = vadd.f32 %v3834, %v3898
        %v3963 = vadd.f32 %v3835, %v3899
        %v3964 = vadd.f32 %v3836, %v3900
        %v3965 = vadd.f32 %v3837, %v3901
        %v3966 = vadd.f32 %v3838, %v3902
        %v3967 = vadd.f32 %v3839, %v3903
        %v3968 = vadd.f32 %v3840, %v3904
        %v3969 = vadd.f32 %v3841, %v3905
        %v3970 = vadd.f32 %v3842, %v3906
        %v3971 = vadd.f32 %v3843, %v3907
        %v3972 = vadd.f32 %v3844, %v3908
        %v3973 = vadd.f32 %v3845, %v3909
        %v3974 = vadd.f32 %v3846, %v3910
        %v3975 = vadd.f32 %v3847, %v3911
        %v3976 = vadd.f32 %v3848, %v3912
        %v3977 = vadd.f32 %v3849, %v3913
        %v3978 = vadd.f32 %v3850, %v3914
        %v3979 = vadd.f32 %v3851, %v3915
        %v3980 = vadd.f32 %v3852, %v3916
        %v3981 = vadd.f32 %v3853, %v3917
        %v3982 = vadd.f32 %v3854, %v3918
        %v3983 = vadd.f32 %v3855, %v3919
        %v3984 = vpack.c.bf16 %v3924, %v3920
        %v3985 = vpack.c.bf16 %v3925, %v3921
        %v3986 = vpack.c.bf16 %v3926, %v3922
        %v3987 = vpack.c.bf16 %v3927, %v3923
        %v3988 = vpack.c.bf16 %v3932, %v3928
        %v3989 = vpack.c.bf16 %v3933, %v3929
        %v3990 = vpack.c.bf16 %v3934, %v3930
        %v3991 = vpack.c.bf16 %v3935, %v3931
        %v3992 = vpack.c.bf16 %v3940, %v3936
        %v3993 = vpack.c.bf16 %v3941, %v3937
        %v3994 = vpack.c.bf16 %v3942, %v3938
        %v3995 = vpack.c.bf16 %v3943, %v3939
        %v3996 = vpack.c.bf16 %v3948, %v3944
        %v3997 = vpack.c.bf16 %v3949, %v3945
        %v3998 = vpack.c.bf16 %v3950, %v3946
        %v3999 = vpack.c.bf16 %v3951, %v3947
        %v4000 = vpack.c.bf16 %v3956, %v3952
        %v4001 = vpack.c.bf16 %v3957, %v3953
        %v4002 = vpack.c.bf16 %v3958, %v3954
        %v4003 = vpack.c.bf16 %v3959, %v3955
        %v4004 = vpack.c.bf16 %v3964, %v3960
        %v4005 = vpack.c.bf16 %v3965, %v3961
        %v4006 = vpack.c.bf16 %v3966, %v3962
        %v4007 = vpack.c.bf16 %v3967, %v3963
        %v4008 = vpack.c.bf16 %v3972, %v3968
        %v4009 = vpack.c.bf16 %v3973, %v3969
        %v4010 = vpack.c.bf16 %v3974, %v3970
        %v4011 = vpack.c.bf16 %v3975, %v3971
        %v4012 = vpack.c.bf16 %v3980, %v3976
        %v4013 = vpack.c.bf16 %v3981, %v3977
        %v4014 = vpack.c.bf16 %v3982, %v3978
        %v4015 = vpack.c.bf16 %v3983, %v3979
        %v4016 = vld [vmem:[#allocation10] sm:$0xff]
        %v4017 = vld [vmem:[#allocation10 + $0x8] sm:$0xff]
        %v4018 = vld [vmem:[#allocation10 + $0x20] sm:$0xff]
        %v4019 = vld [vmem:[#allocation10 + $0x28] sm:$0xff]
        %v4020 = vld [vmem:[#allocation10 + $0x40] sm:$0xff]
        %v4021 = vld [vmem:[#allocation10 + $0x48] sm:$0xff]
        %v4022 = vld [vmem:[#allocation10 + $0x60] sm:$0xff]
        %v4023 = vld [vmem:[#allocation10 + $0x68] sm:$0xff]
        %v4024 = vld [vmem:[#allocation10 + $0x80] sm:$0xff]
        %v4025 = vld [vmem:[#allocation10 + $0x88] sm:$0xff]
        %v4026 = vld [vmem:[#allocation10 + $0xa0] sm:$0xff]
        %v4027 = vld [vmem:[#allocation10 + $0xa8] sm:$0xff]
        %v4028 = vld [vmem:[#allocation10 + $0xc0] sm:$0xff]
        %v4029 = vld [vmem:[#allocation10 + $0xc8] sm:$0xff]
        %v4030 = vld [vmem:[#allocation10 + $0xe0] sm:$0xff]
        %v4031 = vld [vmem:[#allocation10 + $0xe8] sm:$0xff]
        %v4032 = vld [vmem:[#allocation10 + $0x100] sm:$0xff]
        %v4033 = vld [vmem:[#allocation10 + $0x108] sm:$0xff]
        %v4034 = vld [vmem:[#allocation10 + $0x120] sm:$0xff]
        %v4035 = vld [vmem:[#allocation10 + $0x128] sm:$0xff]
        %v4036 = vld [vmem:[#allocation10 + $0x140] sm:$0xff]
        %v4037 = vld [vmem:[#allocation10 + $0x148] sm:$0xff]
        %v4038 = vld [vmem:[#allocation10 + $0x160] sm:$0xff]
        %v4039 = vld [vmem:[#allocation10 + $0x168] sm:$0xff]
        %v4040 = vld [vmem:[#allocation10 + $0x180] sm:$0xff]
        %v4041 = vld [vmem:[#allocation10 + $0x188] sm:$0xff]
        %v4042 = vld [vmem:[#allocation10 + $0x1a0] sm:$0xff]
        %v4043 = vld [vmem:[#allocation10 + $0x1a8] sm:$0xff]
        %v4044 = vld [vmem:[#allocation10 + $0x1c0] sm:$0xff]
        %v4045 = vld [vmem:[#allocation10 + $0x1c8] sm:$0xff]
        %v4046 = vld [vmem:[#allocation10 + $0x1e0] sm:$0xff]
        %v4047 = vld [vmem:[#allocation10 + $0x1e8] sm:$0xff]
        %v4048 = vld [vmem:[#allocation11] sm:$0xff]
        %v4049 = vld [vmem:[#allocation11 + $0x8] sm:$0xff]
        %v4050 = vld [vmem:[#allocation11 + $0x20] sm:$0xff]
        %v4051 = vld [vmem:[#allocation11 + $0x28] sm:$0xff]
        %v4052 = vld [vmem:[#allocation11 + $0x40] sm:$0xff]
        %v4053 = vld [vmem:[#allocation11 + $0x48] sm:$0xff]
        %v4054 = vld [vmem:[#allocation11 + $0x60] sm:$0xff]
        %v4055 = vld [vmem:[#allocation11 + $0x68] sm:$0xff]
        %v4056 = vld [vmem:[#allocation11 + $0x80] sm:$0xff]
        %v4057 = vld [vmem:[#allocation11 + $0x88] sm:$0xff]
        %v4058 = vld [vmem:[#allocation11 + $0xa0] sm:$0xff]
        %v4059 = vld [vmem:[#allocation11 + $0xa8] sm:$0xff]
        %v4060 = vld [vmem:[#allocation11 + $0xc0] sm:$0xff]
        %v4061 = vld [vmem:[#allocation11 + $0xc8] sm:$0xff]
        %v4062 = vld [vmem:[#allocation11 + $0xe0] sm:$0xff]
        %v4063 = vld [vmem:[#allocation11 + $0xe8] sm:$0xff]
        %v4064 = vld [vmem:[#allocation11 + $0x100] sm:$0xff]
        %v4065 = vld [vmem:[#allocation11 + $0x108] sm:$0xff]
        %v4066 = vld [vmem:[#allocation11 + $0x120] sm:$0xff]
        %v4067 = vld [vmem:[#allocation11 + $0x128] sm:$0xff]
        %v4068 = vld [vmem:[#allocation11 + $0x140] sm:$0xff]
        %v4069 = vld [vmem:[#allocation11 + $0x148] sm:$0xff]
        %v4070 = vld [vmem:[#allocation11 + $0x160] sm:$0xff]
        %v4071 = vld [vmem:[#allocation11 + $0x168] sm:$0xff]
        %v4072 = vld [vmem:[#allocation11 + $0x180] sm:$0xff]
        %v4073 = vld [vmem:[#allocation11 + $0x188] sm:$0xff]
        %v4074 = vld [vmem:[#allocation11 + $0x1a0] sm:$0xff]
        %v4075 = vld [vmem:[#allocation11 + $0x1a8] sm:$0xff]
        %v4076 = vld [vmem:[#allocation11 + $0x1c0] sm:$0xff]
        %v4077 = vld [vmem:[#allocation11 + $0x1c8] sm:$0xff]
        %v4078 = vld [vmem:[#allocation11 + $0x1e0] sm:$0xff]
        %v4079 = vld [vmem:[#allocation11 + $0x1e8] sm:$0xff]
        %v4080 = vld [vmem:[#allocation13] sm:$0xff]
        %v4081 = vld [vmem:[#allocation13 + $0x8] sm:$0xff]
        %v4082 = vld [vmem:[#allocation13 + $0x20] sm:$0xff]
        %v4083 = vld [vmem:[#allocation13 + $0x28] sm:$0xff]
        %v4084 = vld [vmem:[#allocation13 + $0x40] sm:$0xff]
        %v4085 = vld [vmem:[#allocation13 + $0x48] sm:$0xff]
        %v4086 = vld [vmem:[#allocation13 + $0x60] sm:$0xff]
        %v4087 = vld [vmem:[#allocation13 + $0x68] sm:$0xff]
        %v4088 = vld [vmem:[#allocation13 + $0x80] sm:$0xff]
        %v4089 = vld [vmem:[#allocation13 + $0x88] sm:$0xff]
        %v4090 = vld [vmem:[#allocation13 + $0xa0] sm:$0xff]
        %v4091 = vld [vmem:[#allocation13 + $0xa8] sm:$0xff]
        %v4092 = vld [vmem:[#allocation13 + $0xc0] sm:$0xff]
        %v4093 = vld [vmem:[#allocation13 + $0xc8] sm:$0xff]
        %v4094 = vld [vmem:[#allocation13 + $0xe0] sm:$0xff]
        %v4095 = vld [vmem:[#allocation13 + $0xe8] sm:$0xff]
        %v4096 = vld [vmem:[#allocation13 + $0x100] sm:$0xff]
        %v4097 = vld [vmem:[#allocation13 + $0x108] sm:$0xff]
        %v4098 = vld [vmem:[#allocation13 + $0x120] sm:$0xff]
        %v4099 = vld [vmem:[#allocation13 + $0x128] sm:$0xff]
        %v4100 = vld [vmem:[#allocation13 + $0x140] sm:$0xff]
        %v4101 = vld [vmem:[#allocation13 + $0x148] sm:$0xff]
        %v4102 = vld [vmem:[#allocation13 + $0x160] sm:$0xff]
        %v4103 = vld [vmem:[#allocation13 + $0x168] sm:$0xff]
        %v4104 = vld [vmem:[#allocation13 + $0x180] sm:$0xff]
        %v4105 = vld [vmem:[#allocation13 + $0x188] sm:$0xff]
        %v4106 = vld [vmem:[#allocation13 + $0x1a0] sm:$0xff]
        %v4107 = vld [vmem:[#allocation13 + $0x1a8] sm:$0xff]
        %v4108 = vld [vmem:[#allocation13 + $0x1c0] sm:$0xff]
        %v4109 = vld [vmem:[#allocation13 + $0x1c8] sm:$0xff]
        %v4110 = vld [vmem:[#allocation13 + $0x1e0] sm:$0xff]
        %v4111 = vld [vmem:[#allocation13 + $0x1e8] sm:$0xff]
        %4112 = vrot.lane.b32.xlu0 %v2780, 127
        %v4113 = vpop.permute.xlu0 %4112
        %4114 = vrot.lane.b32.xlu0 %v2784, 127
        %v4115 = vpop.permute.xlu0 %4114
        %4116 = vrot.lane.b32.xlu0 %v2790, 127
        %v4117 = vpop.permute.xlu0 %4116
        %4118 = vrot.lane.b32.xlu0 %v2794, 127
        %v4119 = vpop.permute.xlu0 %4118
        %4120 = vrot.lane.b32.xlu0 %v2800, 127
        %v4121 = vpop.permute.xlu0 %4120
        %4122 = vrot.lane.b32.xlu0 %v2804, 127
        %v4123 = vpop.permute.xlu0 %4122
        %4124 = vrot.lane.b32.xlu0 %v2810, 127
        %v4125 = vpop.permute.xlu0 %4124
        %4126 = vrot.lane.b32.xlu0 %v2814, 127
        %v4127 = vpop.permute.xlu0 %4126
        %4128 = vrot.lane.b32.xlu0 %v2820, 127
        %v4129 = vpop.permute.xlu0 %4128
        %4130 = vrot.lane.b32.xlu0 %v2824, 127
        %v4131 = vpop.permute.xlu0 %4130
        %4132 = vrot.lane.b32.xlu0 %v2830, 127
        %v4133 = vpop.permute.xlu0 %4132
        %4134 = vrot.lane.b32.xlu0 %v2834, 127
        %v4135 = vpop.permute.xlu0 %4134
        %4136 = vrot.lane.b32.xlu0 %v2840, 127
        %v4137 = vpop.permute.xlu0 %4136
        %4138 = vrot.lane.b32.xlu0 %v2844, 127
        %v4139 = vpop.permute.xlu0 %4138
        %4140 = vrot.lane.b32.xlu0 %v2850, 127
        %v4141 = vpop.permute.xlu0 %4140
        %4142 = vrot.lane.b32.xlu0 %v2854, 127
        %v4143 = vpop.permute.xlu0 %4142
        %4144 = vrot.lane.b32.xlu0 %v2782, 127
        %v4145 = vpop.permute.xlu0 %4144
        %4146 = vrot.lane.b32.xlu0 %v2786, 127
        %v4147 = vpop.permute.xlu0 %4146
        %4148 = vrot.lane.b32.xlu0 %v2792, 127
        %v4149 = vpop.permute.xlu0 %4148
        %4150 = vrot.lane.b32.xlu0 %v2796, 127
        %v4151 = vpop.permute.xlu0 %4150
        %4152 = vrot.lane.b32.xlu0 %v2802, 127
        %v4153 = vpop.permute.xlu0 %4152
        %4154 = vrot.lane.b32.xlu0 %v2806, 127
        %v4155 = vpop.permute.xlu0 %4154
        %4156 = vrot.lane.b32.xlu0 %v2812, 127
        %v4157 = vpop.permute.xlu0 %4156
        %4158 = vrot.lane.b32.xlu0 %v2816, 127
        %v4159 = vpop.permute.xlu0 %4158
        %4160 = vrot.lane.b32.xlu0 %v2822, 127
        %v4161 = vpop.permute.xlu0 %4160
        %4162 = vrot.lane.b32.xlu0 %v2826, 127
        %v4163 = vpop.permute.xlu0 %4162
        %4164 = vrot.lane.b32.xlu0 %v2832, 127
        %v4165 = vpop.permute.xlu0 %4164
        %4166 = vrot.lane.b32.xlu0 %v2836, 127
        %v4167 = vpop.permute.xlu0 %4166
        %4168 = vrot.lane.b32.xlu0 %v2842, 127
        %v4169 = vpop.permute.xlu0 %4168
        %4170 = vrot.lane.b32.xlu0 %v2846, 127
        %v4171 = vpop.permute.xlu0 %4170
        %4172 = vrot.lane.b32.xlu0 %v2852, 127
        %v4173 = vpop.permute.xlu0 %4172
        %4174 = vrot.lane.b32.xlu0 %v2856, 127
        %v4175 = vpop.permute.xlu0 %4174
        %v4176 = vsel %vm3406, %v4113, %v4145
        %v4177 = vsel %vm3406, %v4115, %v4147
        %v4178 = vsel %vm3406, %v4117, %v4149
        %v4179 = vsel %vm3406, %v4119, %v4151
        %v4180 = vsel %vm3406, %v4121, %v4153
        %v4181 = vsel %vm3406, %v4123, %v4155
        %v4182 = vsel %vm3406, %v4125, %v4157
        %v4183 = vsel %vm3406, %v4127, %v4159
        %v4184 = vsel %vm3406, %v4129, %v4161
        %v4185 = vsel %vm3406, %v4131, %v4163
        %v4186 = vsel %vm3406, %v4133, %v4165
        %v4187 = vsel %vm3406, %v4135, %v4167
        %v4188 = vsel %vm3406, %v4137, %v4169
        %v4189 = vsel %vm3406, %v4139, %v4171
        %v4190 = vsel %vm3406, %v4141, %v4173
        %v4191 = vsel %vm3406, %v4143, %v4175
        %v4192 = vsel %vm3406, %v4145, %v4113
        %v4193 = vsel %vm3406, %v4147, %v4115
        %v4194 = vsel %vm3406, %v4149, %v4117
        %v4195 = vsel %vm3406, %v4151, %v4119
        %v4196 = vsel %vm3406, %v4153, %v4121
        %v4197 = vsel %vm3406, %v4155, %v4123
        %v4198 = vsel %vm3406, %v4157, %v4125
        %v4199 = vsel %vm3406, %v4159, %v4127
        %v4200 = vsel %vm3406, %v4161, %v4129
        %v4201 = vsel %vm3406, %v4163, %v4131
        %v4202 = vsel %vm3406, %v4165, %v4133
        %v4203 = vsel %vm3406, %v4167, %v4135
        %v4204 = vsel %vm3406, %v4169, %v4137
        %v4205 = vsel %vm3406, %v4171, %v4139
        %v4206 = vsel %vm3406, %v4173, %v4141
        %v4207 = vsel %vm3406, %v4175, %v4143
        %4208 = vrot.lane.b32.xlu0 %v2780, 1
        %v4209 = vpop.permute.xlu0 %4208
        %4210 = vrot.lane.b32.xlu0 %v2784, 1
        %v4211 = vpop.permute.xlu0 %4210
        %4212 = vrot.lane.b32.xlu0 %v2790, 1
        %v4213 = vpop.permute.xlu0 %4212
        %4214 = vrot.lane.b32.xlu0 %v2794, 1
        %v4215 = vpop.permute.xlu0 %4214
        %4216 = vrot.lane.b32.xlu0 %v2800, 1
        %v4217 = vpop.permute.xlu0 %4216
        %4218 = vrot.lane.b32.xlu0 %v2804, 1
        %v4219 = vpop.permute.xlu0 %4218
        %4220 = vrot.lane.b32.xlu0 %v2810, 1
        %v4221 = vpop.permute.xlu0 %4220
        %4222 = vrot.lane.b32.xlu0 %v2814, 1
        %v4223 = vpop.permute.xlu0 %4222
        %4224 = vrot.lane.b32.xlu0 %v2820, 1
        %v4225 = vpop.permute.xlu0 %4224
        %4226 = vrot.lane.b32.xlu0 %v2824, 1
        %v4227 = vpop.permute.xlu0 %4226
        %4228 = vrot.lane.b32.xlu0 %v2830, 1
        %v4229 = vpop.permute.xlu0 %4228
        %4230 = vrot.lane.b32.xlu0 %v2834, 1
        %v4231 = vpop.permute.xlu0 %4230
        %4232 = vrot.lane.b32.xlu0 %v2840, 1
        %v4233 = vpop.permute.xlu0 %4232
        %4234 = vrot.lane.b32.xlu0 %v2844, 1
        %v4235 = vpop.permute.xlu0 %4234
        %4236 = vrot.lane.b32.xlu0 %v2850, 1
        %v4237 = vpop.permute.xlu0 %4236
        %4238 = vrot.lane.b32.xlu0 %v2854, 1
        %v4239 = vpop.permute.xlu0 %4238
        %4240 = vrot.lane.b32.xlu0 %v2782, 1
        %v4241 = vpop.permute.xlu0 %4240
        %4242 = vrot.lane.b32.xlu0 %v2786, 1
        %v4243 = vpop.permute.xlu0 %4242
        %4244 = vrot.lane.b32.xlu0 %v2792, 1
        %v4245 = vpop.permute.xlu0 %4244
        %4246 = vrot.lane.b32.xlu0 %v2796, 1
        %v4247 = vpop.permute.xlu0 %4246
        %4248 = vrot.lane.b32.xlu0 %v2802, 1
        %v4249 = vpop.permute.xlu0 %4248
        %4250 = vrot.lane.b32.xlu0 %v2806, 1
        %v4251 = vpop.permute.xlu0 %4250
        %4252 = vrot.lane.b32.xlu0 %v2812, 1
        %v4253 = vpop.permute.xlu0 %4252
        %4254 = vrot.lane.b32.xlu0 %v2816, 1
        %v4255 = vpop.permute.xlu0 %4254
        %4256 = vrot.lane.b32.xlu0 %v2822, 1
        %v4257 = vpop.permute.xlu0 %4256
        %4258 = vrot.lane.b32.xlu0 %v2826, 1
        %v4259 = vpop.permute.xlu0 %4258
        %4260 = vrot.lane.b32.xlu0 %v2832, 1
        %v4261 = vpop.permute.xlu0 %4260
        %4262 = vrot.lane.b32.xlu0 %v2836, 1
        %v4263 = vpop.permute.xlu0 %4262
        %4264 = vrot.lane.b32.xlu0 %v2842, 1
        %v4265 = vpop.permute.xlu0 %4264
        %4266 = vrot.lane.b32.xlu0 %v2846, 1
        %v4267 = vpop.permute.xlu0 %4266
        %4268 = vrot.lane.b32.xlu0 %v2852, 1
        %v4269 = vpop.permute.xlu0 %4268
        %4270 = vrot.lane.b32.xlu0 %v2856, 1
        %v4271 = vpop.permute.xlu0 %4270
        %v4272 = vsel %vm3599, %v4209, %v4241
        %v4273 = vsel %vm3599, %v4211, %v4243
        %v4274 = vsel %vm3599, %v4213, %v4245
        %v4275 = vsel %vm3599, %v4215, %v4247
        %v4276 = vsel %vm3599, %v4217, %v4249
        %v4277 = vsel %vm3599, %v4219, %v4251
        %v4278 = vsel %vm3599, %v4221, %v4253
        %v4279 = vsel %vm3599, %v4223, %v4255
        %v4280 = vsel %vm3599, %v4225, %v4257
        %v4281 = vsel %vm3599, %v4227, %v4259
        %v4282 = vsel %vm3599, %v4229, %v4261
        %v4283 = vsel %vm3599, %v4231, %v4263
        %v4284 = vsel %vm3599, %v4233, %v4265
        %v4285 = vsel %vm3599, %v4235, %v4267
        %v4286 = vsel %vm3599, %v4237, %v4269
        %v4287 = vsel %vm3599, %v4239, %v4271
        %v4288 = vsel %vm3599, %v4241, %v4209
        %v4289 = vsel %vm3599, %v4243, %v4211
        %v4290 = vsel %vm3599, %v4245, %v4213
        %v4291 = vsel %vm3599, %v4247, %v4215
        %v4292 = vsel %vm3599, %v4249, %v4217
        %v4293 = vsel %vm3599, %v4251, %v4219
        %v4294 = vsel %vm3599, %v4253, %v4221
        %v4295 = vsel %vm3599, %v4255, %v4223
        %v4296 = vsel %vm3599, %v4257, %v4225
        %v4297 = vsel %vm3599, %v4259, %v4227
        %v4298 = vsel %vm3599, %v4261, %v4229
        %v4299 = vsel %vm3599, %v4263, %v4231
        %v4300 = vsel %vm3599, %v4265, %v4233
        %v4301 = vsel %vm3599, %v4267, %v4235
        %v4302 = vsel %vm3599, %v4269, %v4237
        %v4303 = vsel %vm3599, %v4271, %v4239
        %v4304 = vmul.f32 %v2780, %v4016
        %v4305 = vmul.f32 %v2782, %v4017
        %v4306 = vmul.f32 %v2784, %v4018
        %v4307 = vmul.f32 %v2786, %v4019
        %v4308 = vmul.f32 %v2790, %v4020
        %v4309 = vmul.f32 %v2792, %v4021
        %v4310 = vmul.f32 %v2794, %v4022
        %v4311 = vmul.f32 %v2796, %v4023
        %v4312 = vmul.f32 %v2800, %v4024
        %v4313 = vmul.f32 %v2802, %v4025
        %v4314 = vmul.f32 %v2804, %v4026
        %v4315 = vmul.f32 %v2806, %v4027
        %v4316 = vmul.f32 %v2810, %v4028
        %v4317 = vmul.f32 %v2812, %v4029
        %v4318 = vmul.f32 %v2814, %v4030
        %v4319 = vmul.f32 %v2816, %v4031
        %v4320 = vmul.f32 %v2820, %v4032
        %v4321 = vmul.f32 %v2822, %v4033
        %v4322 = vmul.f32 %v2824, %v4034
        %v4323 = vmul.f32 %v2826, %v4035
        %v4324 = vmul.f32 %v2830, %v4036
        %v4325 = vmul.f32 %v2832, %v4037
        %v4326 = vmul.f32 %v2834, %v4038
        %v4327 = vmul.f32 %v2836, %v4039
        %v4328 = vmul.f32 %v2840, %v4040
        %v4329 = vmul.f32 %v2842, %v4041
        %v4330 = vmul.f32 %v2844, %v4042
        %v4331 = vmul.f32 %v2846, %v4043
        %v4332 = vmul.f32 %v2850, %v4044
        %v4333 = vmul.f32 %v2852, %v4045
        %v4334 = vmul.f32 %v2854, %v4046
        %v4335 = vmul.f32 %v2856, %v4047
        %v4336 = vmul.f32 %v4176, %v4048
        %v4337 = vmul.f32 %v4192, %v4049
        %v4338 = vmul.f32 %v4177, %v4050
        %v4339 = vmul.f32 %v4193, %v4051
        %v4340 = vmul.f32 %v4178, %v4052
        %v4341 = vmul.f32 %v4194, %v4053
        %v4342 = vmul.f32 %v4179, %v4054
        %v4343 = vmul.f32 %v4195, %v4055
        %v4344 = vmul.f32 %v4180, %v4056
        %v4345 = vmul.f32 %v4196, %v4057
        %v4346 = vmul.f32 %v4181, %v4058
        %v4347 = vmul.f32 %v4197, %v4059
        %v4348 = vmul.f32 %v4182, %v4060
        %v4349 = vmul.f32 %v4198, %v4061
        %v4350 = vmul.f32 %v4183, %v4062
        %v4351 = vmul.f32 %v4199, %v4063
        %v4352 = vmul.f32 %v4184, %v4064
        %v4353 = vmul.f32 %v4200, %v4065
        %v4354 = vmul.f32 %v4185, %v4066
        %v4355 = vmul.f32 %v4201, %v4067
        %v4356 = vmul.f32 %v4186, %v4068
        %v4357 = vmul.f32 %v4202, %v4069
        %v4358 = vmul.f32 %v4187, %v4070
        %v4359 = vmul.f32 %v4203, %v4071
        %v4360 = vmul.f32 %v4188, %v4072
        %v4361 = vmul.f32 %v4204, %v4073
        %v4362 = vmul.f32 %v4189, %v4074
        %v4363 = vmul.f32 %v4205, %v4075
        %v4364 = vmul.f32 %v4190, %v4076
        %v4365 = vmul.f32 %v4206, %v4077
        %v4366 = vmul.f32 %v4191, %v4078
        %v4367 = vmul.f32 %v4207, %v4079
        %v4368 = vadd.f32 %v4304, %v4336
        %v4369 = vadd.f32 %v4305, %v4337
        %v4370 = vadd.f32 %v4306, %v4338
        %v4371 = vadd.f32 %v4307, %v4339
        %v4372 = vadd.f32 %v4308, %v4340
        %v4373 = vadd.f32 %v4309, %v4341
        %v4374 = vadd.f32 %v4310, %v4342
        %v4375 = vadd.f32 %v4311, %v4343
        %v4376 = vadd.f32 %v4312, %v4344
        %v4377 = vadd.f32 %v4313, %v4345
        %v4378 = vadd.f32 %v4314, %v4346
        %v4379 = vadd.f32 %v4315, %v4347
        %v4380 = vadd.f32 %v4316, %v4348
        %v4381 = vadd.f32 %v4317, %v4349
        %v4382 = vadd.f32 %v4318, %v4350
        %v4383 = vadd.f32 %v4319, %v4351
        %v4384 = vadd.f32 %v4320, %v4352
        %v4385 = vadd.f32 %v4321, %v4353
        %v4386 = vadd.f32 %v4322, %v4354
        %v4387 = vadd.f32 %v4323, %v4355
        %v4388 = vadd.f32 %v4324, %v4356
        %v4389 = vadd.f32 %v4325, %v4357
        %v4390 = vadd.f32 %v4326, %v4358
        %v4391 = vadd.f32 %v4327, %v4359
        %v4392 = vadd.f32 %v4328, %v4360
        %v4393 = vadd.f32 %v4329, %v4361
        %v4394 = vadd.f32 %v4330, %v4362
        %v4395 = vadd.f32 %v4331, %v4363
        %v4396 = vadd.f32 %v4332, %v4364
        %v4397 = vadd.f32 %v4333, %v4365
        %v4398 = vadd.f32 %v4334, %v4366
        %v4399 = vadd.f32 %v4335, %v4367
        %v4400 = vmul.f32 %v4288, %v4080
        %v4401 = vmul.f32 %v4272, %v4081
        %v4402 = vmul.f32 %v4289, %v4082
        %v4403 = vmul.f32 %v4273, %v4083
        %v4404 = vmul.f32 %v4290, %v4084
        %v4405 = vmul.f32 %v4274, %v4085
        %v4406 = vmul.f32 %v4291, %v4086
        %v4407 = vmul.f32 %v4275, %v4087
        %v4408 = vmul.f32 %v4292, %v4088
        %v4409 = vmul.f32 %v4276, %v4089
        %v4410 = vmul.f32 %v4293, %v4090
        %v4411 = vmul.f32 %v4277, %v4091
        %v4412 = vmul.f32 %v4294, %v4092
        %v4413 = vmul.f32 %v4278, %v4093
        %v4414 = vmul.f32 %v4295, %v4094
        %v4415 = vmul.f32 %v4279, %v4095
        %v4416 = vmul.f32 %v4296, %v4096
        %v4417 = vmul.f32 %v4280, %v4097
        %v4418 = vmul.f32 %v4297, %v4098
        %v4419 = vmul.f32 %v4281, %v4099
        %v4420 = vmul.f32 %v4298, %v4100
        %v4421 = vmul.f32 %v4282, %v4101
        %v4422 = vmul.f32 %v4299, %v4102
        %v4423 = vmul.f32 %v4283, %v4103
        %v4424 = vmul.f32 %v4300, %v4104
        %v4425 = vmul.f32 %v4284, %v4105
        %v4426 = vmul.f32 %v4301, %v4106
        %v4427 = vmul.f32 %v4285, %v4107
        %v4428 = vmul.f32 %v4302, %v4108
        %v4429 = vmul.f32 %v4286, %v4109
        %v4430 = vmul.f32 %v4303, %v4110
        %v4431 = vmul.f32 %v4287, %v4111
        %v4432 = vadd.f32 %v4368, %v4400
        %v4433 = vadd.f32 %v4369, %v4401
        %v4434 = vadd.f32 %v4370, %v4402
        %v4435 = vadd.f32 %v4371, %v4403
        %v4436 = vadd.f32 %v4372, %v4404
        %v4437 = vadd.f32 %v4373, %v4405
        %v4438 = vadd.f32 %v4374, %v4406
        %v4439 = vadd.f32 %v4375, %v4407
        %v4440 = vadd.f32 %v4376, %v4408
        %v4441 = vadd.f32 %v4377, %v4409
        %v4442 = vadd.f32 %v4378, %v4410
        %v4443 = vadd.f32 %v4379, %v4411
        %v4444 = vadd.f32 %v4380, %v4412
        %v4445 = vadd.f32 %v4381, %v4413
        %v4446 = vadd.f32 %v4382, %v4414
        %v4447 = vadd.f32 %v4383, %v4415
        %v4448 = vadd.f32 %v4384, %v4416
        %v4449 = vadd.f32 %v4385, %v4417
        %v4450 = vadd.f32 %v4386, %v4418
        %v4451 = vadd.f32 %v4387, %v4419
        %v4452 = vadd.f32 %v4388, %v4420
        %v4453 = vadd.f32 %v4389, %v4421
        %v4454 = vadd.f32 %v4390, %v4422
        %v4455 = vadd.f32 %v4391, %v4423
        %v4456 = vadd.f32 %v4392, %v4424
        %v4457 = vadd.f32 %v4393, %v4425
        %v4458 = vadd.f32 %v4394, %v4426
        %v4459 = vadd.f32 %v4395, %v4427
        %v4460 = vadd.f32 %v4396, %v4428
        %v4461 = vadd.f32 %v4397, %v4429
        %v4462 = vadd.f32 %v4398, %v4430
        %v4463 = vadd.f32 %v4399, %v4431
        %v4464 = vpack.c.bf16 %v4434, %v4432
        %v4465 = vpack.c.bf16 %v4435, %v4433
        %v4466 = vpack.c.bf16 %v4438, %v4436
        %v4467 = vpack.c.bf16 %v4439, %v4437
        %v4468 = vpack.c.bf16 %v4442, %v4440
        %v4469 = vpack.c.bf16 %v4443, %v4441
        %v4470 = vpack.c.bf16 %v4446, %v4444
        %v4471 = vpack.c.bf16 %v4447, %v4445
        %v4472 = vpack.c.bf16 %v4450, %v4448
        %v4473 = vpack.c.bf16 %v4451, %v4449
        %v4474 = vpack.c.bf16 %v4454, %v4452
        %v4475 = vpack.c.bf16 %v4455, %v4453
        %v4476 = vpack.c.bf16 %v4458, %v4456
        %v4477 = vpack.c.bf16 %v4459, %v4457
        %v4478 = vpack.c.bf16 %v4462, %v4460
        %v4479 = vpack.c.bf16 %v4463, %v4461
        %v4480 = vpack.c.bf16 %v3010, %v3006
        %v4481 = vpack.c.bf16 %v3012, %v3008
        %v4482 = vpack.c.bf16 %v3020, %v3016
        %v4483 = vpack.c.bf16 %v3022, %v3018
        %v4484 = vpack.c.bf16 %v3030, %v3026
        %v4485 = vpack.c.bf16 %v3032, %v3028
        %v4486 = vpack.c.bf16 %v3040, %v3036
        %v4487 = vpack.c.bf16 %v3042, %v3038
        %v4488 = vpack.c.bf16 %v3050, %v3046
        %v4489 = vpack.c.bf16 %v3052, %v3048
        %v4490 = vpack.c.bf16 %v3060, %v3056
        %v4491 = vpack.c.bf16 %v3062, %v3058
        %v4492 = vpack.c.bf16 %v3070, %v3066
        %v4493 = vpack.c.bf16 %v3072, %v3068
        %v4494 = vpack.c.bf16 %v3080, %v3076
        %v4495 = vpack.c.bf16 %v3082, %v3078
        %v4496 = vlaneseq
        %v4497 = vshrl.u32 %v4496, 7
        %v4498 = vadd.s32 %v4497, 8
        %v4499 = vadd.s32 %v4497, 16
        %v4500 = vadd.s32 %v4497, 24
        %v4501 = vadd.s32 %v4497, 32
        %v4502 = vadd.s32 %v4497, 40
        %v4503 = vadd.s32 %v4497, 48
        %v4504 = vadd.s32 %v4497, 56
        %v4505 = vadd.s32 %v4497, 64
        %v4506 = vadd.s32 %v4497, 72
        %v4507 = vadd.s32 %v4497, 80
        %v4508 = vadd.s32 %v4497, 88
        %v4509 = vadd.s32 %v4497, 96
        %v4510 = vadd.s32 %v4497, 104
        %v4511 = vadd.s32 %v4497, 112
        %v4512 = vadd.s32 %v4497, 120
        %v4513 = vadd.s32 %v4497, 128
        %v4514 = vadd.s32 %v4497, 136
        %v4515 = vadd.s32 %v4497, 144
        %v4516 = vadd.s32 %v4497, 152
        %v4517 = vadd.s32 %v4497, 160
        %v4518 = vadd.s32 %v4497, 168
        %v4519 = vadd.s32 %v4497, 176
        %v4520 = vadd.s32 %v4497, 184
        %v4521 = vadd.s32 %v4497, 192
        %v4522 = vadd.s32 %v4497, 200
        %v4523 = vadd.s32 %v4497, 208
        %v4524 = vadd.s32 %v4497, 216
        %v4525 = vadd.s32 %v4497, 224
        %v4526 = vadd.s32 %v4497, 232
        %v4527 = vadd.s32 %v4497, 240
        %v4528 = vadd.s32 %v4497, 248
        %v4529 = vand.u32 %v4497, 127
        %v4530 = vand.u32 %v4498, 127
        %v4531 = vand.u32 %v4499, 127
        %v4532 = vand.u32 %v4500, 127
        %v4533 = vand.u32 %v4501, 127
        %v4534 = vand.u32 %v4502, 127
        %v4535 = vand.u32 %v4503, 127
        %v4536 = vand.u32 %v4504, 127
        %v4537 = vand.u32 %v4505, 127
        %v4538 = vand.u32 %v4506, 127
        %v4539 = vand.u32 %v4507, 127
        %v4540 = vand.u32 %v4508, 127
        %v4541 = vand.u32 %v4509, 127
        %v4542 = vand.u32 %v4510, 127
        %v4543 = vand.u32 %v4511, 127
        %v4544 = vand.u32 %v4512, 127
        %v4545 = vand.u32 %v4513, 127
        %v4546 = vand.u32 %v4514, 127
        %v4547 = vand.u32 %v4515, 127
        %v4548 = vand.u32 %v4516, 127
        %v4549 = vand.u32 %v4517, 127
        %v4550 = vand.u32 %v4518, 127
        %v4551 = vand.u32 %v4519, 127
        %v4552 = vand.u32 %v4520, 127
        %v4553 = vand.u32 %v4521, 127
        %v4554 = vand.u32 %v4522, 127
        %v4555 = vand.u32 %v4523, 127
        %v4556 = vand.u32 %v4524, 127
        %v4557 = vand.u32 %v4525, 127
        %v4558 = vand.u32 %v4526, 127
        %v4559 = vand.u32 %v4527, 127
        %v4560 = vand.u32 %v4528, 127
        %vm4561 = vcmp.gt.s32.totalorder %v3405, %v4529
        %vm4562 = vcmp.gt.s32.totalorder %v3405, %v4530
        %vm4563 = vcmp.gt.s32.totalorder %v3405, %v4531
        %vm4564 = vcmp.gt.s32.totalorder %v3405, %v4532
        %vm4565 = vcmp.gt.s32.totalorder %v3405, %v4533
        %vm4566 = vcmp.gt.s32.totalorder %v3405, %v4534
        %vm4567 = vcmp.gt.s32.totalorder %v3405, %v4535
        %vm4568 = vcmp.gt.s32.totalorder %v3405, %v4536
        %vm4569 = vcmp.gt.s32.totalorder %v3405, %v4537
        %vm4570 = vcmp.gt.s32.totalorder %v3405, %v4538
        %vm4571 = vcmp.gt.s32.totalorder %v3405, %v4539
        %vm4572 = vcmp.gt.s32.totalorder %v3405, %v4540
        %vm4573 = vcmp.gt.s32.totalorder %v3405, %v4541
        %vm4574 = vcmp.gt.s32.totalorder %v3405, %v4542
        %vm4575 = vcmp.gt.s32.totalorder %v3405, %v4543
        %vm4576 = vcmp.gt.s32.totalorder %v3405, %v4544
        %vm4577 = vcmp.gt.s32.totalorder %v3405, %v4545
        %vm4578 = vcmp.gt.s32.totalorder %v3405, %v4546
        %vm4579 = vcmp.gt.s32.totalorder %v3405, %v4547
        %vm4580 = vcmp.gt.s32.totalorder %v3405, %v4548
        %vm4581 = vcmp.gt.s32.totalorder %v3405, %v4549
        %vm4582 = vcmp.gt.s32.totalorder %v3405, %v4550
        %vm4583 = vcmp.gt.s32.totalorder %v3405, %v4551
        %vm4584 = vcmp.gt.s32.totalorder %v3405, %v4552
        %vm4585 = vcmp.gt.s32.totalorder %v3405, %v4553
        %vm4586 = vcmp.gt.s32.totalorder %v3405, %v4554
        %vm4587 = vcmp.gt.s32.totalorder %v3405, %v4555
        %vm4588 = vcmp.gt.s32.totalorder %v3405, %v4556
        %vm4589 = vcmp.gt.s32.totalorder %v3405, %v4557
        %vm4590 = vcmp.gt.s32.totalorder %v3405, %v4558
        %vm4591 = vcmp.gt.s32.totalorder %v3405, %v4559
        %vm4592 = vcmp.gt.s32.totalorder %v3405, %v4560
        %v4593 = vsel %vm4561, -1e+30, 0.0
        %v4594 = vsel %vm4562, -1e+30, 0.0
        %v4595 = vsel %vm4563, -1e+30, 0.0
        %v4596 = vsel %vm4564, -1e+30, 0.0
        %v4597 = vsel %vm4565, -1e+30, 0.0
        %v4598 = vsel %vm4566, -1e+30, 0.0
        %v4599 = vsel %vm4567, -1e+30, 0.0
        %v4600 = vsel %vm4568, -1e+30, 0.0
        %v4601 = vsel %vm4569, -1e+30, 0.0
        %v4602 = vsel %vm4570, -1e+30, 0.0
        %v4603 = vsel %vm4571, -1e+30, 0.0
        %v4604 = vsel %vm4572, -1e+30, 0.0
        %v4605 = vsel %vm4573, -1e+30, 0.0
        %v4606 = vsel %vm4574, -1e+30, 0.0
        %v4607 = vsel %vm4575, -1e+30, 0.0
        %v4608 = vsel %vm4576, -1e+30, 0.0
        %v4609 = vsel %vm4577, -1e+30, 0.0
        %v4610 = vsel %vm4578, -1e+30, 0.0
        %v4611 = vsel %vm4579, -1e+30, 0.0
        %v4612 = vsel %vm4580, -1e+30, 0.0
        %v4613 = vsel %vm4581, -1e+30, 0.0
        %v4614 = vsel %vm4582, -1e+30, 0.0
        %v4615 = vsel %vm4583, -1e+30, 0.0
        %v4616 = vsel %vm4584, -1e+30, 0.0
        %v4617 = vsel %vm4585, -1e+30, 0.0
        %v4618 = vsel %vm4586, -1e+30, 0.0
        %v4619 = vsel %vm4587, -1e+30, 0.0
        %v4620 = vsel %vm4588, -1e+30, 0.0
        %v4621 = vsel %vm4589, -1e+30, 0.0
        %v4622 = vsel %vm4590, -1e+30, 0.0
        %v4623 = vsel %vm4591, -1e+30, 0.0
        %v4624 = vsel %vm4592, -1e+30, 0.0
        %4625 = vmatprep.subr.bf16.mxu0 0
        %4626 = vmatpush1.bf16.xpose.msra.mxu0 %v4464
        %4627 = vmatprep.subr.bf16.mxu0 0
        %4628 = vmatpush1.bf16.xpose.msra.mxu0 %v4466
        %4629 = vmatprep.subr.bf16.mxu0 0
        %4630 = vmatpush1.bf16.xpose.msra.mxu0 %v4468
        %4631 = vmatprep.subr.bf16.mxu0 0
        %4632 = vmatpush1.bf16.xpose.msra.mxu0 %v4470
        %4633 = vmatprep.subr.bf16.mxu0 0
        %4634 = vmatpush1.bf16.xpose.msra.mxu0 %v4472
        %4635 = vmatprep.subr.bf16.mxu0 0
        %4636 = vmatpush1.bf16.xpose.msra.mxu0 %v4474
        %4637 = vmatprep.subr.bf16.mxu0 0
        %4638 = vmatpush1.bf16.xpose.msra.mxu0 %v4476
        %4639 = vmatprep.subr.bf16.mxu0 0
        %4640 = vmatpush1.bf16.xpose.msra.mxu0 %v4478
        %4641 = vmatprep.subr.bf16.mxu0 0
        %4642 = vmatpush1.bf16.xpose.msra.mxu0 0
        %4643 = vmatprep.subr.bf16.mxu0 0
        %4644 = vmatpush1.bf16.xpose.msra.mxu0 0
        %4645 = vmatprep.subr.bf16.mxu0 0
        %4646 = vmatpush1.bf16.xpose.msra.mxu0 0
        %4647 = vmatprep.subr.bf16.mxu0 0
        %4648 = vmatpush1.bf16.xpose.msra.mxu0 0
        %4649 = vmatprep.subr.bf16.mxu0 0
        %4650 = vmatpush1.bf16.xpose.msra.mxu0 0
        %4651 = vmatprep.subr.bf16.mxu0 0
        %4652 = vmatpush1.bf16.xpose.msra.mxu0 0
        %4653 = vmatprep.subr.bf16.mxu0 0
        %4654 = vmatpush1.bf16.xpose.msra.mxu0 0
        %4655 = vmatprep.subr.bf16.mxu0 0
        %4656 = vmatpush1.bf16.xpose.msra.mxu0 0
        %4657 = vmatprep.mubr.bf16.mxu0 0
        %4658 = vmatmul.mubr.bf16.gmra.mrb[0].mxu0 %v3984
        %v4659 = vpop.f32.mrb[0].mxu0
        %v4660 = vadd.f32 %v4593, %v4659
        %v4661 = vpop.f32.mrb[0].mxu0
        %v4662 = vpop.f32.mrb[0].mxu0
        %v4663 = vadd.f32 %v4594, %v4662
        %v4664 = vpop.f32.mrb[0].mxu0
        %4665 = vmatprep.mubr.bf16.mxu0 0
        %4666 = vmatmul.mubr.bf16.gmra.mrb[0].mxu0 %v3988
        %v4667 = vpop.f32.mrb[0].mxu0
        %v4668 = vadd.f32 %v4595, %v4667
        %v4669 = vpop.f32.mrb[0].mxu0
        %v4670 = vpop.f32.mrb[0].mxu0
        %v4671 = vadd.f32 %v4596, %v4670
        %v4672 = vpop.f32.mrb[0].mxu0
        %4673 = vmatprep.mubr.bf16.mxu0 0
        %4674 = vmatmul.mubr.bf16.gmra.mrb[0].mxu0 %v3992
        %v4675 = vpop.f32.mrb[0].mxu0
        %v4676 = vadd.f32 %v4597, %v4675
        %v4677 = vpop.f32.mrb[0].mxu0
        %v4678 = vpop.f32.mrb[0].mxu0
        %v4679 = vadd.f32 %v4598, %v4678
        %v4680 = vpop.f32.mrb[0].mxu0
        %4681 = vmatprep.mubr.bf16.mxu0 0
        %4682 = vmatmul.mubr.bf16.gmra.mrb[0].mxu0 %v3996
        %v4683 = vpop.f32.mrb[0].mxu0
        %v4684 = vadd.f32 %v4599, %v4683
        %v4685 = vpop.f32.mrb[0].mxu0
        %v4686 = vpop.f32.mrb[0].mxu0
        %v4687 = vadd.f32 %v4600, %v4686
        %v4688 = vpop.f32.mrb[0].mxu0
        %4689 = vmatprep.mubr.bf16.mxu0 0
        %4690 = vmatmul.mubr.bf16.gmra.mrb[0].mxu0 %v4000
        %v4691 = vpop.f32.mrb[0].mxu0
        %v4692 = vadd.f32 %v4601, %v4691
        %v4693 = vpop.f32.mrb[0].mxu0
        %v4694 = vpop.f32.mrb[0].mxu0
        %v4695 = vadd.f32 %v4602, %v4694
        %v4696 = vpop.f32.mrb[0].mxu0
        %4697 = vmatprep.mubr.bf16.mxu0 0
        %4698 = vmatmul.mubr.bf16.gmra.mrb[0].mxu0 %v4004
        %v4699 = vpop.f32.mrb[0].mxu0
        %v4700 = vadd.f32 %v4603, %v4699
        %v4701 = vpop.f32.mrb[0].mxu0
        %v4702 = vpop.f32.mrb[0].mxu0
        %v4703 = vadd.f32 %v4604, %v4702
        %v4704 = vpop.f32.mrb[0].mxu0
        %4705 = vmatprep.mubr.bf16.mxu0 0
        %4706 = vmatmul.mubr.bf16.gmra.mrb[0].mxu0 %v4008
        %v4707 = vpop.f32.mrb[0].mxu0
        %v4708 = vadd.f32 %v4605, %v4707
        %v4709 = vpop.f32.mrb[0].mxu0
        %v4710 = vpop.f32.mrb[0].mxu0
        %v4711 = vadd.f32 %v4606, %v4710
        %v4712 = vpop.f32.mrb[0].mxu0
        %4713 = vmatprep.mubr.bf16.mxu0 0
        %4714 = vmatmul.mubr.bf16.gmra.mrb[0].mxu0 %v4012
        %v4715 = vpop.f32.mrb[0].mxu0
        %v4716 = vadd.f32 %v4607, %v4715
        %v4717 = vpop.f32.mrb[0].mxu0
        %v4718 = vpop.f32.mrb[0].mxu0
        %v4719 = vadd.f32 %v4608, %v4718
        %v4720 = vpop.f32.mrb[0].mxu0
        %4721 = vmatprep.mubr.bf16.mxu0 0
        %4722 = vmatmul.mubr.bf16.gmra.mrb[0].mxu0 %v3986
        %v4723 = vpop.f32.mrb[0].mxu0
        %v4724 = vadd.f32 %v4609, %v4723
        %v4725 = vpop.f32.mrb[0].mxu0
        %v4726 = vpop.f32.mrb[0].mxu0
        %v4727 = vadd.f32 %v4610, %v4726
        %v4728 = vpop.f32.mrb[0].mxu0
        %4729 = vmatprep.mubr.bf16.mxu0 0
        %4730 = vmatmul.mubr.bf16.gmra.mrb[0].mxu0 %v3990
        %v4731 = vpop.f32.mrb[0].mxu0
        %v4732 = vadd.f32 %v4611, %v4731
        %v4733 = vpop.f32.mrb[0].mxu0
        %v4734 = vpop.f32.mrb[0].mxu0
        %v4735 = vadd.f32 %v4612, %v4734
        %v4736 = vpop.f32.mrb[0].mxu0
        %4737 = vmatprep.mubr.bf16.mxu0 0
        %4738 = vmatmul.mubr.bf16.gmra.mrb[0].mxu0 %v3994
        %v4739 = vpop.f32.mrb[0].mxu0
        %v4740 = vadd.f32 %v4613, %v4739
        %v4741 = vpop.f32.mrb[0].mxu0
        %v4742 = vpop.f32.mrb[0].mxu0
        %v4743 = vadd.f32 %v4614, %v4742
        %v4744 = vpop.f32.mrb[0].mxu0
        %4745 = vmatprep.mubr.bf16.mxu0 0
        %4746 = vmatmul.mubr.bf16.gmra.mrb[0].mxu0 %v3998
        %v4747 = vpop.f32.mrb[0].mxu0
        %v4748 = vadd.f32 %v4615, %v4747
        %v4749 = vpop.f32.mrb[0].mxu0
        %v4750 = vpop.f32.mrb[0].mxu0
        %v4751 = vadd.f32 %v4616, %v4750
        %v4752 = vpop.f32.mrb[0].mxu0
        %4753 = vmatprep.mubr.bf16.mxu0 0
        %4754 = vmatmul.mubr.bf16.gmra.mrb[0].mxu0 %v4002
        %v4755 = vpop.f32.mrb[0].mxu0
        %v4756 = vadd.f32 %v4617, %v4755
        %v4757 = vpop.f32.mrb[0].mxu0
        %v4758 = vpop.f32.mrb[0].mxu0
        %v4759 = vadd.f32 %v4618, %v4758
        %v4760 = vpop.f32.mrb[0].mxu0
        %4761 = vmatprep.mubr.bf16.mxu0 0
        %4762 = vmatmul.mubr.bf16.gmra.mrb[0].mxu0 %v4006
        %v4763 = vpop.f32.mrb[0].mxu0
        %v4764 = vadd.f32 %v4619, %v4763
        %v4765 = vpop.f32.mrb[0].mxu0
        %v4766 = vpop.f32.mrb[0].mxu0
        %v4767 = vadd.f32 %v4620, %v4766
        %v4768 = vpop.f32.mrb[0].mxu0
        %4769 = vmatprep.mubr.bf16.mxu0 0
        %4770 = vmatmul.mubr.bf16.gmra.mrb[0].mxu0 %v4010
        %v4771 = vpop.f32.mrb[0].mxu0
        %v4772 = vadd.f32 %v4621, %v4771
        %v4773 = vpop.f32.mrb[0].mxu0
        %v4774 = vpop.f32.mrb[0].mxu0
        %v4775 = vadd.f32 %v4622, %v4774
        %v4776 = vpop.f32.mrb[0].mxu0
        %4777 = vmatprep.mubr.bf16.mxu0 0
        %4778 = vmatmul.mubr.bf16.gmra.mrb[0].mxu0 %v4014
        %v4779 = vpop.f32.mrb[0].mxu0
        %v4780 = vadd.f32 %v4623, %v4779
        %v4781 = vpop.f32.mrb[0].mxu0
        %v4782 = vpop.f32.mrb[0].mxu0
        %v4783 = vadd.f32 %v4624, %v4782
        %v4784 = vpop.f32.mrb[0].mxu0
        %4785 = vdwg.mxu0
        %4786 = vmax.xlane.f32.xlu0 %v4660
        %v4787 = vpop.xlane.xlu0 %4786
        %4788 = vmax.xlane.f32.xlu0 %v4663
        %v4789 = vpop.xlane.xlu0 %4788
        %4790 = vmax.xlane.f32.xlu0 %v4668
        %v4791 = vpop.xlane.xlu0 %4790
        %4792 = vmax.xlane.f32.xlu0 %v4671
        %v4793 = vpop.xlane.xlu0 %4792
        %4794 = vmax.xlane.f32.xlu0 %v4676
        %v4795 = vpop.xlane.xlu0 %4794
        %4796 = vmax.xlane.f32.xlu0 %v4679
        %v4797 = vpop.xlane.xlu0 %4796
        %4798 = vmax.xlane.f32.xlu0 %v4684
        %v4799 = vpop.xlane.xlu0 %4798
        %4800 = vmax.xlane.f32.xlu0 %v4687
        %v4801 = vpop.xlane.xlu0 %4800
        %4802 = vmax.xlane.f32.xlu0 %v4692
        %v4803 = vpop.xlane.xlu0 %4802
        %4804 = vmax.xlane.f32.xlu0 %v4695
        %v4805 = vpop.xlane.xlu0 %4804
        %4806 = vmax.xlane.f32.xlu0 %v4700
        %v4807 = vpop.xlane.xlu0 %4806
        %4808 = vmax.xlane.f32.xlu0 %v4703
        %v4809 = vpop.xlane.xlu0 %4808
        %4810 = vmax.xlane.f32.xlu0 %v4708
        %v4811 = vpop.xlane.xlu0 %4810
        %4812 = vmax.xlane.f32.xlu0 %v4711
        %v4813 = vpop.xlane.xlu0 %4812
        %4814 = vmax.xlane.f32.xlu0 %v4716
        %v4815 = vpop.xlane.xlu0 %4814
        %4816 = vmax.xlane.f32.xlu0 %v4719
        %v4817 = vpop.xlane.xlu0 %4816
        %4818 = vmax.xlane.f32.xlu0 %v4724
        %v4819 = vpop.xlane.xlu0 %4818
        %4820 = vmax.xlane.f32.xlu0 %v4727
        %v4821 = vpop.xlane.xlu0 %4820
        %4822 = vmax.xlane.f32.xlu0 %v4732
        %v4823 = vpop.xlane.xlu0 %4822
        %4824 = vmax.xlane.f32.xlu0 %v4735
        %v4825 = vpop.xlane.xlu0 %4824
        %4826 = vmax.xlane.f32.xlu0 %v4740
        %v4827 = vpop.xlane.xlu0 %4826
        %4828 = vmax.xlane.f32.xlu0 %v4743
        %v4829 = vpop.xlane.xlu0 %4828
        %4830 = vmax.xlane.f32.xlu0 %v4748
        %v4831 = vpop.xlane.xlu0 %4830
        %4832 = vmax.xlane.f32.xlu0 %v4751
        %v4833 = vpop.xlane.xlu0 %4832
        %4834 = vmax.xlane.f32.xlu0 %v4756
        %v4835 = vpop.xlane.xlu0 %4834
        %4836 = vmax.xlane.f32.xlu0 %v4759
        %v4837 = vpop.xlane.xlu0 %4836
        %4838 = vmax.xlane.f32.xlu0 %v4764
        %v4839 = vpop.xlane.xlu0 %4838
        %4840 = vmax.xlane.f32.xlu0 %v4767
        %v4841 = vpop.xlane.xlu0 %4840
        %4842 = vmax.xlane.f32.xlu0 %v4772
        %v4843 = vpop.xlane.xlu0 %4842
        %4844 = vmax.xlane.f32.xlu0 %v4775
        %v4845 = vpop.xlane.xlu0 %4844
        %4846 = vmax.xlane.f32.xlu0 %v4780
        %v4847 = vpop.xlane.xlu0 %4846
        %4848 = vmax.xlane.f32.xlu0 %v4783
        %v4849 = vpop.xlane.xlu0 %4848
        %v4850 = vsub.f32 %v4660, %v4787
        %v4851 = vsub.f32 %v4663, %v4789
        %v4852 = vsub.f32 %v4668, %v4791
        %v4853 = vsub.f32 %v4671, %v4793
        %v4854 = vsub.f32 %v4676, %v4795
        %v4855 = vsub.f32 %v4679, %v4797
        %v4856 = vsub.f32 %v4684, %v4799
        %v4857 = vsub.f32 %v4687, %v4801
        %v4858 = vsub.f32 %v4692, %v4803
        %v4859 = vsub.f32 %v4695, %v4805
        %v4860 = vsub.f32 %v4700, %v4807
        %v4861 = vsub.f32 %v4703, %v4809
        %v4862 = vsub.f32 %v4708, %v4811
        %v4863 = vsub.f32 %v4711, %v4813
        %v4864 = vsub.f32 %v4716, %v4815
        %v4865 = vsub.f32 %v4719, %v4817
        %v4866 = vsub.f32 %v4724, %v4819
        %v4867 = vsub.f32 %v4727, %v4821
        %v4868 = vsub.f32 %v4732, %v4823
        %v4869 = vsub.f32 %v4735, %v4825
        %v4870 = vsub.f32 %v4740, %v4827
        %v4871 = vsub.f32 %v4743, %v4829
        %v4872 = vsub.f32 %v4748, %v4831
        %v4873 = vsub.f32 %v4751, %v4833
        %v4874 = vsub.f32 %v4756, %v4835
        %v4875 = vsub.f32 %v4759, %v4837
        %v4876 = vsub.f32 %v4764, %v4839
        %v4877 = vsub.f32 %v4767, %v4841
        %v4878 = vsub.f32 %v4772, %v4843
        %v4879 = vsub.f32 %v4775, %v4845
        %v4880 = vsub.f32 %v4780, %v4847
        %v4881 = vsub.f32 %v4783, %v4849
        %v4882 = vmul.f32 %v4850, 1.442695
        %v4883 = vpow.pop %v4882
        %v4884 = vmul.f32 %v4851, 1.442695
        %v4885 = vpow.pop %v4884
        %v4886 = vmul.f32 %v4852, 1.442695
        %v4887 = vpow.pop %v4886
        %v4888 = vmul.f32 %v4853, 1.442695
        %v4889 = vpow.pop %v4888
        %v4890 = vmul.f32 %v4854, 1.442695
        %v4891 = vpow.pop %v4890
        %v4892 = vmul.f32 %v4855, 1.442695
        %v4893 = vpow.pop %v4892
        %v4894 = vmul.f32 %v4856, 1.442695
        %v4895 = vpow.pop %v4894
        %v4896 = vmul.f32 %v4857, 1.442695
        %v4897 = vpow.pop %v4896
        %v4898 = vmul.f32 %v4858, 1.442695
        %v4899 = vpow.pop %v4898
        %v4900 = vmul.f32 %v4859, 1.442695
        %v4901 = vpow.pop %v4900
        %v4902 = vmul.f32 %v4860, 1.442695
        %v4903 = vpow.pop %v4902
        %v4904 = vmul.f32 %v4861, 1.442695
        %v4905 = vpow.pop %v4904
        %v4906 = vmul.f32 %v4862, 1.442695
        %v4907 = vpow.pop %v4906
        %v4908 = vmul.f32 %v4863, 1.442695
        %v4909 = vpow.pop %v4908
        %v4910 = vmul.f32 %v4864, 1.442695
        %v4911 = vpow.pop %v4910
        %v4912 = vmul.f32 %v4865, 1.442695
        %v4913 = vpow.pop %v4912
        %v4914 = vmul.f32 %v4866, 1.442695
        %v4915 = vpow.pop %v4914
        %v4916 = vmul.f32 %v4867, 1.442695
        %v4917 = vpow.pop %v4916
        %v4918 = vmul.f32 %v4868, 1.442695
        %v4919 = vpow.pop %v4918
        %v4920 = vmul.f32 %v4869, 1.442695
        %v4921 = vpow.pop %v4920
        %v4922 = vmul.f32 %v4870, 1.442695
        %v4923 = vpow.pop %v4922
        %v4924 = vmul.f32 %v4871, 1.442695
        %v4925 = vpow.pop %v4924
        %v4926 = vmul.f32 %v4872, 1.442695
        %v4927 = vpow.pop %v4926
        %v4928 = vmul.f32 %v4873, 1.442695
        %v4929 = vpow.pop %v4928
        %v4930 = vmul.f32 %v4874, 1.442695
        %v4931 = vpow.pop %v4930
        %v4932 = vmul.f32 %v4875, 1.442695
        %v4933 = vpow.pop %v4932
        %v4934 = vmul.f32 %v4876, 1.442695
        %v4935 = vpow.pop %v4934
        %v4936 = vmul.f32 %v4877, 1.442695
        %v4937 = vpow.pop %v4936
        %v4938 = vmul.f32 %v4878, 1.442695
        %v4939 = vpow.pop %v4938
        %v4940 = vmul.f32 %v4879, 1.442695
        %v4941 = vpow.pop %v4940
        %v4942 = vmul.f32 %v4880, 1.442695
        %v4943 = vpow.pop %v4942
        %v4944 = vmul.f32 %v4881, 1.442695
        %v4945 = vpow.pop %v4944
        %4946 = vadd.xlane.f32.xlu0 %v4883
        %v4947 = vpop.xlane.xlu0 %4946
        %4948 = vadd.xlane.f32.xlu0 %v4885
        %v4949 = vpop.xlane.xlu0 %4948
        %4950 = vadd.xlane.f32.xlu0 %v4887
        %v4951 = vpop.xlane.xlu0 %4950
        %4952 = vadd.xlane.f32.xlu0 %v4889
        %v4953 = vpop.xlane.xlu0 %4952
        %4954 = vadd.xlane.f32.xlu0 %v4891
        %v4955 = vpop.xlane.xlu0 %4954
        %4956 = vadd.xlane.f32.xlu0 %v4893
        %v4957 = vpop.xlane.xlu0 %4956
        %4958 = vadd.xlane.f32.xlu0 %v4895
        %v4959 = vpop.xlane.xlu0 %4958
        %4960 = vadd.xlane.f32.xlu0 %v4897
        %v4961 = vpop.xlane.xlu0 %4960
        %4962 = vadd.xlane.f32.xlu0 %v4899
        %v4963 = vpop.xlane.xlu0 %4962
        %4964 = vadd.xlane.f32.xlu0 %v4901
        %v4965 = vpop.xlane.xlu0 %4964
        %4966 = vadd.xlane.f32.xlu0 %v4903
        %v4967 = vpop.xlane.xlu0 %4966
        %4968 = vadd.xlane.f32.xlu0 %v4905
        %v4969 = vpop.xlane.xlu0 %4968
        %4970 = vadd.xlane.f32.xlu0 %v4907
        %v4971 = vpop.xlane.xlu0 %4970
        %4972 = vadd.xlane.f32.xlu0 %v4909
        %v4973 = vpop.xlane.xlu0 %4972
        %4974 = vadd.xlane.f32.xlu0 %v4911
        %v4975 = vpop.xlane.xlu0 %4974
        %4976 = vadd.xlane.f32.xlu0 %v4913
        %v4977 = vpop.xlane.xlu0 %4976
        %4978 = vadd.xlane.f32.xlu0 %v4915
        %v4979 = vpop.xlane.xlu0 %4978
        %4980 = vadd.xlane.f32.xlu0 %v4917
        %v4981 = vpop.xlane.xlu0 %4980
        %4982 = vadd.xlane.f32.xlu0 %v4919
        %v4983 = vpop.xlane.xlu0 %4982
        %4984 = vadd.xlane.f32.xlu0 %v4921
        %v4985 = vpop.xlane.xlu0 %4984
        %4986 = vadd.xlane.f32.xlu0 %v4923
        %v4987 = vpop.xlane.xlu0 %4986
        %4988 = vadd.xlane.f32.xlu0 %v4925
        %v4989 = vpop.xlane.xlu0 %4988
        %4990 = vadd.xlane.f32.xlu0 %v4927
        %v4991 = vpop.xlane.xlu0 %4990
        %4992 = vadd.xlane.f32.xlu0 %v4929
        %v4993 = vpop.xlane.xlu0 %4992
        %4994 = vadd.xlane.f32.xlu0 %v4931
        %v4995 = vpop.xlane.xlu0 %4994
        %4996 = vadd.xlane.f32.xlu0 %v4933
        %v4997 = vpop.xlane.xlu0 %4996
        %4998 = vadd.xlane.f32.xlu0 %v4935
        %v4999 = vpop.xlane.xlu0 %4998
        %5000 = vadd.xlane.f32.xlu0 %v4937
        %v5001 = vpop.xlane.xlu0 %5000
        %5002 = vadd.xlane.f32.xlu0 %v4939
        %v5003 = vpop.xlane.xlu0 %5002
        %5004 = vadd.xlane.f32.xlu0 %v4941
        %v5005 = vpop.xlane.xlu0 %5004
        %5006 = vadd.xlane.f32.xlu0 %v4943
        %v5007 = vpop.xlane.xlu0 %5006
        %5008 = vadd.xlane.f32.xlu0 %v4945
        %v5009 = vpop.xlane.xlu0 %5008
        %v5010 = vrcp.pop %v4947
        %v5011 = vrcp.pop %v4949
        %v5012 = vrcp.pop %v4951
        %v5013 = vrcp.pop %v4953
        %v5014 = vrcp.pop %v4955
        %v5015 = vrcp.pop %v4957
        %v5016 = vrcp.pop %v4959
        %v5017 = vrcp.pop %v4961
        %v5018 = vrcp.pop %v4963
        %v5019 = vrcp.pop %v4965
        %v5020 = vrcp.pop %v4967
        %v5021 = vrcp.pop %v4969
        %v5022 = vrcp.pop %v4971
        %v5023 = vrcp.pop %v4973
        %v5024 = vrcp.pop %v4975
        %v5025 = vrcp.pop %v4977
        %v5026 = vrcp.pop %v4979
        %v5027 = vrcp.pop %v4981
        %v5028 = vrcp.pop %v4983
        %v5029 = vrcp.pop %v4985
        %v5030 = vrcp.pop %v4987
        %v5031 = vrcp.pop %v4989
        %v5032 = vrcp.pop %v4991
        %v5033 = vrcp.pop %v4993
        %v5034 = vrcp.pop %v4995
        %v5035 = vrcp.pop %v4997
        %v5036 = vrcp.pop %v4999
        %v5037 = vrcp.pop %v5001
        %v5038 = vrcp.pop %v5003
        %v5039 = vrcp.pop %v5005
        %v5040 = vrcp.pop %v5007
        %v5041 = vrcp.pop %v5009
        %v5042 = vmul.f32 %v4883, %v5010
        %v5043 = vmul.f32 %v4885, %v5011
        %v5044 = vmul.f32 %v4887, %v5012
        %v5045 = vmul.f32 %v4889, %v5013
        %v5046 = vmul.f32 %v4891, %v5014
        %v5047 = vmul.f32 %v4893, %v5015
        %v5048 = vmul.f32 %v4895, %v5016
        %v5049 = vmul.f32 %v4897, %v5017
        %v5050 = vmul.f32 %v4899, %v5018
        %v5051 = vmul.f32 %v4901, %v5019
        %v5052 = vmul.f32 %v4903, %v5020
        %v5053 = vmul.f32 %v4905, %v5021
        %v5054 = vmul.f32 %v4907, %v5022
        %v5055 = vmul.f32 %v4909, %v5023
        %v5056 = vmul.f32 %v4911, %v5024
        %v5057 = vmul.f32 %v4913, %v5025
        %v5058 = vmul.f32 %v4915, %v5026
        %v5059 = vmul.f32 %v4917, %v5027
        %v5060 = vmul.f32 %v4919, %v5028
        %v5061 = vmul.f32 %v4921, %v5029
        %v5062 = vmul.f32 %v4923, %v5030
        %v5063 = vmul.f32 %v4925, %v5031
        %v5064 = vmul.f32 %v4927, %v5032
        %v5065 = vmul.f32 %v4929, %v5033
        %v5066 = vmul.f32 %v4931, %v5034
        %v5067 = vmul.f32 %v4933, %v5035
        %v5068 = vmul.f32 %v4935, %v5036
        %v5069 = vmul.f32 %v4937, %v5037
        %v5070 = vmul.f32 %v4939, %v5038
        %v5071 = vmul.f32 %v4941, %v5039
        %v5072 = vmul.f32 %v4943, %v5040
        %v5073 = vmul.f32 %v4945, %v5041
        %v5074 = vpack.c.bf16 %v5043, %v5042
        %v5075 = vpack.c.bf16 %v5045, %v5044
        %v5076 = vpack.c.bf16 %v5047, %v5046
        %v5077 = vpack.c.bf16 %v5049, %v5048
        %v5078 = vpack.c.bf16 %v5051, %v5050
        %v5079 = vpack.c.bf16 %v5053, %v5052
        %v5080 = vpack.c.bf16 %v5055, %v5054
        %v5081 = vpack.c.bf16 %v5057, %v5056
        %v5082 = vpack.c.bf16 %v5059, %v5058
        %v5083 = vpack.c.bf16 %v5061, %v5060
        %v5084 = vpack.c.bf16 %v5063, %v5062
        %v5085 = vpack.c.bf16 %v5065, %v5064
        %v5086 = vpack.c.bf16 %v5067, %v5066
        %v5087 = vpack.c.bf16 %v5069, %v5068
        %v5088 = vpack.c.bf16 %v5071, %v5070
        %v5089 = vpack.c.bf16 %v5073, %v5072
        %5090 = vmatprep.subr.bf16.mxu0 0
        %5091 = vmatpush1.bf16.msra.mxu0 %v4480
        %5092 = vmatprep.subr.bf16.mxu0 0
        %5093 = vmatpush1.bf16.msra.mxu0 %v4482
        %5094 = vmatprep.subr.bf16.mxu0 0
        %5095 = vmatpush1.bf16.msra.mxu0 %v4484
        %5096 = vmatprep.subr.bf16.mxu0 0
        %5097 = vmatpush1.bf16.msra.mxu0 %v4486
        %5098 = vmatprep.subr.bf16.mxu0 0
        %5099 = vmatpush1.bf16.msra.mxu0 %v4488
        %5100 = vmatprep.subr.bf16.mxu0 0
        %5101 = vmatpush1.bf16.msra.mxu0 %v4490
        %5102 = vmatprep.subr.bf16.mxu0 0
        %5103 = vmatpush1.bf16.msra.mxu0 %v4492
        %5104 = vmatprep.subr.bf16.mxu0 0
        %5105 = vmatpush1.bf16.msra.mxu0 %v4494
        %5106 = vmatprep.subr.bf16.mxu0 0
        %5107 = vmatpush1.bf16.msra.mxu0 0
        %5108 = vmatprep.subr.bf16.mxu0 0
        %5109 = vmatpush1.bf16.msra.mxu0 0
        %5110 = vmatprep.subr.bf16.mxu0 0
        %5111 = vmatpush1.bf16.msra.mxu0 0
        %5112 = vmatprep.subr.bf16.mxu0 0
        %5113 = vmatpush1.bf16.msra.mxu0 0
        %5114 = vmatprep.subr.bf16.mxu0 0
        %5115 = vmatpush1.bf16.msra.mxu0 0
        %5116 = vmatprep.subr.bf16.mxu0 0
        %5117 = vmatpush1.bf16.msra.mxu0 0
        %5118 = vmatprep.subr.bf16.mxu0 0
        %5119 = vmatpush1.bf16.msra.mxu0 0
        %5120 = vmatprep.subr.bf16.mxu0 0
        %5121 = vmatpush1.bf16.msra.mxu0 0
        %5122 = vmatprep.mubr.bf16.mxu0 0
        %5123 = vmatmul.mubr.bf16.gmra.mrb[0].mxu0 %v5074
        %v5124 = vpop.f32.mrb[0].mxu0
        %v5125 = vadd.f32 0.0, %v5124
        %v5126 = vpop.f32.mrb[0].mxu0
        %v5127 = vpop.f32.mrb[0].mxu0
        %v5128 = vadd.f32 0.0, %v5127
        %v5129 = vpop.f32.mrb[0].mxu0
        %5130 = vmatprep.mubr.bf16.mxu0 0
        %5131 = vmatmul.mubr.bf16.gmra.mrb[0].mxu0 %v5075
        %v5132 = vpop.f32.mrb[0].mxu0
        %v5133 = vadd.f32 0.0, %v5132
        %v5134 = vpop.f32.mrb[0].mxu0
        %v5135 = vpop.f32.mrb[0].mxu0
        %v5136 = vadd.f32 0.0, %v5135
        %v5137 = vpop.f32.mrb[0].mxu0
        %5138 = vmatprep.mubr.bf16.mxu0 0
        %5139 = vmatmul.mubr.bf16.gmra.mrb[0].mxu0 %v5076
        %v5140 = vpop.f32.mrb[0].mxu0
        %v5141 = vadd.f32 0.0, %v5140
        %v5142 = vpop.f32.mrb[0].mxu0
        %v5143 = vpop.f32.mrb[0].mxu0
        %v5144 = vadd.f32 0.0, %v5143
        %v5145 = vpop.f32.mrb[0].mxu0
        %5146 = vmatprep.mubr.bf16.mxu0 0
        %5147 = vmatmul.mubr.bf16.gmra.mrb[0].mxu0 %v5077
        %v5148 = vpop.f32.mrb[0].mxu0
        %v5149 = vadd.f32 0.0, %v5148
        %v5150 = vpop.f32.mrb[0].mxu0
        %v5151 = vpop.f32.mrb[0].mxu0
        %v5152 = vadd.f32 0.0, %v5151
        %v5153 = vpop.f32.mrb[0].mxu0
        %5154 = vmatprep.mubr.bf16.mxu0 0
        %5155 = vmatmul.mubr.bf16.gmra.mrb[0].mxu0 %v5078
        %v5156 = vpop.f32.mrb[0].mxu0
        %v5157 = vadd.f32 0.0, %v5156
        %v5158 = vpop.f32.mrb[0].mxu0
        %v5159 = vpop.f32.mrb[0].mxu0
        %v5160 = vadd.f32 0.0, %v5159
        %v5161 = vpop.f32.mrb[0].mxu0
        %5162 = vmatprep.mubr.bf16.mxu0 0
        %5163 = vmatmul.mubr.bf16.gmra.mrb[0].mxu0 %v5079
        %v5164 = vpop.f32.mrb[0].mxu0
        %v5165 = vadd.f32 0.0, %v5164
        %v5166 = vpop.f32.mrb[0].mxu0
        %v5167 = vpop.f32.mrb[0].mxu0
        %v5168 = vadd.f32 0.0, %v5167
        %v5169 = vpop.f32.mrb[0].mxu0
        %5170 = vmatprep.mubr.bf16.mxu0 0
        %5171 = vmatmul.mubr.bf16.gmra.mrb[0].mxu0 %v5080
        %v5172 = vpop.f32.mrb[0].mxu0
        %v5173 = vadd.f32 0.0, %v5172
        %v5174 = vpop.f32.mrb[0].mxu0
        %v5175 = vpop.f32.mrb[0].mxu0
        %v5176 = vadd.f32 0.0, %v5175
        %v5177 = vpop.f32.mrb[0].mxu0
        %5178 = vmatprep.mubr.bf16.mxu0 0
        %5179 = vmatmul.mubr.bf16.gmra.mrb[0].mxu0 %v5081
        %v5180 = vpop.f32.mrb[0].mxu0
        %v5181 = vadd.f32 0.0, %v5180
        %v5182 = vpop.f32.mrb[0].mxu0
        %v5183 = vpop.f32.mrb[0].mxu0
        %v5184 = vadd.f32 0.0, %v5183
        %v5185 = vpop.f32.mrb[0].mxu0
        %5186 = vmatprep.mubr.bf16.mxu0 0
        %5187 = vmatmul.mubr.bf16.gmra.mrb[0].mxu0 %v5082
        %v5188 = vpop.f32.mrb[0].mxu0
        %v5189 = vadd.f32 0.0, %v5188
        %v5190 = vpop.f32.mrb[0].mxu0
        %v5191 = vpop.f32.mrb[0].mxu0
        %v5192 = vadd.f32 0.0, %v5191
        %v5193 = vpop.f32.mrb[0].mxu0
        %5194 = vmatprep.mubr.bf16.mxu0 0
        %5195 = vmatmul.mubr.bf16.gmra.mrb[0].mxu0 %v5083
        %v5196 = vpop.f32.mrb[0].mxu0
        %v5197 = vadd.f32 0.0, %v5196
        %v5198 = vpop.f32.mrb[0].mxu0
        %v5199 = vpop.f32.mrb[0].mxu0
        %v5200 = vadd.f32 0.0, %v5199
        %v5201 = vpop.f32.mrb[0].mxu0
        %5202 = vmatprep.mubr.bf16.mxu0 0
        %5203 = vmatmul.mubr.bf16.gmra.mrb[0].mxu0 %v5084
        %v5204 = vpop.f32.mrb[0].mxu0
        %v5205 = vadd.f32 0.0, %v5204
        %v5206 = vpop.f32.mrb[0].mxu0
        %v5207 = vpop.f32.mrb[0].mxu0
        %v5208 = vadd.f32 0.0, %v5207
        %v5209 = vpop.f32.mrb[0].mxu0
        %5210 = vmatprep.mubr.bf16.mxu0 0
        %5211 = vmatmul.mubr.bf16.gmra.mrb[0].mxu0 %v5085
        %v5212 = vpop.f32.mrb[0].mxu0
        %v5213 = vadd.f32 0.0, %v5212
        %v5214 = vpop.f32.mrb[0].mxu0
        %v5215 = vpop.f32.mrb[0].mxu0
        %v5216 = vadd.f32 0.0, %v5215
        %v5217 = vpop.f32.mrb[0].mxu0
        %5218 = vmatprep.mubr.bf16.mxu0 0
        %5219 = vmatmul.mubr.bf16.gmra.mrb[0].mxu0 %v5086
        %v5220 = vpop.f32.mrb[0].mxu0
        %v5221 = vadd.f32 0.0, %v5220
        %v5222 = vpop.f32.mrb[0].mxu0
        %v5223 = vpop.f32.mrb[0].mxu0
        %v5224 = vadd.f32 0.0, %v5223
        %v5225 = vpop.f32.mrb[0].mxu0
        %5226 = vmatprep.mubr.bf16.mxu0 0
        %5227 = vmatmul.mubr.bf16.gmra.mrb[0].mxu0 %v5087
        %v5228 = vpop.f32.mrb[0].mxu0
        %v5229 = vadd.f32 0.0, %v5228
        %v5230 = vpop.f32.mrb[0].mxu0
        %v5231 = vpop.f32.mrb[0].mxu0
        %v5232 = vadd.f32 0.0, %v5231
        %v5233 = vpop.f32.mrb[0].mxu0
        %5234 = vmatprep.mubr.bf16.mxu0 0
        %5235 = vmatmul.mubr.bf16.gmra.mrb[0].mxu0 %v5088
        %v5236 = vpop.f32.mrb[0].mxu0
        %v5237 = vadd.f32 0.0, %v5236
        %v5238 = vpop.f32.mrb[0].mxu0
        %v5239 = vpop.f32.mrb[0].mxu0
        %v5240 = vadd.f32 0.0, %v5239
        %v5241 = vpop.f32.mrb[0].mxu0
        %5242 = vmatprep.mubr.bf16.mxu0 0
        %5243 = vmatmul.mubr.bf16.gmra.mrb[0].mxu0 %v5089
        %v5244 = vpop.f32.mrb[0].mxu0
        %v5245 = vadd.f32 0.0, %v5244
        %v5246 = vpop.f32.mrb[0].mxu0
        %v5247 = vpop.f32.mrb[0].mxu0
        %v5248 = vadd.f32 0.0, %v5247
        %v5249 = vpop.f32.mrb[0].mxu0
        %5250 = vdwg.mxu0
        %v5251 = vpack.c.bf16 %v5128, %v5125
        %v5252 = vpack.c.bf16 %v5136, %v5133
        %v5253 = vpack.c.bf16 %v5144, %v5141
        %v5254 = vpack.c.bf16 %v5152, %v5149
        %v5255 = vpack.c.bf16 %v5160, %v5157
        %v5256 = vpack.c.bf16 %v5168, %v5165
        %v5257 = vpack.c.bf16 %v5176, %v5173
        %v5258 = vpack.c.bf16 %v5184, %v5181
        %v5259 = vpack.c.bf16 %v5192, %v5189
        %v5260 = vpack.c.bf16 %v5200, %v5197
        %v5261 = vpack.c.bf16 %v5208, %v5205
        %v5262 = vpack.c.bf16 %v5216, %v5213
        %v5263 = vpack.c.bf16 %v5224, %v5221
        %v5264 = vpack.c.bf16 %v5232, %v5229
        %v5265 = vpack.c.bf16 %v5240, %v5237
        %v5266 = vpack.c.bf16 %v5248, %v5245
        %5267 = vmatprep.subr.bf16.mxu0 0
        %5268 = vmatpush1.bf16.xpose.msra.mxu0 %v4465
        %5269 = vmatprep.subr.bf16.mxu0 0
        %5270 = vmatpush1.bf16.xpose.msra.mxu0 %v4467
        %5271 = vmatprep.subr.bf16.mxu0 0
        %5272 = vmatpush1.bf16.xpose.msra.mxu0 %v4469
        %5273 = vmatprep.subr.bf16.mxu0 0
        %5274 = vmatpush1.bf16.xpose.msra.mxu0 %v4471
        %5275 = vmatprep.subr.bf16.mxu0 0
        %5276 = vmatpush1.bf16.xpose.msra.mxu0 %v4473
        %5277 = vmatprep.subr.bf16.mxu0 0
        %5278 = vmatpush1.bf16.xpose.msra.mxu0 %v4475
        %5279 = vmatprep.subr.bf16.mxu0 0
        %5280 = vmatpush1.bf16.xpose.msra.mxu0 %v4477
        %5281 = vmatprep.subr.bf16.mxu0 0
        %5282 = vmatpush1.bf16.xpose.msra.mxu0 %v4479
        %5283 = vmatprep.subr.bf16.mxu0 0
        %5284 = vmatpush1.bf16.xpose.msra.mxu0 0
        %5285 = vmatprep.subr.bf16.mxu0 0
        %5286 = vmatpush1.bf16.xpose.msra.mxu0 0
        %5287 = vmatprep.subr.bf16.mxu0 0
        %5288 = vmatpush1.bf16.xpose.msra.mxu0 0
        %5289 = vmatprep.subr.bf16.mxu0 0
        %5290 = vmatpush1.bf16.xpose.msra.mxu0 0
        %5291 = vmatprep.subr.bf16.mxu0 0
        %5292 = vmatpush1.bf16.xpose.msra.mxu0 0
        %5293 = vmatprep.subr.bf16.mxu0 0
        %5294 = vmatpush1.bf16.xpose.msra.mxu0 0
        %5295 = vmatprep.subr.bf16.mxu0 0
        %5296 = vmatpush1.bf16.xpose.msra.mxu0 0
        %5297 = vmatprep.subr.bf16.mxu0 0
        %5298 = vmatpush1.bf16.xpose.msra.mxu0 0
        %5299 = vmatprep.mubr.bf16.mxu0 0
        %5300 = vmatmul.mubr.bf16.gmra.mrb[0].mxu0 %v3985
        %v5301 = vpop.f32.mrb[0].mxu0
        %v5302 = vadd.f32 %v4593, %v5301
        %v5303 = vpop.f32.mrb[0].mxu0
        %v5304 = vpop.f32.mrb[0].mxu0
        %v5305 = vadd.f32 %v4594, %v5304
        %v5306 = vpop.f32.mrb[0].mxu0
        %5307 = vmatprep.mubr.bf16.mxu0 0
        %5308 = vmatmul.mubr.bf16.gmra.mrb[0].mxu0 %v3989
        %v5309 = vpop.f32.mrb[0].mxu0
        %v5310 = vadd.f32 %v4595, %v5309
        %v5311 = vpop.f32.mrb[0].mxu0
        %v5312 = vpop.f32.mrb[0].mxu0
        %v5313 = vadd.f32 %v4596, %v5312
        %v5314 = vpop.f32.mrb[0].mxu0
        %5315 = vmatprep.mubr.bf16.mxu0 0
        %5316 = vmatmul.mubr.bf16.gmra.mrb[0].mxu0 %v3993
        %v5317 = vpop.f32.mrb[0].mxu0
        %v5318 = vadd.f32 %v4597, %v5317
        %v5319 = vpop.f32.mrb[0].mxu0
        %v5320 = vpop.f32.mrb[0].mxu0
        %v5321 = vadd.f32 %v4598, %v5320
        %v5322 = vpop.f32.mrb[0].mxu0
        %5323 = vmatprep.mubr.bf16.mxu0 0
        %5324 = vmatmul.mubr.bf16.gmra.mrb[0].mxu0 %v3997
        %v5325 = vpop.f32.mrb[0].mxu0
        %v5326 = vadd.f32 %v4599, %v5325
        %v5327 = vpop.f32.mrb[0].mxu0
        %v5328 = vpop.f32.mrb[0].mxu0
        %v5329 = vadd.f32 %v4600, %v5328
        %v5330 = vpop.f32.mrb[0].mxu0
        %5331 = vmatprep.mubr.bf16.mxu0 0
        %5332 = vmatmul.mubr.bf16.gmra.mrb[0].mxu0 %v4001
        %v5333 = vpop.f32.mrb[0].mxu0
        %v5334 = vadd.f32 %v4601, %v5333
        %v5335 = vpop.f32.mrb[0].mxu0
        %v5336 = vpop.f32.mrb[0].mxu0
        %v5337 = vadd.f32 %v4602, %v5336
        %v5338 = vpop.f32.mrb[0].mxu0
        %5339 = vmatprep.mubr.bf16.mxu0 0
        %5340 = vmatmul.mubr.bf16.gmra.mrb[0].mxu0 %v4005
        %v5341 = vpop.f32.mrb[0].mxu0
        %v5342 = vadd.f32 %v4603, %v5341
        %v5343 = vpop.f32.mrb[0].mxu0
        %v5344 = vpop.f32.mrb[0].mxu0
        %v5345 = vadd.f32 %v4604, %v5344
        %v5346 = vpop.f32.mrb[0].mxu0
        %5347 = vmatprep.mubr.bf16.mxu0 0
        %5348 = vmatmul.mubr.bf16.gmra.mrb[0].mxu0 %v4009
        %v5349 = vpop.f32.mrb[0].mxu0
        %v5350 = vadd.f32 %v4605, %v5349
        %v5351 = vpop.f32.mrb[0].mxu0
        %v5352 = vpop.f32.mrb[0].mxu0
        %v5353 = vadd.f32 %v4606, %v5352
        %v5354 = vpop.f32.mrb[0].mxu0
        %5355 = vmatprep.mubr.bf16.mxu0 0
        %5356 = vmatmul.mubr.bf16.gmra.mrb[0].mxu0 %v4013
        %v5357 = vpop.f32.mrb[0].mxu0
        %v5358 = vadd.f32 %v4607, %v5357
        %v5359 = vpop.f32.mrb[0].mxu0
        %v5360 = vpop.f32.mrb[0].mxu0
        %v5361 = vadd.f32 %v4608, %v5360
        %v5362 = vpop.f32.mrb[0].mxu0
        %5363 = vmatprep.mubr.bf16.mxu0 0
        %5364 = vmatmul.mubr.bf16.gmra.mrb[0].mxu0 %v3987
        %v5365 = vpop.f32.mrb[0].mxu0
        %v5366 = vadd.f32 %v4609, %v5365
        %v5367 = vpop.f32.mrb[0].mxu0
        %v5368 = vpop.f32.mrb[0].mxu0
        %v5369 = vadd.f32 %v4610, %v5368
        %v5370 = vpop.f32.mrb[0].mxu0
        %5371 = vmatprep.mubr.bf16.mxu0 0
        %5372 = vmatmul.mubr.bf16.gmra.mrb[0].mxu0 %v3991
        %v5373 = vpop.f32.mrb[0].mxu0
        %v5374 = vadd.f32 %v4611, %v5373
        %v5375 = vpop.f32.mrb[0].mxu0
        %v5376 = vpop.f32.mrb[0].mxu0
        %v5377 = vadd.f32 %v4612, %v5376
        %v5378 = vpop.f32.mrb[0].mxu0
        %5379 = vmatprep.mubr.bf16.mxu0 0
        %5380 = vmatmul.mubr.bf16.gmra.mrb[0].mxu0 %v3995
        %v5381 = vpop.f32.mrb[0].mxu0
        %v5382 = vadd.f32 %v4613, %v5381
        %v5383 = vpop.f32.mrb[0].mxu0
        %v5384 = vpop.f32.mrb[0].mxu0
        %v5385 = vadd.f32 %v4614, %v5384
        %v5386 = vpop.f32.mrb[0].mxu0
        %5387 = vmatprep.mubr.bf16.mxu0 0
        %5388 = vmatmul.mubr.bf16.gmra.mrb[0].mxu0 %v3999
        %v5389 = vpop.f32.mrb[0].mxu0
        %v5390 = vadd.f32 %v4615, %v5389
        %v5391 = vpop.f32.mrb[0].mxu0
        %v5392 = vpop.f32.mrb[0].mxu0
        %v5393 = vadd.f32 %v4616, %v5392
        %v5394 = vpop.f32.mrb[0].mxu0
        %5395 = vmatprep.mubr.bf16.mxu0 0
        %5396 = vmatmul.mubr.bf16.gmra.mrb[0].mxu0 %v4003
        %v5397 = vpop.f32.mrb[0].mxu0
        %v5398 = vadd.f32 %v4617, %v5397
        %v5399 = vpop.f32.mrb[0].mxu0
        %v5400 = vpop.f32.mrb[0].mxu0
        %v5401 = vadd.f32 %v4618, %v5400
        %v5402 = vpop.f32.mrb[0].mxu0
        %5403 = vmatprep.mubr.bf16.mxu0 0
        %5404 = vmatmul.mubr.bf16.gmra.mrb[0].mxu0 %v4007
        %v5405 = vpop.f32.mrb[0].mxu0
        %v5406 = vadd.f32 %v4619, %v5405
        %v5407 = vpop.f32.mrb[0].mxu0
        %v5408 = vpop.f32.mrb[0].mxu0
        %v5409 = vadd.f32 %v4620, %v5408
        %v5410 = vpop.f32.mrb[0].mxu0
        %5411 = vmatprep.mubr.bf16.mxu0 0
        %5412 = vmatmul.mubr.bf16.gmra.mrb[0].mxu0 %v4011
        %v5413 = vpop.f32.mrb[0].mxu0
        %v5414 = vadd.f32 %v4621, %v5413
        %v5415 = vpop.f32.mrb[0].mxu0
        %v5416 = vpop.f32.mrb[0].mxu0
        %v5417 = vadd.f32 %v4622, %v5416
        %v5418 = vpop.f32.mrb[0].mxu0
        %5419 = vmatprep.mubr.bf16.mxu0 0
        %5420 = vmatmul.mubr.bf16.gmra.mrb[0].mxu0 %v4015
        %v5421 = vpop.f32.mrb[0].mxu0
        %v5422 = vadd.f32 %v4623, %v5421
        %v5423 = vpop.f32.mrb[0].mxu0
        %v5424 = vpop.f32.mrb[0].mxu0
        %v5425 = vadd.f32 %v4624, %v5424
        %v5426 = vpop.f32.mrb[0].mxu0
        %5427 = vdwg.mxu0
        %5428 = vmax.xlane.f32.xlu0 %v5302
        %v5429 = vpop.xlane.xlu0 %5428
        %5430 = vmax.xlane.f32.xlu0 %v5305
        %v5431 = vpop.xlane.xlu0 %5430
        %5432 = vmax.xlane.f32.xlu0 %v5310
        %v5433 = vpop.xlane.xlu0 %5432
        %5434 = vmax.xlane.f32.xlu0 %v5313
        %v5435 = vpop.xlane.xlu0 %5434
        %5436 = vmax.xlane.f32.xlu0 %v5318
        %v5437 = vpop.xlane.xlu0 %5436
        %5438 = vmax.xlane.f32.xlu0 %v5321
        %v5439 = vpop.xlane.xlu0 %5438
        %5440 = vmax.xlane.f32.xlu0 %v5326
        %v5441 = vpop.xlane.xlu0 %5440
        %5442 = vmax.xlane.f32.xlu0 %v5329
        %v5443 = vpop.xlane.xlu0 %5442
        %5444 = vmax.xlane.f32.xlu0 %v5334
        %v5445 = vpop.xlane.xlu0 %5444
        %5446 = vmax.xlane.f32.xlu0 %v5337
        %v5447 = vpop.xlane.xlu0 %5446
        %5448 = vmax.xlane.f32.xlu0 %v5342
        %v5449 = vpop.xlane.xlu0 %5448
        %5450 = vmax.xlane.f32.xlu0 %v5345
        %v5451 = vpop.xlane.xlu0 %5450
        %5452 = vmax.xlane.f32.xlu0 %v5350
        %v5453 = vpop.xlane.xlu0 %5452
        %5454 = vmax.xlane.f32.xlu0 %v5353
        %v5455 = vpop.xlane.xlu0 %5454
        %5456 = vmax.xlane.f32.xlu0 %v5358
        %v5457 = vpop.xlane.xlu0 %5456
        %5458 = vmax.xlane.f32.xlu0 %v5361
        %v5459 = vpop.xlane.xlu0 %5458
        %5460 = vmax.xlane.f32.xlu0 %v5366
        %v5461 = vpop.xlane.xlu0 %5460
        %5462 = vmax.xlane.f32.xlu0 %v5369
        %v5463 = vpop.xlane.xlu0 %5462
        %5464 = vmax.xlane.f32.xlu0 %v5374
        %v5465 = vpop.xlane.xlu0 %5464
        %5466 = vmax.xlane.f32.xlu0 %v5377
        %v5467 = vpop.xlane.xlu0 %5466
        %5468 = vmax.xlane.f32.xlu0 %v5382
        %v5469 = vpop.xlane.xlu0 %5468
        %5470 = vmax.xlane.f32.xlu0 %v5385
        %v5471 = vpop.xlane.xlu0 %5470
        %5472 = vmax.xlane.f32.xlu0 %v5390
        %v5473 = vpop.xlane.xlu0 %5472
        %5474 = vmax.xlane.f32.xlu0 %v5393
        %v5475 = vpop.xlane.xlu0 %5474
        %5476 = vmax.xlane.f32.xlu0 %v5398
        %v5477 = vpop.xlane.xlu0 %5476
        %5478 = vmax.xlane.f32.xlu0 %v5401
        %v5479 = vpop.xlane.xlu0 %5478
        %5480 = vmax.xlane.f32.xlu0 %v5406
        %v5481 = vpop.xlane.xlu0 %5480
        %5482 = vmax.xlane.f32.xlu0 %v5409
        %v5483 = vpop.xlane.xlu0 %5482
        %5484 = vmax.xlane.f32.xlu0 %v5414
        %v5485 = vpop.xlane.xlu0 %5484
        %5486 = vmax.xlane.f32.xlu0 %v5417
        %v5487 = vpop.xlane.xlu0 %5486
        %5488 = vmax.xlane.f32.xlu0 %v5422
        %v5489 = vpop.xlane.xlu0 %5488
        %5490 = vmax.xlane.f32.xlu0 %v5425
        %v5491 = vpop.xlane.xlu0 %5490
        %v5492 = vsub.f32 %v5302, %v5429
        %v5493 = vsub.f32 %v5305, %v5431
        %v5494 = vsub.f32 %v5310, %v5433
        %v5495 = vsub.f32 %v5313, %v5435
        %v5496 = vsub.f32 %v5318, %v5437
        %v5497 = vsub.f32 %v5321, %v5439
        %v5498 = vsub.f32 %v5326, %v5441
        %v5499 = vsub.f32 %v5329, %v5443
        %v5500 = vsub.f32 %v5334, %v5445
        %v5501 = vsub.f32 %v5337, %v5447
        %v5502 = vsub.f32 %v5342, %v5449
        %v5503 = vsub.f32 %v5345, %v5451
        %v5504 = vsub.f32 %v5350, %v5453
        %v5505 = vsub.f32 %v5353, %v5455
        %v5506 = vsub.f32 %v5358, %v5457
        %v5507 = vsub.f32 %v5361, %v5459
        %v5508 = vsub.f32 %v5366, %v5461
        %v5509 = vsub.f32 %v5369, %v5463
        %v5510 = vsub.f32 %v5374, %v5465
        %v5511 = vsub.f32 %v5377, %v5467
        %v5512 = vsub.f32 %v5382, %v5469
        %v5513 = vsub.f32 %v5385, %v5471
        %v5514 = vsub.f32 %v5390, %v5473
        %v5515 = vsub.f32 %v5393, %v5475
        %v5516 = vsub.f32 %v5398, %v5477
        %v5517 = vsub.f32 %v5401, %v5479
        %v5518 = vsub.f32 %v5406, %v5481
        %v5519 = vsub.f32 %v5409, %v5483
        %v5520 = vsub.f32 %v5414, %v5485
        %v5521 = vsub.f32 %v5417, %v5487
        %v5522 = vsub.f32 %v5422, %v5489
        %v5523 = vsub.f32 %v5425, %v5491
        %v5524 = vmul.f32 %v5492, 1.442695
        %v5525 = vpow.pop %v5524
        %v5526 = vmul.f32 %v5493, 1.442695
        %v5527 = vpow.pop %v5526
        %v5528 = vmul.f32 %v5494, 1.442695
        %v5529 = vpow.pop %v5528
        %v5530 = vmul.f32 %v5495, 1.442695
        %v5531 = vpow.pop %v5530
        %v5532 = vmul.f32 %v5496, 1.442695
        %v5533 = vpow.pop %v5532
        %v5534 = vmul.f32 %v5497, 1.442695
        %v5535 = vpow.pop %v5534
        %v5536 = vmul.f32 %v5498, 1.442695
        %v5537 = vpow.pop %v5536
        %v5538 = vmul.f32 %v5499, 1.442695
        %v5539 = vpow.pop %v5538
        %v5540 = vmul.f32 %v5500, 1.442695
        %v5541 = vpow.pop %v5540
        %v5542 = vmul.f32 %v5501, 1.442695
        %v5543 = vpow.pop %v5542
        %v5544 = vmul.f32 %v5502, 1.442695
        %v5545 = vpow.pop %v5544
        %v5546 = vmul.f32 %v5503, 1.442695
        %v5547 = vpow.pop %v5546
        %v5548 = vmul.f32 %v5504, 1.442695
        %v5549 = vpow.pop %v5548
        %v5550 = vmul.f32 %v5505, 1.442695
        %v5551 = vpow.pop %v5550
        %v5552 = vmul.f32 %v5506, 1.442695
        %v5553 = vpow.pop %v5552
        %v5554 = vmul.f32 %v5507, 1.442695
        %v5555 = vpow.pop %v5554
        %v5556 = vmul.f32 %v5508, 1.442695
        %v5557 = vpow.pop %v5556
        %v5558 = vmul.f32 %v5509, 1.442695
        %v5559 = vpow.pop %v5558
        %v5560 = vmul.f32 %v5510, 1.442695
        %v5561 = vpow.pop %v5560
        %v5562 = vmul.f32 %v5511, 1.442695
        %v5563 = vpow.pop %v5562
        %v5564 = vmul.f32 %v5512, 1.442695
        %v5565 = vpow.pop %v5564
        %v5566 = vmul.f32 %v5513, 1.442695
        %v5567 = vpow.pop %v5566
        %v5568 = vmul.f32 %v5514, 1.442695
        %v5569 = vpow.pop %v5568
        %v5570 = vmul.f32 %v5515, 1.442695
        %v5571 = vpow.pop %v5570
        %v5572 = vmul.f32 %v5516, 1.442695
        %v5573 = vpow.pop %v5572
        %v5574 = vmul.f32 %v5517, 1.442695
        %v5575 = vpow.pop %v5574
        %v5576 = vmul.f32 %v5518, 1.442695
        %v5577 = vpow.pop %v5576
        %v5578 = vmul.f32 %v5519, 1.442695
        %v5579 = vpow.pop %v5578
        %v5580 = vmul.f32 %v5520, 1.442695
        %v5581 = vpow.pop %v5580
        %v5582 = vmul.f32 %v5521, 1.442695
        %v5583 = vpow.pop %v5582
        %v5584 = vmul.f32 %v5522, 1.442695
        %v5585 = vpow.pop %v5584
        %v5586 = vmul.f32 %v5523, 1.442695
        %v5587 = vpow.pop %v5586
        %5588 = vadd.xlane.f32.xlu0 %v5525
        %v5589 = vpop.xlane.xlu0 %5588
        %5590 = vadd.xlane.f32.xlu0 %v5527
        %v5591 = vpop.xlane.xlu0 %5590
        %5592 = vadd.xlane.f32.xlu0 %v5529
        %v5593 = vpop.xlane.xlu0 %5592
        %5594 = vadd.xlane.f32.xlu0 %v5531
        %v5595 = vpop.xlane.xlu0 %5594
        %5596 = vadd.xlane.f32.xlu0 %v5533
        %v5597 = vpop.xlane.xlu0 %5596
        %5598 = vadd.xlane.f32.xlu0 %v5535
        %v5599 = vpop.xlane.xlu0 %5598
        %5600 = vadd.xlane.f32.xlu0 %v5537
        %v5601 = vpop.xlane.xlu0 %5600
        %5602 = vadd.xlane.f32.xlu0 %v5539
        %v5603 = vpop.xlane.xlu0 %5602
        %5604 = vadd.xlane.f32.xlu0 %v5541
        %v5605 = vpop.xlane.xlu0 %5604
        %5606 = vadd.xlane.f32.xlu0 %v5543
        %v5607 = vpop.xlane.xlu0 %5606
        %5608 = vadd.xlane.f32.xlu0 %v5545
        %v5609 = vpop.xlane.xlu0 %5608
        %5610 = vadd.xlane.f32.xlu0 %v5547
        %v5611 = vpop.xlane.xlu0 %5610
        %5612 = vadd.xlane.f32.xlu0 %v5549
        %v5613 = vpop.xlane.xlu0 %5612
        %5614 = vadd.xlane.f32.xlu0 %v5551
        %v5615 = vpop.xlane.xlu0 %5614
        %5616 = vadd.xlane.f32.xlu0 %v5553
        %v5617 = vpop.xlane.xlu0 %5616
        %5618 = vadd.xlane.f32.xlu0 %v5555
        %v5619 = vpop.xlane.xlu0 %5618
        %5620 = vadd.xlane.f32.xlu0 %v5557
        %v5621 = vpop.xlane.xlu0 %5620
        %5622 = vadd.xlane.f32.xlu0 %v5559
        %v5623 = vpop.xlane.xlu0 %5622
        %5624 = vadd.xlane.f32.xlu0 %v5561
        %v5625 = vpop.xlane.xlu0 %5624
        %5626 = vadd.xlane.f32.xlu0 %v5563
        %v5627 = vpop.xlane.xlu0 %5626
        %5628 = vadd.xlane.f32.xlu0 %v5565
        %v5629 = vpop.xlane.xlu0 %5628
        %5630 = vadd.xlane.f32.xlu0 %v5567
        %v5631 = vpop.xlane.xlu0 %5630
        %5632 = vadd.xlane.f32.xlu0 %v5569
        %v5633 = vpop.xlane.xlu0 %5632
        %5634 = vadd.xlane.f32.xlu0 %v5571
        %v5635 = vpop.xlane.xlu0 %5634
        %5636 = vadd.xlane.f32.xlu0 %v5573
        %v5637 = vpop.xlane.xlu0 %5636
        %5638 = vadd.xlane.f32.xlu0 %v5575
        %v5639 = vpop.xlane.xlu0 %5638
        %5640 = vadd.xlane.f32.xlu0 %v5577
        %v5641 = vpop.xlane.xlu0 %5640
        %5642 = vadd.xlane.f32.xlu0 %v5579
        %v5643 = vpop.xlane.xlu0 %5642
        %5644 = vadd.xlane.f32.xlu0 %v5581
        %v5645 = vpop.xlane.xlu0 %5644
        %5646 = vadd.xlane.f32.xlu0 %v5583
        %v5647 = vpop.xlane.xlu0 %5646
        %5648 = vadd.xlane.f32.xlu0 %v5585
        %v5649 = vpop.xlane.xlu0 %5648
        %5650 = vadd.xlane.f32.xlu0 %v5587
        %v5651 = vpop.xlane.xlu0 %5650
        %v5652 = vrcp.pop %v5589
        %v5653 = vrcp.pop %v5591
        %v5654 = vrcp.pop %v5593
        %v5655 = vrcp.pop %v5595
        %v5656 = vrcp.pop %v5597
        %v5657 = vrcp.pop %v5599
        %v5658 = vrcp.pop %v5601
        %v5659 = vrcp.pop %v5603
        %v5660 = vrcp.pop %v5605
        %v5661 = vrcp.pop %v5607
        %v5662 = vrcp.pop %v5609
        %v5663 = vrcp.pop %v5611
        %v5664 = vrcp.pop %v5613
        %v5665 = vrcp.pop %v5615
        %v5666 = vrcp.pop %v5617
        %v5667 = vrcp.pop %v5619
        %v5668 = vrcp.pop %v5621
        %v5669 = vrcp.pop %v5623
        %v5670 = vrcp.pop %v5625
        %v5671 = vrcp.pop %v5627
        %v5672 = vrcp.pop %v5629
        %v5673 = vrcp.pop %v5631
        %v5674 = vrcp.pop %v5633
        %v5675 = vrcp.pop %v5635
        %v5676 = vrcp.pop %v5637
        %v5677 = vrcp.pop %v5639
        %v5678 = vrcp.pop %v5641
        %v5679 = vrcp.pop %v5643
        %v5680 = vrcp.pop %v5645
        %v5681 = vrcp.pop %v5647
        %v5682 = vrcp.pop %v5649
        %v5683 = vrcp.pop %v5651
        %v5684 = vmul.f32 %v5525, %v5652
        %v5685 = vmul.f32 %v5527, %v5653
        %v5686 = vmul.f32 %v5529, %v5654
        %v5687 = vmul.f32 %v5531, %v5655
        %v5688 = vmul.f32 %v5533, %v5656
        %v5689 = vmul.f32 %v5535, %v5657
        %v5690 = vmul.f32 %v5537, %v5658
        %v5691 = vmul.f32 %v5539, %v5659
        %v5692 = vmul.f32 %v5541, %v5660
        %v5693 = vmul.f32 %v5543, %v5661
        %v5694 = vmul.f32 %v5545, %v5662
        %v5695 = vmul.f32 %v5547, %v5663
        %v5696 = vmul.f32 %v5549, %v5664
        %v5697 = vmul.f32 %v5551, %v5665
        %v5698 = vmul.f32 %v5553, %v5666
        %v5699 = vmul.f32 %v5555, %v5667
        %v5700 = vmul.f32 %v5557, %v5668
        %v5701 = vmul.f32 %v5559, %v5669
        %v5702 = vmul.f32 %v5561, %v5670
        %v5703 = vmul.f32 %v5563, %v5671
        %v5704 = vmul.f32 %v5565, %v5672
        %v5705 = vmul.f32 %v5567, %v5673
        %v5706 = vmul.f32 %v5569, %v5674
        %v5707 = vmul.f32 %v5571, %v5675
        %v5708 = vmul.f32 %v5573, %v5676
        %v5709 = vmul.f32 %v5575, %v5677
        %v5710 = vmul.f32 %v5577, %v5678
        %v5711 = vmul.f32 %v5579, %v5679
        %v5712 = vmul.f32 %v5581, %v5680
        %v5713 = vmul.f32 %v5583, %v5681
        %v5714 = vmul.f32 %v5585, %v5682
        %v5715 = vmul.f32 %v5587, %v5683
        %v5716 = vpack.c.bf16 %v5685, %v5684
        %v5717 = vpack.c.bf16 %v5687, %v5686
        %v5718 = vpack.c.bf16 %v5689, %v5688
        %v5719 = vpack.c.bf16 %v5691, %v5690
        %v5720 = vpack.c.bf16 %v5693, %v5692
        %v5721 = vpack.c.bf16 %v5695, %v5694
        %v5722 = vpack.c.bf16 %v5697, %v5696
        %v5723 = vpack.c.bf16 %v5699, %v5698
        %v5724 = vpack.c.bf16 %v5701, %v5700
        %v5725 = vpack.c.bf16 %v5703, %v5702
        %v5726 = vpack.c.bf16 %v5705, %v5704
        %v5727 = vpack.c.bf16 %v5707, %v5706
        %v5728 = vpack.c.bf16 %v5709, %v5708
        %v5729 = vpack.c.bf16 %v5711, %v5710
        %v5730 = vpack.c.bf16 %v5713, %v5712
        %v5731 = vpack.c.bf16 %v5715, %v5714
        %5732 = vmatprep.subr.bf16.mxu0 0
        %5733 = vmatpush1.bf16.msra.mxu0 %v4481
        %5734 = vmatprep.subr.bf16.mxu0 0
        %5735 = vmatpush1.bf16.msra.mxu0 %v4483
        %5736 = vmatprep.subr.bf16.mxu0 0
        %5737 = vmatpush1.bf16.msra.mxu0 %v4485
        %5738 = vmatprep.subr.bf16.mxu0 0
        %5739 = vmatpush1.bf16.msra.mxu0 %v4487
        %5740 = vmatprep.subr.bf16.mxu0 0
        %5741 = vmatpush1.bf16.msra.mxu0 %v4489
        %5742 = vmatprep.subr.bf16.mxu0 0
        %5743 = vmatpush1.bf16.msra.mxu0 %v4491
        %5744 = vmatprep.subr.bf16.mxu0 0
        %5745 = vmatpush1.bf16.msra.mxu0 %v4493
        %5746 = vmatprep.subr.bf16.mxu0 0
        %5747 = vmatpush1.bf16.msra.mxu0 %v4495
        %5748 = vmatprep.subr.bf16.mxu0 0
        %5749 = vmatpush1.bf16.msra.mxu0 0
        %5750 = vmatprep.subr.bf16.mxu0 0
        %5751 = vmatpush1.bf16.msra.mxu0 0
        %5752 = vmatprep.subr.bf16.mxu0 0
        %5753 = vmatpush1.bf16.msra.mxu0 0
        %5754 = vmatprep.subr.bf16.mxu0 0
        %5755 = vmatpush1.bf16.msra.mxu0 0
        %5756 = vmatprep.subr.bf16.mxu0 0
        %5757 = vmatpush1.bf16.msra.mxu0 0
        %5758 = vmatprep.subr.bf16.mxu0 0
        %5759 = vmatpush1.bf16.msra.mxu0 0
        %5760 = vmatprep.subr.bf16.mxu0 0
        %5761 = vmatpush1.bf16.msra.mxu0 0
        %5762 = vmatprep.subr.bf16.mxu0 0
        %5763 = vmatpush1.bf16.msra.mxu0 0
        %5764 = vmatprep.mubr.bf16.mxu0 0
        %5765 = vmatmul.mubr.bf16.gmra.mrb[0].mxu0 %v5716
        %v5766 = vpop.f32.mrb[0].mxu0
        %v5767 = vadd.f32 0.0, %v5766
        %v5768 = vpop.f32.mrb[0].mxu0
        %v5769 = vpop.f32.mrb[0].mxu0
        %v5770 = vadd.f32 0.0, %v5769
        %v5771 = vpop.f32.mrb[0].mxu0
        %5772 = vmatprep.mubr.bf16.mxu0 0
        %5773 = vmatmul.mubr.bf16.gmra.mrb[0].mxu0 %v5717
        %v5774 = vpop.f32.mrb[0].mxu0
        %v5775 = vadd.f32 0.0, %v5774
        %v5776 = vpop.f32.mrb[0].mxu0
        %v5777 = vpop.f32.mrb[0].mxu0
        %v5778 = vadd.f32 0.0, %v5777
        %v5779 = vpop.f32.mrb[0].mxu0
        %5780 = vmatprep.mubr.bf16.mxu0 0
        %5781 = vmatmul.mubr.bf16.gmra.mrb[0].mxu0 %v5718
        %v5782 = vpop.f32.mrb[0].mxu0
        %v5783 = vadd.f32 0.0, %v5782
        %v5784 = vpop.f32.mrb[0].mxu0
        %v5785 = vpop.f32.mrb[0].mxu0
        %v5786 = vadd.f32 0.0, %v5785
        %v5787 = vpop.f32.mrb[0].mxu0
        %5788 = vmatprep.mubr.bf16.mxu0 0
        %5789 = vmatmul.mubr.bf16.gmra.mrb[0].mxu0 %v5719
        %v5790 = vpop.f32.mrb[0].mxu0
        %v5791 = vadd.f32 0.0, %v5790
        %v5792 = vpop.f32.mrb[0].mxu0
        %v5793 = vpop.f32.mrb[0].mxu0
        %v5794 = vadd.f32 0.0, %v5793
        %v5795 = vpop.f32.mrb[0].mxu0
        %5796 = vmatprep.mubr.bf16.mxu0 0
        %5797 = vmatmul.mubr.bf16.gmra.mrb[0].mxu0 %v5720
        %v5798 = vpop.f32.mrb[0].mxu0
        %v5799 = vadd.f32 0.0, %v5798
        %v5800 = vpop.f32.mrb[0].mxu0
        %v5801 = vpop.f32.mrb[0].mxu0
        %v5802 = vadd.f32 0.0, %v5801
        %v5803 = vpop.f32.mrb[0].mxu0
        %5804 = vmatprep.mubr.bf16.mxu0 0
        %5805 = vmatmul.mubr.bf16.gmra.mrb[0].mxu0 %v5721
        %v5806 = vpop.f32.mrb[0].mxu0
        %v5807 = vadd.f32 0.0, %v5806
        %v5808 = vpop.f32.mrb[0].mxu0
        %v5809 = vpop.f32.mrb[0].mxu0
        %v5810 = vadd.f32 0.0, %v5809
        %v5811 = vpop.f32.mrb[0].mxu0
        %5812 = vmatprep.mubr.bf16.mxu0 0
        %5813 = vmatmul.mubr.bf16.gmra.mrb[0].mxu0 %v5722
        %v5814 = vpop.f32.mrb[0].mxu0
        %v5815 = vadd.f32 0.0, %v5814
        %v5816 = vpop.f32.mrb[0].mxu0
        %v5817 = vpop.f32.mrb[0].mxu0
        %v5818 = vadd.f32 0.0, %v5817
        %v5819 = vpop.f32.mrb[0].mxu0
        %5820 = vmatprep.mubr.bf16.mxu0 0
        %5821 = vmatmul.mubr.bf16.gmra.mrb[0].mxu0 %v5723
        %v5822 = vpop.f32.mrb[0].mxu0
        %v5823 = vadd.f32 0.0, %v5822
        %v5824 = vpop.f32.mrb[0].mxu0
        %v5825 = vpop.f32.mrb[0].mxu0
        %v5826 = vadd.f32 0.0, %v5825
        %v5827 = vpop.f32.mrb[0].mxu0
        %5828 = vmatprep.mubr.bf16.mxu0 0
        %5829 = vmatmul.mubr.bf16.gmra.mrb[0].mxu0 %v5724
        %v5830 = vpop.f32.mrb[0].mxu0
        %v5831 = vadd.f32 0.0, %v5830
        %v5832 = vpop.f32.mrb[0].mxu0
        %v5833 = vpop.f32.mrb[0].mxu0
        %v5834 = vadd.f32 0.0, %v5833
        %v5835 = vpop.f32.mrb[0].mxu0
        %5836 = vmatprep.mubr.bf16.mxu0 0
        %5837 = vmatmul.mubr.bf16.gmra.mrb[0].mxu0 %v5725
        %v5838 = vpop.f32.mrb[0].mxu0
        %v5839 = vadd.f32 0.0, %v5838
        %v5840 = vpop.f32.mrb[0].mxu0
        %v5841 = vpop.f32.mrb[0].mxu0
        %v5842 = vadd.f32 0.0, %v5841
        %v5843 = vpop.f32.mrb[0].mxu0
        %5844 = vmatprep.mubr.bf16.mxu0 0
        %5845 = vmatmul.mubr.bf16.gmra.mrb[0].mxu0 %v5726
        %v5846 = vpop.f32.mrb[0].mxu0
        %v5847 = vadd.f32 0.0, %v5846
        %v5848 = vpop.f32.mrb[0].mxu0
        %v5849 = vpop.f32.mrb[0].mxu0
        %v5850 = vadd.f32 0.0, %v5849
        %v5851 = vpop.f32.mrb[0].mxu0
        %5852 = vmatprep.mubr.bf16.mxu0 0
        %5853 = vmatmul.mubr.bf16.gmra.mrb[0].mxu0 %v5727
        %v5854 = vpop.f32.mrb[0].mxu0
        %v5855 = vadd.f32 0.0, %v5854
        %v5856 = vpop.f32.mrb[0].mxu0
        %v5857 = vpop.f32.mrb[0].mxu0
        %v5858 = vadd.f32 0.0, %v5857
        %v5859 = vpop.f32.mrb[0].mxu0
        %5860 = vmatprep.mubr.bf16.mxu0 0
        %5861 = vmatmul.mubr.bf16.gmra.mrb[0].mxu0 %v5728
        %v5862 = vpop.f32.mrb[0].mxu0
        %v5863 = vadd.f32 0.0, %v5862
        %v5864 = vpop.f32.mrb[0].mxu0
        %v5865 = vpop.f32.mrb[0].mxu0
        %v5866 = vadd.f32 0.0, %v5865
        %v5867 = vpop.f32.mrb[0].mxu0
        %5868 = vmatprep.mubr.bf16.mxu0 0
        %5869 = vmatmul.mubr.bf16.gmra.mrb[0].mxu0 %v5729
        %v5870 = vpop.f32.mrb[0].mxu0
        %v5871 = vadd.f32 0.0, %v5870
        %v5872 = vpop.f32.mrb[0].mxu0
        %v5873 = vpop.f32.mrb[0].mxu0
        %v5874 = vadd.f32 0.0, %v5873
        %v5875 = vpop.f32.mrb[0].mxu0
        %5876 = vmatprep.mubr.bf16.mxu0 0
        %5877 = vmatmul.mubr.bf16.gmra.mrb[0].mxu0 %v5730
        %v5878 = vpop.f32.mrb[0].mxu0
        %v5879 = vadd.f32 0.0, %v5878
        %v5880 = vpop.f32.mrb[0].mxu0
        %v5881 = vpop.f32.mrb[0].mxu0
        %v5882 = vadd.f32 0.0, %v5881
        %v5883 = vpop.f32.mrb[0].mxu0
        %5884 = vmatprep.mubr.bf16.mxu0 0
        %5885 = vmatmul.mubr.bf16.gmra.mrb[0].mxu0 %v5731
        %v5886 = vpop.f32.mrb[0].mxu0
        %v5887 = vadd.f32 0.0, %v5886
        %v5888 = vpop.f32.mrb[0].mxu0
        %v5889 = vpop.f32.mrb[0].mxu0
        %v5890 = vadd.f32 0.0, %v5889
        %v5891 = vpop.f32.mrb[0].mxu0
        %5892 = vdwg.mxu0
        %v5893 = vpack.c.bf16 %v5770, %v5767
        %v5894 = vpack.c.bf16 %v5778, %v5775
        %v5895 = vpack.c.bf16 %v5786, %v5783
        %v5896 = vpack.c.bf16 %v5794, %v5791
        %v5897 = vpack.c.bf16 %v5802, %v5799
        %v5898 = vpack.c.bf16 %v5810, %v5807
        %v5899 = vpack.c.bf16 %v5818, %v5815
        %v5900 = vpack.c.bf16 %v5826, %v5823
        %v5901 = vpack.c.bf16 %v5834, %v5831
        %v5902 = vpack.c.bf16 %v5842, %v5839
        %v5903 = vpack.c.bf16 %v5850, %v5847
        %v5904 = vpack.c.bf16 %v5858, %v5855
        %v5905 = vpack.c.bf16 %v5866, %v5863
        %v5906 = vpack.c.bf16 %v5874, %v5871
        %v5907 = vpack.c.bf16 %v5882, %v5879
        %v5908 = vpack.c.bf16 %v5890, %v5887
        %v5909 = vld [vmem:[#allocation8] sm:$0xff]
        %v5910 = vld [vmem:[#allocation8 + $0x8] sm:$0xff]
        %v5911 = vld [vmem:[#allocation8 + $0x10] sm:$0xff]
        %v5912 = vld [vmem:[#allocation8 + $0x18] sm:$0xff]
        %v5913 = vld [vmem:[#allocation8 + $0x20] sm:$0xff]
        %v5914 = vld [vmem:[#allocation8 + $0x28] sm:$0xff]
        %v5915 = vld [vmem:[#allocation8 + $0x30] sm:$0xff]
        %v5916 = vld [vmem:[#allocation8 + $0x38] sm:$0xff]
        %v5917 = vld [vmem:[#allocation8 + $0x40] sm:$0xff]
        %v5918 = vld [vmem:[#allocation8 + $0x48] sm:$0xff]
        %v5919 = vld [vmem:[#allocation8 + $0x50] sm:$0xff]
        %v5920 = vld [vmem:[#allocation8 + $0x58] sm:$0xff]
        %v5921 = vld [vmem:[#allocation8 + $0x60] sm:$0xff]
        %v5922 = vld [vmem:[#allocation8 + $0x68] sm:$0xff]
        %v5923 = vld [vmem:[#allocation8 + $0x70] sm:$0xff]
        %v5924 = vld [vmem:[#allocation8 + $0x78] sm:$0xff]
        %v5925 = vld [vmem:[#allocation8 + $0x80] sm:$0xff]
        %v5926 = vld [vmem:[#allocation8 + $0x88] sm:$0xff]
        %v5927 = vld [vmem:[#allocation8 + $0x90] sm:$0xff]
        %v5928 = vld [vmem:[#allocation8 + $0x98] sm:$0xff]
        %v5929 = vld [vmem:[#allocation8 + $0xa0] sm:$0xff]
        %v5930 = vld [vmem:[#allocation8 + $0xa8] sm:$0xff]
        %v5931 = vld [vmem:[#allocation8 + $0xb0] sm:$0xff]
        %v5932 = vld [vmem:[#allocation8 + $0xb8] sm:$0xff]
        %v5933 = vld [vmem:[#allocation8 + $0xc0] sm:$0xff]
        %v5934 = vld [vmem:[#allocation8 + $0xc8] sm:$0xff]
        %v5935 = vld [vmem:[#allocation8 + $0xd0] sm:$0xff]
        %v5936 = vld [vmem:[#allocation8 + $0xd8] sm:$0xff]
        %v5937 = vld [vmem:[#allocation8 + $0xe0] sm:$0xff]
        %v5938 = vld [vmem:[#allocation8 + $0xe8] sm:$0xff]
        %v5939 = vld [vmem:[#allocation8 + $0xf0] sm:$0xff]
        %v5940 = vld [vmem:[#allocation8 + $0xf8] sm:$0xff]
        %v5941 = vld [vmem:[#allocation8 + $0x100] sm:$0xff]
        %v5942 = vld [vmem:[#allocation8 + $0x108] sm:$0xff]
        %v5943 = vld [vmem:[#allocation8 + $0x110] sm:$0xff]
        %v5944 = vld [vmem:[#allocation8 + $0x118] sm:$0xff]
        %v5945 = vld [vmem:[#allocation8 + $0x120] sm:$0xff]
        %v5946 = vld [vmem:[#allocation8 + $0x128] sm:$0xff]
        %v5947 = vld [vmem:[#allocation8 + $0x130] sm:$0xff]
        %v5948 = vld [vmem:[#allocation8 + $0x138] sm:$0xff]
        %v5949 = vld [vmem:[#allocation8 + $0x140] sm:$0xff]
        %v5950 = vld [vmem:[#allocation8 + $0x148] sm:$0xff]
        %v5951 = vld [vmem:[#allocation8 + $0x150] sm:$0xff]
        %v5952 = vld [vmem:[#allocation8 + $0x158] sm:$0xff]
        %v5953 = vld [vmem:[#allocation8 + $0x160] sm:$0xff]
        %v5954 = vld [vmem:[#allocation8 + $0x168] sm:$0xff]
        %v5955 = vld [vmem:[#allocation8 + $0x170] sm:$0xff]
        %v5956 = vld [vmem:[#allocation8 + $0x178] sm:$0xff]
        %v5957 = vld [vmem:[#allocation8 + $0x180] sm:$0xff]
        %v5958 = vld [vmem:[#allocation8 + $0x188] sm:$0xff]
        %v5959 = vld [vmem:[#allocation8 + $0x190] sm:$0xff]
        %v5960 = vld [vmem:[#allocation8 + $0x198] sm:$0xff]
        %v5961 = vld [vmem:[#allocation8 + $0x1a0] sm:$0xff]
        %v5962 = vld [vmem:[#allocation8 + $0x1a8] sm:$0xff]
        %v5963 = vld [vmem:[#allocation8 + $0x1b0] sm:$0xff]
        %v5964 = vld [vmem:[#allocation8 + $0x1b8] sm:$0xff]
        %v5965 = vld [vmem:[#allocation8 + $0x1c0] sm:$0xff]
        %v5966 = vld [vmem:[#allocation8 + $0x1c8] sm:$0xff]
        %v5967 = vld [vmem:[#allocation8 + $0x1d0] sm:$0xff]
        %v5968 = vld [vmem:[#allocation8 + $0x1d8] sm:$0xff]
        %v5969 = vld [vmem:[#allocation8 + $0x1e0] sm:$0xff]
        %v5970 = vld [vmem:[#allocation8 + $0x1e8] sm:$0xff]
        %v5971 = vld [vmem:[#allocation8 + $0x1f0] sm:$0xff]
        %v5972 = vld [vmem:[#allocation8 + $0x1f8] sm:$0xff]
        %v5973 = vld [vmem:[#allocation8 + $0x200] sm:$0xff]
        %v5974 = vld [vmem:[#allocation8 + $0x208] sm:$0xff]
        %v5975 = vld [vmem:[#allocation8 + $0x210] sm:$0xff]
        %v5976 = vld [vmem:[#allocation8 + $0x218] sm:$0xff]
        %v5977 = vld [vmem:[#allocation8 + $0x220] sm:$0xff]
        %v5978 = vld [vmem:[#allocation8 + $0x228] sm:$0xff]
        %v5979 = vld [vmem:[#allocation8 + $0x230] sm:$0xff]
        %v5980 = vld [vmem:[#allocation8 + $0x238] sm:$0xff]
        %v5981 = vld [vmem:[#allocation8 + $0x240] sm:$0xff]
        %v5982 = vld [vmem:[#allocation8 + $0x248] sm:$0xff]
        %v5983 = vld [vmem:[#allocation8 + $0x250] sm:$0xff]
        %v5984 = vld [vmem:[#allocation8 + $0x258] sm:$0xff]
        %v5985 = vld [vmem:[#allocation8 + $0x260] sm:$0xff]
        %v5986 = vld [vmem:[#allocation8 + $0x268] sm:$0xff]
        %v5987 = vld [vmem:[#allocation8 + $0x270] sm:$0xff]
        %v5988 = vld [vmem:[#allocation8 + $0x278] sm:$0xff]
        %v5989 = vld [vmem:[#allocation8 + $0x280] sm:$0xff]
        %v5990 = vld [vmem:[#allocation8 + $0x288] sm:$0xff]
        %v5991 = vld [vmem:[#allocation8 + $0x290] sm:$0xff]
        %v5992 = vld [vmem:[#allocation8 + $0x298] sm:$0xff]
        %v5993 = vld [vmem:[#allocation8 + $0x2a0] sm:$0xff]
        %v5994 = vld [vmem:[#allocation8 + $0x2a8] sm:$0xff]
        %v5995 = vld [vmem:[#allocation8 + $0x2b0] sm:$0xff]
        %v5996 = vld [vmem:[#allocation8 + $0x2b8] sm:$0xff]
        %v5997 = vld [vmem:[#allocation8 + $0x2c0] sm:$0xff]
        %v5998 = vld [vmem:[#allocation8 + $0x2c8] sm:$0xff]
        %v5999 = vld [vmem:[#allocation8 + $0x2d0] sm:$0xff]
        %v6000 = vld [vmem:[#allocation8 + $0x2d8] sm:$0xff]
        %v6001 = vld [vmem:[#allocation8 + $0x2e0] sm:$0xff]
        %v6002 = vld [vmem:[#allocation8 + $0x2e8] sm:$0xff]
        %v6003 = vld [vmem:[#allocation8 + $0x2f0] sm:$0xff]
        %v6004 = vld [vmem:[#allocation8 + $0x2f8] sm:$0xff]
        %v6005 = vld [vmem:[#allocation8 + $0x300] sm:$0xff]
        %v6006 = vld [vmem:[#allocation8 + $0x308] sm:$0xff]
        %v6007 = vld [vmem:[#allocation8 + $0x310] sm:$0xff]
        %v6008 = vld [vmem:[#allocation8 + $0x318] sm:$0xff]
        %v6009 = vld [vmem:[#allocation8 + $0x320] sm:$0xff]
        %v6010 = vld [vmem:[#allocation8 + $0x328] sm:$0xff]
        %v6011 = vld [vmem:[#allocation8 + $0x330] sm:$0xff]
        %v6012 = vld [vmem:[#allocation8 + $0x338] sm:$0xff]
        %v6013 = vld [vmem:[#allocation8 + $0x340] sm:$0xff]
        %v6014 = vld [vmem:[#allocation8 + $0x348] sm:$0xff]
        %v6015 = vld [vmem:[#allocation8 + $0x350] sm:$0xff]
        %v6016 = vld [vmem:[#allocation8 + $0x358] sm:$0xff]
        %v6017 = vld [vmem:[#allocation8 + $0x360] sm:$0xff]
        %v6018 = vld [vmem:[#allocation8 + $0x368] sm:$0xff]
        %v6019 = vld [vmem:[#allocation8 + $0x370] sm:$0xff]
        %v6020 = vld [vmem:[#allocation8 + $0x378] sm:$0xff]
        %v6021 = vld [vmem:[#allocation8 + $0x380] sm:$0xff]
        %v6022 = vld [vmem:[#allocation8 + $0x388] sm:$0xff]
        %v6023 = vld [vmem:[#allocation8 + $0x390] sm:$0xff]
        %v6024 = vld [vmem:[#allocation8 + $0x398] sm:$0xff]
        %v6025 = vld [vmem:[#allocation8 + $0x3a0] sm:$0xff]
        %v6026 = vld [vmem:[#allocation8 + $0x3a8] sm:$0xff]
        %v6027 = vld [vmem:[#allocation8 + $0x3b0] sm:$0xff]
        %v6028 = vld [vmem:[#allocation8 + $0x3b8] sm:$0xff]
        %v6029 = vld [vmem:[#allocation8 + $0x3c0] sm:$0xff]
        %v6030 = vld [vmem:[#allocation8 + $0x3c8] sm:$0xff]
        %v6031 = vld [vmem:[#allocation8 + $0x3d0] sm:$0xff]
        %v6032 = vld [vmem:[#allocation8 + $0x3d8] sm:$0xff]
        %v6033 = vld [vmem:[#allocation8 + $0x3e0] sm:$0xff]
        %v6034 = vld [vmem:[#allocation8 + $0x3e8] sm:$0xff]
        %v6035 = vld [vmem:[#allocation8 + $0x3f0] sm:$0xff]
        %v6036 = vld [vmem:[#allocation8 + $0x3f8] sm:$0xff]
        %v6037 = vld [vmem:[%s4] sm:$0xf]
        %v6039 = vlaneseq
        %v6040 = vshrl.u32 %v6039, 7
        %v6041 = vsub.s32 0, %v6040
        %v6042 = vrot.slane %v6037, %v6041
        %v6043 = vlaneseq
        %v6044 = vshrl.u32 %v6043, 7
        %v6045 = vsub.s32 1, %v6044
        %v6046 = vrot.slane %v6037, %v6045
        %v6047 = vlaneseq
        %v6048 = vshrl.u32 %v6047, 7
        %v6049 = vsub.s32 2, %v6048
        %v6050 = vrot.slane %v6037, %v6049
        %v6051 = vlaneseq
        %v6052 = vshrl.u32 %v6051, 7
        %v6053 = vsub.s32 3, %v6052
        %v6054 = vrot.slane %v6037, %v6053
        %v6187 = vunpack.c.l.b16 %v5909
        %v6188 = vunpack.c.h.b16 %v5909
        %v6189 = vunpack.c.l.b16 %v5910
        %v6190 = vunpack.c.h.b16 %v5910
        %v6191 = vunpack.c.l.b16 %v5911
        %v6192 = vunpack.c.h.b16 %v5911
        %v6193 = vunpack.c.l.b16 %v5912
        %v6194 = vunpack.c.h.b16 %v5912
        %v6195 = vunpack.c.l.b16 %v5913
        %v6196 = vunpack.c.h.b16 %v5913
        %v6197 = vunpack.c.l.b16 %v5914
        %v6198 = vunpack.c.h.b16 %v5914
        %v6199 = vunpack.c.l.b16 %v5915
        %v6200 = vunpack.c.h.b16 %v5915
        %v6201 = vunpack.c.l.b16 %v5916
        %v6202 = vunpack.c.h.b16 %v5916
        %v6203 = vunpack.c.l.b16 %v5917
        %v6204 = vunpack.c.h.b16 %v5917
        %v6205 = vunpack.c.l.b16 %v5918
        %v6206 = vunpack.c.h.b16 %v5918
        %v6207 = vunpack.c.l.b16 %v5919
        %v6208 = vunpack.c.h.b16 %v5919
        %v6209 = vunpack.c.l.b16 %v5920
        %v6210 = vunpack.c.h.b16 %v5920
        %v6211 = vunpack.c.l.b16 %v5921
        %v6212 = vunpack.c.h.b16 %v5921
        %v6213 = vunpack.c.l.b16 %v5922
        %v6214 = vunpack.c.h.b16 %v5922
        %v6215 = vunpack.c.l.b16 %v5923
        %v6216 = vunpack.c.h.b16 %v5923
        %v6217 = vunpack.c.l.b16 %v5924
        %v6218 = vunpack.c.h.b16 %v5924
        %v6219 = vunpack.c.l.b16 %v5925
        %v6220 = vunpack.c.h.b16 %v5925
        %v6221 = vunpack.c.l.b16 %v5926
        %v6222 = vunpack.c.h.b16 %v5926
        %v6223 = vunpack.c.l.b16 %v5927
        %v6224 = vunpack.c.h.b16 %v5927
        %v6225 = vunpack.c.l.b16 %v5928
        %v6226 = vunpack.c.h.b16 %v5928
        %v6227 = vunpack.c.l.b16 %v5929
        %v6228 = vunpack.c.h.b16 %v5929
        %v6229 = vunpack.c.l.b16 %v5930
        %v6230 = vunpack.c.h.b16 %v5930
        %v6231 = vunpack.c.l.b16 %v5931
        %v6232 = vunpack.c.h.b16 %v5931
        %v6233 = vunpack.c.l.b16 %v5932
        %v6234 = vunpack.c.h.b16 %v5932
        %v6235 = vunpack.c.l.b16 %v5933
        %v6236 = vunpack.c.h.b16 %v5933
        %v6237 = vunpack.c.l.b16 %v5934
        %v6238 = vunpack.c.h.b16 %v5934
        %v6239 = vunpack.c.l.b16 %v5935
        %v6240 = vunpack.c.h.b16 %v5935
        %v6241 = vunpack.c.l.b16 %v5936
        %v6242 = vunpack.c.h.b16 %v5936
        %v6243 = vunpack.c.l.b16 %v5937
        %v6244 = vunpack.c.h.b16 %v5937
        %v6245 = vunpack.c.l.b16 %v5938
        %v6246 = vunpack.c.h.b16 %v5938
        %v6247 = vunpack.c.l.b16 %v5939
        %v6248 = vunpack.c.h.b16 %v5939
        %v6249 = vunpack.c.l.b16 %v5940
        %v6250 = vunpack.c.h.b16 %v5940
        %v6251 = vunpack.c.l.b16 %v5941
        %v6252 = vunpack.c.h.b16 %v5941
        %v6253 = vunpack.c.l.b16 %v5942
        %v6254 = vunpack.c.h.b16 %v5942
        %v6255 = vunpack.c.l.b16 %v5943
        %v6256 = vunpack.c.h.b16 %v5943
        %v6257 = vunpack.c.l.b16 %v5944
        %v6258 = vunpack.c.h.b16 %v5944
        %v6259 = vunpack.c.l.b16 %v5945
        %v6260 = vunpack.c.h.b16 %v5945
        %v6261 = vunpack.c.l.b16 %v5946
        %v6262 = vunpack.c.h.b16 %v5946
        %v6263 = vunpack.c.l.b16 %v5947
        %v6264 = vunpack.c.h.b16 %v5947
        %v6265 = vunpack.c.l.b16 %v5948
        %v6266 = vunpack.c.h.b16 %v5948
        %v6267 = vunpack.c.l.b16 %v5949
        %v6268 = vunpack.c.h.b16 %v5949
        %v6269 = vunpack.c.l.b16 %v5950
        %v6270 = vunpack.c.h.b16 %v5950
        %v6271 = vunpack.c.l.b16 %v5951
        %v6272 = vunpack.c.h.b16 %v5951
        %v6273 = vunpack.c.l.b16 %v5952
        %v6274 = vunpack.c.h.b16 %v5952
        %v6275 = vunpack.c.l.b16 %v5953
        %v6276 = vunpack.c.h.b16 %v5953
        %v6277 = vunpack.c.l.b16 %v5954
        %v6278 = vunpack.c.h.b16 %v5954
        %v6279 = vunpack.c.l.b16 %v5955
        %v6280 = vunpack.c.h.b16 %v5955
        %v6281 = vunpack.c.l.b16 %v5956
        %v6282 = vunpack.c.h.b16 %v5956
        %v6283 = vunpack.c.l.b16 %v5957
        %v6284 = vunpack.c.h.b16 %v5957
        %v6285 = vunpack.c.l.b16 %v5958
        %v6286 = vunpack.c.h.b16 %v5958
        %v6287 = vunpack.c.l.b16 %v5959
        %v6288 = vunpack.c.h.b16 %v5959
        %v6289 = vunpack.c.l.b16 %v5960
        %v6290 = vunpack.c.h.b16 %v5960
        %v6291 = vunpack.c.l.b16 %v5961
        %v6292 = vunpack.c.h.b16 %v5961
        %v6293 = vunpack.c.l.b16 %v5962
        %v6294 = vunpack.c.h.b16 %v5962
        %v6295 = vunpack.c.l.b16 %v5963
        %v6296 = vunpack.c.h.b16 %v5963
        %v6297 = vunpack.c.l.b16 %v5964
        %v6298 = vunpack.c.h.b16 %v5964
        %v6299 = vunpack.c.l.b16 %v5965
        %v6300 = vunpack.c.h.b16 %v5965
        %v6301 = vunpack.c.l.b16 %v5966
        %v6302 = vunpack.c.h.b16 %v5966
        %v6303 = vunpack.c.l.b16 %v5967
        %v6304 = vunpack.c.h.b16 %v5967
        %v6305 = vunpack.c.l.b16 %v5968
        %v6306 = vunpack.c.h.b16 %v5968
        %v6307 = vunpack.c.l.b16 %v5969
        %v6308 = vunpack.c.h.b16 %v5969
        %v6309 = vunpack.c.l.b16 %v5970
        %v6310 = vunpack.c.h.b16 %v5970
        %v6311 = vunpack.c.l.b16 %v5971
        %v6312 = vunpack.c.h.b16 %v5971
        %v6313 = vunpack.c.l.b16 %v5972
        %v6314 = vunpack.c.h.b16 %v5972
        %v6315 = vunpack.c.l.b16 %v5973
        %v6316 = vunpack.c.h.b16 %v5973
        %v6317 = vunpack.c.l.b16 %v5974
        %v6318 = vunpack.c.h.b16 %v5974
        %v6319 = vunpack.c.l.b16 %v5975
        %v6320 = vunpack.c.h.b16 %v5975
        %v6321 = vunpack.c.l.b16 %v5976
        %v6322 = vunpack.c.h.b16 %v5976
        %v6323 = vunpack.c.l.b16 %v5977
        %v6324 = vunpack.c.h.b16 %v5977
        %v6325 = vunpack.c.l.b16 %v5978
        %v6326 = vunpack.c.h.b16 %v5978
        %v6327 = vunpack.c.l.b16 %v5979
        %v6328 = vunpack.c.h.b16 %v5979
        %v6329 = vunpack.c.l.b16 %v5980
        %v6330 = vunpack.c.h.b16 %v5980
        %v6331 = vunpack.c.l.b16 %v5981
        %v6332 = vunpack.c.h.b16 %v5981
        %v6333 = vunpack.c.l.b16 %v5982
        %v6334 = vunpack.c.h.b16 %v5982
        %v6335 = vunpack.c.l.b16 %v5983
        %v6336 = vunpack.c.h.b16 %v5983
        %v6337 = vunpack.c.l.b16 %v5984
        %v6338 = vunpack.c.h.b16 %v5984
        %v6339 = vunpack.c.l.b16 %v5985
        %v6340 = vunpack.c.h.b16 %v5985
        %v6341 = vunpack.c.l.b16 %v5986
        %v6342 = vunpack.c.h.b16 %v5986
        %v6343 = vunpack.c.l.b16 %v5987
        %v6344 = vunpack.c.h.b16 %v5987
        %v6345 = vunpack.c.l.b16 %v5988
        %v6346 = vunpack.c.h.b16 %v5988
        %v6347 = vunpack.c.l.b16 %v5989
        %v6348 = vunpack.c.h.b16 %v5989
        %v6349 = vunpack.c.l.b16 %v5990
        %v6350 = vunpack.c.h.b16 %v5990
        %v6351 = vunpack.c.l.b16 %v5991
        %v6352 = vunpack.c.h.b16 %v5991
        %v6353 = vunpack.c.l.b16 %v5992
        %v6354 = vunpack.c.h.b16 %v5992
        %v6355 = vunpack.c.l.b16 %v5993
        %v6356 = vunpack.c.h.b16 %v5993
        %v6357 = vunpack.c.l.b16 %v5994
        %v6358 = vunpack.c.h.b16 %v5994
        %v6359 = vunpack.c.l.b16 %v5995
        %v6360 = vunpack.c.h.b16 %v5995
        %v6361 = vunpack.c.l.b16 %v5996
        %v6362 = vunpack.c.h.b16 %v5996
        %v6363 = vunpack.c.l.b16 %v5997
        %v6364 = vunpack.c.h.b16 %v5997
        %v6365 = vunpack.c.l.b16 %v5998
        %v6366 = vunpack.c.h.b16 %v5998
        %v6367 = vunpack.c.l.b16 %v5999
        %v6368 = vunpack.c.h.b16 %v5999
        %v6369 = vunpack.c.l.b16 %v6000
        %v6370 = vunpack.c.h.b16 %v6000
        %v6371 = vunpack.c.l.b16 %v6001
        %v6372 = vunpack.c.h.b16 %v6001
        %v6373 = vunpack.c.l.b16 %v6002
        %v6374 = vunpack.c.h.b16 %v6002
        %v6375 = vunpack.c.l.b16 %v6003
        %v6376 = vunpack.c.h.b16 %v6003
        %v6377 = vunpack.c.l.b16 %v6004
        %v6378 = vunpack.c.h.b16 %v6004
        %v6379 = vunpack.c.l.b16 %v6005
        %v6380 = vunpack.c.h.b16 %v6005
        %v6381 = vunpack.c.l.b16 %v6006
        %v6382 = vunpack.c.h.b16 %v6006
        %v6383 = vunpack.c.l.b16 %v6007
        %v6384 = vunpack.c.h.b16 %v6007
        %v6385 = vunpack.c.l.b16 %v6008
        %v6386 = vunpack.c.h.b16 %v6008
        %v6387 = vunpack.c.l.b16 %v6009
        %v6388 = vunpack.c.h.b16 %v6009
        %v6389 = vunpack.c.l.b16 %v6010
        %v6390 = vunpack.c.h.b16 %v6010
        %v6391 = vunpack.c.l.b16 %v6011
        %v6392 = vunpack.c.h.b16 %v6011
        %v6393 = vunpack.c.l.b16 %v6012
        %v6394 = vunpack.c.h.b16 %v6012
        %v6395 = vunpack.c.l.b16 %v6013
        %v6396 = vunpack.c.h.b16 %v6013
        %v6397 = vunpack.c.l.b16 %v6014
        %v6398 = vunpack.c.h.b16 %v6014
        %v6399 = vunpack.c.l.b16 %v6015
        %v6400 = vunpack.c.h.b16 %v6015
        %v6401 = vunpack.c.l.b16 %v6016
        %v6402 = vunpack.c.h.b16 %v6016
        %v6403 = vunpack.c.l.b16 %v6017
        %v6404 = vunpack.c.h.b16 %v6017
        %v6405 = vunpack.c.l.b16 %v6018
        %v6406 = vunpack.c.h.b16 %v6018
        %v6407 = vunpack.c.l.b16 %v6019
        %v6408 = vunpack.c.h.b16 %v6019
        %v6409 = vunpack.c.l.b16 %v6020
        %v6410 = vunpack.c.h.b16 %v6020
        %v6411 = vunpack.c.l.b16 %v6021
        %v6412 = vunpack.c.h.b16 %v6021
        %v6413 = vunpack.c.l.b16 %v6022
        %v6414 = vunpack.c.h.b16 %v6022
        %v6415 = vunpack.c.l.b16 %v6023
        %v6416 = vunpack.c.h.b16 %v6023
        %v6417 = vunpack.c.l.b16 %v6024
        %v6418 = vunpack.c.h.b16 %v6024
        %v6419 = vunpack.c.l.b16 %v6025
        %v6420 = vunpack.c.h.b16 %v6025
        %v6421 = vunpack.c.l.b16 %v6026
        %v6422 = vunpack.c.h.b16 %v6026
        %v6423 = vunpack.c.l.b16 %v6027
        %v6424 = vunpack.c.h.b16 %v6027
        %v6425 = vunpack.c.l.b16 %v6028
        %v6426 = vunpack.c.h.b16 %v6028
        %v6427 = vunpack.c.l.b16 %v6029
        %v6428 = vunpack.c.h.b16 %v6029
        %v6429 = vunpack.c.l.b16 %v6030
        %v6430 = vunpack.c.h.b16 %v6030
        %v6431 = vunpack.c.l.b16 %v6031
        %v6432 = vunpack.c.h.b16 %v6031
        %v6433 = vunpack.c.l.b16 %v6032
        %v6434 = vunpack.c.h.b16 %v6032
        %v6435 = vunpack.c.l.b16 %v6033
        %v6436 = vunpack.c.h.b16 %v6033
        %v6437 = vunpack.c.l.b16 %v6034
        %v6438 = vunpack.c.h.b16 %v6034
        %v6439 = vunpack.c.l.b16 %v6035
        %v6440 = vunpack.c.h.b16 %v6035
        %v6441 = vunpack.c.l.b16 %v6036
        %v6442 = vunpack.c.h.b16 %v6036
        %v6443 = vpack.c.b16 %v6191, %v6187
        %v6444 = vpack.c.b16 %v6192, %v6188
        %v6445 = vpack.c.b16 %v6193, %v6189
        %v6446 = vpack.c.b16 %v6194, %v6190
        %v6447 = vpack.c.b16 %v6199, %v6195
        %v6448 = vpack.c.b16 %v6200, %v6196
        %v6449 = vpack.c.b16 %v6201, %v6197
        %v6450 = vpack.c.b16 %v6202, %v6198
        %v6451 = vpack.c.b16 %v6207, %v6203
        %v6452 = vpack.c.b16 %v6208, %v6204
        %v6453 = vpack.c.b16 %v6209, %v6205
        %v6454 = vpack.c.b16 %v6210, %v6206
        %v6455 = vpack.c.b16 %v6215, %v6211
        %v6456 = vpack.c.b16 %v6216, %v6212
        %v6457 = vpack.c.b16 %v6217, %v6213
        %v6458 = vpack.c.b16 %v6218, %v6214
        %v6459 = vpack.c.b16 %v6223, %v6219
        %v6460 = vpack.c.b16 %v6224, %v6220
        %v6461 = vpack.c.b16 %v6225, %v6221
        %v6462 = vpack.c.b16 %v6226, %v6222
        %v6463 = vpack.c.b16 %v6231, %v6227
        %v6464 = vpack.c.b16 %v6232, %v6228
        %v6465 = vpack.c.b16 %v6233, %v6229
        %v6466 = vpack.c.b16 %v6234, %v6230
        %v6467 = vpack.c.b16 %v6239, %v6235
        %v6468 = vpack.c.b16 %v6240, %v6236
        %v6469 = vpack.c.b16 %v6241, %v6237
        %v6470 = vpack.c.b16 %v6242, %v6238
        %v6471 = vpack.c.b16 %v6247, %v6243
        %v6472 = vpack.c.b16 %v6248, %v6244
        %v6473 = vpack.c.b16 %v6249, %v6245
        %v6474 = vpack.c.b16 %v6250, %v6246
        %v6475 = vpack.c.b16 %v6255, %v6251
        %v6476 = vpack.c.b16 %v6256, %v6252
        %v6477 = vpack.c.b16 %v6257, %v6253
        %v6478 = vpack.c.b16 %v6258, %v6254
        %v6479 = vpack.c.b16 %v6263, %v6259
        %v6480 = vpack.c.b16 %v6264, %v6260
        %v6481 = vpack.c.b16 %v6265, %v6261
        %v6482 = vpack.c.b16 %v6266, %v6262
        %v6483 = vpack.c.b16 %v6271, %v6267
        %v6484 = vpack.c.b16 %v6272, %v6268
        %v6485 = vpack.c.b16 %v6273, %v6269
        %v6486 = vpack.c.b16 %v6274, %v6270
        %v6487 = vpack.c.b16 %v6279, %v6275
        %v6488 = vpack.c.b16 %v6280, %v6276
        %v6489 = vpack.c.b16 %v6281, %v6277
        %v6490 = vpack.c.b16 %v6282, %v6278
        %v6491 = vpack.c.b16 %v6287, %v6283
        %v6492 = vpack.c.b16 %v6288, %v6284
        %v6493 = vpack.c.b16 %v6289, %v6285
        %v6494 = vpack.c.b16 %v6290, %v6286
        %v6495 = vpack.c.b16 %v6295, %v6291
        %v6496 = vpack.c.b16 %v6296, %v6292
        %v6497 = vpack.c.b16 %v6297, %v6293
        %v6498 = vpack.c.b16 %v6298, %v6294
        %v6499 = vpack.c.b16 %v6303, %v6299
        %v6500 = vpack.c.b16 %v6304, %v6300
        %v6501 = vpack.c.b16 %v6305, %v6301
        %v6502 = vpack.c.b16 %v6306, %v6302
        %v6503 = vpack.c.b16 %v6311, %v6307
        %v6504 = vpack.c.b16 %v6312, %v6308
        %v6505 = vpack.c.b16 %v6313, %v6309
        %v6506 = vpack.c.b16 %v6314, %v6310
        %v6507 = vpack.c.b16 %v6319, %v6315
        %v6508 = vpack.c.b16 %v6320, %v6316
        %v6509 = vpack.c.b16 %v6321, %v6317
        %v6510 = vpack.c.b16 %v6322, %v6318
        %v6511 = vpack.c.b16 %v6327, %v6323
        %v6512 = vpack.c.b16 %v6328, %v6324
        %v6513 = vpack.c.b16 %v6329, %v6325
        %v6514 = vpack.c.b16 %v6330, %v6326
        %v6515 = vpack.c.b16 %v6335, %v6331
        %v6516 = vpack.c.b16 %v6336, %v6332
        %v6517 = vpack.c.b16 %v6337, %v6333
        %v6518 = vpack.c.b16 %v6338, %v6334
        %v6519 = vpack.c.b16 %v6343, %v6339
        %v6520 = vpack.c.b16 %v6344, %v6340
        %v6521 = vpack.c.b16 %v6345, %v6341
        %v6522 = vpack.c.b16 %v6346, %v6342
        %v6523 = vpack.c.b16 %v6351, %v6347
        %v6524 = vpack.c.b16 %v6352, %v6348
        %v6525 = vpack.c.b16 %v6353, %v6349
        %v6526 = vpack.c.b16 %v6354, %v6350
        %v6527 = vpack.c.b16 %v6359, %v6355
        %v6528 = vpack.c.b16 %v6360, %v6356
        %v6529 = vpack.c.b16 %v6361, %v6357
        %v6530 = vpack.c.b16 %v6362, %v6358
        %v6531 = vpack.c.b16 %v6367, %v6363
        %v6532 = vpack.c.b16 %v6368, %v6364
        %v6533 = vpack.c.b16 %v6369, %v6365
        %v6534 = vpack.c.b16 %v6370, %v6366
        %v6535 = vpack.c.b16 %v6375, %v6371
        %v6536 = vpack.c.b16 %v6376, %v6372
        %v6537 = vpack.c.b16 %v6377, %v6373
        %v6538 = vpack.c.b16 %v6378, %v6374
        %v6539 = vpack.c.b16 %v6383, %v6379
        %v6540 = vpack.c.b16 %v6384, %v6380
        %v6541 = vpack.c.b16 %v6385, %v6381
        %v6542 = vpack.c.b16 %v6386, %v6382
        %v6543 = vpack.c.b16 %v6391, %v6387
        %v6544 = vpack.c.b16 %v6392, %v6388
        %v6545 = vpack.c.b16 %v6393, %v6389
        %v6546 = vpack.c.b16 %v6394, %v6390
        %v6547 = vpack.c.b16 %v6399, %v6395
        %v6548 = vpack.c.b16 %v6400, %v6396
        %v6549 = vpack.c.b16 %v6401, %v6397
        %v6550 = vpack.c.b16 %v6402, %v6398
        %v6551 = vpack.c.b16 %v6407, %v6403
        %v6552 = vpack.c.b16 %v6408, %v6404
        %v6553 = vpack.c.b16 %v6409, %v6405
        %v6554 = vpack.c.b16 %v6410, %v6406
        %v6555 = vpack.c.b16 %v6415, %v6411
        %v6556 = vpack.c.b16 %v6416, %v6412
        %v6557 = vpack.c.b16 %v6417, %v6413
        %v6558 = vpack.c.b16 %v6418, %v6414
        %v6559 = vpack.c.b16 %v6423, %v6419
        %v6560 = vpack.c.b16 %v6424, %v6420
        %v6561 = vpack.c.b16 %v6425, %v6421
        %v6562 = vpack.c.b16 %v6426, %v6422
        %v6563 = vpack.c.b16 %v6431, %v6427
        %v6564 = vpack.c.b16 %v6432, %v6428
        %v6565 = vpack.c.b16 %v6433, %v6429
        %v6566 = vpack.c.b16 %v6434, %v6430
        %v6567 = vpack.c.b16 %v6439, %v6435
        %v6568 = vpack.c.b16 %v6440, %v6436
        %v6569 = vpack.c.b16 %v6441, %v6437
        %v6570 = vpack.c.b16 %v6442, %v6438
        %6699 = vmatprep.subr.bf16.mxu0 %v6444
        %6700 = vmatpush1.bf16.msra.mxu0 %v6443
        %6701 = vmatprep.subr.bf16.mxu0 %v6448
        %6702 = vmatpush1.bf16.msra.mxu0 %v6447
        %6703 = vmatprep.subr.bf16.mxu0 %v6452
        %6704 = vmatpush1.bf16.msra.mxu0 %v6451
        %6705 = vmatprep.subr.bf16.mxu0 %v6456
        %6706 = vmatpush1.bf16.msra.mxu0 %v6455
        %6707 = vmatprep.subr.bf16.mxu0 %v6460
        %6708 = vmatpush1.bf16.msra.mxu0 %v6459
        %6709 = vmatprep.subr.bf16.mxu0 %v6464
        %6710 = vmatpush1.bf16.msra.mxu0 %v6463
        %6711 = vmatprep.subr.bf16.mxu0 %v6468
        %6712 = vmatpush1.bf16.msra.mxu0 %v6467
        %6713 = vmatprep.subr.bf16.mxu0 %v6472
        %6714 = vmatpush1.bf16.msra.mxu0 %v6471
        %6715 = vmatprep.subr.bf16.mxu0 %v6476
        %6716 = vmatpush1.bf16.msra.mxu0 %v6475
        %6717 = vmatprep.subr.bf16.mxu0 %v6480
        %6718 = vmatpush1.bf16.msra.mxu0 %v6479
        %6719 = vmatprep.subr.bf16.mxu0 %v6484
        %6720 = vmatpush1.bf16.msra.mxu0 %v6483
        %6721 = vmatprep.subr.bf16.mxu0 %v6488
        %6722 = vmatpush1.bf16.msra.mxu0 %v6487
        %6723 = vmatprep.subr.bf16.mxu0 %v6492
        %6724 = vmatpush1.bf16.msra.mxu0 %v6491
        %6725 = vmatprep.subr.bf16.mxu0 %v6496
        %6726 = vmatpush1.bf16.msra.mxu0 %v6495
        %6727 = vmatprep.subr.bf16.mxu0 %v6500
        %6728 = vmatpush1.bf16.msra.mxu0 %v6499
        %6729 = vmatprep.subr.bf16.mxu0 %v6504
        %6730 = vmatpush1.bf16.msra.mxu0 %v6503
        %6731 = vmatprep.mubr.bf16.mxu0 %v5893
        %6732 = vmatmul.mubr.bf16.gmra.mrb[0].mxu0 %v5251
        %v6733 = vpop.f32.mrb[0].mxu0
        %v6734 = vadd.f32 %v6042, %v6733
        %v6735 = vpop.f32.mrb[0].mxu0
        %v6736 = vadd.f32 %v6046, %v6735
        %v6737 = vpop.f32.mrb[0].mxu0
        %v6738 = vadd.f32 %v6042, %v6737
        %v6739 = vpop.f32.mrb[0].mxu0
        %v6740 = vadd.f32 %v6046, %v6739
        %6741 = vmatprep.mubr.bf16.mxu0 %v5894
        %6742 = vmatmul.mubr.bf16.gmra.mrb[0].mxu0 %v5252
        %v6743 = vpop.f32.mrb[0].mxu0
        %v6744 = vadd.f32 %v6042, %v6743
        %v6745 = vpop.f32.mrb[0].mxu0
        %v6746 = vadd.f32 %v6046, %v6745
        %v6747 = vpop.f32.mrb[0].mxu0
        %v6748 = vadd.f32 %v6042, %v6747
        %v6749 = vpop.f32.mrb[0].mxu0
        %v6750 = vadd.f32 %v6046, %v6749
        %6751 = vmatprep.mubr.bf16.mxu0 %v5895
        %6752 = vmatmul.mubr.bf16.gmra.mrb[0].mxu0 %v5253
        %v6753 = vpop.f32.mrb[0].mxu0
        %v6754 = vadd.f32 %v6042, %v6753
        %v6755 = vpop.f32.mrb[0].mxu0
        %v6756 = vadd.f32 %v6046, %v6755
        %v6757 = vpop.f32.mrb[0].mxu0
        %v6758 = vadd.f32 %v6042, %v6757
        %v6759 = vpop.f32.mrb[0].mxu0
        %v6760 = vadd.f32 %v6046, %v6759
        %6761 = vmatprep.mubr.bf16.mxu0 %v5896
        %6762 = vmatmul.mubr.bf16.gmra.mrb[0].mxu0 %v5254
        %v6763 = vpop.f32.mrb[0].mxu0
        %v6764 = vadd.f32 %v6042, %v6763
        %v6765 = vpop.f32.mrb[0].mxu0
        %v6766 = vadd.f32 %v6046, %v6765
        %v6767 = vpop.f32.mrb[0].mxu0
        %v6768 = vadd.f32 %v6042, %v6767
        %v6769 = vpop.f32.mrb[0].mxu0
        %v6770 = vadd.f32 %v6046, %v6769
        %6771 = vmatprep.mubr.bf16.mxu0 %v5897
        %6772 = vmatmul.mubr.bf16.gmra.mrb[0].mxu0 %v5255
        %v6773 = vpop.f32.mrb[0].mxu0
        %v6774 = vadd.f32 %v6042, %v6773
        %v6775 = vpop.f32.mrb[0].mxu0
        %v6776 = vadd.f32 %v6046, %v6775
        %v6777 = vpop.f32.mrb[0].mxu0
        %v6778 = vadd.f32 %v6042, %v6777
        %v6779 = vpop.f32.mrb[0].mxu0
        %v6780 = vadd.f32 %v6046, %v6779
        %6781 = vmatprep.mubr.bf16.mxu0 %v5898
        %6782 = vmatmul.mubr.bf16.gmra.mrb[0].mxu0 %v5256
        %v6783 = vpop.f32.mrb[0].mxu0
        %v6784 = vadd.f32 %v6042, %v6783
        %v6785 = vpop.f32.mrb[0].mxu0
        %v6786 = vadd.f32 %v6046, %v6785
        %v6787 = vpop.f32.mrb[0].mxu0
        %v6788 = vadd.f32 %v6042, %v6787
        %v6789 = vpop.f32.mrb[0].mxu0
        %v6790 = vadd.f32 %v6046, %v6789
        %6791 = vmatprep.mubr.bf16.mxu0 %v5899
        %6792 = vmatmul.mubr.bf16.gmra.mrb[0].mxu0 %v5257
        %v6793 = vpop.f32.mrb[0].mxu0
        %v6794 = vadd.f32 %v6042, %v6793
        %v6795 = vpop.f32.mrb[0].mxu0
        %v6796 = vadd.f32 %v6046, %v6795
        %v6797 = vpop.f32.mrb[0].mxu0
        %v6798 = vadd.f32 %v6042, %v6797
        %v6799 = vpop.f32.mrb[0].mxu0
        %v6800 = vadd.f32 %v6046, %v6799
        %6801 = vmatprep.mubr.bf16.mxu0 %v5900
        %6802 = vmatmul.mubr.bf16.gmra.mrb[0].mxu0 %v5258
        %v6803 = vpop.f32.mrb[0].mxu0
        %v6804 = vadd.f32 %v6042, %v6803
        %v6805 = vpop.f32.mrb[0].mxu0
        %v6806 = vadd.f32 %v6046, %v6805
        %v6807 = vpop.f32.mrb[0].mxu0
        %v6808 = vadd.f32 %v6042, %v6807
        %v6809 = vpop.f32.mrb[0].mxu0
        %v6810 = vadd.f32 %v6046, %v6809
        %6811 = vdwg.mxu0
        %6812 = vmatprep.subr.bf16.mxu0 %v6508
        %6813 = vmatpush1.bf16.msra.mxu0 %v6507
        %6814 = vmatprep.subr.bf16.mxu0 %v6512
        %6815 = vmatpush1.bf16.msra.mxu0 %v6511
        %6816 = vmatprep.subr.bf16.mxu0 %v6516
        %6817 = vmatpush1.bf16.msra.mxu0 %v6515
        %6818 = vmatprep.subr.bf16.mxu0 %v6520
        %6819 = vmatpush1.bf16.msra.mxu0 %v6519
        %6820 = vmatprep.subr.bf16.mxu0 %v6524
        %6821 = vmatpush1.bf16.msra.mxu0 %v6523
        %6822 = vmatprep.subr.bf16.mxu0 %v6528
        %6823 = vmatpush1.bf16.msra.mxu0 %v6527
        %6824 = vmatprep.subr.bf16.mxu0 %v6532
        %6825 = vmatpush1.bf16.msra.mxu0 %v6531
        %6826 = vmatprep.subr.bf16.mxu0 %v6536
        %6827 = vmatpush1.bf16.msra.mxu0 %v6535
        %6828 = vmatprep.subr.bf16.mxu0 %v6540
        %6829 = vmatpush1.bf16.msra.mxu0 %v6539
        %6830 = vmatprep.subr.bf16.mxu0 %v6544
        %6831 = vmatpush1.bf16.msra.mxu0 %v6543
        %6832 = vmatprep.subr.bf16.mxu0 %v6548
        %6833 = vmatpush1.bf16.msra.mxu0 %v6547
        %6834 = vmatprep.subr.bf16.mxu0 %v6552
        %6835 = vmatpush1.bf16.msra.mxu0 %v6551
        %6836 = vmatprep.subr.bf16.mxu0 %v6556
        %6837 = vmatpush1.bf16.msra.mxu0 %v6555
        %6838 = vmatprep.subr.bf16.mxu0 %v6560
        %6839 = vmatpush1.bf16.msra.mxu0 %v6559
        %6840 = vmatprep.subr.bf16.mxu0 %v6564
        %6841 = vmatpush1.bf16.msra.mxu0 %v6563
        %6842 = vmatprep.subr.bf16.mxu0 %v6568
        %6843 = vmatpush1.bf16.msra.mxu0 %v6567
        %6844 = vmatprep.mubr.bf16.mxu0 %v5901
        %6845 = vmatmul.mubr.bf16.gmra.mrb[0].mxu0 %v5259
        %v6846 = vpop.f32.mrb[0].mxu0
        %v6847 = vadd.f32 %v6734, %v6846
        %v6848 = vpop.f32.mrb[0].mxu0
        %v6849 = vadd.f32 %v6736, %v6848
        %v6850 = vpop.f32.mrb[0].mxu0
        %v6851 = vadd.f32 %v6738, %v6850
        %v6852 = vpop.f32.mrb[0].mxu0
        %v6853 = vadd.f32 %v6740, %v6852
        %6854 = vmatprep.mubr.bf16.mxu0 %v5902
        %6855 = vmatmul.mubr.bf16.gmra.mrb[0].mxu0 %v5260
        %v6856 = vpop.f32.mrb[0].mxu0
        %v6857 = vadd.f32 %v6744, %v6856
        %v6858 = vpop.f32.mrb[0].mxu0
        %v6859 = vadd.f32 %v6746, %v6858
        %v6860 = vpop.f32.mrb[0].mxu0
        %v6861 = vadd.f32 %v6748, %v6860
        %v6862 = vpop.f32.mrb[0].mxu0
        %v6863 = vadd.f32 %v6750, %v6862
        %6864 = vmatprep.mubr.bf16.mxu0 %v5903
        %6865 = vmatmul.mubr.bf16.gmra.mrb[0].mxu0 %v5261
        %v6866 = vpop.f32.mrb[0].mxu0
        %v6867 = vadd.f32 %v6754, %v6866
        %v6868 = vpop.f32.mrb[0].mxu0
        %v6869 = vadd.f32 %v6756, %v6868
        %v6870 = vpop.f32.mrb[0].mxu0
        %v6871 = vadd.f32 %v6758, %v6870
        %v6872 = vpop.f32.mrb[0].mxu0
        %v6873 = vadd.f32 %v6760, %v6872
        %6874 = vmatprep.mubr.bf16.mxu0 %v5904
        %6875 = vmatmul.mubr.bf16.gmra.mrb[0].mxu0 %v5262
        %v6876 = vpop.f32.mrb[0].mxu0
        %v6877 = vadd.f32 %v6764, %v6876
        %v6878 = vpop.f32.mrb[0].mxu0
        %v6879 = vadd.f32 %v6766, %v6878
        %v6880 = vpop.f32.mrb[0].mxu0
        %v6881 = vadd.f32 %v6768, %v6880
        %v6882 = vpop.f32.mrb[0].mxu0
        %v6883 = vadd.f32 %v6770, %v6882
        %6884 = vmatprep.mubr.bf16.mxu0 %v5905
        %6885 = vmatmul.mubr.bf16.gmra.mrb[0].mxu0 %v5263
        %v6886 = vpop.f32.mrb[0].mxu0
        %v6887 = vadd.f32 %v6774, %v6886
        %v6888 = vpop.f32.mrb[0].mxu0
        %v6889 = vadd.f32 %v6776, %v6888
        %v6890 = vpop.f32.mrb[0].mxu0
        %v6891 = vadd.f32 %v6778, %v6890
        %v6892 = vpop.f32.mrb[0].mxu0
        %v6893 = vadd.f32 %v6780, %v6892
        %6894 = vmatprep.mubr.bf16.mxu0 %v5906
        %6895 = vmatmul.mubr.bf16.gmra.mrb[0].mxu0 %v5264
        %v6896 = vpop.f32.mrb[0].mxu0
        %v6897 = vadd.f32 %v6784, %v6896
        %v6898 = vpop.f32.mrb[0].mxu0
        %v6899 = vadd.f32 %v6786, %v6898
        %v6900 = vpop.f32.mrb[0].mxu0
        %v6901 = vadd.f32 %v6788, %v6900
        %v6902 = vpop.f32.mrb[0].mxu0
        %v6903 = vadd.f32 %v6790, %v6902
        %6904 = vmatprep.mubr.bf16.mxu0 %v5907
        %6905 = vmatmul.mubr.bf16.gmra.mrb[0].mxu0 %v5265
        %v6906 = vpop.f32.mrb[0].mxu0
        %v6907 = vadd.f32 %v6794, %v6906
        %v6908 = vpop.f32.mrb[0].mxu0
        %v6909 = vadd.f32 %v6796, %v6908
        %v6910 = vpop.f32.mrb[0].mxu0
        %v6911 = vadd.f32 %v6798, %v6910
        %v6912 = vpop.f32.mrb[0].mxu0
        %v6913 = vadd.f32 %v6800, %v6912
        %6914 = vmatprep.mubr.bf16.mxu0 %v5908
        %6915 = vmatmul.mubr.bf16.gmra.mrb[0].mxu0 %v5266
        %v6916 = vpop.f32.mrb[0].mxu0
        %v6917 = vadd.f32 %v6804, %v6916
        %v6918 = vpop.f32.mrb[0].mxu0
        %v6919 = vadd.f32 %v6806, %v6918
        %v6920 = vpop.f32.mrb[0].mxu0
        %v6921 = vadd.f32 %v6808, %v6920
        %v6922 = vpop.f32.mrb[0].mxu0
        %v6923 = vadd.f32 %v6810, %v6922
        %6924 = vdwg.mxu0
        %6925 = vmatprep.subr.bf16.mxu0 %v6446
        %6926 = vmatpush1.bf16.msra.mxu0 %v6445
        %6927 = vmatprep.subr.bf16.mxu0 %v6450
        %6928 = vmatpush1.bf16.msra.mxu0 %v6449
        %6929 = vmatprep.subr.bf16.mxu0 %v6454
        %6930 = vmatpush1.bf16.msra.mxu0 %v6453
        %6931 = vmatprep.subr.bf16.mxu0 %v6458
        %6932 = vmatpush1.bf16.msra.mxu0 %v6457
        %6933 = vmatprep.subr.bf16.mxu0 %v6462
        %6934 = vmatpush1.bf16.msra.mxu0 %v6461
        %6935 = vmatprep.subr.bf16.mxu0 %v6466
        %6936 = vmatpush1.bf16.msra.mxu0 %v6465
        %6937 = vmatprep.subr.bf16.mxu0 %v6470
        %6938 = vmatpush1.bf16.msra.mxu0 %v6469
        %6939 = vmatprep.subr.bf16.mxu0 %v6474
        %6940 = vmatpush1.bf16.msra.mxu0 %v6473
        %6941 = vmatprep.subr.bf16.mxu0 %v6478
        %6942 = vmatpush1.bf16.msra.mxu0 %v6477
        %6943 = vmatprep.subr.bf16.mxu0 %v6482
        %6944 = vmatpush1.bf16.msra.mxu0 %v6481
        %6945 = vmatprep.subr.bf16.mxu0 %v6486
        %6946 = vmatpush1.bf16.msra.mxu0 %v6485
        %6947 = vmatprep.subr.bf16.mxu0 %v6490
        %6948 = vmatpush1.bf16.msra.mxu0 %v6489
        %6949 = vmatprep.subr.bf16.mxu0 %v6494
        %6950 = vmatpush1.bf16.msra.mxu0 %v6493
        %6951 = vmatprep.subr.bf16.mxu0 %v6498
        %6952 = vmatpush1.bf16.msra.mxu0 %v6497
        %6953 = vmatprep.subr.bf16.mxu0 %v6502
        %6954 = vmatpush1.bf16.msra.mxu0 %v6501
        %6955 = vmatprep.subr.bf16.mxu0 %v6506
        %6956 = vmatpush1.bf16.msra.mxu0 %v6505
        %6957 = vmatprep.mubr.bf16.mxu0 %v5893
        %6958 = vmatmul.mubr.bf16.gmra.mrb[0].mxu0 %v5251
        %v6959 = vpop.f32.mrb[0].mxu0
        %v6960 = vadd.f32 %v6050, %v6959
        %v6961 = vpop.f32.mrb[0].mxu0
        %v6962 = vadd.f32 %v6054, %v6961
        %v6963 = vpop.f32.mrb[0].mxu0
        %v6964 = vadd.f32 %v6050, %v6963
        %v6965 = vpop.f32.mrb[0].mxu0
        %v6966 = vadd.f32 %v6054, %v6965
        %6967 = vmatprep.mubr.bf16.mxu0 %v5894
        %6968 = vmatmul.mubr.bf16.gmra.mrb[0].mxu0 %v5252
        %v6969 = vpop.f32.mrb[0].mxu0
        %v6970 = vadd.f32 %v6050, %v6969
        %v6971 = vpop.f32.mrb[0].mxu0
        %v6972 = vadd.f32 %v6054, %v6971
        %v6973 = vpop.f32.mrb[0].mxu0
        %v6974 = vadd.f32 %v6050, %v6973
        %v6975 = vpop.f32.mrb[0].mxu0
        %v6976 = vadd.f32 %v6054, %v6975
        %6977 = vmatprep.mubr.bf16.mxu0 %v5895
        %6978 = vmatmul.mubr.bf16.gmra.mrb[0].mxu0 %v5253
        %v6979 = vpop.f32.mrb[0].mxu0
        %v6980 = vadd.f32 %v6050, %v6979
        %v6981 = vpop.f32.mrb[0].mxu0
        %v6982 = vadd.f32 %v6054, %v6981
        %v6983 = vpop.f32.mrb[0].mxu0
        %v6984 = vadd.f32 %v6050, %v6983
        %v6985 = vpop.f32.mrb[0].mxu0
        %v6986 = vadd.f32 %v6054, %v6985
        %6987 = vmatprep.mubr.bf16.mxu0 %v5896
        %6988 = vmatmul.mubr.bf16.gmra.mrb[0].mxu0 %v5254
        %v6989 = vpop.f32.mrb[0].mxu0
        %v6990 = vadd.f32 %v6050, %v6989
        %v6991 = vpop.f32.mrb[0].mxu0
        %v6992 = vadd.f32 %v6054, %v6991
        %v6993 = vpop.f32.mrb[0].mxu0
        %v6994 = vadd.f32 %v6050, %v6993
        %v6995 = vpop.f32.mrb[0].mxu0
        %v6996 = vadd.f32 %v6054, %v6995
        %6997 = vmatprep.mubr.bf16.mxu0 %v5897
        %6998 = vmatmul.mubr.bf16.gmra.mrb[0].mxu0 %v5255
        %v6999 = vpop.f32.mrb[0].mxu0
        %v7000 = vadd.f32 %v6050, %v6999
        %v7001 = vpop.f32.mrb[0].mxu0
        %v7002 = vadd.f32 %v6054, %v7001
        %v7003 = vpop.f32.mrb[0].mxu0
        %v7004 = vadd.f32 %v6050, %v7003
        %v7005 = vpop.f32.mrb[0].mxu0
        %v7006 = vadd.f32 %v6054, %v7005
        %7007 = vmatprep.mubr.bf16.mxu0 %v5898
        %7008 = vmatmul.mubr.bf16.gmra.mrb[0].mxu0 %v5256
        %v7009 = vpop.f32.mrb[0].mxu0
        %v7010 = vadd.f32 %v6050, %v7009
        %v7011 = vpop.f32.mrb[0].mxu0
        %v7012 = vadd.f32 %v6054, %v7011
        %v7013 = vpop.f32.mrb[0].mxu0
        %v7014 = vadd.f32 %v6050, %v7013
        %v7015 = vpop.f32.mrb[0].mxu0
        %v7016 = vadd.f32 %v6054, %v7015
        %7017 = vmatprep.mubr.bf16.mxu0 %v5899
        %7018 = vmatmul.mubr.bf16.gmra.mrb[0].mxu0 %v5257
        %v7019 = vpop.f32.mrb[0].mxu0
        %v7020 = vadd.f32 %v6050, %v7019
        %v7021 = vpop.f32.mrb[0].mxu0
        %v7022 = vadd.f32 %v6054, %v7021
        %v7023 = vpop.f32.mrb[0].mxu0
        %v7024 = vadd.f32 %v6050, %v7023
        %v7025 = vpop.f32.mrb[0].mxu0
        %v7026 = vadd.f32 %v6054, %v7025
        %7027 = vmatprep.mubr.bf16.mxu0 %v5900
        %7028 = vmatmul.mubr.bf16.gmra.mrb[0].mxu0 %v5258
        %v7029 = vpop.f32.mrb[0].mxu0
        %v7030 = vadd.f32 %v6050, %v7029
        %v7031 = vpop.f32.mrb[0].mxu0
        %v7032 = vadd.f32 %v6054, %v7031
        %v7033 = vpop.f32.mrb[0].mxu0
        %v7034 = vadd.f32 %v6050, %v7033
        %v7035 = vpop.f32.mrb[0].mxu0
        %v7036 = vadd.f32 %v6054, %v7035
        %7037 = vdwg.mxu0
        %7038 = vmatprep.subr.bf16.mxu0 %v6510
        %7039 = vmatpush1.bf16.msra.mxu0 %v6509
        %7040 = vmatprep.subr.bf16.mxu0 %v6514
        %7041 = vmatpush1.bf16.msra.mxu0 %v6513
        %7042 = vmatprep.subr.bf16.mxu0 %v6518
        %7043 = vmatpush1.bf16.msra.mxu0 %v6517
        %7044 = vmatprep.subr.bf16.mxu0 %v6522
        %7045 = vmatpush1.bf16.msra.mxu0 %v6521
        %7046 = vmatprep.subr.bf16.mxu0 %v6526
        %7047 = vmatpush1.bf16.msra.mxu0 %v6525
        %7048 = vmatprep.subr.bf16.mxu0 %v6530
        %7049 = vmatpush1.bf16.msra.mxu0 %v6529
        %7050 = vmatprep.subr.bf16.mxu0 %v6534
        %7051 = vmatpush1.bf16.msra.mxu0 %v6533
        %7052 = vmatprep.subr.bf16.mxu0 %v6538
        %7053 = vmatpush1.bf16.msra.mxu0 %v6537
        %7054 = vmatprep.subr.bf16.mxu0 %v6542
        %7055 = vmatpush1.bf16.msra.mxu0 %v6541
        %7056 = vmatprep.subr.bf16.mxu0 %v6546
        %7057 = vmatpush1.bf16.msra.mxu0 %v6545
        %7058 = vmatprep.subr.bf16.mxu0 %v6550
        %7059 = vmatpush1.bf16.msra.mxu0 %v6549
        %7060 = vmatprep.subr.bf16.mxu0 %v6554
        %7061 = vmatpush1.bf16.msra.mxu0 %v6553
        %7062 = vmatprep.subr.bf16.mxu0 %v6558
        %7063 = vmatpush1.bf16.msra.mxu0 %v6557
        %7064 = vmatprep.subr.bf16.mxu0 %v6562
        %7065 = vmatpush1.bf16.msra.mxu0 %v6561
        %7066 = vmatprep.subr.bf16.mxu0 %v6566
        %7067 = vmatpush1.bf16.msra.mxu0 %v6565
        %7068 = vmatprep.subr.bf16.mxu0 %v6570
        %7069 = vmatpush1.bf16.msra.mxu0 %v6569
        %7070 = vmatprep.mubr.bf16.mxu0 %v5901
        %7071 = vmatmul.mubr.bf16.gmra.mrb[0].mxu0 %v5259
        %v7072 = vpop.f32.mrb[0].mxu0
        %v7073 = vadd.f32 %v6960, %v7072
        %v7074 = vpop.f32.mrb[0].mxu0
        %v7075 = vadd.f32 %v6962, %v7074
        %v7076 = vpop.f32.mrb[0].mxu0
        %v7077 = vadd.f32 %v6964, %v7076
        %v7078 = vpop.f32.mrb[0].mxu0
        %v7079 = vadd.f32 %v6966, %v7078
        %7080 = vmatprep.mubr.bf16.mxu0 %v5902
        %7081 = vmatmul.mubr.bf16.gmra.mrb[0].mxu0 %v5260
        %v7082 = vpop.f32.mrb[0].mxu0
        %v7083 = vadd.f32 %v6970, %v7082
        %v7084 = vpop.f32.mrb[0].mxu0
        %v7085 = vadd.f32 %v6972, %v7084
        %v7086 = vpop.f32.mrb[0].mxu0
        %v7087 = vadd.f32 %v6974, %v7086
        %v7088 = vpop.f32.mrb[0].mxu0
        %v7089 = vadd.f32 %v6976, %v7088
        %7090 = vmatprep.mubr.bf16.mxu0 %v5903
        %7091 = vmatmul.mubr.bf16.gmra.mrb[0].mxu0 %v5261
        %v7092 = vpop.f32.mrb[0].mxu0
        %v7093 = vadd.f32 %v6980, %v7092
        %v7094 = vpop.f32.mrb[0].mxu0
        %v7095 = vadd.f32 %v6982, %v7094
        %v7096 = vpop.f32.mrb[0].mxu0
        %v7097 = vadd.f32 %v6984, %v7096
        %v7098 = vpop.f32.mrb[0].mxu0
        %v7099 = vadd.f32 %v6986, %v7098
        %7100 = vmatprep.mubr.bf16.mxu0 %v5904
        %7101 = vmatmul.mubr.bf16.gmra.mrb[0].mxu0 %v5262
        %v7102 = vpop.f32.mrb[0].mxu0
        %v7103 = vadd.f32 %v6990, %v7102
        %v7104 = vpop.f32.mrb[0].mxu0
        %v7105 = vadd.f32 %v6992, %v7104
        %v7106 = vpop.f32.mrb[0].mxu0
        %v7107 = vadd.f32 %v6994, %v7106
        %v7108 = vpop.f32.mrb[0].mxu0
        %v7109 = vadd.f32 %v6996, %v7108
        %7110 = vmatprep.mubr.bf16.mxu0 %v5905
        %7111 = vmatmul.mubr.bf16.gmra.mrb[0].mxu0 %v5263
        %v7112 = vpop.f32.mrb[0].mxu0
        %v7113 = vadd.f32 %v7000, %v7112
        %v7114 = vpop.f32.mrb[0].mxu0
        %v7115 = vadd.f32 %v7002, %v7114
        %v7116 = vpop.f32.mrb[0].mxu0
        %v7117 = vadd.f32 %v7004, %v7116
        %v7118 = vpop.f32.mrb[0].mxu0
        %v7119 = vadd.f32 %v7006, %v7118
        %7120 = vmatprep.mubr.bf16.mxu0 %v5906
        %7121 = vmatmul.mubr.bf16.gmra.mrb[0].mxu0 %v5264
        %v7122 = vpop.f32.mrb[0].mxu0
        %v7123 = vadd.f32 %v7010, %v7122
        %v7124 = vpop.f32.mrb[0].mxu0
        %v7125 = vadd.f32 %v7012, %v7124
        %v7126 = vpop.f32.mrb[0].mxu0
        %v7127 = vadd.f32 %v7014, %v7126
        %v7128 = vpop.f32.mrb[0].mxu0
        %v7129 = vadd.f32 %v7016, %v7128
        %7130 = vmatprep.mubr.bf16.mxu0 %v5907
        %7131 = vmatmul.mubr.bf16.gmra.mrb[0].mxu0 %v5265
        %v7132 = vpop.f32.mrb[0].mxu0
        %v7133 = vadd.f32 %v7020, %v7132
        %v7134 = vpop.f32.mrb[0].mxu0
        %v7135 = vadd.f32 %v7022, %v7134
        %v7136 = vpop.f32.mrb[0].mxu0
        %v7137 = vadd.f32 %v7024, %v7136
        %v7138 = vpop.f32.mrb[0].mxu0
        %v7139 = vadd.f32 %v7026, %v7138
        %7140 = vmatprep.mubr.bf16.mxu0 %v5908
        %7141 = vmatmul.mubr.bf16.gmra.mrb[0].mxu0 %v5266
        %v7142 = vpop.f32.mrb[0].mxu0
        %v7143 = vadd.f32 %v7030, %v7142
        %v7144 = vpop.f32.mrb[0].mxu0
        %v7145 = vadd.f32 %v7032, %v7144
        %v7146 = vpop.f32.mrb[0].mxu0
        %v7147 = vadd.f32 %v7034, %v7146
        %v7148 = vpop.f32.mrb[0].mxu0
        %v7149 = vadd.f32 %v7036, %v7148
        %7150 = vdwg.mxu0
        %7151 = vst [vmem:[%s408] sm:$0xff] %v6847
        %7152 = vst [vmem:[%s408 + $0x8] sm:$0xff] %v6849
        %7153 = vst [vmem:[%s408 + $0x10] sm:$0xff] %v7073
        %7154 = vst [vmem:[%s408 + $0x18] sm:$0xff] %v7075
        %7155 = vst [vmem:[%s408 + $0x20] sm:$0xff] %v6851
        %7156 = vst [vmem:[%s408 + $0x28] sm:$0xff] %v6853
        %7157 = vst [vmem:[%s408 + $0x30] sm:$0xff] %v7077
        %7158 = vst [vmem:[%s408 + $0x38] sm:$0xff] %v7079
        %7159 = vst [vmem:[%s408 + $0x40] sm:$0xff] %v6857
        %7160 = vst [vmem:[%s408 + $0x48] sm:$0xff] %v6859
        %7161 = vst [vmem:[%s408 + $0x50] sm:$0xff] %v7083
        %7162 = vst [vmem:[%s408 + $0x58] sm:$0xff] %v7085
        %7163 = vst [vmem:[%s408 + $0x60] sm:$0xff] %v6861
        %7164 = vst [vmem:[%s408 + $0x68] sm:$0xff] %v6863
        %7165 = vst [vmem:[%s408 + $0x70] sm:$0xff] %v7087
        %7166 = vst [vmem:[%s408 + $0x78] sm:$0xff] %v7089
        %7167 = vst [vmem:[%s408 + $0x80] sm:$0xff] %v6867
        %7168 = vst [vmem:[%s408 + $0x88] sm:$0xff] %v6869
        %7169 = vst [vmem:[%s408 + $0x90] sm:$0xff] %v7093
        %7170 = vst [vmem:[%s408 + $0x98] sm:$0xff] %v7095
        %7171 = vst [vmem:[%s408 + $0xa0] sm:$0xff] %v6871
        %7172 = vst [vmem:[%s408 + $0xa8] sm:$0xff] %v6873
        %7173 = vst [vmem:[%s408 + $0xb0] sm:$0xff] %v7097
        %7174 = vst [vmem:[%s408 + $0xb8] sm:$0xff] %v7099
        %7175 = vst [vmem:[%s408 + $0xc0] sm:$0xff] %v6877
        %7176 = vst [vmem:[%s408 + $0xc8] sm:$0xff] %v6879
        %7177 = vst [vmem:[%s408 + $0xd0] sm:$0xff] %v7103
        %7178 = vst [vmem:[%s408 + $0xd8] sm:$0xff] %v7105
        %7179 = vst [vmem:[%s408 + $0xe0] sm:$0xff] %v6881
        %7180 = vst [vmem:[%s408 + $0xe8] sm:$0xff] %v6883
        %7181 = vst [vmem:[%s408 + $0xf0] sm:$0xff] %v7107
        %7182 = vst [vmem:[%s408 + $0xf8] sm:$0xff] %v7109
        %7183 = vst [vmem:[%s408 + $0x100] sm:$0xff] %v6887
        %7184 = vst [vmem:[%s408 + $0x108] sm:$0xff] %v6889
        %7185 = vst [vmem:[%s408 + $0x110] sm:$0xff] %v7113
        %7186 = vst [vmem:[%s408 + $0x118] sm:$0xff] %v7115
        %7187 = vst [vmem:[%s408 + $0x120] sm:$0xff] %v6891
        %7188 = vst [vmem:[%s408 + $0x128] sm:$0xff] %v6893
        %7189 = vst [vmem:[%s408 + $0x130] sm:$0xff] %v7117
        %7190 = vst [vmem:[%s408 + $0x138] sm:$0xff] %v7119
        %7191 = vst [vmem:[%s408 + $0x140] sm:$0xff] %v6897
        %7192 = vst [vmem:[%s408 + $0x148] sm:$0xff] %v6899
        %7193 = vst [vmem:[%s408 + $0x150] sm:$0xff] %v7123
        %7194 = vst [vmem:[%s408 + $0x158] sm:$0xff] %v7125
        %7195 = vst [vmem:[%s408 + $0x160] sm:$0xff] %v6901
        %7196 = vst [vmem:[%s408 + $0x168] sm:$0xff] %v6903
        %7197 = vst [vmem:[%s408 + $0x170] sm:$0xff] %v7127
        %7198 = vst [vmem:[%s408 + $0x178] sm:$0xff] %v7129
        %7199 = vst [vmem:[%s408 + $0x180] sm:$0xff] %v6907
        %7200 = vst [vmem:[%s408 + $0x188] sm:$0xff] %v6909
        %7201 = vst [vmem:[%s408 + $0x190] sm:$0xff] %v7133
        %7202 = vst [vmem:[%s408 + $0x198] sm:$0xff] %v7135
        %7203 = vst [vmem:[%s408 + $0x1a0] sm:$0xff] %v6911
        %7204 = vst [vmem:[%s408 + $0x1a8] sm:$0xff] %v6913
        %7205 = vst [vmem:[%s408 + $0x1b0] sm:$0xff] %v7137
        %7206 = vst [vmem:[%s408 + $0x1b8] sm:$0xff] %v7139
        %7207 = vst [vmem:[%s408 + $0x1c0] sm:$0xff] %v6917
        %7208 = vst [vmem:[%s408 + $0x1c8] sm:$0xff] %v6919
        %7209 = vst [vmem:[%s408 + $0x1d0] sm:$0xff] %v7143
        %7210 = vst [vmem:[%s408 + $0x1d8] sm:$0xff] %v7145
        %7211 = vst [vmem:[%s408 + $0x1e0] sm:$0xff] %v6921
        %7212 = vst [vmem:[%s408 + $0x1e8] sm:$0xff] %v6923
        %7213 = vst [vmem:[%s408 + $0x1f0] sm:$0xff] %v7147
        %7214 = vst [vmem:[%s408 + $0x1f8] sm:$0xff] %v7149
        %s7215 = sand.u32 %s209, 1
        %s7216 = scalar_lea.sflag [#allocation4], %s7215
        %s7217 = sand.u32 %s209, 1
        %s7218 = smul.addr %s7217, 512
        %s7219 = scalar_lea.vmem [#allocation14], %s7218
        // Predicated region
        $region81: #{tpu_custom_call.1} parent=51 // pred_check
          %p7220 = pneg %p219
        $region82: #{tpu_custom_call.1} parent=51 // pred_check_branch
          %7222 = sbr.rel (%p7220) target = $region84
        $region83: #{tpu_custom_call.1} parent=51 // pred_region
          %s7224 = ssub.s32 8192, 8192
          %7225 = vsyncadd %s7216, %s7224
          %s7226 = smul.addr %s28, 64
          %s7227 = smul.addr %s7226, 128
          %s7228 = scalar_lea.hbm %s8, %s7227
          %s7229 = sshll.u32 %s7219, 4
          %s7230 = int_to_ptr.vmem [resolvable:$true] %s7229
          %7235 = dma.vmem_to_hbm [thread:$0]  %s7230, 8192, %s7228, %s7216, 512, 512, 32
        $region84: #{tpu_custom_call.1} parent=51 // pred_fallthru
          _
      $region52: #{tpu_custom_call.1} parent=5 // pred_fallthru
        _
      %p7236 = scmp.le.s32.totalorder 2, %s23
      // Predicated region
      $region85: #{tpu_custom_call.1} parent=5 // pred_check
        %p7237 = pneg %p7236
      $region86: #{tpu_custom_call.1} parent=5 // pred_check_branch
        %7239 = sbr.rel (%p7237) target = $region88
      $region87: #{tpu_custom_call.1} parent=5 // pred_region
        %s7240 = ssub.s32 %s23, 2
        // Predicated region
        $region89: #{tpu_custom_call.1} parent=87 // pred_check
          %p7241 = pneg %p225
        $region90: #{tpu_custom_call.1} parent=87 // pred_check_branch
          %7243 = sbr.rel (%p7241) target = $region92
        $region91: #{tpu_custom_call.1} parent=87 // pred_region
          %s7244 = sand.u32 %s210, 1
          %s7245 = scalar_lea.sflag [#allocation4], %s7244
          %s7246 = sand.u32 %s210, 1
          %s7247 = smul.addr %s7246, 512
          %s7248 = scalar_lea.vmem [#allocation14], %s7247
          %7249 = dma.done %s7245, 8192
        $region92: #{tpu_custom_call.1} parent=87 // pred_fallthru
          _
      $region88: #{tpu_custom_call.1} parent=5 // pred_fallthru
        _
    $region6: #{tpu_custom_call.1} parent=1 // loop_footer
      %s27 = sadd.s32 1, %s23
    $region7: #{tpu_custom_call.1} parent=1 // loop_footer_branch
      %22 = sbr.rel target = $region3
    $region8: #{tpu_custom_call.1} parent=1 // loop_exit
      _
    %7250 = vsyncpa [#allocation3], 1
    %s7251 = scalar_lea.sflag [#allocation3], 1
    %7252 = vsyncpa %s7251, 1
    %7253 = vsyncpa [#allocation6], 1
    %7254 = vsyncpa [#allocation9], 1
    %7255 = vsyncpa [#allocation12], 1
    %7256 = vsyncpa [#allocation4], 1
    %s7257 = scalar_lea.sflag [#allocation4], 1
    %7258 = vsyncpa %s7257, 1

</llo_original>
